<compile_context>
chip_gen: v5e
topology: v5e:2x2
jax: 0.10.0
libtpu: 0.0.40
codegen_flags: <defaults>
</compile_context>

<pallas_src>
import numpy as np
import jax
import jax.numpy as jnp
from jax.experimental import pallas as pl
from jax.experimental.pallas import tpu as pltpu

INPUT_DIM = 276      # 92 bond lengths + 92 bond angles + 92 dihedrals
LATENT_DIM = 2
HIDDEN_DIM = 50      # MDN hidden width
DEC_WIDTH = 500
COV_SCALE = 0.8
N_PI = 828           # 276 * 3
N_MU = 552           # 184 * 3
N_LOC = 276          # 92 * 3

# Fused head layout (kernel-internal, pi pre-permuted to component-major):
#   [ pi (828) | mu (552) | sigma (552) | loc (276) | conc (276) ]
OFF_MU = N_PI                        # 828
OFF_SG = N_PI + N_MU                 # 1380
OFF_LC = N_PI + 2 * N_MU             # 1932
OFF_CC = N_PI + 2 * N_MU + N_LOC     # 2208
N_HEAD = N_PI + 2 * N_MU + 2 * N_LOC  # 2484


def _sigmoid(x):
    # Single EUP op (tanh) instead of exp + divide; mathematically exact.
    return 0.5 * (1.0 + jnp.tanh(0.5 * x))


def _softplus(x):
    # Overflow-safe softplus (matches nn.Softplus within tolerance).
    return jnp.maximum(x, 0.0) + jnp.log(1.0 + jnp.exp(-jnp.abs(x)))


def autoencoder_kernel(
    x_ref,
    ew1, eb1, ew2, eb2, ew3, eb3, ew6, eb6,          # Encoder
    dw1, db1, dw2, db2, dw3, db3,                    # Decoder trunk
    mwf, mbf, whead, bhead,                          # MDN fc1 + fused heads
    latent_ref, heads_ref,
):
    out_dt = heads_ref.dtype

    def lin(h, w_ref, b_ref):
        # bf16 LHS & bf16 weights on the MXU, f32 accumulation; bias stays f32.
        return jnp.dot(h.astype(jnp.bfloat16), w_ref[...],
                       preferred_element_type=jnp.float32) + b_ref[...]

    x = x_ref[...]                       # already bf16 (cast in the wrapper)

    # ---------------- Encoder ----------------
    h = jnp.tanh(lin(x, ew1, eb1))
    h = jnp.tanh(lin(h, ew2, eb2))
    h = jnp.tanh(lin(h, ew3, eb3))
    z = lin(h, ew6, eb6)                 # latent_states, (Bt, 2), f32
    latent_ref[...] = z

    # ---------------- Decoder trunk ----------------
    # fc1 has K=2: VPU outer product instead of a 98%-padded MXU contraction.
    w1 = dw1[...]                        # (2, 500) f32
    d = jnp.tanh(z[:, 0:1] * w1[0:1, :] + z[:, 1:2] * w1[1:2, :] + db1[...])
    d = jnp.tanh(lin(d, dw2, db2))
    d = jnp.tanh(lin(d, dw3, db3))

    # ---------------- MDN ----------------
    fc = _sigmoid(lin(d, mwf, mbf))      # (Bt, 50)
    heads = lin(fc, whead, bhead)        # (Bt, 2484) fused head pre-activations

    # pi softmax: weights pre-permuted to three contiguous 276-wide component
    # slabs [comp0 | comp1 | comp2].
    a = heads[:, 0:N_LOC]
    b = heads[:, N_LOC:2 * N_LOC]
    c = heads[:, 2 * N_LOC:3 * N_LOC]
    m = jnp.maximum(jnp.maximum(a, b), c)
    ea = jnp.exp(a - m)
    eb_ = jnp.exp(b - m)
    ec = jnp.exp(c - m)
    inv_s = pl.reciprocal(ea + eb_ + ec, approx=True)

    # Per-segment stores into the output slab (no full-width concatenate).
    heads_ref[:, 0:N_LOC] = (ea * inv_s).astype(out_dt)
    heads_ref[:, N_LOC:2 * N_LOC] = (eb_ * inv_s).astype(out_dt)
    heads_ref[:, 2 * N_LOC:3 * N_LOC] = (ec * inv_s).astype(out_dt)
    heads_ref[:, OFF_MU:OFF_SG] = heads[:, OFF_MU:OFF_SG].astype(out_dt)      # mu
    heads_ref[:, OFF_SG:OFF_LC] = (
        _sigmoid(heads[:, OFF_SG:OFF_LC]) * COV_SCALE).astype(out_dt)         # sigma
    heads_ref[:, OFF_LC:OFF_CC] = heads[:, OFF_LC:OFF_CC].astype(out_dt)      # loc
    heads_ref[:, OFF_CC:N_HEAD] = _softplus(heads[:, OFF_CC:N_HEAD]).astype(out_dt)


def _linear_params(key, fan_in, fan_out):
    """Deterministic PyTorch-style init; weight as (in, out), bias as (1, out)."""
    kw, kb = jax.random.split(key)
    bound = 1.0 / np.sqrt(fan_in)
    w = jax.random.uniform(kw, (fan_in, fan_out), jnp.float32, -bound, bound)
    b = jax.random.uniform(kb, (1, fan_out), jnp.float32, -bound, bound)
    return w, b


def make_params(key):
    keys = jax.random.split(key, 13)
    p = {}
    p["ew1"], p["eb1"] = _linear_params(keys[0], INPUT_DIM, DEC_WIDTH)
    p["ew2"], p["eb2"] = _linear_params(keys[1], DEC_WIDTH, DEC_WIDTH)
    p["ew3"], p["eb3"] = _linear_params(keys[2], DEC_WIDTH, DEC_WIDTH)
    p["ew6"], p["eb6"] = _linear_params(keys[3], DEC_WIDTH, LATENT_DIM)
    p["dw1"], p["db1"] = _linear_params(keys[4], LATENT_DIM, DEC_WIDTH)
    p["dw2"], p["db2"] = _linear_params(keys[5], DEC_WIDTH, DEC_WIDTH)
    p["dw3"], p["db3"] = _linear_params(keys[6], DEC_WIDTH, DEC_WIDTH)
    p["mwf"], p["mbf"] = _linear_params(keys[7], DEC_WIDTH, HIDDEN_DIM)
    p["mwpi"], p["mbpi"] = _linear_params(keys[8], HIDDEN_DIM, N_PI)
    p["mwmu"], p["mbmu"] = _linear_params(keys[9], HIDDEN_DIM, N_MU)
    p["mwsg"], p["mbsg"] = _linear_params(keys[10], HIDDEN_DIM, N_MU)
    p["mwlc"], p["mblc"] = _linear_params(keys[11], HIDDEN_DIM, N_LOC)
    p["mwcc"], p["mbcc"] = _linear_params(keys[12], HIDDEN_DIM, N_LOC)
    return p


def prepare_kernel_params(p):
    """One-time weight reformatting (done at init, not per forward call):
    permute fc_pi columns to component-major, fuse the 5 MDN head layers into
    a single (50, 2484) weight/bias, cast the big weights to bf16."""
    # Permute fc_pi so column (k*276 + i) <- original column (i*3 + k).
    perm = np.array([i * 3 + k for k in range(3) for i in range(N_LOC)], dtype=np.int32)
    mwpi_p = p["mwpi"][:, perm]
    mbpi_p = p["mbpi"][:, perm]
    whead = jnp.concatenate(
        [mwpi_p, p["mwmu"], p["mwsg"], p["mwlc"], p["mwcc"]], axis=1)   # (50, 2484)
    bhead = jnp.concatenate(
        [mbpi_p, p["mbmu"], p["mbsg"], p["mblc"], p["mbcc"]], axis=1)   # (1, 2484)

    def bf(w):
        return w.astype(jnp.bfloat16)

    # dw1 is tiny (2x500) and used on the VPU; keep it f32.
    return [
        bf(p["ew1"]), p["eb1"], bf(p["ew2"]), p["eb2"], bf(p["ew3"]), p["eb3"],
        bf(p["ew6"]), p["eb6"],
        p["dw1"], p["db1"], bf(p["dw2"]), p["db2"], bf(p["dw3"]), p["db3"],
        bf(p["mwf"]), p["mbf"], bf(whead), bhead,
    ]


def _round_up(v, m):
    return ((v + m - 1) // m) * m


def _pick_batch_tile(B):
    """Batch tile: multiple of 8, <= 256.  For B >= 16 keep at least 2 grid
    steps so the 'parallel' axis shards across both TensorCores on v7x; cap at
    256 to amortize the ~0.35 us per-step overhead at large B."""
    b8 = _round_up(B, 8)
    if b8 <= 8:
        return b8
    return min(256, _round_up((b8 + 1) // 2, 8))


def _build_pallas_call(kernel_params, Bt, B_pad, single_buffer_weights):
    grid = (B_pad // Bt,)

    def resident(arr):
        # Full-array block, constant index map: stays resident in VMEM across
        # grid steps (no re-DMA).  Optionally single-buffered to save VMEM.
        if single_buffer_weights:
            return pl.BlockSpec(arr.shape, lambda i: (0,) * arr.ndim,
                                pipeline_mode=pl.Buffered(1))
        return pl.BlockSpec(arr.shape, lambda i: (0,) * arr.ndim)

    in_specs = [pl.BlockSpec((Bt, INPUT_DIM), lambda i: (i, 0))]
    in_specs += [resident(a) for a in kernel_params]

    out_shapes = (
        jax.ShapeDtypeStruct((B_pad, LATENT_DIM), jnp.float32),   # latent_states
        jax.ShapeDtypeStruct((B_pad, N_HEAD), jnp.bfloat16),      # fused heads (bf16)
    )
    out_specs = (
        pl.BlockSpec((Bt, LATENT_DIM), lambda i: (i, 0)),
        pl.BlockSpec((Bt, N_HEAD), lambda i: (i, 0)),
    )

    return pl.pallas_call(
        autoencoder_kernel,
        out_shape=out_shapes,
        grid=grid,
        in_specs=in_specs,
        out_specs=out_specs,
        compiler_params=pltpu.CompilerParams(
            dimension_semantics=("parallel",),
            vmem_limit_bytes=48 * 1024 * 1024,   # safe on v7x (64 MiB physical)
        ),
    )


def autoencoder_forward(x, kernel_params):
    B = x.shape[0]
    Bt = _pick_batch_tile(B)
    B_pad = _round_up(max(B, Bt), Bt)

    xp = x if B_pad == B else jnp.pad(x, ((0, B_pad - B), (0, 0)))
    xp = xp.astype(jnp.bfloat16)   # halve input DMA; MXU takes bf16 LHS anyway

    try:
        call = _build_pallas_call(kernel_params, Bt, B_pad, single_buffer_weights=True)
        latent, heads = call(xp, *kernel_params)
        jax.block_until_ready((latent, heads))
    except Exception:
        # TODO(synk): pl.Buffered(1) single-buffering rejected by this JAX
        # build; fall back to default double-buffered resident weights.
        call = _build_pallas_call(kernel_params, Bt, B_pad, single_buffer_weights=False)
        latent, heads = call(xp, *kernel_params)
        jax.block_until_ready((latent, heads))

    latent = latent[:B]
    heads = heads[:B].astype(jnp.float32)

    # Glue reshapes back to PyTorch's .view() conventions (wrapper-side plumbing).
    pi = jnp.transpose(heads[:, 0:N_PI].reshape(B, 3, N_LOC), (0, 2, 1))   # (B,276,3)
    mu = heads[:, OFF_MU:OFF_SG].reshape(B, 184, 3)
    sigma = heads[:, OFF_SG:OFF_LC].reshape(B, 184, 3)
    loc = heads[:, OFF_LC:OFF_CC].reshape(B, 92, 3)
    conc = heads[:, OFF_CC:].reshape(B, 92, 3)
    return latent, pi, mu, sigma, loc, conc


def reference_forward(x, params):
    """Plain-JAX reference matching the PyTorch forward (original weight layout)."""
    p = params
    B = x.shape[0]

    def lin(h, w, b):
        return h @ w + b

    h = jnp.tanh(lin(x, p["ew1"], p["eb1"]))
    h = jnp.tanh(lin(h, p["ew2"], p["eb2"]))
    h = jnp.tanh(lin(h, p["ew3"], p["eb3"]))
    z = lin(h, p["ew6"], p["eb6"])

    d = jnp.tanh(lin(z, p["dw1"], p["db1"]))
    d = jnp.tanh(lin(d, p["dw2"], p["db2"]))
    d = jnp.tanh(lin(d, p["dw3"], p["db3"]))

    fc = jax.nn.sigmoid(lin(d, p["mwf"], p["mbf"]))
    pi = jax.nn.softmax(lin(fc, p["mwpi"], p["mbpi"]).reshape(B, 276, 3), axis=-1)
    mu = lin(fc, p["mwmu"], p["mbmu"]).reshape(B, 184, 3)
    sigma = (jax.nn.sigmoid(lin(fc, p["mwsg"], p["mbsg"])) * COV_SCALE).reshape(B, 184, 3)
    loc = lin(fc, p["mwlc"], p["mblc"]).reshape(B, 92, 3)
    conc = jax.nn.softplus(lin(fc, p["mwcc"], p["mbcc"])).reshape(B, 92, 3)
    return z, pi, mu, sigma, loc, conc


if __name__ == "__main__":
    key = jax.random.PRNGKey(0)
    k_params, k_x = jax.random.split(key)

    params = make_params(k_params)
    kernel_params = prepare_kernel_params(params)   # one-time reformat/fuse/bf16

    # Synthetic features in (0, 1), standing in for load_full_dataset() output.
    # TODO(synk): original features come from a sqlite DB; replaced with synthetic data.
    B = 8
    x = jax.random.uniform(k_x, (B, INPUT_DIM), jnp.float32, 0.05, 0.95)

    outs = autoencoder_forward(x, kernel_params)
    outs = jax.block_until_ready(outs)

    refs = reference_forward(x, params)
    names = ["latent", "pi", "mu", "sigma", "loc", "conc"]
    for name, o, r in zip(names, outs, refs):
        assert o.shape == r.shape, (name, o.shape, r.shape)
        # bf16 weights + bf16 head output slab -> loose tolerance vs f32 reference
        assert np.allclose(np.asarray(o), np.asarray(r), atol=2e-2, rtol=2e-2), name

    print("KERNEL_OK")
</pallas_src>

<mosaic_0001>
module attributes {stable_mosaic.version = 11 : i64} {
  func.func @autoencoder_kernel(%arg0: i32, %arg1: memref<8x276xbf16, #tpu.memory_space<vmem>>, %arg2: memref<276x500xbf16, #tpu.memory_space<vmem>>, %arg3: memref<1x500xf32, #tpu.memory_space<vmem>>, %arg4: memref<500x500xbf16, #tpu.memory_space<vmem>>, %arg5: memref<1x500xf32, #tpu.memory_space<vmem>>, %arg6: memref<500x500xbf16, #tpu.memory_space<vmem>>, %arg7: memref<1x500xf32, #tpu.memory_space<vmem>>, %arg8: memref<500x2xbf16, #tpu.memory_space<vmem>>, %arg9: memref<1x2xf32, #tpu.memory_space<vmem>>, %arg10: memref<2x500xf32, #tpu.memory_space<vmem>>, %arg11: memref<1x500xf32, #tpu.memory_space<vmem>>, %arg12: memref<500x500xbf16, #tpu.memory_space<vmem>>, %arg13: memref<1x500xf32, #tpu.memory_space<vmem>>, %arg14: memref<500x500xbf16, #tpu.memory_space<vmem>>, %arg15: memref<1x500xf32, #tpu.memory_space<vmem>>, %arg16: memref<500x50xbf16, #tpu.memory_space<vmem>>, %arg17: memref<1x50xf32, #tpu.memory_space<vmem>>, %arg18: memref<50x2484xbf16, #tpu.memory_space<vmem>>, %arg19: memref<1x2484xf32, #tpu.memory_space<vmem>>, %arg20: memref<8x2xf32, #tpu.memory_space<vmem>>, %arg21: memref<8x2484xbf16, #tpu.memory_space<vmem>>) attributes {dimension_semantics = [#tpu.dimension_semantics<parallel>], iteration_bounds = array<i64: 1>, scalar_prefetch = 0 : i64, scratch_operands = 0 : i64, tpu.core_type = #tpu.core_type<tc>, window_params = [{transform_indices = @transform_0, window_bounds = array<i64: 8, 276>}, {pipeline_mode = #tpu.pipeline_mode<synchronous>, transform_indices = @transform_1, window_bounds = array<i64: 276, 500>}, {pipeline_mode = #tpu.pipeline_mode<synchronous>, transform_indices = @transform_2, window_bounds = array<i64: 1, 500>}, {pipeline_mode = #tpu.pipeline_mode<synchronous>, transform_indices = @transform_3, window_bounds = array<i64: 500, 500>}, {pipeline_mode = #tpu.pipeline_mode<synchronous>, transform_indices = @transform_4, window_bounds = array<i64: 1, 500>}, {pipeline_mode = #tpu.pipeline_mode<synchronous>, transform_indices = @transform_5, window_bounds = array<i64: 500, 500>}, {pipeline_mode = #tpu.pipeline_mode<synchronous>, transform_indices = @transform_6, window_bounds = array<i64: 1, 500>}, {pipeline_mode = #tpu.pipeline_mode<synchronous>, transform_indices = @transform_7, window_bounds = array<i64: 500, 2>}, {pipeline_mode = #tpu.pipeline_mode<synchronous>, transform_indices = @transform_8, window_bounds = array<i64: 1, 2>}, {pipeline_mode = #tpu.pipeline_mode<synchronous>, transform_indices = @transform_9, window_bounds = array<i64: 2, 500>}, {pipeline_mode = #tpu.pipeline_mode<synchronous>, transform_indices = @transform_10, window_bounds = array<i64: 1, 500>}, {pipeline_mode = #tpu.pipeline_mode<synchronous>, transform_indices = @transform_11, window_bounds = array<i64: 500, 500>}, {pipeline_mode = #tpu.pipeline_mode<synchronous>, transform_indices = @transform_12, window_bounds = array<i64: 1, 500>}, {pipeline_mode = #tpu.pipeline_mode<synchronous>, transform_indices = @transform_13, window_bounds = array<i64: 500, 500>}, {pipeline_mode = #tpu.pipeline_mode<synchronous>, transform_indices = @transform_14, window_bounds = array<i64: 1, 500>}, {pipeline_mode = #tpu.pipeline_mode<synchronous>, transform_indices = @transform_15, window_bounds = array<i64: 500, 50>}, {pipeline_mode = #tpu.pipeline_mode<synchronous>, transform_indices = @transform_16, window_bounds = array<i64: 1, 50>}, {pipeline_mode = #tpu.pipeline_mode<synchronous>, transform_indices = @transform_17, window_bounds = array<i64: 50, 2484>}, {pipeline_mode = #tpu.pipeline_mode<synchronous>, transform_indices = @transform_18, window_bounds = array<i64: 1, 2484>}, {transform_indices = @transform_19, window_bounds = array<i64: 8, 2>}, {transform_indices = @transform_20, window_bounds = array<i64: 8, 2484>}]} {
    %c0 = arith.constant 0 : index
    %c0_0 = arith.constant 0 : index
    %0 = vector.load %arg1[%c0, %c0_0] : memref<8x276xbf16, #tpu.memory_space<vmem>>, vector<8x276xbf16>
    %c0_1 = arith.constant 0 : index
    %c0_2 = arith.constant 0 : index
    %1 = vector.load %arg2[%c0_1, %c0_2] : memref<276x500xbf16, #tpu.memory_space<vmem>>, vector<276x500xbf16>
    %cst = arith.constant dense<0.000000e+00> : vector<8x500xf32>
    %2 = tpu.matmul %0, %1, %cst {dimension_numbers = #tpu.dot_dimension_numbers<[1], [0], [0], [1], [0, 0, 1, 1], [], []>} : vector<8x276xbf16>, vector<276x500xbf16>, vector<8x500xf32> -> vector<8x500xf32>
    %c0_3 = arith.constant 0 : index
    %c0_4 = arith.constant 0 : index
    %3 = vector.load %arg3[%c0_3, %c0_4] : memref<1x500xf32, #tpu.memory_space<vmem>>, vector<1x500xf32>
    %4 = vector.broadcast %3 : vector<1x500xf32> to vector<8x500xf32>
    %5 = arith.addf %2, %4 : vector<8x500xf32>
    %6 = math.tanh %5 : vector<8x500xf32>
    %7 = arith.truncf %6 : vector<8x500xf32> to vector<8x500xbf16>
    %c0_5 = arith.constant 0 : index
    %c0_6 = arith.constant 0 : index
    %8 = vector.load %arg4[%c0_5, %c0_6] : memref<500x500xbf16, #tpu.memory_space<vmem>>, vector<500x500xbf16>
    %cst_7 = arith.constant dense<0.000000e+00> : vector<8x500xf32>
    %9 = tpu.matmul %7, %8, %cst_7 {dimension_numbers = #tpu.dot_dimension_numbers<[1], [0], [0], [1], [0, 0, 1, 1], [], []>} : vector<8x500xbf16>, vector<500x500xbf16>, vector<8x500xf32> -> vector<8x500xf32>
    %c0_8 = arith.constant 0 : index
    %c0_9 = arith.constant 0 : index
    %10 = vector.load %arg5[%c0_8, %c0_9] : memref<1x500xf32, #tpu.memory_space<vmem>>, vector<1x500xf32>
    %11 = vector.broadcast %10 : vector<1x500xf32> to vector<8x500xf32>
    %12 = arith.addf %9, %11 : vector<8x500xf32>
    %13 = math.tanh %12 : vector<8x500xf32>
    %14 = arith.truncf %13 : vector<8x500xf32> to vector<8x500xbf16>
    %c0_10 = arith.constant 0 : index
    %c0_11 = arith.constant 0 : index
    %15 = vector.load %arg6[%c0_10, %c0_11] : memref<500x500xbf16, #tpu.memory_space<vmem>>, vector<500x500xbf16>
    %cst_12 = arith.constant dense<0.000000e+00> : vector<8x500xf32>
    %16 = tpu.matmul %14, %15, %cst_12 {dimension_numbers = #tpu.dot_dimension_numbers<[1], [0], [0], [1], [0, 0, 1, 1], [], []>} : vector<8x500xbf16>, vector<500x500xbf16>, vector<8x500xf32> -> vector<8x500xf32>
    %c0_13 = arith.constant 0 : index
    %c0_14 = arith.constant 0 : index
    %17 = vector.load %arg7[%c0_13, %c0_14] : memref<1x500xf32, #tpu.memory_space<vmem>>, vector<1x500xf32>
    %18 = vector.broadcast %17 : vector<1x500xf32> to vector<8x500xf32>
    %19 = arith.addf %16, %18 : vector<8x500xf32>
    %20 = math.tanh %19 : vector<8x500xf32>
    %21 = arith.truncf %20 : vector<8x500xf32> to vector<8x500xbf16>
    %c0_15 = arith.constant 0 : index
    %c0_16 = arith.constant 0 : index
    %22 = vector.load %arg8[%c0_15, %c0_16] : memref<500x2xbf16, #tpu.memory_space<vmem>>, vector<500x2xbf16>
    %cst_17 = arith.constant dense<0.000000e+00> : vector<8x2xf32>
    %23 = tpu.matmul %21, %22, %cst_17 {dimension_numbers = #tpu.dot_dimension_numbers<[1], [0], [0], [1], [0, 0, 1, 1], [], []>} : vector<8x500xbf16>, vector<500x2xbf16>, vector<8x2xf32> -> vector<8x2xf32>
    %c0_18 = arith.constant 0 : index
    %c0_19 = arith.constant 0 : index
    %24 = vector.load %arg9[%c0_18, %c0_19] : memref<1x2xf32, #tpu.memory_space<vmem>>, vector<1x2xf32>
    %25 = vector.broadcast %24 : vector<1x2xf32> to vector<8x2xf32>
    %26 = arith.addf %23, %25 : vector<8x2xf32>
    %c0_20 = arith.constant 0 : index
    %c0_21 = arith.constant 0 : index
    %27 = vector.load %arg20[%c0_20, %c0_21] : memref<8x2xf32, #tpu.memory_space<vmem>>, vector<8x2xf32>
    tpu.vector_store %arg20[%c0_20, %c0_21], %26 {strides = array<i32>} : memref<8x2xf32, #tpu.memory_space<vmem>>, vector<8x2xf32>,
    %c0_22 = arith.constant 0 : index
    %c0_23 = arith.constant 0 : index
    %28 = vector.load %arg10[%c0_22, %c0_23] : memref<2x500xf32, #tpu.memory_space<vmem>>, vector<2x500xf32>
    %29 = vector.extract_strided_slice %26 {offsets = [0, 0], sizes = [8, 1], strides = [1, 1]} : vector<8x2xf32> to vector<8x1xf32>
    %30 = vector.extract_strided_slice %28 {offsets = [0, 0], sizes = [1, 500], strides = [1, 1]} : vector<2x500xf32> to vector<1x500xf32>
    %31 = vector.broadcast %29 : vector<8x1xf32> to vector<8x500xf32>
    %32 = vector.broadcast %30 : vector<1x500xf32> to vector<8x500xf32>
    %33 = arith.mulf %31, %32 : vector<8x500xf32>
    %34 = vector.extract_strided_slice %26 {offsets = [0, 1], sizes = [8, 1], strides = [1, 1]} : vector<8x2xf32> to vector<8x1xf32>
    %35 = vector.extract_strided_slice %28 {offsets = [1, 0], sizes = [1, 500], strides = [1, 1]} : vector<2x500xf32> to vector<1x500xf32>
    %36 = vector.broadcast %34 : vector<8x1xf32> to vector<8x500xf32>
    %37 = vector.broadcast %35 : vector<1x500xf32> to vector<8x500xf32>
    %38 = arith.mulf %36, %37 : vector<8x500xf32>
    %39 = arith.addf %33, %38 : vector<8x500xf32>
    %c0_24 = arith.constant 0 : index
    %c0_25 = arith.constant 0 : index
    %40 = vector.load %arg11[%c0_24, %c0_25] : memref<1x500xf32, #tpu.memory_space<vmem>>, vector<1x500xf32>
    %41 = vector.broadcast %40 : vector<1x500xf32> to vector<8x500xf32>
    %42 = arith.addf %39, %41 : vector<8x500xf32>
    %43 = math.tanh %42 : vector<8x500xf32>
    %44 = arith.truncf %43 : vector<8x500xf32> to vector<8x500xbf16>
    %c0_26 = arith.constant 0 : index
    %c0_27 = arith.constant 0 : index
    %45 = vector.load %arg12[%c0_26, %c0_27] : memref<500x500xbf16, #tpu.memory_space<vmem>>, vector<500x500xbf16>
    %cst_28 = arith.constant dense<0.000000e+00> : vector<8x500xf32>
    %46 = tpu.matmul %44, %45, %cst_28 {dimension_numbers = #tpu.dot_dimension_numbers<[1], [0], [0], [1], [0, 0, 1, 1], [], []>} : vector<8x500xbf16>, vector<500x500xbf16>, vector<8x500xf32> -> vector<8x500xf32>
    %c0_29 = arith.constant 0 : index
    %c0_30 = arith.constant 0 : index
    %47 = vector.load %arg13[%c0_29, %c0_30] : memref<1x500xf32, #tpu.memory_space<vmem>>, vector<1x500xf32>
    %48 = vector.broadcast %47 : vector<1x500xf32> to vector<8x500xf32>
    %49 = arith.addf %46, %48 : vector<8x500xf32>
    %50 = math.tanh %49 : vector<8x500xf32>
    %51 = arith.truncf %50 : vector<8x500xf32> to vector<8x500xbf16>
    %c0_31 = arith.constant 0 : index
    %c0_32 = arith.constant 0 : index
    %52 = vector.load %arg14[%c0_31, %c0_32] : memref<500x500xbf16, #tpu.memory_space<vmem>>, vector<500x500xbf16>
    %cst_33 = arith.constant dense<0.000000e+00> : vector<8x500xf32>
    %53 = tpu.matmul %51, %52, %cst_33 {dimension_numbers = #tpu.dot_dimension_numbers<[1], [0], [0], [1], [0, 0, 1, 1], [], []>} : vector<8x500xbf16>, vector<500x500xbf16>, vector<8x500xf32> -> vector<8x500xf32>
    %c0_34 = arith.constant 0 : index
    %c0_35 = arith.constant 0 : index
    %54 = vector.load %arg15[%c0_34, %c0_35] : memref<1x500xf32, #tpu.memory_space<vmem>>, vector<1x500xf32>
    %55 = vector.broadcast %54 : vector<1x500xf32> to vector<8x500xf32>
    %56 = arith.addf %53, %55 : vector<8x500xf32>
    %57 = math.tanh %56 : vector<8x500xf32>
    %58 = arith.truncf %57 : vector<8x500xf32> to vector<8x500xbf16>
    %c0_36 = arith.constant 0 : index
    %c0_37 = arith.constant 0 : index
    %59 = vector.load %arg16[%c0_36, %c0_37] : memref<500x50xbf16, #tpu.memory_space<vmem>>, vector<500x50xbf16>
    %cst_38 = arith.constant dense<0.000000e+00> : vector<8x50xf32>
    %60 = tpu.matmul %58, %59, %cst_38 {dimension_numbers = #tpu.dot_dimension_numbers<[1], [0], [0], [1], [0, 0, 1, 1], [], []>} : vector<8x500xbf16>, vector<500x50xbf16>, vector<8x50xf32> -> vector<8x50xf32>
    %c0_39 = arith.constant 0 : index
    %c0_40 = arith.constant 0 : index
    %61 = vector.load %arg17[%c0_39, %c0_40] : memref<1x50xf32, #tpu.memory_space<vmem>>, vector<1x50xf32>
    %62 = vector.broadcast %61 : vector<1x50xf32> to vector<8x50xf32>
    %63 = arith.addf %60, %62 : vector<8x50xf32>
    %cst_41 = arith.constant 5.000000e-01 : f32
    %64 = vector.broadcast %cst_41 : f32 to vector<8x50xf32>
    %65 = arith.mulf %64, %63 : vector<8x50xf32>
    %66 = math.tanh %65 : vector<8x50xf32>
    %cst_42 = arith.constant 1.000000e+00 : f32
    %67 = vector.broadcast %cst_42 : f32 to vector<8x50xf32>
    %68 = arith.addf %67, %66 : vector<8x50xf32>
    %cst_43 = arith.constant 5.000000e-01 : f32
    %69 = vector.broadcast %cst_43 : f32 to vector<8x50xf32>
    %70 = arith.mulf %69, %68 : vector<8x50xf32>
    %71 = arith.truncf %70 : vector<8x50xf32> to vector<8x50xbf16>
    %c0_44 = arith.constant 0 : index
    %c0_45 = arith.constant 0 : index
    %72 = vector.load %arg18[%c0_44, %c0_45] : memref<50x2484xbf16, #tpu.memory_space<vmem>>, vector<50x2484xbf16>
    %cst_46 = arith.constant dense<0.000000e+00> : vector<8x2484xf32>
    %73 = tpu.matmul %71, %72, %cst_46 {dimension_numbers = #tpu.dot_dimension_numbers<[1], [0], [0], [1], [0, 0, 1, 1], [], []>} : vector<8x50xbf16>, vector<50x2484xbf16>, vector<8x2484xf32> -> vector<8x2484xf32>
    %c0_47 = arith.constant 0 : index
    %c0_48 = arith.constant 0 : index
    %74 = vector.load %arg19[%c0_47, %c0_48] : memref<1x2484xf32, #tpu.memory_space<vmem>>, vector<1x2484xf32>
    %75 = vector.broadcast %74 : vector<1x2484xf32> to vector<8x2484xf32>
    %76 = arith.addf %73, %75 : vector<8x2484xf32>
    %77 = vector.extract_strided_slice %76 {offsets = [0, 0], sizes = [8, 276], strides = [1, 1]} : vector<8x2484xf32> to vector<8x276xf32>
    %78 = vector.extract_strided_slice %76 {offsets = [0, 276], sizes = [8, 276], strides = [1, 1]} : vector<8x2484xf32> to vector<8x276xf32>
    %79 = vector.extract_strided_slice %76 {offsets = [0, 552], sizes = [8, 276], strides = [1, 1]} : vector<8x2484xf32> to vector<8x276xf32>
    %80 = arith.maximumf %77, %78 : vector<8x276xf32>
    %81 = arith.maximumf %80, %79 : vector<8x276xf32>
    %82 = arith.subf %77, %81 : vector<8x276xf32>
    %83 = math.exp %82 : vector<8x276xf32>
    %84 = arith.subf %78, %81 : vector<8x276xf32>
    %85 = math.exp %84 : vector<8x276xf32>
    %86 = arith.subf %79, %81 : vector<8x276xf32>
    %87 = math.exp %86 : vector<8x276xf32>
    %88 = arith.addf %83, %85 : vector<8x276xf32>
    %89 = arith.addf %88, %87 : vector<8x276xf32>
    %90 = tpu.reciprocal %89 {approx = true} : vector<8x276xf32> -> vector<8x276xf32>
    %91 = arith.mulf %83, %90 : vector<8x276xf32>
    %92 = arith.truncf %91 : vector<8x276xf32> to vector<8x276xbf16>
    %c0_49 = arith.constant 0 : index
    %c0_50 = arith.constant 0 : index
    %93 = vector.load %arg21[%c0_49, %c0_50] : memref<8x2484xbf16, #tpu.memory_space<vmem>>, vector<8x276xbf16>
    tpu.vector_store %arg21[%c0_49, %c0_50], %92 {strides = array<i32>} : memref<8x2484xbf16, #tpu.memory_space<vmem>>, vector<8x276xbf16>,
    %94 = arith.mulf %85, %90 : vector<8x276xf32>
    %95 = arith.truncf %94 : vector<8x276xf32> to vector<8x276xbf16>
    %c0_51 = arith.constant 0 : index
    %c276 = arith.constant 276 : index
    %96 = vector.load %arg21[%c0_51, %c276] : memref<8x2484xbf16, #tpu.memory_space<vmem>>, vector<8x276xbf16>
    tpu.vector_store %arg21[%c0_51, %c276], %95 {strides = array<i32>} : memref<8x2484xbf16, #tpu.memory_space<vmem>>, vector<8x276xbf16>,
    %97 = arith.mulf %87, %90 : vector<8x276xf32>
    %98 = arith.truncf %97 : vector<8x276xf32> to vector<8x276xbf16>
    %c0_52 = arith.constant 0 : index
    %c552 = arith.constant 552 : index
    %99 = vector.load %arg21[%c0_52, %c552] : memref<8x2484xbf16, #tpu.memory_space<vmem>>, vector<8x276xbf16>
    tpu.vector_store %arg21[%c0_52, %c552], %98 {strides = array<i32>} : memref<8x2484xbf16, #tpu.memory_space<vmem>>, vector<8x276xbf16>,
    %100 = vector.extract_strided_slice %76 {offsets = [0, 828], sizes = [8, 552], strides = [1, 1]} : vector<8x2484xf32> to vector<8x552xf32>
    %101 = arith.truncf %100 : vector<8x552xf32> to vector<8x552xbf16>
    %c0_53 = arith.constant 0 : index
    %c828 = arith.constant 828 : index
    %102 = vector.load %arg21[%c0_53, %c828] : memref<8x2484xbf16, #tpu.memory_space<vmem>>, vector<8x552xbf16>
    tpu.vector_store %arg21[%c0_53, %c828], %101 {strides = array<i32>} : memref<8x2484xbf16, #tpu.memory_space<vmem>>, vector<8x552xbf16>,
    %103 = vector.extract_strided_slice %76 {offsets = [0, 1380], sizes = [8, 552], strides = [1, 1]} : vector<8x2484xf32> to vector<8x552xf32>
    %cst_54 = arith.constant 5.000000e-01 : f32
    %104 = vector.broadcast %cst_54 : f32 to vector<8x552xf32>
    %105 = arith.mulf %104, %103 : vector<8x552xf32>
    %106 = math.tanh %105 : vector<8x552xf32>
    %cst_55 = arith.constant 1.000000e+00 : f32
    %107 = vector.broadcast %cst_55 : f32 to vector<8x552xf32>
    %108 = arith.addf %107, %106 : vector<8x552xf32>
    %cst_56 = arith.constant 5.000000e-01 : f32
    %109 = vector.broadcast %cst_56 : f32 to vector<8x552xf32>
    %110 = arith.mulf %109, %108 : vector<8x552xf32>
    %cst_57 = arith.constant 8.000000e-01 : f32
    %111 = vector.broadcast %cst_57 : f32 to vector<8x552xf32>
    %112 = arith.mulf %110, %111 : vector<8x552xf32>
    %113 = arith.truncf %112 : vector<8x552xf32> to vector<8x552xbf16>
    %c0_58 = arith.constant 0 : index
    %c1380 = arith.constant 1380 : index
    %114 = vector.load %arg21[%c0_58, %c1380] : memref<8x2484xbf16, #tpu.memory_space<vmem>>, vector<8x552xbf16>
    tpu.vector_store %arg21[%c0_58, %c1380], %113 {strides = array<i32>} : memref<8x2484xbf16, #tpu.memory_space<vmem>>, vector<8x552xbf16>,
    %115 = vector.extract_strided_slice %76 {offsets = [0, 1932], sizes = [8, 276], strides = [1, 1]} : vector<8x2484xf32> to vector<8x276xf32>
    %116 = arith.truncf %115 : vector<8x276xf32> to vector<8x276xbf16>
    %c0_59 = arith.constant 0 : index
    %c1932 = arith.constant 1932 : index
    %117 = vector.load %arg21[%c0_59, %c1932] : memref<8x2484xbf16, #tpu.memory_space<vmem>>, vector<8x276xbf16>
    tpu.vector_store %arg21[%c0_59, %c1932], %116 {strides = array<i32>} : memref<8x2484xbf16, #tpu.memory_space<vmem>>, vector<8x276xbf16>,
    %118 = vector.extract_strided_slice %76 {offsets = [0, 2208], sizes = [8, 276], strides = [1, 1]} : vector<8x2484xf32> to vector<8x276xf32>
    %cst_60 = arith.constant 0.000000e+00 : f32
    %119 = vector.broadcast %cst_60 : f32 to vector<8x276xf32>
    %120 = arith.maximumf %118, %119 : vector<8x276xf32>
    %121 = math.absf %118 : vector<8x276xf32>
    %cst_61 = arith.constant 0.000000e+00 : f32
    %122 = vector.broadcast %cst_61 : f32 to vector<8x276xf32>
    %123 = arith.subf %122, %121 : vector<8x276xf32>
    %124 = math.exp %123 : vector<8x276xf32>
    %cst_62 = arith.constant 1.000000e+00 : f32
    %125 = vector.broadcast %cst_62 : f32 to vector<8x276xf32>
    %126 = arith.addf %125, %124 : vector<8x276xf32>
    %127 = math.log %126 : vector<8x276xf32>
    %128 = arith.addf %120, %127 : vector<8x276xf32>
    %129 = arith.truncf %128 : vector<8x276xf32> to vector<8x276xbf16>
    %c0_63 = arith.constant 0 : index
    %c2208 = arith.constant 2208 : index
    %130 = vector.load %arg21[%c0_63, %c2208] : memref<8x2484xbf16, #tpu.memory_space<vmem>>, vector<8x276xbf16>
    tpu.vector_store %arg21[%c0_63, %c2208], %129 {strides = array<i32>} : memref<8x2484xbf16, #tpu.memory_space<vmem>>, vector<8x276xbf16>,
    return
  }
  func.func @transform_0(%arg0: i32) -> (i32, i32) {
    %c0_i32 = arith.constant 0 : i32
    %c0_i32_0 = arith.constant 0 : i32
    return %arg0, %c0_i32 : i32, i32
  }
  func.func @transform_1(%arg0: i32) -> (i32, i32) {
    %c0_i32 = arith.constant 0 : i32
    %c0_i32_0 = arith.constant 0 : i32
    %c0_i32_1 = arith.constant 0 : i32
    return %c0_i32, %c0_i32_0 : i32, i32
  }
  func.func @transform_2(%arg0: i32) -> (i32, i32) {
    %c0_i32 = arith.constant 0 : i32
    %c0_i32_0 = arith.constant 0 : i32
    %c0_i32_1 = arith.constant 0 : i32
    return %c0_i32, %c0_i32_0 : i32, i32
  }
  func.func @transform_3(%arg0: i32) -> (i32, i32) {
    %c0_i32 = arith.constant 0 : i32
    %c0_i32_0 = arith.constant 0 : i32
    %c0_i32_1 = arith.constant 0 : i32
    return %c0_i32, %c0_i32_0 : i32, i32
  }
  func.func @transform_4(%arg0: i32) -> (i32, i32) {
    %c0_i32 = arith.constant 0 : i32
    %c0_i32_0 = arith.constant 0 : i32
    %c0_i32_1 = arith.constant 0 : i32
    return %c0_i32, %c0_i32_0 : i32, i32
  }
  func.func @transform_5(%arg0: i32) -> (i32, i32) {
    %c0_i32 = arith.constant 0 : i32
    %c0_i32_0 = arith.constant 0 : i32
    %c0_i32_1 = arith.constant 0 : i32
    return %c0_i32, %c0_i32_0 : i32, i32
  }
  func.func @transform_6(%arg0: i32) -> (i32, i32) {
    %c0_i32 = arith.constant 0 : i32
    %c0_i32_0 = arith.constant 0 : i32
    %c0_i32_1 = arith.constant 0 : i32
    return %c0_i32, %c0_i32_0 : i32, i32
  }
  func.func @transform_7(%arg0: i32) -> (i32, i32) {
    %c0_i32 = arith.constant 0 : i32
    %c0_i32_0 = arith.constant 0 : i32
    %c0_i32_1 = arith.constant 0 : i32
    return %c0_i32, %c0_i32_0 : i32, i32
  }
  func.func @transform_8(%arg0: i32) -> (i32, i32) {
    %c0_i32 = arith.constant 0 : i32
    %c0_i32_0 = arith.constant 0 : i32
    %c0_i32_1 = arith.constant 0 : i32
    return %c0_i32, %c0_i32_0 : i32, i32
  }
  func.func @transform_9(%arg0: i32) -> (i32, i32) {
    %c0_i32 = arith.constant 0 : i32
    %c0_i32_0 = arith.constant 0 : i32
    %c0_i32_1 = arith.constant 0 : i32
    return %c0_i32, %c0_i32_0 : i32, i32
  }
  func.func @transform_10(%arg0: i32) -> (i32, i32) {
    %c0_i32 = arith.constant 0 : i32
    %c0_i32_0 = arith.constant 0 : i32
    %c0_i32_1 = arith.constant 0 : i32
    return %c0_i32, %c0_i32_0 : i32, i32
  }
  func.func @transform_11(%arg0: i32) -> (i32, i32) {
    %c0_i32 = arith.constant 0 : i32
    %c0_i32_0 = arith.constant 0 : i32
    %c0_i32_1 = arith.constant 0 : i32
    return %c0_i32, %c0_i32_0 : i32, i32
  }
  func.func @transform_12(%arg0: i32) -> (i32, i32) {
    %c0_i32 = arith.constant 0 : i32
    %c0_i32_0 = arith.constant 0 : i32
    %c0_i32_1 = arith.constant 0 : i32
    return %c0_i32, %c0_i32_0 : i32, i32
  }
  func.func @transform_13(%arg0: i32) -> (i32, i32) {
    %c0_i32 = arith.constant 0 : i32
    %c0_i32_0 = arith.constant 0 : i32
    %c0_i32_1 = arith.constant 0 : i32
    return %c0_i32, %c0_i32_0 : i32, i32
  }
  func.func @transform_14(%arg0: i32) -> (i32, i32) {
    %c0_i32 = arith.constant 0 : i32
    %c0_i32_0 = arith.constant 0 : i32
    %c0_i32_1 = arith.constant 0 : i32
    return %c0_i32, %c0_i32_0 : i32, i32
  }
  func.func @transform_15(%arg0: i32) -> (i32, i32) {
    %c0_i32 = arith.constant 0 : i32
    %c0_i32_0 = arith.constant 0 : i32
    %c0_i32_1 = arith.constant 0 : i32
    return %c0_i32, %c0_i32_0 : i32, i32
  }
  func.func @transform_16(%arg0: i32) -> (i32, i32) {
    %c0_i32 = arith.constant 0 : i32
    %c0_i32_0 = arith.constant 0 : i32
    %c0_i32_1 = arith.constant 0 : i32
    return %c0_i32, %c0_i32_0 : i32, i32
  }
  func.func @transform_17(%arg0: i32) -> (i32, i32) {
    %c0_i32 = arith.constant 0 : i32
    %c0_i32_0 = arith.constant 0 : i32
    %c0_i32_1 = arith.constant 0 : i32
    return %c0_i32, %c0_i32_0 : i32, i32
  }
  func.func @transform_18(%arg0: i32) -> (i32, i32) {
    %c0_i32 = arith.constant 0 : i32
    %c0_i32_0 = arith.constant 0 : i32
    %c0_i32_1 = arith.constant 0 : i32
    return %c0_i32, %c0_i32_0 : i32, i32
  }
  func.func @transform_19(%arg0: i32) -> (i32, i32) {
    %c0_i32 = arith.constant 0 : i32
    %c0_i32_0 = arith.constant 0 : i32
    return %arg0, %c0_i32 : i32, i32
  }
  func.func @transform_20(%arg0: i32) -> (i32, i32) {
    %c0_i32 = arith.constant 0 : i32
    %c0_i32_0 = arith.constant 0 : i32
    return %arg0, %c0_i32 : i32, i32
  }
}

module attributes {stable_mosaic.version = 11 : i64} {
  func.func @autoencoder_kernel(%arg0: i32, %arg1: memref<8x276xbf16, #tpu.memory_space<vmem>>, %arg2: memref<276x500xbf16, #tpu.memory_space<vmem>>, %arg3: memref<1x500xf32, #tpu.memory_space<vmem>>, %arg4: memref<500x500xbf16, #tpu.memory_space<vmem>>, %arg5: memref<1x500xf32, #tpu.memory_space<vmem>>, %arg6: memref<500x500xbf16, #tpu.memory_space<vmem>>, %arg7: memref<1x500xf32, #tpu.memory_space<vmem>>, %arg8: memref<500x2xbf16, #tpu.memory_space<vmem>>, %arg9: memref<1x2xf32, #tpu.memory_space<vmem>>, %arg10: memref<2x500xf32, #tpu.memory_space<vmem>>, %arg11: memref<1x500xf32, #tpu.memory_space<vmem>>, %arg12: memref<500x500xbf16, #tpu.memory_space<vmem>>, %arg13: memref<1x500xf32, #tpu.memory_space<vmem>>, %arg14: memref<500x500xbf16, #tpu.memory_space<vmem>>, %arg15: memref<1x500xf32, #tpu.memory_space<vmem>>, %arg16: memref<500x50xbf16, #tpu.memory_space<vmem>>, %arg17: memref<1x50xf32, #tpu.memory_space<vmem>>, %arg18: memref<50x2484xbf16, #tpu.memory_space<vmem>>, %arg19: memref<1x2484xf32, #tpu.memory_space<vmem>>, %arg20: memref<8x2xf32, #tpu.memory_space<vmem>>, %arg21: memref<8x2484xbf16, #tpu.memory_space<vmem>>) attributes {dimension_semantics = [#tpu.dimension_semantics<parallel>], iteration_bounds = array<i64: 1>, scalar_prefetch = 0 : i64, scratch_operands = 0 : i64, tpu.core_type = #tpu.core_type<tc>, window_params = [{transform_indices = @transform_0, window_bounds = array<i64: 8, 276>}, {pipeline_mode = #tpu.pipeline_mode<synchronous>, transform_indices = @transform_1, window_bounds = array<i64: 276, 500>}, {pipeline_mode = #tpu.pipeline_mode<synchronous>, transform_indices = @transform_2, window_bounds = array<i64: 1, 500>}, {pipeline_mode = #tpu.pipeline_mode<synchronous>, transform_indices = @transform_3, window_bounds = array<i64: 500, 500>}, {pipeline_mode = #tpu.pipeline_mode<synchronous>, transform_indices = @transform_4, window_bounds = array<i64: 1, 500>}, {pipeline_mode = #tpu.pipeline_mode<synchronous>, transform_indices = @transform_5, window_bounds = array<i64: 500, 500>}, {pipeline_mode = #tpu.pipeline_mode<synchronous>, transform_indices = @transform_6, window_bounds = array<i64: 1, 500>}, {pipeline_mode = #tpu.pipeline_mode<synchronous>, transform_indices = @transform_7, window_bounds = array<i64: 500, 2>}, {pipeline_mode = #tpu.pipeline_mode<synchronous>, transform_indices = @transform_8, window_bounds = array<i64: 1, 2>}, {pipeline_mode = #tpu.pipeline_mode<synchronous>, transform_indices = @transform_9, window_bounds = array<i64: 2, 500>}, {pipeline_mode = #tpu.pipeline_mode<synchronous>, transform_indices = @transform_10, window_bounds = array<i64: 1, 500>}, {pipeline_mode = #tpu.pipeline_mode<synchronous>, transform_indices = @transform_11, window_bounds = array<i64: 500, 500>}, {pipeline_mode = #tpu.pipeline_mode<synchronous>, transform_indices = @transform_12, window_bounds = array<i64: 1, 500>}, {pipeline_mode = #tpu.pipeline_mode<synchronous>, transform_indices = @transform_13, window_bounds = array<i64: 500, 500>}, {pipeline_mode = #tpu.pipeline_mode<synchronous>, transform_indices = @transform_14, window_bounds = array<i64: 1, 500>}, {pipeline_mode = #tpu.pipeline_mode<synchronous>, transform_indices = @transform_15, window_bounds = array<i64: 500, 50>}, {pipeline_mode = #tpu.pipeline_mode<synchronous>, transform_indices = @transform_16, window_bounds = array<i64: 1, 50>}, {pipeline_mode = #tpu.pipeline_mode<synchronous>, transform_indices = @transform_17, window_bounds = array<i64: 50, 2484>}, {pipeline_mode = #tpu.pipeline_mode<synchronous>, transform_indices = @transform_18, window_bounds = array<i64: 1, 2484>}, {transform_indices = @transform_19, window_bounds = array<i64: 8, 2>}, {transform_indices = @transform_20, window_bounds = array<i64: 8, 2484>}]} {
    %c0 = arith.constant 0 : index
    %c0_0 = arith.constant 0 : index
    %0 = vector.load %arg1[%c0, %c0_0] : memref<8x276xbf16, #tpu.memory_space<vmem>>, vector<8x276xbf16>
    %c0_1 = arith.constant 0 : index
    %c0_2 = arith.constant 0 : index
    %1 = vector.load %arg2[%c0_1, %c0_2] : memref<276x500xbf16, #tpu.memory_space<vmem>>, vector<276x500xbf16>
    %cst = arith.constant dense<0.000000e+00> : vector<8x500xf32>
    %2 = tpu.matmul %0, %1, %cst {dimension_numbers = #tpu.dot_dimension_numbers<[1], [0], [0], [1], [0, 0, 1, 1], [], []>} : vector<8x276xbf16>, vector<276x500xbf16>, vector<8x500xf32> -> vector<8x500xf32>
    %c0_3 = arith.constant 0 : index
    %c0_4 = arith.constant 0 : index
    %3 = vector.load %arg3[%c0_3, %c0_4] : memref<1x500xf32, #tpu.memory_space<vmem>>, vector<1x500xf32>
    %4 = vector.broadcast %3 : vector<1x500xf32> to vector<8x500xf32>
    %5 = arith.addf %2, %4 : vector<8x500xf32>
    %6 = math.tanh %5 : vector<8x500xf32>
    %7 = arith.truncf %6 : vector<8x500xf32> to vector<8x500xbf16>
    %c0_5 = arith.constant 0 : index
    %c0_6 = arith.constant 0 : index
    %8 = vector.load %arg4[%c0_5, %c0_6] : memref<500x500xbf16, #tpu.memory_space<vmem>>, vector<500x500xbf16>
    %cst_7 = arith.constant dense<0.000000e+00> : vector<8x500xf32>
    %9 = tpu.matmul %7, %8, %cst_7 {dimension_numbers = #tpu.dot_dimension_numbers<[1], [0], [0], [1], [0, 0, 1, 1], [], []>} : vector<8x500xbf16>, vector<500x500xbf16>, vector<8x500xf32> -> vector<8x500xf32>
    %c0_8 = arith.constant 0 : index
    %c0_9 = arith.constant 0 : index
    %10 = vector.load %arg5[%c0_8, %c0_9] : memref<1x500xf32, #tpu.memory_space<vmem>>, vector<1x500xf32>
    %11 = vector.broadcast %10 : vector<1x500xf32> to vector<8x500xf32>
    %12 = arith.addf %9, %11 : vector<8x500xf32>
    %13 = math.tanh %12 : vector<8x500xf32>
    %14 = arith.truncf %13 : vector<8x500xf32> to vector<8x500xbf16>
    %c0_10 = arith.constant 0 : index
    %c0_11 = arith.constant 0 : index
    %15 = vector.load %arg6[%c0_10, %c0_11] : memref<500x500xbf16, #tpu.memory_space<vmem>>, vector<500x500xbf16>
    %cst_12 = arith.constant dense<0.000000e+00> : vector<8x500xf32>
    %16 = tpu.matmul %14, %15, %cst_12 {dimension_numbers = #tpu.dot_dimension_numbers<[1], [0], [0], [1], [0, 0, 1, 1], [], []>} : vector<8x500xbf16>, vector<500x500xbf16>, vector<8x500xf32> -> vector<8x500xf32>
    %c0_13 = arith.constant 0 : index
    %c0_14 = arith.constant 0 : index
    %17 = vector.load %arg7[%c0_13, %c0_14] : memref<1x500xf32, #tpu.memory_space<vmem>>, vector<1x500xf32>
    %18 = vector.broadcast %17 : vector<1x500xf32> to vector<8x500xf32>
    %19 = arith.addf %16, %18 : vector<8x500xf32>
    %20 = math.tanh %19 : vector<8x500xf32>
    %21 = arith.truncf %20 : vector<8x500xf32> to vector<8x500xbf16>
    %c0_15 = arith.constant 0 : index
    %c0_16 = arith.constant 0 : index
    %22 = vector.load %arg8[%c0_15, %c0_16] : memref<500x2xbf16, #tpu.memory_space<vmem>>, vector<500x2xbf16>
    %cst_17 = arith.constant dense<0.000000e+00> : vector<8x2xf32>
    %23 = tpu.matmul %21, %22, %cst_17 {dimension_numbers = #tpu.dot_dimension_numbers<[1], [0], [0], [1], [0, 0, 1, 1], [], []>} : vector<8x500xbf16>, vector<500x2xbf16>, vector<8x2xf32> -> vector<8x2xf32>
    %c0_18 = arith.constant 0 : index
    %c0_19 = arith.constant 0 : index
    %24 = vector.load %arg9[%c0_18, %c0_19] : memref<1x2xf32, #tpu.memory_space<vmem>>, vector<1x2xf32>
    %25 = vector.broadcast %24 : vector<1x2xf32> to vector<8x2xf32>
    %26 = arith.addf %23, %25 : vector<8x2xf32>
    %c0_20 = arith.constant 0 : index
    %c0_21 = arith.constant 0 : index
    %27 = vector.load %arg20[%c0_20, %c0_21] : memref<8x2xf32, #tpu.memory_space<vmem>>, vector<8x2xf32>
    tpu.vector_store %arg20[%c0_20, %c0_21], %26 {strides = array<i32>} : memref<8x2xf32, #tpu.memory_space<vmem>>, vector<8x2xf32>,
    %c0_22 = arith.constant 0 : index
    %c0_23 = arith.constant 0 : index
    %28 = vector.load %arg10[%c0_22, %c0_23] : memref<2x500xf32, #tpu.memory_space<vmem>>, vector<2x500xf32>
    %29 = vector.extract_strided_slice %26 {offsets = [0, 0], sizes = [8, 1], strides = [1, 1]} : vector<8x2xf32> to vector<8x1xf32>
    %30 = vector.extract_strided_slice %28 {offsets = [0, 0], sizes = [1, 500], strides = [1, 1]} : vector<2x500xf32> to vector<1x500xf32>
    %31 = vector.broadcast %29 : vector<8x1xf32> to vector<8x500xf32>
    %32 = vector.broadcast %30 : vector<1x500xf32> to vector<8x500xf32>
    %33 = arith.mulf %31, %32 : vector<8x500xf32>
    %34 = vector.extract_strided_slice %26 {offsets = [0, 1], sizes = [8, 1], strides = [1, 1]} : vector<8x2xf32> to vector<8x1xf32>
    %35 = vector.extract_strided_slice %28 {offsets = [1, 0], sizes = [1, 500], strides = [1, 1]} : vector<2x500xf32> to vector<1x500xf32>
    %36 = vector.broadcast %34 : vector<8x1xf32> to vector<8x500xf32>
    %37 = vector.broadcast %35 : vector<1x500xf32> to vector<8x500xf32>
    %38 = arith.mulf %36, %37 : vector<8x500xf32>
    %39 = arith.addf %33, %38 : vector<8x500xf32>
    %c0_24 = arith.constant 0 : index
    %c0_25 = arith.constant 0 : index
    %40 = vector.load %arg11[%c0_24, %c0_25] : memref<1x500xf32, #tpu.memory_space<vmem>>, vector<1x500xf32>
    %41 = vector.broadcast %40 : vector<1x500xf32> to vector<8x500xf32>
    %42 = arith.addf %39, %41 : vector<8x500xf32>
    %43 = math.tanh %42 : vector<8x500xf32>
    %44 = arith.truncf %43 : vector<8x500xf32> to vector<8x500xbf16>
    %c0_26 = arith.constant 0 : index
    %c0_27 = arith.constant 0 : index
    %45 = vector.load %arg12[%c0_26, %c0_27] : memref<500x500xbf16, #tpu.memory_space<vmem>>, vector<500x500xbf16>
    %cst_28 = arith.constant dense<0.000000e+00> : vector<8x500xf32>
    %46 = tpu.matmul %44, %45, %cst_28 {dimension_numbers = #tpu.dot_dimension_numbers<[1], [0], [0], [1], [0, 0, 1, 1], [], []>} : vector<8x500xbf16>, vector<500x500xbf16>, vector<8x500xf32> -> vector<8x500xf32>
    %c0_29 = arith.constant 0 : index
    %c0_30 = arith.constant 0 : index
    %47 = vector.load %arg13[%c0_29, %c0_30] : memref<1x500xf32, #tpu.memory_space<vmem>>, vector<1x500xf32>
    %48 = vector.broadcast %47 : vector<1x500xf32> to vector<8x500xf32>
    %49 = arith.addf %46, %48 : vector<8x500xf32>
    %50 = math.tanh %49 : vector<8x500xf32>
    %51 = arith.truncf %50 : vector<8x500xf32> to vector<8x500xbf16>
    %c0_31 = arith.constant 0 : index
    %c0_32 = arith.constant 0 : index
    %52 = vector.load %arg14[%c0_31, %c0_32] : memref<500x500xbf16, #tpu.memory_space<vmem>>, vector<500x500xbf16>
    %cst_33 = arith.constant dense<0.000000e+00> : vector<8x500xf32>
    %53 = tpu.matmul %51, %52, %cst_33 {dimension_numbers = #tpu.dot_dimension_numbers<[1], [0], [0], [1], [0, 0, 1, 1], [], []>} : vector<8x500xbf16>, vector<500x500xbf16>, vector<8x500xf32> -> vector<8x500xf32>
    %c0_34 = arith.constant 0 : index
    %c0_35 = arith.constant 0 : index
    %54 = vector.load %arg15[%c0_34, %c0_35] : memref<1x500xf32, #tpu.memory_space<vmem>>, vector<1x500xf32>
    %55 = vector.broadcast %54 : vector<1x500xf32> to vector<8x500xf32>
    %56 = arith.addf %53, %55 : vector<8x500xf32>
    %57 = math.tanh %56 : vector<8x500xf32>
    %58 = arith.truncf %57 : vector<8x500xf32> to vector<8x500xbf16>
    %c0_36 = arith.constant 0 : index
    %c0_37 = arith.constant 0 : index
    %59 = vector.load %arg16[%c0_36, %c0_37] : memref<500x50xbf16, #tpu.memory_space<vmem>>, vector<500x50xbf16>
    %cst_38 = arith.constant dense<0.000000e+00> : vector<8x50xf32>
    %60 = tpu.matmul %58, %59, %cst_38 {dimension_numbers = #tpu.dot_dimension_numbers<[1], [0], [0], [1], [0, 0, 1, 1], [], []>} : vector<8x500xbf16>, vector<500x50xbf16>, vector<8x50xf32> -> vector<8x50xf32>
    %c0_39 = arith.constant 0 : index
    %c0_40 = arith.constant 0 : index
    %61 = vector.load %arg17[%c0_39, %c0_40] : memref<1x50xf32, #tpu.memory_space<vmem>>, vector<1x50xf32>
    %62 = vector.broadcast %61 : vector<1x50xf32> to vector<8x50xf32>
    %63 = arith.addf %60, %62 : vector<8x50xf32>
    %cst_41 = arith.constant 5.000000e-01 : f32
    %64 = vector.broadcast %cst_41 : f32 to vector<8x50xf32>
    %65 = arith.mulf %64, %63 : vector<8x50xf32>
    %66 = math.tanh %65 : vector<8x50xf32>
    %cst_42 = arith.constant 1.000000e+00 : f32
    %67 = vector.broadcast %cst_42 : f32 to vector<8x50xf32>
    %68 = arith.addf %67, %66 : vector<8x50xf32>
    %cst_43 = arith.constant 5.000000e-01 : f32
    %69 = vector.broadcast %cst_43 : f32 to vector<8x50xf32>
    %70 = arith.mulf %69, %68 : vector<8x50xf32>
    %71 = arith.truncf %70 : vector<8x50xf32> to vector<8x50xbf16>
    %c0_44 = arith.constant 0 : index
    %c0_45 = arith.constant 0 : index
    %72 = vector.load %arg18[%c0_44, %c0_45] : memref<50x2484xbf16, #tpu.memory_space<vmem>>, vector<50x2484xbf16>
    %cst_46 = arith.constant dense<0.000000e+00> : vector<8x2484xf32>
    %73 = tpu.matmul %71, %72, %cst_46 {dimension_numbers = #tpu.dot_dimension_numbers<[1], [0], [0], [1], [0, 0, 1, 1], [], []>} : vector<8x50xbf16>, vector<50x2484xbf16>, vector<8x2484xf32> -> vector<8x2484xf32>
    %c0_47 = arith.constant 0 : index
    %c0_48 = arith.constant 0 : index
    %74 = vector.load %arg19[%c0_47, %c0_48] : memref<1x2484xf32, #tpu.memory_space<vmem>>, vector<1x2484xf32>
    %75 = vector.broadcast %74 : vector<1x2484xf32> to vector<8x2484xf32>
    %76 = arith.addf %73, %75 : vector<8x2484xf32>
    %77 = vector.extract_strided_slice %76 {offsets = [0, 0], sizes = [8, 276], strides = [1, 1]} : vector<8x2484xf32> to vector<8x276xf32>
    %78 = vector.extract_strided_slice %76 {offsets = [0, 276], sizes = [8, 276], strides = [1, 1]} : vector<8x2484xf32> to vector<8x276xf32>
    %79 = vector.extract_strided_slice %76 {offsets = [0, 552], sizes = [8, 276], strides = [1, 1]} : vector<8x2484xf32> to vector<8x276xf32>
    %80 = arith.maximumf %77, %78 : vector<8x276xf32>
    %81 = arith.maximumf %80, %79 : vector<8x276xf32>
    %82 = arith.subf %77, %81 : vector<8x276xf32>
    %83 = math.exp %82 : vector<8x276xf32>
    %84 = arith.subf %78, %81 : vector<8x276xf32>
    %85 = math.exp %84 : vector<8x276xf32>
    %86 = arith.subf %79, %81 : vector<8x276xf32>
    %87 = math.exp %86 : vector<8x276xf32>
    %88 = arith.addf %83, %85 : vector<8x276xf32>
    %89 = arith.addf %88, %87 : vector<8x276xf32>
    %90 = tpu.reciprocal %89 {approx = true} : vector<8x276xf32> -> vector<8x276xf32>
    %91 = arith.mulf %83, %90 : vector<8x276xf32>
    %92 = arith.truncf %91 : vector<8x276xf32> to vector<8x276xbf16>
    %c0_49 = arith.constant 0 : index
    %c0_50 = arith.constant 0 : index
    %93 = vector.load %arg21[%c0_49, %c0_50] : memref<8x2484xbf16, #tpu.memory_space<vmem>>, vector<8x276xbf16>
    tpu.vector_store %arg21[%c0_49, %c0_50], %92 {strides = array<i32>} : memref<8x2484xbf16, #tpu.memory_space<vmem>>, vector<8x276xbf16>,
    %94 = arith.mulf %85, %90 : vector<8x276xf32>
    %95 = arith.truncf %94 : vector<8x276xf32> to vector<8x276xbf16>
    %c0_51 = arith.constant 0 : index
    %c276 = arith.constant 276 : index
    %96 = vector.load %arg21[%c0_51, %c276] : memref<8x2484xbf16, #tpu.memory_space<vmem>>, vector<8x276xbf16>
    tpu.vector_store %arg21[%c0_51, %c276], %95 {strides = array<i32>} : memref<8x2484xbf16, #tpu.memory_space<vmem>>, vector<8x276xbf16>,
    %97 = arith.mulf %87, %90 : vector<8x276xf32>
    %98 = arith.truncf %97 : vector<8x276xf32> to vector<8x276xbf16>
    %c0_52 = arith.constant 0 : index
    %c552 = arith.constant 552 : index
    %99 = vector.load %arg21[%c0_52, %c552] : memref<8x2484xbf16, #tpu.memory_space<vmem>>, vector<8x276xbf16>
    tpu.vector_store %arg21[%c0_52, %c552], %98 {strides = array<i32>} : memref<8x2484xbf16, #tpu.memory_space<vmem>>, vector<8x276xbf16>,
    %100 = vector.extract_strided_slice %76 {offsets = [0, 828], sizes = [8, 552], strides = [1, 1]} : vector<8x2484xf32> to vector<8x552xf32>
    %101 = arith.truncf %100 : vector<8x552xf32> to vector<8x552xbf16>
    %c0_53 = arith.constant 0 : index
    %c828 = arith.constant 828 : index
    %102 = vector.load %arg21[%c0_53, %c828] : memref<8x2484xbf16, #tpu.memory_space<vmem>>, vector<8x552xbf16>
    tpu.vector_store %arg21[%c0_53, %c828], %101 {strides = array<i32>} : memref<8x2484xbf16, #tpu.memory_space<vmem>>, vector<8x552xbf16>,
    %103 = vector.extract_strided_slice %76 {offsets = [0, 1380], sizes = [8, 552], strides = [1, 1]} : vector<8x2484xf32> to vector<8x552xf32>
    %cst_54 = arith.constant 5.000000e-01 : f32
    %104 = vector.broadcast %cst_54 : f32 to vector<8x552xf32>
    %105 = arith.mulf %104, %103 : vector<8x552xf32>
    %106 = math.tanh %105 : vector<8x552xf32>
    %cst_55 = arith.constant 1.000000e+00 : f32
    %107 = vector.broadcast %cst_55 : f32 to vector<8x552xf32>
    %108 = arith.addf %107, %106 : vector<8x552xf32>
    %cst_56 = arith.constant 5.000000e-01 : f32
    %109 = vector.broadcast %cst_56 : f32 to vector<8x552xf32>
    %110 = arith.mulf %109, %108 : vector<8x552xf32>
    %cst_57 = arith.constant 8.000000e-01 : f32
    %111 = vector.broadcast %cst_57 : f32 to vector<8x552xf32>
    %112 = arith.mulf %110, %111 : vector<8x552xf32>
    %113 = arith.truncf %112 : vector<8x552xf32> to vector<8x552xbf16>
    %c0_58 = arith.constant 0 : index
    %c1380 = arith.constant 1380 : index
    %114 = vector.load %arg21[%c0_58, %c1380] : memref<8x2484xbf16, #tpu.memory_space<vmem>>, vector<8x552xbf16>
    tpu.vector_store %arg21[%c0_58, %c1380], %113 {strides = array<i32>} : memref<8x2484xbf16, #tpu.memory_space<vmem>>, vector<8x552xbf16>,
    %115 = vector.extract_strided_slice %76 {offsets = [0, 1932], sizes = [8, 276], strides = [1, 1]} : vector<8x2484xf32> to vector<8x276xf32>
    %116 = arith.truncf %115 : vector<8x276xf32> to vector<8x276xbf16>
    %c0_59 = arith.constant 0 : index
    %c1932 = arith.constant 1932 : index
    %117 = vector.load %arg21[%c0_59, %c1932] : memref<8x2484xbf16, #tpu.memory_space<vmem>>, vector<8x276xbf16>
    tpu.vector_store %arg21[%c0_59, %c1932], %116 {strides = array<i32>} : memref<8x2484xbf16, #tpu.memory_space<vmem>>, vector<8x276xbf16>,
    %118 = vector.extract_strided_slice %76 {offsets = [0, 2208], sizes = [8, 276], strides = [1, 1]} : vector<8x2484xf32> to vector<8x276xf32>
    %cst_60 = arith.constant 0.000000e+00 : f32
    %119 = vector.broadcast %cst_60 : f32 to vector<8x276xf32>
    %120 = arith.maximumf %118, %119 : vector<8x276xf32>
    %121 = math.absf %118 : vector<8x276xf32>
    %cst_61 = arith.constant 0.000000e+00 : f32
    %122 = vector.broadcast %cst_61 : f32 to vector<8x276xf32>
    %123 = arith.subf %122, %121 : vector<8x276xf32>
    %124 = math.exp %123 : vector<8x276xf32>
    %cst_62 = arith.constant 1.000000e+00 : f32
    %125 = vector.broadcast %cst_62 : f32 to vector<8x276xf32>
    %126 = arith.addf %125, %124 : vector<8x276xf32>
    %127 = math.log %126 : vector<8x276xf32>
    %128 = arith.addf %120, %127 : vector<8x276xf32>
    %129 = arith.truncf %128 : vector<8x276xf32> to vector<8x276xbf16>
    %c0_63 = arith.constant 0 : index
    %c2208 = arith.constant 2208 : index
    %130 = vector.load %arg21[%c0_63, %c2208] : memref<8x2484xbf16, #tpu.memory_space<vmem>>, vector<8x276xbf16>
    tpu.vector_store %arg21[%c0_63, %c2208], %129 {strides = array<i32>} : memref<8x2484xbf16, #tpu.memory_space<vmem>>, vector<8x276xbf16>,
    return
  }
  func.func @transform_0(%arg0: i32) -> (i32, i32) {
    %c0_i32 = arith.constant 0 : i32
    %c0_i32_0 = arith.constant 0 : i32
    return %arg0, %c0_i32 : i32, i32
  }
  func.func @transform_1(%arg0: i32) -> (i32, i32) {
    %c0_i32 = arith.constant 0 : i32
    %c0_i32_0 = arith.constant 0 : i32
    %c0_i32_1 = arith.constant 0 : i32
    return %c0_i32, %c0_i32_0 : i32, i32
  }
  func.func @transform_2(%arg0: i32) -> (i32, i32) {
    %c0_i32 = arith.constant 0 : i32
    %c0_i32_0 = arith.constant 0 : i32
    %c0_i32_1 = arith.constant 0 : i32
    return %c0_i32, %c0_i32_0 : i32, i32
  }
  func.func @transform_3(%arg0: i32) -> (i32, i32) {
    %c0_i32 = arith.constant 0 : i32
    %c0_i32_0 = arith.constant 0 : i32
    %c0_i32_1 = arith.constant 0 : i32
    return %c0_i32, %c0_i32_0 : i32, i32
  }
  func.func @transform_4(%arg0: i32) -> (i32, i32) {
    %c0_i32 = arith.constant 0 : i32
    %c0_i32_0 = arith.constant 0 : i32
    %c0_i32_1 = arith.constant 0 : i32
    return %c0_i32, %c0_i32_0 : i32, i32
  }
  func.func @transform_5(%arg0: i32) -> (i32, i32) {
    %c0_i32 = arith.constant 0 : i32
    %c0_i32_0 = arith.constant 0 : i32
    %c0_i32_1 = arith.constant 0 : i32
    return %c0_i32, %c0_i32_0 : i32, i32
  }
  func.func @transform_6(%arg0: i32) -> (i32, i32) {
    %c0_i32 = arith.constant 0 : i32
    %c0_i32_0 = arith.constant 0 : i32
    %c0_i32_1 = arith.constant 0 : i32
    return %c0_i32, %c0_i32_0 : i32, i32
  }
  func.func @transform_7(%arg0: i32) -> (i32, i32) {
    %c0_i32 = arith.constant 0 : i32
    %c0_i32_0 = arith.constant 0 : i32
    %c0_i32_1 = arith.constant 0 : i32
    return %c0_i32, %c0_i32_0 : i32, i32
  }
  func.func @transform_8(%arg0: i32) -> (i32, i32) {
    %c0_i32 = arith.constant 0 : i32
    %c0_i32_0 = arith.constant 0 : i32
    %c0_i32_1 = arith.constant 0 : i32
    return %c0_i32, %c0_i32_0 : i32, i32
  }
  func.func @transform_9(%arg0: i32) -> (i32, i32) {
    %c0_i32 = arith.constant 0 : i32
    %c0_i32_0 = arith.constant 0 : i32
    %c0_i32_1 = arith.constant 0 : i32
    return %c0_i32, %c0_i32_0 : i32, i32
  }
  func.func @transform_10(%arg0: i32) -> (i32, i32) {
    %c0_i32 = arith.constant 0 : i32
    %c0_i32_0 = arith.constant 0 : i32
    %c0_i32_1 = arith.constant 0 : i32
    return %c0_i32, %c0_i32_0 : i32, i32
  }
  func.func @transform_11(%arg0: i32) -> (i32, i32) {
    %c0_i32 = arith.constant 0 : i32
    %c0_i32_0 = arith.constant 0 : i32
    %c0_i32_1 = arith.constant 0 : i32
    return %c0_i32, %c0_i32_0 : i32, i32
  }
  func.func @transform_12(%arg0: i32) -> (i32, i32) {
    %c0_i32 = arith.constant 0 : i32
    %c0_i32_0 = arith.constant 0 : i32
    %c0_i32_1 = arith.constant 0 : i32
    return %c0_i32, %c0_i32_0 : i32, i32
  }
  func.func @transform_13(%arg0: i32) -> (i32, i32) {
    %c0_i32 = arith.constant 0 : i32
    %c0_i32_0 = arith.constant 0 : i32
    %c0_i32_1 = arith.constant 0 : i32
    return %c0_i32, %c0_i32_0 : i32, i32
  }
  func.func @transform_14(%arg0: i32) -> (i32, i32) {
    %c0_i32 = arith.constant 0 : i32
    %c0_i32_0 = arith.constant 0 : i32
    %c0_i32_1 = arith.constant 0 : i32
    return %c0_i32, %c0_i32_0 : i32, i32
  }
  func.func @transform_15(%arg0: i32) -> (i32, i32) {
    %c0_i32 = arith.constant 0 : i32
    %c0_i32_0 = arith.constant 0 : i32
    %c0_i32_1 = arith.constant 0 : i32
    return %c0_i32, %c0_i32_0 : i32, i32
  }
  func.func @transform_16(%arg0: i32) -> (i32, i32) {
    %c0_i32 = arith.constant 0 : i32
    %c0_i32_0 = arith.constant 0 : i32
    %c0_i32_1 = arith.constant 0 : i32
    return %c0_i32, %c0_i32_0 : i32, i32
  }
  func.func @transform_17(%arg0: i32) -> (i32, i32) {
    %c0_i32 = arith.constant 0 : i32
    %c0_i32_0 = arith.constant 0 : i32
    %c0_i32_1 = arith.constant 0 : i32
    return %c0_i32, %c0_i32_0 : i32, i32
  }
  func.func @transform_18(%arg0: i32) -> (i32, i32) {
    %c0_i32 = arith.constant 0 : i32
    %c0_i32_0 = arith.constant 0 : i32
    %c0_i32_1 = arith.constant 0 : i32
    return %c0_i32, %c0_i32_0 : i32, i32
  }
  func.func @transform_19(%arg0: i32) -> (i32, i32) {
    %c0_i32 = arith.constant 0 : i32
    %c0_i32_0 = arith.constant 0 : i32
    return %arg0, %c0_i32 : i32, i32
  }
  func.func @transform_20(%arg0: i32) -> (i32, i32) {
    %c0_i32 = arith.constant 0 : i32
    %c0_i32_0 = arith.constant 0 : i32
    return %arg0, %c0_i32 : i32, i32
  }
}

</mosaic_0001>

<llo_original>
// kernel: tpu_custom_call.1
$region0: #{tpu_custom_call.1}
  #allocation0 [shape = 'u32[]', space=smem, size = 0x4, offset = 0x4, fixed_abs, tag = 'smem constant byte address 0x4 - core index']
  #allocation1 [shape = 'u32[72,128]{1,0:T(1,128)}', space=vmem, size = 0x9000, scoped, tag = 'internal scratch']
  %s0 = inlined_call_operand.vmem [shape: bf16[8,276], index: 0, kind: input, shape index: {}]
  %s1 = inlined_call_operand.hbm [shape: bf16[276,500], index: 1, kind: input, shape index: {}]
  %s2 = inlined_call_operand.vmem [shape: f32[1,500], index: 2, kind: input, shape index: {}]
  %s3 = inlined_call_operand.hbm [shape: bf16[500,500], index: 3, kind: input, shape index: {}]
  %s4 = inlined_call_operand.vmem [shape: f32[1,500], index: 4, kind: input, shape index: {}]
  %s5 = inlined_call_operand.hbm [shape: bf16[500,500], index: 5, kind: input, shape index: {}]
  %s6 = inlined_call_operand.vmem [shape: f32[1,500], index: 6, kind: input, shape index: {}]
  %s7 = inlined_call_operand.vmem [shape: bf16[500,2], index: 7, kind: input, shape index: {}]
  %s8 = inlined_call_operand.vmem [shape: f32[1,2], index: 8, kind: input, shape index: {}]
  %s9 = inlined_call_operand.vmem [shape: f32[2,500], index: 9, kind: input, shape index: {}]
  %s10 = inlined_call_operand.vmem [shape: f32[1,500], index: 10, kind: input, shape index: {}]
  %s11 = inlined_call_operand.hbm [shape: bf16[500,500], index: 11, kind: input, shape index: {}]
  %s12 = inlined_call_operand.vmem [shape: f32[1,500], index: 12, kind: input, shape index: {}]
  %s13 = inlined_call_operand.hbm [shape: bf16[500,500], index: 13, kind: input, shape index: {}]
  %s14 = inlined_call_operand.vmem [shape: f32[1,500], index: 14, kind: input, shape index: {}]
  %s15 = inlined_call_operand.vmem [shape: bf16[500,50], index: 15, kind: input, shape index: {}]
  %s16 = inlined_call_operand.vmem [shape: f32[1,50], index: 16, kind: input, shape index: {}]
  %s17 = inlined_call_operand.hbm [shape: bf16[50,2484], index: 17, kind: input, shape index: {}]
  %s18 = inlined_call_operand.vmem [shape: f32[1,2484], index: 18, kind: input, shape index: {}]
  %s19 = inlined_call_operand.vmem [shape: f32[8,2], index: 19, kind: output, shape index: {0}]
  %s20 = inlined_call_operand.hbm [shape: bf16[8,2484], index: 20, kind: output, shape index: {1}]
  %21 = xla_tuple %s19, %s20
  %s22 = sld [smem:[#allocation0]]
  $region118: #{tpu_custom_call.1} parent=0
    _
  %s24 = ssub.s32 1, %s22
  %s25 = scalar_select 0, %s24, %s22
  $region1: #{tpu_custom_call.1} parent=0
    #allocation2 [shape = 'u8[286720]{0}', space=vmem, size = 0x46000, scoped, tag = 'input window, operand 1, single buffered']
    #allocation3 [shape = 's32[1]{0}', space=sflag, size = 0x4, scoped, tag = 'scoped memory for tpu_custom_call.1']
    #allocation4 [shape = 's32[1]{0}', space=sflag, size = 0x4, scoped, tag = 'scoped memory for tpu_custom_call.1']
    #allocation5 [shape = 'u8[516096]{0}', space=vmem, size = 0x7e000, scoped, tag = 'input window, operand 3, single buffered']
    #allocation6 [shape = 's32[1]{0}', space=sflag, size = 0x4, scoped, tag = 'scoped memory for tpu_custom_call.1']
    #allocation7 [shape = 'u8[516096]{0}', space=vmem, size = 0x7e000, scoped, tag = 'input window, operand 5, single buffered']
    #allocation8 [shape = 'u8[516096]{0}', space=vmem, size = 0x7e000, scoped, tag = 'input window, operand 11, single buffered']
    #allocation9 [shape = 's32[1]{0}', space=sflag, size = 0x4, scoped, tag = 'scoped memory for tpu_custom_call.1']
    #allocation10 [shape = 'u8[516096]{0}', space=vmem, size = 0x7e000, scoped, tag = 'input window, operand 13, single buffered']
    #allocation11 [shape = 'u8[286720]{0}', space=vmem, size = 0x46000, scoped, tag = 'input window, operand 17, single buffered']
    #allocation12 [shape = 's32[1]{0}', space=sflag, size = 0x4, scoped, tag = 'scoped memory for tpu_custom_call.1']
    #allocation13 [shape = 'u8[40960]{0}', space=vmem, size = 0xa000, scoped, tag = 'output window, operand 1, single buffered']
    %26 = vsyncpa [#allocation3], 0
    %27 = vsyncpa [#allocation6], 0
    %28 = vsyncpa [#allocation9], 0
    %29 = vsyncpa [#allocation12], 0
    %30 = vsyncpa [#allocation4], 0
    // Predicated region
    $region2: #{tpu_custom_call.1} parent=1 // pred_check
      _
    $region3: #{tpu_custom_call.1} parent=1 // pred_check_branch
      %32 = sbr.rel (0) target = $region5
    $region4: #{tpu_custom_call.1} parent=1 // pred_region
      _
    $region5: #{tpu_custom_call.1} parent=1 // pred_fallthru
      _
    // Predicated region
    $region6: #{tpu_custom_call.1} parent=1 // pred_check
      _
    $region7: #{tpu_custom_call.1} parent=1 // pred_check_branch
      %34 = sbr.rel (0) target = $region9
    $region8: #{tpu_custom_call.1} parent=1 // pred_region
      %36 = vsyncadd [#allocation3], 0
      %s37 = sshll.u32 %s1, 4
      %s38 = int_to_ptr.hbm [resolvable:$true] %s37
      %s39 = sshll.u32 [#allocation2], 4
      %s40 = int_to_ptr.vmem [resolvable:$true] %s39
      %45 = dma.hbm_to_vmem [thread:$0]  %s38, 8960, %s40, [#allocation3], 256, 256, 16
    $region9: #{tpu_custom_call.1} parent=1 // pred_fallthru
      _
    // Predicated region
    $region10: #{tpu_custom_call.1} parent=1 // pred_check
      _
    $region11: #{tpu_custom_call.1} parent=1 // pred_check_branch
      %47 = sbr.rel (0) target = $region13
    $region12: #{tpu_custom_call.1} parent=1 // pred_region
      _
    $region13: #{tpu_custom_call.1} parent=1 // pred_fallthru
      _
    // Predicated region
    $region14: #{tpu_custom_call.1} parent=1 // pred_check
      _
    $region15: #{tpu_custom_call.1} parent=1 // pred_check_branch
      %49 = sbr.rel (0) target = $region17
    $region16: #{tpu_custom_call.1} parent=1 // pred_region
      %51 = vsyncadd [#allocation6], 0
      %s52 = sshll.u32 %s3, 4
      %s53 = int_to_ptr.hbm [resolvable:$true] %s52
      %s54 = sshll.u32 [#allocation5], 4
      %s55 = int_to_ptr.vmem [resolvable:$true] %s54
      %60 = dma.hbm_to_vmem [thread:$0]  %s53, 16128, %s55, [#allocation6], 256, 256, 16
    $region17: #{tpu_custom_call.1} parent=1 // pred_fallthru
      _
    // Predicated region
    $region18: #{tpu_custom_call.1} parent=1 // pred_check
      _
    $region19: #{tpu_custom_call.1} parent=1 // pred_check_branch
      %62 = sbr.rel (0) target = $region21
    $region20: #{tpu_custom_call.1} parent=1 // pred_region
      _
    $region21: #{tpu_custom_call.1} parent=1 // pred_fallthru
      _
    // Predicated region
    $region22: #{tpu_custom_call.1} parent=1 // pred_check
      _
    $region23: #{tpu_custom_call.1} parent=1 // pred_check_branch
      %64 = sbr.rel (0) target = $region25
    $region24: #{tpu_custom_call.1} parent=1 // pred_region
      %66 = vsyncadd [#allocation6], 0
      %s67 = sshll.u32 %s5, 4
      %s68 = int_to_ptr.hbm [resolvable:$true] %s67
      %s69 = sshll.u32 [#allocation7], 4
      %s70 = int_to_ptr.vmem [resolvable:$true] %s69
      %75 = dma.hbm_to_vmem [thread:$0]  %s68, 16128, %s70, [#allocation6], 256, 256, 16
    $region25: #{tpu_custom_call.1} parent=1 // pred_fallthru
      _
    // Predicated region
    $region26: #{tpu_custom_call.1} parent=1 // pred_check
      _
    $region27: #{tpu_custom_call.1} parent=1 // pred_check_branch
      %77 = sbr.rel (0) target = $region29
    $region28: #{tpu_custom_call.1} parent=1 // pred_region
      _
    $region29: #{tpu_custom_call.1} parent=1 // pred_fallthru
      _
    // Predicated region
    $region30: #{tpu_custom_call.1} parent=1 // pred_check
      _
    $region31: #{tpu_custom_call.1} parent=1 // pred_check_branch
      %79 = sbr.rel (0) target = $region33
    $region32: #{tpu_custom_call.1} parent=1 // pred_region
      _
    $region33: #{tpu_custom_call.1} parent=1 // pred_fallthru
      _
    // Predicated region
    $region34: #{tpu_custom_call.1} parent=1 // pred_check
      _
    $region35: #{tpu_custom_call.1} parent=1 // pred_check_branch
      %81 = sbr.rel (0) target = $region37
    $region36: #{tpu_custom_call.1} parent=1 // pred_region
      _
    $region37: #{tpu_custom_call.1} parent=1 // pred_fallthru
      _
    // Predicated region
    $region38: #{tpu_custom_call.1} parent=1 // pred_check
      _
    $region39: #{tpu_custom_call.1} parent=1 // pred_check_branch
      %83 = sbr.rel (0) target = $region41
    $region40: #{tpu_custom_call.1} parent=1 // pred_region
      _
    $region41: #{tpu_custom_call.1} parent=1 // pred_fallthru
      _
    // Predicated region
    $region42: #{tpu_custom_call.1} parent=1 // pred_check
      _
    $region43: #{tpu_custom_call.1} parent=1 // pred_check_branch
      %85 = sbr.rel (0) target = $region45
    $region44: #{tpu_custom_call.1} parent=1 // pred_region
      _
    $region45: #{tpu_custom_call.1} parent=1 // pred_fallthru
      _
    // Predicated region
    $region46: #{tpu_custom_call.1} parent=1 // pred_check
      _
    $region47: #{tpu_custom_call.1} parent=1 // pred_check_branch
      %87 = sbr.rel (0) target = $region49
    $region48: #{tpu_custom_call.1} parent=1 // pred_region
      %89 = vsyncadd [#allocation9], 0
      %s90 = sshll.u32 %s11, 4
      %s91 = int_to_ptr.hbm [resolvable:$true] %s90
      %s92 = sshll.u32 [#allocation8], 4
      %s93 = int_to_ptr.vmem [resolvable:$true] %s92
      %98 = dma.hbm_to_vmem [thread:$0]  %s91, 16128, %s93, [#allocation9], 256, 256, 16
    $region49: #{tpu_custom_call.1} parent=1 // pred_fallthru
      _
    // Predicated region
    $region50: #{tpu_custom_call.1} parent=1 // pred_check
      _
    $region51: #{tpu_custom_call.1} parent=1 // pred_check_branch
      %100 = sbr.rel (0) target = $region53
    $region52: #{tpu_custom_call.1} parent=1 // pred_region
      _
    $region53: #{tpu_custom_call.1} parent=1 // pred_fallthru
      _
    // Predicated region
    $region54: #{tpu_custom_call.1} parent=1 // pred_check
      _
    $region55: #{tpu_custom_call.1} parent=1 // pred_check_branch
      %102 = sbr.rel (0) target = $region57
    $region56: #{tpu_custom_call.1} parent=1 // pred_region
      %104 = vsyncadd [#allocation9], 0
      %s105 = sshll.u32 %s13, 4
      %s106 = int_to_ptr.hbm [resolvable:$true] %s105
      %s107 = sshll.u32 [#allocation10], 4
      %s108 = int_to_ptr.vmem [resolvable:$true] %s107
      %113 = dma.hbm_to_vmem [thread:$0]  %s106, 16128, %s108, [#allocation9], 256, 256, 16
    $region57: #{tpu_custom_call.1} parent=1 // pred_fallthru
      _
    // Predicated region
    $region58: #{tpu_custom_call.1} parent=1 // pred_check
      _
    $region59: #{tpu_custom_call.1} parent=1 // pred_check_branch
      %115 = sbr.rel (0) target = $region61
    $region60: #{tpu_custom_call.1} parent=1 // pred_region
      _
    $region61: #{tpu_custom_call.1} parent=1 // pred_fallthru
      _
    // Predicated region
    $region62: #{tpu_custom_call.1} parent=1 // pred_check
      _
    $region63: #{tpu_custom_call.1} parent=1 // pred_check_branch
      %117 = sbr.rel (0) target = $region65
    $region64: #{tpu_custom_call.1} parent=1 // pred_region
      _
    $region65: #{tpu_custom_call.1} parent=1 // pred_fallthru
      _
    // Predicated region
    $region66: #{tpu_custom_call.1} parent=1 // pred_check
      _
    $region67: #{tpu_custom_call.1} parent=1 // pred_check_branch
      %119 = sbr.rel (0) target = $region69
    $region68: #{tpu_custom_call.1} parent=1 // pred_region
      _
    $region69: #{tpu_custom_call.1} parent=1 // pred_fallthru
      _
    // Predicated region
    $region70: #{tpu_custom_call.1} parent=1 // pred_check
      _
    $region71: #{tpu_custom_call.1} parent=1 // pred_check_branch
      %121 = sbr.rel (0) target = $region73
    $region72: #{tpu_custom_call.1} parent=1 // pred_region
      %123 = vsyncadd [#allocation12], 0
      %s124 = sshll.u32 %s17, 4
      %s125 = int_to_ptr.hbm [resolvable:$true] %s124
      %s126 = sshll.u32 [#allocation11], 4
      %s127 = int_to_ptr.vmem [resolvable:$true] %s126
      %132 = dma.hbm_to_vmem [thread:$0]  %s125, 8960, %s127, [#allocation12], 1280, 1280, 80
    $region73: #{tpu_custom_call.1} parent=1 // pred_fallthru
      _
    // Predicated region
    $region74: #{tpu_custom_call.1} parent=1 // pred_check
      _
    $region75: #{tpu_custom_call.1} parent=1 // pred_check_branch
      %134 = sbr.rel (0) target = $region77
    $region76: #{tpu_custom_call.1} parent=1 // pred_region
      _
    $region77: #{tpu_custom_call.1} parent=1 // pred_fallthru
      _
    // Predicated region
    $region78: #{tpu_custom_call.1} parent=1 // pred_check
      _
    $region79: #{tpu_custom_call.1} parent=1 // pred_check_branch
      %136 = sbr.rel (0) target = $region81
    $region80: #{tpu_custom_call.1} parent=1 // pred_region
      %138 = dma.done [#allocation3], 8960
    $region81: #{tpu_custom_call.1} parent=1 // pred_fallthru
      _
    // Predicated region
    $region82: #{tpu_custom_call.1} parent=1 // pred_check
      _
    $region83: #{tpu_custom_call.1} parent=1 // pred_check_branch
      %140 = sbr.rel (0) target = $region85
    $region84: #{tpu_custom_call.1} parent=1 // pred_region
      %142 = dma.done [#allocation6], 16128
    $region85: #{tpu_custom_call.1} parent=1 // pred_fallthru
      _
    // Predicated region
    $region86: #{tpu_custom_call.1} parent=1 // pred_check
      _
    $region87: #{tpu_custom_call.1} parent=1 // pred_check_branch
      %144 = sbr.rel (0) target = $region89
    $region88: #{tpu_custom_call.1} parent=1 // pred_region
      %146 = dma.done [#allocation6], 16128
    $region89: #{tpu_custom_call.1} parent=1 // pred_fallthru
      _
    // Predicated region
    $region90: #{tpu_custom_call.1} parent=1 // pred_check
      _
    $region91: #{tpu_custom_call.1} parent=1 // pred_check_branch
      %148 = sbr.rel (0) target = $region93
    $region92: #{tpu_custom_call.1} parent=1 // pred_region
      %150 = dma.done [#allocation9], 16128
    $region93: #{tpu_custom_call.1} parent=1 // pred_fallthru
      _
    // Predicated region
    $region94: #{tpu_custom_call.1} parent=1 // pred_check
      _
    $region95: #{tpu_custom_call.1} parent=1 // pred_check_branch
      %152 = sbr.rel (0) target = $region97
    $region96: #{tpu_custom_call.1} parent=1 // pred_region
      %154 = dma.done [#allocation9], 16128
    $region97: #{tpu_custom_call.1} parent=1 // pred_fallthru
      _
    // Predicated region
    $region98: #{tpu_custom_call.1} parent=1 // pred_check
      _
    $region99: #{tpu_custom_call.1} parent=1 // pred_check_branch
      %156 = sbr.rel (0) target = $region101
    $region100: #{tpu_custom_call.1} parent=1 // pred_region
      %158 = dma.done [#allocation12], 8960
    $region101: #{tpu_custom_call.1} parent=1 // pred_fallthru
      _
    %v160 = vld [vmem:[%s0] sm:$0xff]
    %v161 = vld [vmem:[%s0 + $0x8] sm:$0xf]
    %v162 = vld [vmem:[#allocation2] sm:$0xff]
    %v163 = vld [vmem:[#allocation2 + $0x8] sm:$0xff]
    %v164 = vld [vmem:[#allocation2 + $0x10] sm:$0xff]
    %v165 = vld [vmem:[#allocation2 + $0x18] sm:$0xff]
    %v166 = vld [vmem:[#allocation2 + $0x20] sm:$0xff]
    %v167 = vld [vmem:[#allocation2 + $0x28] sm:$0xff]
    %v168 = vld [vmem:[#allocation2 + $0x30] sm:$0xff]
    %v169 = vld [vmem:[#allocation2 + $0x38] sm:$0xff]
    %v170 = vld [vmem:[#allocation2 + $0x40] sm:$0xff]
    %v171 = vld [vmem:[#allocation2 + $0x48] sm:$0xff]
    %v172 = vld [vmem:[#allocation2 + $0x50] sm:$0xff]
    %v173 = vld [vmem:[#allocation2 + $0x58] sm:$0xff]
    %v174 = vld [vmem:[#allocation2 + $0x60] sm:$0xff]
    %v175 = vld [vmem:[#allocation2 + $0x68] sm:$0xff]
    %v176 = vld [vmem:[#allocation2 + $0x70] sm:$0xff]
    %v177 = vld [vmem:[#allocation2 + $0x78] sm:$0xff]
    %v178 = vld [vmem:[#allocation2 + $0x80] sm:$0xff]
    %v179 = vld [vmem:[#allocation2 + $0x88] sm:$0xff]
    %v180 = vld [vmem:[#allocation2 + $0x90] sm:$0xff]
    %v181 = vld [vmem:[#allocation2 + $0x98] sm:$0xff]
    %v182 = vld [vmem:[#allocation2 + $0xa0] sm:$0xff]
    %v183 = vld [vmem:[#allocation2 + $0xa8] sm:$0xff]
    %v184 = vld [vmem:[#allocation2 + $0xb0] sm:$0xff]
    %v185 = vld [vmem:[#allocation2 + $0xb8] sm:$0xff]
    %v186 = vld [vmem:[#allocation2 + $0xc0] sm:$0xff]
    %v187 = vld [vmem:[#allocation2 + $0xc8] sm:$0xff]
    %v188 = vld [vmem:[#allocation2 + $0xd0] sm:$0xff]
    %v189 = vld [vmem:[#allocation2 + $0xd8] sm:$0xff]
    %v190 = vld [vmem:[#allocation2 + $0xe0] sm:$0xff]
    %v191 = vld [vmem:[#allocation2 + $0xe8] sm:$0xff]
    %v192 = vld [vmem:[#allocation2 + $0xf0] sm:$0xff]
    %v193 = vld [vmem:[#allocation2 + $0xf8] sm:$0xff]
    %v194 = vld [vmem:[#allocation2 + $0x100] sm:$0xff]
    %v195 = vld [vmem:[#allocation2 + $0x108] sm:$0xff]
    %v196 = vld [vmem:[#allocation2 + $0x110] sm:$0xff]
    %v197 = vld [vmem:[#allocation2 + $0x118] sm:$0xff]
    %v198 = vld [vmem:[#allocation2 + $0x120] sm:$0xff]
    %v199 = vld [vmem:[#allocation2 + $0x128] sm:$0xff]
    %v200 = vld [vmem:[#allocation2 + $0x130] sm:$0xff]
    %v201 = vld [vmem:[#allocation2 + $0x138] sm:$0xff]
    %v202 = vld [vmem:[#allocation2 + $0x140] sm:$0xff]
    %v203 = vld [vmem:[#allocation2 + $0x148] sm:$0xff]
    %v204 = vld [vmem:[#allocation2 + $0x150] sm:$0xff]
    %v205 = vld [vmem:[#allocation2 + $0x158] sm:$0xff]
    %v206 = vld [vmem:[#allocation2 + $0x160] sm:$0xff]
    %v207 = vld [vmem:[#allocation2 + $0x168] sm:$0xff]
    %v208 = vld [vmem:[#allocation2 + $0x170] sm:$0xff]
    %v209 = vld [vmem:[#allocation2 + $0x178] sm:$0xff]
    %v210 = vld [vmem:[#allocation2 + $0x180] sm:$0xff]
    %v211 = vld [vmem:[#allocation2 + $0x188] sm:$0xff]
    %v212 = vld [vmem:[#allocation2 + $0x190] sm:$0xff]
    %v213 = vld [vmem:[#allocation2 + $0x198] sm:$0xff]
    %v214 = vld [vmem:[#allocation2 + $0x1a0] sm:$0xff]
    %v215 = vld [vmem:[#allocation2 + $0x1a8] sm:$0xff]
    %v216 = vld [vmem:[#allocation2 + $0x1b0] sm:$0xff]
    %v217 = vld [vmem:[#allocation2 + $0x1b8] sm:$0xff]
    %v218 = vld [vmem:[#allocation2 + $0x1c0] sm:$0xff]
    %v219 = vld [vmem:[#allocation2 + $0x1c8] sm:$0xff]
    %v220 = vld [vmem:[#allocation2 + $0x1d0] sm:$0xff]
    %v221 = vld [vmem:[#allocation2 + $0x1d8] sm:$0xff]
    %v222 = vld [vmem:[#allocation2 + $0x1e0] sm:$0xff]
    %v223 = vld [vmem:[#allocation2 + $0x1e8] sm:$0xff]
    %v224 = vld [vmem:[#allocation2 + $0x1f0] sm:$0xff]
    %v225 = vld [vmem:[#allocation2 + $0x1f8] sm:$0xff]
    %v226 = vld [vmem:[#allocation2 + $0x200] sm:$0xff]
    %v227 = vld [vmem:[#allocation2 + $0x208] sm:$0xff]
    %v228 = vld [vmem:[#allocation2 + $0x210] sm:$0xff]
    %v229 = vld [vmem:[#allocation2 + $0x218] sm:$0xff]
    %v230 = vld [vmem:[#allocation2 + $0x220] sm:$0x33]
    %v231 = vld [vmem:[#allocation2 + $0x228] sm:$0x33]
    %v232 = vld [vmem:[%s2] sm:$0xf]
    %v234 = vperm.slane %v232, 0
    %v235 = vperm.slane %v232, 1
    %v236 = vperm.slane %v232, 2
    %v237 = vperm.slane %v232, 3
    %v244 = vunpack.c.l.b16 %v160
    %v245 = vunpack.c.h.b16 %v160
    %v246 = vunpack.c.l.b16 %v161
    %v247 = vpack.c.b16 %v244, %v244
    %v248 = vpack.c.b16 %v245, %v245
    %v249 = vpack.c.b16 %v246, %v246
    %v322 = vunpack.c.l.b16 %v162
    %v323 = vunpack.c.h.b16 %v162
    %v324 = vunpack.c.l.b16 %v163
    %v325 = vunpack.c.h.b16 %v163
    %v326 = vunpack.c.l.b16 %v164
    %v327 = vunpack.c.h.b16 %v164
    %v328 = vunpack.c.l.b16 %v165
    %v329 = vunpack.c.h.b16 %v165
    %v330 = vunpack.c.l.b16 %v166
    %v331 = vunpack.c.h.b16 %v166
    %v332 = vunpack.c.l.b16 %v167
    %v333 = vunpack.c.h.b16 %v167
    %v334 = vunpack.c.l.b16 %v168
    %v335 = vunpack.c.h.b16 %v168
    %v336 = vunpack.c.l.b16 %v169
    %v337 = vunpack.c.h.b16 %v169
    %v338 = vunpack.c.l.b16 %v170
    %v339 = vunpack.c.h.b16 %v170
    %v340 = vunpack.c.l.b16 %v171
    %v341 = vunpack.c.h.b16 %v171
    %v342 = vunpack.c.l.b16 %v172
    %v343 = vunpack.c.h.b16 %v172
    %v344 = vunpack.c.l.b16 %v173
    %v345 = vunpack.c.h.b16 %v173
    %v346 = vunpack.c.l.b16 %v174
    %v347 = vunpack.c.h.b16 %v174
    %v348 = vunpack.c.l.b16 %v175
    %v349 = vunpack.c.h.b16 %v175
    %v350 = vunpack.c.l.b16 %v176
    %v351 = vunpack.c.h.b16 %v176
    %v352 = vunpack.c.l.b16 %v177
    %v353 = vunpack.c.h.b16 %v177
    %v354 = vunpack.c.l.b16 %v178
    %v355 = vunpack.c.h.b16 %v178
    %v356 = vunpack.c.l.b16 %v179
    %v357 = vunpack.c.h.b16 %v179
    %v358 = vunpack.c.l.b16 %v180
    %v359 = vunpack.c.h.b16 %v180
    %v360 = vunpack.c.l.b16 %v181
    %v361 = vunpack.c.h.b16 %v181
    %v362 = vunpack.c.l.b16 %v182
    %v363 = vunpack.c.h.b16 %v182
    %v364 = vunpack.c.l.b16 %v183
    %v365 = vunpack.c.h.b16 %v183
    %v366 = vunpack.c.l.b16 %v184
    %v367 = vunpack.c.h.b16 %v184
    %v368 = vunpack.c.l.b16 %v185
    %v369 = vunpack.c.h.b16 %v185
    %v370 = vunpack.c.l.b16 %v186
    %v371 = vunpack.c.h.b16 %v186
    %v372 = vunpack.c.l.b16 %v187
    %v373 = vunpack.c.h.b16 %v187
    %v374 = vunpack.c.l.b16 %v188
    %v375 = vunpack.c.h.b16 %v188
    %v376 = vunpack.c.l.b16 %v189
    %v377 = vunpack.c.h.b16 %v189
    %v378 = vunpack.c.l.b16 %v190
    %v379 = vunpack.c.h.b16 %v190
    %v380 = vunpack.c.l.b16 %v191
    %v381 = vunpack.c.h.b16 %v191
    %v382 = vunpack.c.l.b16 %v192
    %v383 = vunpack.c.h.b16 %v192
    %v384 = vunpack.c.l.b16 %v193
    %v385 = vunpack.c.h.b16 %v193
    %v386 = vunpack.c.l.b16 %v194
    %v387 = vunpack.c.h.b16 %v194
    %v388 = vunpack.c.l.b16 %v195
    %v389 = vunpack.c.h.b16 %v195
    %v390 = vunpack.c.l.b16 %v196
    %v391 = vunpack.c.h.b16 %v196
    %v392 = vunpack.c.l.b16 %v197
    %v393 = vunpack.c.h.b16 %v197
    %v394 = vunpack.c.l.b16 %v198
    %v395 = vunpack.c.h.b16 %v198
    %v396 = vunpack.c.l.b16 %v199
    %v397 = vunpack.c.h.b16 %v199
    %v398 = vunpack.c.l.b16 %v200
    %v399 = vunpack.c.h.b16 %v200
    %v400 = vunpack.c.l.b16 %v201
    %v401 = vunpack.c.h.b16 %v201
    %v402 = vunpack.c.l.b16 %v202
    %v403 = vunpack.c.h.b16 %v202
    %v404 = vunpack.c.l.b16 %v203
    %v405 = vunpack.c.h.b16 %v203
    %v406 = vunpack.c.l.b16 %v204
    %v407 = vunpack.c.h.b16 %v204
    %v408 = vunpack.c.l.b16 %v205
    %v409 = vunpack.c.h.b16 %v205
    %v410 = vunpack.c.l.b16 %v206
    %v411 = vunpack.c.h.b16 %v206
    %v412 = vunpack.c.l.b16 %v207
    %v413 = vunpack.c.h.b16 %v207
    %v414 = vunpack.c.l.b16 %v208
    %v415 = vunpack.c.h.b16 %v208
    %v416 = vunpack.c.l.b16 %v209
    %v417 = vunpack.c.h.b16 %v209
    %v418 = vunpack.c.l.b16 %v210
    %v419 = vunpack.c.h.b16 %v210
    %v420 = vunpack.c.l.b16 %v211
    %v421 = vunpack.c.h.b16 %v211
    %v422 = vunpack.c.l.b16 %v212
    %v423 = vunpack.c.h.b16 %v212
    %v424 = vunpack.c.l.b16 %v213
    %v425 = vunpack.c.h.b16 %v213
    %v426 = vunpack.c.l.b16 %v214
    %v427 = vunpack.c.h.b16 %v214
    %v428 = vunpack.c.l.b16 %v215
    %v429 = vunpack.c.h.b16 %v215
    %v430 = vunpack.c.l.b16 %v216
    %v431 = vunpack.c.h.b16 %v216
    %v432 = vunpack.c.l.b16 %v217
    %v433 = vunpack.c.h.b16 %v217
    %v434 = vunpack.c.l.b16 %v218
    %v435 = vunpack.c.h.b16 %v218
    %v436 = vunpack.c.l.b16 %v219
    %v437 = vunpack.c.h.b16 %v219
    %v438 = vunpack.c.l.b16 %v220
    %v439 = vunpack.c.h.b16 %v220
    %v440 = vunpack.c.l.b16 %v221
    %v441 = vunpack.c.h.b16 %v221
    %v442 = vunpack.c.l.b16 %v222
    %v443 = vunpack.c.h.b16 %v222
    %v444 = vunpack.c.l.b16 %v223
    %v445 = vunpack.c.h.b16 %v223
    %v446 = vunpack.c.l.b16 %v224
    %v447 = vunpack.c.h.b16 %v224
    %v448 = vunpack.c.l.b16 %v225
    %v449 = vunpack.c.h.b16 %v225
    %v450 = vunpack.c.l.b16 %v226
    %v451 = vunpack.c.h.b16 %v226
    %v452 = vunpack.c.l.b16 %v227
    %v453 = vunpack.c.h.b16 %v227
    %v454 = vunpack.c.l.b16 %v228
    %v455 = vunpack.c.h.b16 %v228
    %v456 = vunpack.c.l.b16 %v229
    %v457 = vunpack.c.h.b16 %v229
    %v458 = vunpack.c.l.b16 %v230
    %v459 = vunpack.c.h.b16 %v230
    %v460 = vunpack.c.l.b16 %v231
    %v461 = vunpack.c.h.b16 %v231
    %v462 = vpack.c.b16 %v326, %v322
    %v463 = vpack.c.b16 %v327, %v323
    %v464 = vpack.c.b16 %v328, %v324
    %v465 = vpack.c.b16 %v329, %v325
    %v466 = vpack.c.b16 %v334, %v330
    %v467 = vpack.c.b16 %v335, %v331
    %v468 = vpack.c.b16 %v336, %v332
    %v469 = vpack.c.b16 %v337, %v333
    %v470 = vpack.c.b16 %v342, %v338
    %v471 = vpack.c.b16 %v343, %v339
    %v472 = vpack.c.b16 %v344, %v340
    %v473 = vpack.c.b16 %v345, %v341
    %v474 = vpack.c.b16 %v350, %v346
    %v475 = vpack.c.b16 %v351, %v347
    %v476 = vpack.c.b16 %v352, %v348
    %v477 = vpack.c.b16 %v353, %v349
    %v478 = vpack.c.b16 %v358, %v354
    %v479 = vpack.c.b16 %v359, %v355
    %v480 = vpack.c.b16 %v360, %v356
    %v481 = vpack.c.b16 %v361, %v357
    %v482 = vpack.c.b16 %v366, %v362
    %v483 = vpack.c.b16 %v367, %v363
    %v484 = vpack.c.b16 %v368, %v364
    %v485 = vpack.c.b16 %v369, %v365
    %v486 = vpack.c.b16 %v374, %v370
    %v487 = vpack.c.b16 %v375, %v371
    %v488 = vpack.c.b16 %v376, %v372
    %v489 = vpack.c.b16 %v377, %v373
    %v490 = vpack.c.b16 %v382, %v378
    %v491 = vpack.c.b16 %v383, %v379
    %v492 = vpack.c.b16 %v384, %v380
    %v493 = vpack.c.b16 %v385, %v381
    %v494 = vpack.c.b16 %v390, %v386
    %v495 = vpack.c.b16 %v391, %v387
    %v496 = vpack.c.b16 %v392, %v388
    %v497 = vpack.c.b16 %v393, %v389
    %v498 = vpack.c.b16 %v398, %v394
    %v499 = vpack.c.b16 %v399, %v395
    %v500 = vpack.c.b16 %v400, %v396
    %v501 = vpack.c.b16 %v401, %v397
    %v502 = vpack.c.b16 %v406, %v402
    %v503 = vpack.c.b16 %v407, %v403
    %v504 = vpack.c.b16 %v408, %v404
    %v505 = vpack.c.b16 %v409, %v405
    %v506 = vpack.c.b16 %v414, %v410
    %v507 = vpack.c.b16 %v415, %v411
    %v508 = vpack.c.b16 %v416, %v412
    %v509 = vpack.c.b16 %v417, %v413
    %v510 = vpack.c.b16 %v422, %v418
    %v511 = vpack.c.b16 %v423, %v419
    %v512 = vpack.c.b16 %v424, %v420
    %v513 = vpack.c.b16 %v425, %v421
    %v514 = vpack.c.b16 %v430, %v426
    %v515 = vpack.c.b16 %v431, %v427
    %v516 = vpack.c.b16 %v432, %v428
    %v517 = vpack.c.b16 %v433, %v429
    %v518 = vpack.c.b16 %v438, %v434
    %v519 = vpack.c.b16 %v439, %v435
    %v520 = vpack.c.b16 %v440, %v436
    %v521 = vpack.c.b16 %v441, %v437
    %v522 = vpack.c.b16 %v446, %v442
    %v523 = vpack.c.b16 %v447, %v443
    %v524 = vpack.c.b16 %v448, %v444
    %v525 = vpack.c.b16 %v449, %v445
    %v526 = vpack.c.b16 %v454, %v450
    %v527 = vpack.c.b16 %v455, %v451
    %v528 = vpack.c.b16 %v456, %v452
    %v529 = vpack.c.b16 %v457, %v453
    %v530 = vpack.c.b16 %v458, %v458
    %v531 = vpack.c.b16 %v459, %v459
    %v532 = vpack.c.b16 %v460, %v460
    %v533 = vpack.c.b16 %v461, %v461
    %vm602 = vcmask 162816
    %v604 = vsel %vm602, %v249, 0
    %vm606 = vcmask 1041408
    %v608 = vsel %vm606, %v530, 0
    %v611 = vsel %vm606, %v531, 0
    %v614 = vsel %vm606, %v532, 0
    %v617 = vsel %vm606, %v533, 0
    %619 = vmatpush.bf16.msra.mxu0 %v490
    %620 = vmatpush.bf16.msra.mxu0 %v486
    %621 = vmatpush.bf16.msra.mxu0 %v482
    %622 = vmatpush.bf16.msra.mxu0 %v478
    %623 = vmatpush.bf16.msra.mxu0 %v474
    %624 = vmatpush.bf16.msra.mxu0 %v470
    %625 = vmatpush.bf16.msra.mxu0 %v466
    %626 = vmatpush.bf16.msra.mxu0 %v462
    %627 = vmatmul.bf16.gmra.mxu0 %v247
    %v628 = vpop.f32.mrf.mxu0
    %v629 = vadd.f32 %v234, %v628
    %v630 = vpop.f32.mrf.mxu0
    %631 = vdwg.mxu0
    %632 = vmatpush.bf16.msra.mxu0 %v522
    %633 = vmatpush.bf16.msra.mxu0 %v518
    %634 = vmatpush.bf16.msra.mxu0 %v514
    %635 = vmatpush.bf16.msra.mxu0 %v510
    %636 = vmatpush.bf16.msra.mxu0 %v506
    %637 = vmatpush.bf16.msra.mxu0 %v502
    %638 = vmatpush.bf16.msra.mxu0 %v498
    %639 = vmatpush.bf16.msra.mxu0 %v494
    %640 = vmatmul.bf16.gmra.mxu0 %v248
    %v641 = vpop.f32.mrf.mxu0
    %v642 = vadd.f32 %v629, %v641
    %v643 = vpop.f32.mrf.mxu0
    %644 = vdwg.mxu0
    %645 = vmatpush.bf16.msra.mxu0 0
    %646 = vmatpush.bf16.msra.mxu0 0
    %647 = vmatpush.bf16.msra.mxu0 0
    %648 = vmatpush.bf16.msra.mxu0 0
    %649 = vmatpush.bf16.msra.mxu0 0
    %650 = vmatpush.bf16.msra.mxu0 0
    %651 = vmatpush.bf16.msra.mxu0 %v608
    %652 = vmatpush.bf16.msra.mxu0 %v526
    %653 = vmatmul.bf16.gmra.mxu0 %v604
    %v654 = vpop.f32.mrf.mxu0
    %v655 = vadd.f32 %v642, %v654
    %v656 = vpop.f32.mrf.mxu0
    %657 = vdwg.mxu0
    %658 = vmatpush.bf16.msra.mxu0 %v491
    %659 = vmatpush.bf16.msra.mxu0 %v487
    %660 = vmatpush.bf16.msra.mxu0 %v483
    %661 = vmatpush.bf16.msra.mxu0 %v479
    %662 = vmatpush.bf16.msra.mxu0 %v475
    %663 = vmatpush.bf16.msra.mxu0 %v471
    %664 = vmatpush.bf16.msra.mxu0 %v467
    %665 = vmatpush.bf16.msra.mxu0 %v463
    %666 = vmatmul.bf16.gmra.mxu0 %v247
    %v667 = vpop.f32.mrf.mxu0
    %v668 = vadd.f32 %v235, %v667
    %v669 = vpop.f32.mrf.mxu0
    %670 = vdwg.mxu0
    %671 = vmatpush.bf16.msra.mxu0 %v523
    %672 = vmatpush.bf16.msra.mxu0 %v519
    %673 = vmatpush.bf16.msra.mxu0 %v515
    %674 = vmatpush.bf16.msra.mxu0 %v511
    %675 = vmatpush.bf16.msra.mxu0 %v507
    %676 = vmatpush.bf16.msra.mxu0 %v503
    %677 = vmatpush.bf16.msra.mxu0 %v499
    %678 = vmatpush.bf16.msra.mxu0 %v495
    %679 = vmatmul.bf16.gmra.mxu0 %v248
    %v680 = vpop.f32.mrf.mxu0
    %v681 = vadd.f32 %v668, %v680
    %v682 = vpop.f32.mrf.mxu0
    %683 = vdwg.mxu0
    %684 = vmatpush.bf16.msra.mxu0 0
    %685 = vmatpush.bf16.msra.mxu0 0
    %686 = vmatpush.bf16.msra.mxu0 0
    %687 = vmatpush.bf16.msra.mxu0 0
    %688 = vmatpush.bf16.msra.mxu0 0
    %689 = vmatpush.bf16.msra.mxu0 0
    %690 = vmatpush.bf16.msra.mxu0 %v611
    %691 = vmatpush.bf16.msra.mxu0 %v527
    %692 = vmatmul.bf16.gmra.mxu0 %v604
    %v693 = vpop.f32.mrf.mxu0
    %v694 = vadd.f32 %v681, %v693
    %v695 = vpop.f32.mrf.mxu0
    %696 = vdwg.mxu0
    %697 = vmatpush.bf16.msra.mxu0 %v492
    %698 = vmatpush.bf16.msra.mxu0 %v488
    %699 = vmatpush.bf16.msra.mxu0 %v484
    %700 = vmatpush.bf16.msra.mxu0 %v480
    %701 = vmatpush.bf16.msra.mxu0 %v476
    %702 = vmatpush.bf16.msra.mxu0 %v472
    %703 = vmatpush.bf16.msra.mxu0 %v468
    %704 = vmatpush.bf16.msra.mxu0 %v464
    %705 = vmatmul.bf16.gmra.mxu0 %v247
    %v706 = vpop.f32.mrf.mxu0
    %v707 = vadd.f32 %v236, %v706
    %v708 = vpop.f32.mrf.mxu0
    %709 = vdwg.mxu0
    %710 = vmatpush.bf16.msra.mxu0 %v524
    %711 = vmatpush.bf16.msra.mxu0 %v520
    %712 = vmatpush.bf16.msra.mxu0 %v516
    %713 = vmatpush.bf16.msra.mxu0 %v512
    %714 = vmatpush.bf16.msra.mxu0 %v508
    %715 = vmatpush.bf16.msra.mxu0 %v504
    %716 = vmatpush.bf16.msra.mxu0 %v500
    %717 = vmatpush.bf16.msra.mxu0 %v496
    %718 = vmatmul.bf16.gmra.mxu0 %v248
    %v719 = vpop.f32.mrf.mxu0
    %v720 = vadd.f32 %v707, %v719
    %v721 = vpop.f32.mrf.mxu0
    %722 = vdwg.mxu0
    %723 = vmatpush.bf16.msra.mxu0 0
    %724 = vmatpush.bf16.msra.mxu0 0
    %725 = vmatpush.bf16.msra.mxu0 0
    %726 = vmatpush.bf16.msra.mxu0 0
    %727 = vmatpush.bf16.msra.mxu0 0
    %728 = vmatpush.bf16.msra.mxu0 0
    %729 = vmatpush.bf16.msra.mxu0 %v614
    %730 = vmatpush.bf16.msra.mxu0 %v528
    %731 = vmatmul.bf16.gmra.mxu0 %v604
    %v732 = vpop.f32.mrf.mxu0
    %v733 = vadd.f32 %v720, %v732
    %v734 = vpop.f32.mrf.mxu0
    %735 = vdwg.mxu0
    %736 = vmatpush.bf16.msra.mxu0 %v493
    %737 = vmatpush.bf16.msra.mxu0 %v489
    %738 = vmatpush.bf16.msra.mxu0 %v485
    %739 = vmatpush.bf16.msra.mxu0 %v481
    %740 = vmatpush.bf16.msra.mxu0 %v477
    %741 = vmatpush.bf16.msra.mxu0 %v473
    %742 = vmatpush.bf16.msra.mxu0 %v469
    %743 = vmatpush.bf16.msra.mxu0 %v465
    %744 = vmatmul.bf16.gmra.mxu0 %v247
    %v745 = vpop.f32.mrf.mxu0
    %v746 = vadd.f32 %v237, %v745
    %v747 = vpop.f32.mrf.mxu0
    %748 = vdwg.mxu0
    %749 = vmatpush.bf16.msra.mxu0 %v525
    %750 = vmatpush.bf16.msra.mxu0 %v521
    %751 = vmatpush.bf16.msra.mxu0 %v517
    %752 = vmatpush.bf16.msra.mxu0 %v513
    %753 = vmatpush.bf16.msra.mxu0 %v509
    %754 = vmatpush.bf16.msra.mxu0 %v505
    %755 = vmatpush.bf16.msra.mxu0 %v501
    %756 = vmatpush.bf16.msra.mxu0 %v497
    %757 = vmatmul.bf16.gmra.mxu0 %v248
    %v758 = vpop.f32.mrf.mxu0
    %v759 = vadd.f32 %v746, %v758
    %v760 = vpop.f32.mrf.mxu0
    %761 = vdwg.mxu0
    %762 = vmatpush.bf16.msra.mxu0 0
    %763 = vmatpush.bf16.msra.mxu0 0
    %764 = vmatpush.bf16.msra.mxu0 0
    %765 = vmatpush.bf16.msra.mxu0 0
    %766 = vmatpush.bf16.msra.mxu0 0
    %767 = vmatpush.bf16.msra.mxu0 0
    %768 = vmatpush.bf16.msra.mxu0 %v617
    %769 = vmatpush.bf16.msra.mxu0 %v529
    %770 = vmatmul.bf16.gmra.mxu0 %v604
    %v771 = vpop.f32.mrf.mxu0
    %v772 = vadd.f32 %v759, %v771
    %v773 = vpop.f32.mrf.mxu0
    %774 = vdwg.mxu0
    %v775 = vtanh.pop %v655
    %v776 = vtanh.pop %v694
    %v777 = vtanh.pop %v733
    %v778 = vtanh.pop %v772
    %v779 = vpack.c.bf16 %v775, %v775
    %v780 = vpack.c.bf16 %v776, %v776
    %v781 = vpack.c.bf16 %v777, %v777
    %v782 = vpack.c.bf16 %v778, %v778
    %v783 = vld [vmem:[#allocation5] sm:$0xff]
    %v784 = vld [vmem:[#allocation5 + $0x8] sm:$0xff]
    %v785 = vld [vmem:[#allocation5 + $0x10] sm:$0xff]
    %v786 = vld [vmem:[#allocation5 + $0x18] sm:$0xff]
    %v787 = vld [vmem:[#allocation5 + $0x20] sm:$0xff]
    %v788 = vld [vmem:[#allocation5 + $0x28] sm:$0xff]
    %v789 = vld [vmem:[#allocation5 + $0x30] sm:$0xff]
    %v790 = vld [vmem:[#allocation5 + $0x38] sm:$0xff]
    %v791 = vld [vmem:[#allocation5 + $0x40] sm:$0xff]
    %v792 = vld [vmem:[#allocation5 + $0x48] sm:$0xff]
    %v793 = vld [vmem:[#allocation5 + $0x50] sm:$0xff]
    %v794 = vld [vmem:[#allocation5 + $0x58] sm:$0xff]
    %v795 = vld [vmem:[#allocation5 + $0x60] sm:$0xff]
    %v796 = vld [vmem:[#allocation5 + $0x68] sm:$0xff]
    %v797 = vld [vmem:[#allocation5 + $0x70] sm:$0xff]
    %v798 = vld [vmem:[#allocation5 + $0x78] sm:$0xff]
    %v799 = vld [vmem:[#allocation5 + $0x80] sm:$0xff]
    %v800 = vld [vmem:[#allocation5 + $0x88] sm:$0xff]
    %v801 = vld [vmem:[#allocation5 + $0x90] sm:$0xff]
    %v802 = vld [vmem:[#allocation5 + $0x98] sm:$0xff]
    %v803 = vld [vmem:[#allocation5 + $0xa0] sm:$0xff]
    %v804 = vld [vmem:[#allocation5 + $0xa8] sm:$0xff]
    %v805 = vld [vmem:[#allocation5 + $0xb0] sm:$0xff]
    %v806 = vld [vmem:[#allocation5 + $0xb8] sm:$0xff]
    %v807 = vld [vmem:[#allocation5 + $0xc0] sm:$0xff]
    %v808 = vld [vmem:[#allocation5 + $0xc8] sm:$0xff]
    %v809 = vld [vmem:[#allocation5 + $0xd0] sm:$0xff]
    %v810 = vld [vmem:[#allocation5 + $0xd8] sm:$0xff]
    %v811 = vld [vmem:[#allocation5 + $0xe0] sm:$0xff]
    %v812 = vld [vmem:[#allocation5 + $0xe8] sm:$0xff]
    %v813 = vld [vmem:[#allocation5 + $0xf0] sm:$0xff]
    %v814 = vld [vmem:[#allocation5 + $0xf8] sm:$0xff]
    %v815 = vld [vmem:[#allocation5 + $0x100] sm:$0xff]
    %v816 = vld [vmem:[#allocation5 + $0x108] sm:$0xff]
    %v817 = vld [vmem:[#allocation5 + $0x110] sm:$0xff]
    %v818 = vld [vmem:[#allocation5 + $0x118] sm:$0xff]
    %v819 = vld [vmem:[#allocation5 + $0x120] sm:$0xff]
    %v820 = vld [vmem:[#allocation5 + $0x128] sm:$0xff]
    %v821 = vld [vmem:[#allocation5 + $0x130] sm:$0xff]
    %v822 = vld [vmem:[#allocation5 + $0x138] sm:$0xff]
    %v823 = vld [vmem:[#allocation5 + $0x140] sm:$0xff]
    %v824 = vld [vmem:[#allocation5 + $0x148] sm:$0xff]
    %v825 = vld [vmem:[#allocation5 + $0x150] sm:$0xff]
    %v826 = vld [vmem:[#allocation5 + $0x158] sm:$0xff]
    %v827 = vld [vmem:[#allocation5 + $0x160] sm:$0xff]
    %v828 = vld [vmem:[#allocation5 + $0x168] sm:$0xff]
    %v829 = vld [vmem:[#allocation5 + $0x170] sm:$0xff]
    %v830 = vld [vmem:[#allocation5 + $0x178] sm:$0xff]
    %v831 = vld [vmem:[#allocation5 + $0x180] sm:$0xff]
    %v832 = vld [vmem:[#allocation5 + $0x188] sm:$0xff]
    %v833 = vld [vmem:[#allocation5 + $0x190] sm:$0xff]
    %v834 = vld [vmem:[#allocation5 + $0x198] sm:$0xff]
    %v835 = vld [vmem:[#allocation5 + $0x1a0] sm:$0xff]
    %v836 = vld [vmem:[#allocation5 + $0x1a8] sm:$0xff]
    %v837 = vld [vmem:[#allocation5 + $0x1b0] sm:$0xff]
    %v838 = vld [vmem:[#allocation5 + $0x1b8] sm:$0xff]
    %v839 = vld [vmem:[#allocation5 + $0x1c0] sm:$0xff]
    %v840 = vld [vmem:[#allocation5 + $0x1c8] sm:$0xff]
    %v841 = vld [vmem:[#allocation5 + $0x1d0] sm:$0xff]
    %v842 = vld [vmem:[#allocation5 + $0x1d8] sm:$0xff]
    %v843 = vld [vmem:[#allocation5 + $0x1e0] sm:$0xff]
    %v844 = vld [vmem:[#allocation5 + $0x1e8] sm:$0xff]
    %v845 = vld [vmem:[#allocation5 + $0x1f0] sm:$0xff]
    %v846 = vld [vmem:[#allocation5 + $0x1f8] sm:$0xff]
    %v847 = vld [vmem:[#allocation5 + $0x200] sm:$0xff]
    %v848 = vld [vmem:[#allocation5 + $0x208] sm:$0xff]
    %v849 = vld [vmem:[#allocation5 + $0x210] sm:$0xff]
    %v850 = vld [vmem:[#allocation5 + $0x218] sm:$0xff]
    %v851 = vld [vmem:[#allocation5 + $0x220] sm:$0xff]
    %v852 = vld [vmem:[#allocation5 + $0x228] sm:$0xff]
    %v853 = vld [vmem:[#allocation5 + $0x230] sm:$0xff]
    %v854 = vld [vmem:[#allocation5 + $0x238] sm:$0xff]
    %v855 = vld [vmem:[#allocation5 + $0x240] sm:$0xff]
    %v856 = vld [vmem:[#allocation5 + $0x248] sm:$0xff]
    %v857 = vld [vmem:[#allocation5 + $0x250] sm:$0xff]
    %v858 = vld [vmem:[#allocation5 + $0x258] sm:$0xff]
    %v859 = vld [vmem:[#allocation5 + $0x260] sm:$0xff]
    %v860 = vld [vmem:[#allocation5 + $0x268] sm:$0xff]
    %v861 = vld [vmem:[#allocation5 + $0x270] sm:$0xff]
    %v862 = vld [vmem:[#allocation5 + $0x278] sm:$0xff]
    %v863 = vld [vmem:[#allocation5 + $0x280] sm:$0xff]
    %v864 = vld [vmem:[#allocation5 + $0x288] sm:$0xff]
    %v865 = vld [vmem:[#allocation5 + $0x290] sm:$0xff]
    %v866 = vld [vmem:[#allocation5 + $0x298] sm:$0xff]
    %v867 = vld [vmem:[#allocation5 + $0x2a0] sm:$0xff]
    %v868 = vld [vmem:[#allocation5 + $0x2a8] sm:$0xff]
    %v869 = vld [vmem:[#allocation5 + $0x2b0] sm:$0xff]
    %v870 = vld [vmem:[#allocation5 + $0x2b8] sm:$0xff]
    %v871 = vld [vmem:[#allocation5 + $0x2c0] sm:$0xff]
    %v872 = vld [vmem:[#allocation5 + $0x2c8] sm:$0xff]
    %v873 = vld [vmem:[#allocation5 + $0x2d0] sm:$0xff]
    %v874 = vld [vmem:[#allocation5 + $0x2d8] sm:$0xff]
    %v875 = vld [vmem:[#allocation5 + $0x2e0] sm:$0xff]
    %v876 = vld [vmem:[#allocation5 + $0x2e8] sm:$0xff]
    %v877 = vld [vmem:[#allocation5 + $0x2f0] sm:$0xff]
    %v878 = vld [vmem:[#allocation5 + $0x2f8] sm:$0xff]
    %v879 = vld [vmem:[#allocation5 + $0x300] sm:$0xff]
    %v880 = vld [vmem:[#allocation5 + $0x308] sm:$0xff]
    %v881 = vld [vmem:[#allocation5 + $0x310] sm:$0xff]
    %v882 = vld [vmem:[#allocation5 + $0x318] sm:$0xff]
    %v883 = vld [vmem:[#allocation5 + $0x320] sm:$0xff]
    %v884 = vld [vmem:[#allocation5 + $0x328] sm:$0xff]
    %v885 = vld [vmem:[#allocation5 + $0x330] sm:$0xff]
    %v886 = vld [vmem:[#allocation5 + $0x338] sm:$0xff]
    %v887 = vld [vmem:[#allocation5 + $0x340] sm:$0xff]
    %v888 = vld [vmem:[#allocation5 + $0x348] sm:$0xff]
    %v889 = vld [vmem:[#allocation5 + $0x350] sm:$0xff]
    %v890 = vld [vmem:[#allocation5 + $0x358] sm:$0xff]
    %v891 = vld [vmem:[#allocation5 + $0x360] sm:$0xff]
    %v892 = vld [vmem:[#allocation5 + $0x368] sm:$0xff]
    %v893 = vld [vmem:[#allocation5 + $0x370] sm:$0xff]
    %v894 = vld [vmem:[#allocation5 + $0x378] sm:$0xff]
    %v895 = vld [vmem:[#allocation5 + $0x380] sm:$0xff]
    %v896 = vld [vmem:[#allocation5 + $0x388] sm:$0xff]
    %v897 = vld [vmem:[#allocation5 + $0x390] sm:$0xff]
    %v898 = vld [vmem:[#allocation5 + $0x398] sm:$0xff]
    %v899 = vld [vmem:[#allocation5 + $0x3a0] sm:$0xff]
    %v900 = vld [vmem:[#allocation5 + $0x3a8] sm:$0xff]
    %v901 = vld [vmem:[#allocation5 + $0x3b0] sm:$0xff]
    %v902 = vld [vmem:[#allocation5 + $0x3b8] sm:$0xff]
    %v903 = vld [vmem:[#allocation5 + $0x3c0] sm:$0xff]
    %v904 = vld [vmem:[#allocation5 + $0x3c8] sm:$0xff]
    %v905 = vld [vmem:[#allocation5 + $0x3d0] sm:$0xff]
    %v906 = vld [vmem:[#allocation5 + $0x3d8] sm:$0xff]
    %v907 = vld [vmem:[#allocation5 + $0x3e0] sm:$0x33]
    %v908 = vld [vmem:[#allocation5 + $0x3e8] sm:$0x33]
    %v909 = vld [vmem:[%s4] sm:$0xf]
    %v911 = vperm.slane %v909, 0
    %v912 = vperm.slane %v909, 1
    %v913 = vperm.slane %v909, 2
    %v914 = vperm.slane %v909, 3
    %v1045 = vunpack.c.l.b16 %v783
    %v1046 = vunpack.c.h.b16 %v783
    %v1047 = vunpack.c.l.b16 %v784
    %v1048 = vunpack.c.h.b16 %v784
    %v1049 = vunpack.c.l.b16 %v785
    %v1050 = vunpack.c.h.b16 %v785
    %v1051 = vunpack.c.l.b16 %v786
    %v1052 = vunpack.c.h.b16 %v786
    %v1053 = vunpack.c.l.b16 %v787
    %v1054 = vunpack.c.h.b16 %v787
    %v1055 = vunpack.c.l.b16 %v788
    %v1056 = vunpack.c.h.b16 %v788
    %v1057 = vunpack.c.l.b16 %v789
    %v1058 = vunpack.c.h.b16 %v789
    %v1059 = vunpack.c.l.b16 %v790
    %v1060 = vunpack.c.h.b16 %v790
    %v1061 = vunpack.c.l.b16 %v791
    %v1062 = vunpack.c.h.b16 %v791
    %v1063 = vunpack.c.l.b16 %v792
    %v1064 = vunpack.c.h.b16 %v792
    %v1065 = vunpack.c.l.b16 %v793
    %v1066 = vunpack.c.h.b16 %v793
    %v1067 = vunpack.c.l.b16 %v794
    %v1068 = vunpack.c.h.b16 %v794
    %v1069 = vunpack.c.l.b16 %v795
    %v1070 = vunpack.c.h.b16 %v795
    %v1071 = vunpack.c.l.b16 %v796
    %v1072 = vunpack.c.h.b16 %v796
    %v1073 = vunpack.c.l.b16 %v797
    %v1074 = vunpack.c.h.b16 %v797
    %v1075 = vunpack.c.l.b16 %v798
    %v1076 = vunpack.c.h.b16 %v798
    %v1077 = vunpack.c.l.b16 %v799
    %v1078 = vunpack.c.h.b16 %v799
    %v1079 = vunpack.c.l.b16 %v800
    %v1080 = vunpack.c.h.b16 %v800
    %v1081 = vunpack.c.l.b16 %v801
    %v1082 = vunpack.c.h.b16 %v801
    %v1083 = vunpack.c.l.b16 %v802
    %v1084 = vunpack.c.h.b16 %v802
    %v1085 = vunpack.c.l.b16 %v803
    %v1086 = vunpack.c.h.b16 %v803
    %v1087 = vunpack.c.l.b16 %v804
    %v1088 = vunpack.c.h.b16 %v804
    %v1089 = vunpack.c.l.b16 %v805
    %v1090 = vunpack.c.h.b16 %v805
    %v1091 = vunpack.c.l.b16 %v806
    %v1092 = vunpack.c.h.b16 %v806
    %v1093 = vunpack.c.l.b16 %v807
    %v1094 = vunpack.c.h.b16 %v807
    %v1095 = vunpack.c.l.b16 %v808
    %v1096 = vunpack.c.h.b16 %v808
    %v1097 = vunpack.c.l.b16 %v809
    %v1098 = vunpack.c.h.b16 %v809
    %v1099 = vunpack.c.l.b16 %v810
    %v1100 = vunpack.c.h.b16 %v810
    %v1101 = vunpack.c.l.b16 %v811
    %v1102 = vunpack.c.h.b16 %v811
    %v1103 = vunpack.c.l.b16 %v812
    %v1104 = vunpack.c.h.b16 %v812
    %v1105 = vunpack.c.l.b16 %v813
    %v1106 = vunpack.c.h.b16 %v813
    %v1107 = vunpack.c.l.b16 %v814
    %v1108 = vunpack.c.h.b16 %v814
    %v1109 = vunpack.c.l.b16 %v815
    %v1110 = vunpack.c.h.b16 %v815
    %v1111 = vunpack.c.l.b16 %v816
    %v1112 = vunpack.c.h.b16 %v816
    %v1113 = vunpack.c.l.b16 %v817
    %v1114 = vunpack.c.h.b16 %v817
    %v1115 = vunpack.c.l.b16 %v818
    %v1116 = vunpack.c.h.b16 %v818
    %v1117 = vunpack.c.l.b16 %v819
    %v1118 = vunpack.c.h.b16 %v819
    %v1119 = vunpack.c.l.b16 %v820
    %v1120 = vunpack.c.h.b16 %v820
    %v1121 = vunpack.c.l.b16 %v821
    %v1122 = vunpack.c.h.b16 %v821
    %v1123 = vunpack.c.l.b16 %v822
    %v1124 = vunpack.c.h.b16 %v822
    %v1125 = vunpack.c.l.b16 %v823
    %v1126 = vunpack.c.h.b16 %v823
    %v1127 = vunpack.c.l.b16 %v824
    %v1128 = vunpack.c.h.b16 %v824
    %v1129 = vunpack.c.l.b16 %v825
    %v1130 = vunpack.c.h.b16 %v825
    %v1131 = vunpack.c.l.b16 %v826
    %v1132 = vunpack.c.h.b16 %v826
    %v1133 = vunpack.c.l.b16 %v827
    %v1134 = vunpack.c.h.b16 %v827
    %v1135 = vunpack.c.l.b16 %v828
    %v1136 = vunpack.c.h.b16 %v828
    %v1137 = vunpack.c.l.b16 %v829
    %v1138 = vunpack.c.h.b16 %v829
    %v1139 = vunpack.c.l.b16 %v830
    %v1140 = vunpack.c.h.b16 %v830
    %v1141 = vunpack.c.l.b16 %v831
    %v1142 = vunpack.c.h.b16 %v831
    %v1143 = vunpack.c.l.b16 %v832
    %v1144 = vunpack.c.h.b16 %v832
    %v1145 = vunpack.c.l.b16 %v833
    %v1146 = vunpack.c.h.b16 %v833
    %v1147 = vunpack.c.l.b16 %v834
    %v1148 = vunpack.c.h.b16 %v834
    %v1149 = vunpack.c.l.b16 %v835
    %v1150 = vunpack.c.h.b16 %v835
    %v1151 = vunpack.c.l.b16 %v836
    %v1152 = vunpack.c.h.b16 %v836
    %v1153 = vunpack.c.l.b16 %v837
    %v1154 = vunpack.c.h.b16 %v837
    %v1155 = vunpack.c.l.b16 %v838
    %v1156 = vunpack.c.h.b16 %v838
    %v1157 = vunpack.c.l.b16 %v839
    %v1158 = vunpack.c.h.b16 %v839
    %v1159 = vunpack.c.l.b16 %v840
    %v1160 = vunpack.c.h.b16 %v840
    %v1161 = vunpack.c.l.b16 %v841
    %v1162 = vunpack.c.h.b16 %v841
    %v1163 = vunpack.c.l.b16 %v842
    %v1164 = vunpack.c.h.b16 %v842
    %v1165 = vunpack.c.l.b16 %v843
    %v1166 = vunpack.c.h.b16 %v843
    %v1167 = vunpack.c.l.b16 %v844
    %v1168 = vunpack.c.h.b16 %v844
    %v1169 = vunpack.c.l.b16 %v845
    %v1170 = vunpack.c.h.b16 %v845
    %v1171 = vunpack.c.l.b16 %v846
    %v1172 = vunpack.c.h.b16 %v846
    %v1173 = vunpack.c.l.b16 %v847
    %v1174 = vunpack.c.h.b16 %v847
    %v1175 = vunpack.c.l.b16 %v848
    %v1176 = vunpack.c.h.b16 %v848
    %v1177 = vunpack.c.l.b16 %v849
    %v1178 = vunpack.c.h.b16 %v849
    %v1179 = vunpack.c.l.b16 %v850
    %v1180 = vunpack.c.h.b16 %v850
    %v1181 = vunpack.c.l.b16 %v851
    %v1182 = vunpack.c.h.b16 %v851
    %v1183 = vunpack.c.l.b16 %v852
    %v1184 = vunpack.c.h.b16 %v852
    %v1185 = vunpack.c.l.b16 %v853
    %v1186 = vunpack.c.h.b16 %v853
    %v1187 = vunpack.c.l.b16 %v854
    %v1188 = vunpack.c.h.b16 %v854
    %v1189 = vunpack.c.l.b16 %v855
    %v1190 = vunpack.c.h.b16 %v855
    %v1191 = vunpack.c.l.b16 %v856
    %v1192 = vunpack.c.h.b16 %v856
    %v1193 = vunpack.c.l.b16 %v857
    %v1194 = vunpack.c.h.b16 %v857
    %v1195 = vunpack.c.l.b16 %v858
    %v1196 = vunpack.c.h.b16 %v858
    %v1197 = vunpack.c.l.b16 %v859
    %v1198 = vunpack.c.h.b16 %v859
    %v1199 = vunpack.c.l.b16 %v860
    %v1200 = vunpack.c.h.b16 %v860
    %v1201 = vunpack.c.l.b16 %v861
    %v1202 = vunpack.c.h.b16 %v861
    %v1203 = vunpack.c.l.b16 %v862
    %v1204 = vunpack.c.h.b16 %v862
    %v1205 = vunpack.c.l.b16 %v863
    %v1206 = vunpack.c.h.b16 %v863
    %v1207 = vunpack.c.l.b16 %v864
    %v1208 = vunpack.c.h.b16 %v864
    %v1209 = vunpack.c.l.b16 %v865
    %v1210 = vunpack.c.h.b16 %v865
    %v1211 = vunpack.c.l.b16 %v866
    %v1212 = vunpack.c.h.b16 %v866
    %v1213 = vunpack.c.l.b16 %v867
    %v1214 = vunpack.c.h.b16 %v867
    %v1215 = vunpack.c.l.b16 %v868
    %v1216 = vunpack.c.h.b16 %v868
    %v1217 = vunpack.c.l.b16 %v869
    %v1218 = vunpack.c.h.b16 %v869
    %v1219 = vunpack.c.l.b16 %v870
    %v1220 = vunpack.c.h.b16 %v870
    %v1221 = vunpack.c.l.b16 %v871
    %v1222 = vunpack.c.h.b16 %v871
    %v1223 = vunpack.c.l.b16 %v872
    %v1224 = vunpack.c.h.b16 %v872
    %v1225 = vunpack.c.l.b16 %v873
    %v1226 = vunpack.c.h.b16 %v873
    %v1227 = vunpack.c.l.b16 %v874
    %v1228 = vunpack.c.h.b16 %v874
    %v1229 = vunpack.c.l.b16 %v875
    %v1230 = vunpack.c.h.b16 %v875
    %v1231 = vunpack.c.l.b16 %v876
    %v1232 = vunpack.c.h.b16 %v876
    %v1233 = vunpack.c.l.b16 %v877
    %v1234 = vunpack.c.h.b16 %v877
    %v1235 = vunpack.c.l.b16 %v878
    %v1236 = vunpack.c.h.b16 %v878
    %v1237 = vunpack.c.l.b16 %v879
    %v1238 = vunpack.c.h.b16 %v879
    %v1239 = vunpack.c.l.b16 %v880
    %v1240 = vunpack.c.h.b16 %v880
    %v1241 = vunpack.c.l.b16 %v881
    %v1242 = vunpack.c.h.b16 %v881
    %v1243 = vunpack.c.l.b16 %v882
    %v1244 = vunpack.c.h.b16 %v882
    %v1245 = vunpack.c.l.b16 %v883
    %v1246 = vunpack.c.h.b16 %v883
    %v1247 = vunpack.c.l.b16 %v884
    %v1248 = vunpack.c.h.b16 %v884
    %v1249 = vunpack.c.l.b16 %v885
    %v1250 = vunpack.c.h.b16 %v885
    %v1251 = vunpack.c.l.b16 %v886
    %v1252 = vunpack.c.h.b16 %v886
    %v1253 = vunpack.c.l.b16 %v887
    %v1254 = vunpack.c.h.b16 %v887
    %v1255 = vunpack.c.l.b16 %v888
    %v1256 = vunpack.c.h.b16 %v888
    %v1257 = vunpack.c.l.b16 %v889
    %v1258 = vunpack.c.h.b16 %v889
    %v1259 = vunpack.c.l.b16 %v890
    %v1260 = vunpack.c.h.b16 %v890
    %v1261 = vunpack.c.l.b16 %v891
    %v1262 = vunpack.c.h.b16 %v891
    %v1263 = vunpack.c.l.b16 %v892
    %v1264 = vunpack.c.h.b16 %v892
    %v1265 = vunpack.c.l.b16 %v893
    %v1266 = vunpack.c.h.b16 %v893
    %v1267 = vunpack.c.l.b16 %v894
    %v1268 = vunpack.c.h.b16 %v894
    %v1269 = vunpack.c.l.b16 %v895
    %v1270 = vunpack.c.h.b16 %v895
    %v1271 = vunpack.c.l.b16 %v896
    %v1272 = vunpack.c.h.b16 %v896
    %v1273 = vunpack.c.l.b16 %v897
    %v1274 = vunpack.c.h.b16 %v897
    %v1275 = vunpack.c.l.b16 %v898
    %v1276 = vunpack.c.h.b16 %v898
    %v1277 = vunpack.c.l.b16 %v899
    %v1278 = vunpack.c.h.b16 %v899
    %v1279 = vunpack.c.l.b16 %v900
    %v1280 = vunpack.c.h.b16 %v900
    %v1281 = vunpack.c.l.b16 %v901
    %v1282 = vunpack.c.h.b16 %v901
    %v1283 = vunpack.c.l.b16 %v902
    %v1284 = vunpack.c.h.b16 %v902
    %v1285 = vunpack.c.l.b16 %v903
    %v1286 = vunpack.c.h.b16 %v903
    %v1287 = vunpack.c.l.b16 %v904
    %v1288 = vunpack.c.h.b16 %v904
    %v1289 = vunpack.c.l.b16 %v905
    %v1290 = vunpack.c.h.b16 %v905
    %v1291 = vunpack.c.l.b16 %v906
    %v1292 = vunpack.c.h.b16 %v906
    %v1293 = vunpack.c.l.b16 %v907
    %v1294 = vunpack.c.h.b16 %v907
    %v1295 = vunpack.c.l.b16 %v908
    %v1296 = vunpack.c.h.b16 %v908
    %v1297 = vpack.c.b16 %v1049, %v1045
    %v1298 = vpack.c.b16 %v1050, %v1046
    %v1299 = vpack.c.b16 %v1051, %v1047
    %v1300 = vpack.c.b16 %v1052, %v1048
    %v1301 = vpack.c.b16 %v1057, %v1053
    %v1302 = vpack.c.b16 %v1058, %v1054
    %v1303 = vpack.c.b16 %v1059, %v1055
    %v1304 = vpack.c.b16 %v1060, %v1056
    %v1305 = vpack.c.b16 %v1065, %v1061
    %v1306 = vpack.c.b16 %v1066, %v1062
    %v1307 = vpack.c.b16 %v1067, %v1063
    %v1308 = vpack.c.b16 %v1068, %v1064
    %v1309 = vpack.c.b16 %v1073, %v1069
    %v1310 = vpack.c.b16 %v1074, %v1070
    %v1311 = vpack.c.b16 %v1075, %v1071
    %v1312 = vpack.c.b16 %v1076, %v1072
    %v1313 = vpack.c.b16 %v1081, %v1077
    %v1314 = vpack.c.b16 %v1082, %v1078
    %v1315 = vpack.c.b16 %v1083, %v1079
    %v1316 = vpack.c.b16 %v1084, %v1080
    %v1317 = vpack.c.b16 %v1089, %v1085
    %v1318 = vpack.c.b16 %v1090, %v1086
    %v1319 = vpack.c.b16 %v1091, %v1087
    %v1320 = vpack.c.b16 %v1092, %v1088
    %v1321 = vpack.c.b16 %v1097, %v1093
    %v1322 = vpack.c.b16 %v1098, %v1094
    %v1323 = vpack.c.b16 %v1099, %v1095
    %v1324 = vpack.c.b16 %v1100, %v1096
    %v1325 = vpack.c.b16 %v1105, %v1101
    %v1326 = vpack.c.b16 %v1106, %v1102
    %v1327 = vpack.c.b16 %v1107, %v1103
    %v1328 = vpack.c.b16 %v1108, %v1104
    %v1329 = vpack.c.b16 %v1113, %v1109
    %v1330 = vpack.c.b16 %v1114, %v1110
    %v1331 = vpack.c.b16 %v1115, %v1111
    %v1332 = vpack.c.b16 %v1116, %v1112
    %v1333 = vpack.c.b16 %v1121, %v1117
    %v1334 = vpack.c.b16 %v1122, %v1118
    %v1335 = vpack.c.b16 %v1123, %v1119
    %v1336 = vpack.c.b16 %v1124, %v1120
    %v1337 = vpack.c.b16 %v1129, %v1125
    %v1338 = vpack.c.b16 %v1130, %v1126
    %v1339 = vpack.c.b16 %v1131, %v1127
    %v1340 = vpack.c.b16 %v1132, %v1128
    %v1341 = vpack.c.b16 %v1137, %v1133
    %v1342 = vpack.c.b16 %v1138, %v1134
    %v1343 = vpack.c.b16 %v1139, %v1135
    %v1344 = vpack.c.b16 %v1140, %v1136
    %v1345 = vpack.c.b16 %v1145, %v1141
    %v1346 = vpack.c.b16 %v1146, %v1142
    %v1347 = vpack.c.b16 %v1147, %v1143
    %v1348 = vpack.c.b16 %v1148, %v1144
    %v1349 = vpack.c.b16 %v1153, %v1149
    %v1350 = vpack.c.b16 %v1154, %v1150
    %v1351 = vpack.c.b16 %v1155, %v1151
    %v1352 = vpack.c.b16 %v1156, %v1152
    %v1353 = vpack.c.b16 %v1161, %v1157
    %v1354 = vpack.c.b16 %v1162, %v1158
    %v1355 = vpack.c.b16 %v1163, %v1159
    %v1356 = vpack.c.b16 %v1164, %v1160
    %v1357 = vpack.c.b16 %v1169, %v1165
    %v1358 = vpack.c.b16 %v1170, %v1166
    %v1359 = vpack.c.b16 %v1171, %v1167
    %v1360 = vpack.c.b16 %v1172, %v1168
    %v1361 = vpack.c.b16 %v1177, %v1173
    %v1362 = vpack.c.b16 %v1178, %v1174
    %v1363 = vpack.c.b16 %v1179, %v1175
    %v1364 = vpack.c.b16 %v1180, %v1176
    %v1365 = vpack.c.b16 %v1185, %v1181
    %v1366 = vpack.c.b16 %v1186, %v1182
    %v1367 = vpack.c.b16 %v1187, %v1183
    %v1368 = vpack.c.b16 %v1188, %v1184
    %v1369 = vpack.c.b16 %v1193, %v1189
    %v1370 = vpack.c.b16 %v1194, %v1190
    %v1371 = vpack.c.b16 %v1195, %v1191
    %v1372 = vpack.c.b16 %v1196, %v1192
    %v1373 = vpack.c.b16 %v1201, %v1197
    %v1374 = vpack.c.b16 %v1202, %v1198
    %v1375 = vpack.c.b16 %v1203, %v1199
    %v1376 = vpack.c.b16 %v1204, %v1200
    %v1377 = vpack.c.b16 %v1209, %v1205
    %v1378 = vpack.c.b16 %v1210, %v1206
    %v1379 = vpack.c.b16 %v1211, %v1207
    %v1380 = vpack.c.b16 %v1212, %v1208
    %v1381 = vpack.c.b16 %v1217, %v1213
    %v1382 = vpack.c.b16 %v1218, %v1214
    %v1383 = vpack.c.b16 %v1219, %v1215
    %v1384 = vpack.c.b16 %v1220, %v1216
    %v1385 = vpack.c.b16 %v1225, %v1221
    %v1386 = vpack.c.b16 %v1226, %v1222
    %v1387 = vpack.c.b16 %v1227, %v1223
    %v1388 = vpack.c.b16 %v1228, %v1224
    %v1389 = vpack.c.b16 %v1233, %v1229
    %v1390 = vpack.c.b16 %v1234, %v1230
    %v1391 = vpack.c.b16 %v1235, %v1231
    %v1392 = vpack.c.b16 %v1236, %v1232
    %v1393 = vpack.c.b16 %v1241, %v1237
    %v1394 = vpack.c.b16 %v1242, %v1238
    %v1395 = vpack.c.b16 %v1243, %v1239
    %v1396 = vpack.c.b16 %v1244, %v1240
    %v1397 = vpack.c.b16 %v1249, %v1245
    %v1398 = vpack.c.b16 %v1250, %v1246
    %v1399 = vpack.c.b16 %v1251, %v1247
    %v1400 = vpack.c.b16 %v1252, %v1248
    %v1401 = vpack.c.b16 %v1257, %v1253
    %v1402 = vpack.c.b16 %v1258, %v1254
    %v1403 = vpack.c.b16 %v1259, %v1255
    %v1404 = vpack.c.b16 %v1260, %v1256
    %v1405 = vpack.c.b16 %v1265, %v1261
    %v1406 = vpack.c.b16 %v1266, %v1262
    %v1407 = vpack.c.b16 %v1267, %v1263
    %v1408 = vpack.c.b16 %v1268, %v1264
    %v1409 = vpack.c.b16 %v1273, %v1269
    %v1410 = vpack.c.b16 %v1274, %v1270
    %v1411 = vpack.c.b16 %v1275, %v1271
    %v1412 = vpack.c.b16 %v1276, %v1272
    %v1413 = vpack.c.b16 %v1281, %v1277
    %v1414 = vpack.c.b16 %v1282, %v1278
    %v1415 = vpack.c.b16 %v1283, %v1279
    %v1416 = vpack.c.b16 %v1284, %v1280
    %v1417 = vpack.c.b16 %v1289, %v1285
    %v1418 = vpack.c.b16 %v1290, %v1286
    %v1419 = vpack.c.b16 %v1291, %v1287
    %v1420 = vpack.c.b16 %v1292, %v1288
    %v1421 = vpack.c.b16 %v1293, %v1293
    %v1422 = vpack.c.b16 %v1294, %v1294
    %v1423 = vpack.c.b16 %v1295, %v1295
    %v1424 = vpack.c.b16 %v1296, %v1296
    %vm1549 = vcmask 949248
    %v1551 = vsel %vm1549, %v782, 0
    %v1554 = vsel %vm606, %v1421, 0
    %v1557 = vsel %vm606, %v1422, 0
    %v1560 = vsel %vm606, %v1423, 0
    %v1563 = vsel %vm606, %v1424, 0
    %1565 = vmatpush.bf16.msra.mxu0 %v1325
    %1566 = vmatpush.bf16.msra.mxu0 %v1321
    %1567 = vmatpush.bf16.msra.mxu0 %v1317
    %1568 = vmatpush.bf16.msra.mxu0 %v1313
    %1569 = vmatpush.bf16.msra.mxu0 %v1309
    %1570 = vmatpush.bf16.msra.mxu0 %v1305
    %1571 = vmatpush.bf16.msra.mxu0 %v1301
    %1572 = vmatpush.bf16.msra.mxu0 %v1297
    %1573 = vmatmul.bf16.gmra.mxu0 %v779
    %v1574 = vpop.f32.mrf.mxu0
    %v1575 = vadd.f32 %v911, %v1574
    %v1576 = vpop.f32.mrf.mxu0
    %1577 = vdwg.mxu0
    %1578 = vmatpush.bf16.msra.mxu0 %v1357
    %1579 = vmatpush.bf16.msra.mxu0 %v1353
    %1580 = vmatpush.bf16.msra.mxu0 %v1349
    %1581 = vmatpush.bf16.msra.mxu0 %v1345
    %1582 = vmatpush.bf16.msra.mxu0 %v1341
    %1583 = vmatpush.bf16.msra.mxu0 %v1337
    %1584 = vmatpush.bf16.msra.mxu0 %v1333
    %1585 = vmatpush.bf16.msra.mxu0 %v1329
    %1586 = vmatmul.bf16.gmra.mxu0 %v780
    %v1587 = vpop.f32.mrf.mxu0
    %v1588 = vadd.f32 %v1575, %v1587
    %v1589 = vpop.f32.mrf.mxu0
    %1590 = vdwg.mxu0
    %1591 = vmatpush.bf16.msra.mxu0 %v1389
    %1592 = vmatpush.bf16.msra.mxu0 %v1385
    %1593 = vmatpush.bf16.msra.mxu0 %v1381
    %1594 = vmatpush.bf16.msra.mxu0 %v1377
    %1595 = vmatpush.bf16.msra.mxu0 %v1373
    %1596 = vmatpush.bf16.msra.mxu0 %v1369
    %1597 = vmatpush.bf16.msra.mxu0 %v1365
    %1598 = vmatpush.bf16.msra.mxu0 %v1361
    %1599 = vmatmul.bf16.gmra.mxu0 %v781
    %v1600 = vpop.f32.mrf.mxu0
    %v1601 = vadd.f32 %v1588, %v1600
    %v1602 = vpop.f32.mrf.mxu0
    %1603 = vdwg.mxu0
    %1604 = vmatpush.bf16.msra.mxu0 %v1554
    %1605 = vmatpush.bf16.msra.mxu0 %v1417
    %1606 = vmatpush.bf16.msra.mxu0 %v1413
    %1607 = vmatpush.bf16.msra.mxu0 %v1409
    %1608 = vmatpush.bf16.msra.mxu0 %v1405
    %1609 = vmatpush.bf16.msra.mxu0 %v1401
    %1610 = vmatpush.bf16.msra.mxu0 %v1397
    %1611 = vmatpush.bf16.msra.mxu0 %v1393
    %1612 = vmatmul.bf16.gmra.mxu0 %v1551
    %v1613 = vpop.f32.mrf.mxu0
    %v1614 = vadd.f32 %v1601, %v1613
    %v1615 = vpop.f32.mrf.mxu0
    %1616 = vdwg.mxu0
    %1617 = vmatpush.bf16.msra.mxu0 %v1326
    %1618 = vmatpush.bf16.msra.mxu0 %v1322
    %1619 = vmatpush.bf16.msra.mxu0 %v1318
    %1620 = vmatpush.bf16.msra.mxu0 %v1314
    %1621 = vmatpush.bf16.msra.mxu0 %v1310
    %1622 = vmatpush.bf16.msra.mxu0 %v1306
    %1623 = vmatpush.bf16.msra.mxu0 %v1302
    %1624 = vmatpush.bf16.msra.mxu0 %v1298
    %1625 = vmatmul.bf16.gmra.mxu0 %v779
    %v1626 = vpop.f32.mrf.mxu0
    %v1627 = vadd.f32 %v912, %v1626
    %v1628 = vpop.f32.mrf.mxu0
    %1629 = vdwg.mxu0
    %1630 = vmatpush.bf16.msra.mxu0 %v1358
    %1631 = vmatpush.bf16.msra.mxu0 %v1354
    %1632 = vmatpush.bf16.msra.mxu0 %v1350
    %1633 = vmatpush.bf16.msra.mxu0 %v1346
    %1634 = vmatpush.bf16.msra.mxu0 %v1342
    %1635 = vmatpush.bf16.msra.mxu0 %v1338
    %1636 = vmatpush.bf16.msra.mxu0 %v1334
    %1637 = vmatpush.bf16.msra.mxu0 %v1330
    %1638 = vmatmul.bf16.gmra.mxu0 %v780
    %v1639 = vpop.f32.mrf.mxu0
    %v1640 = vadd.f32 %v1627, %v1639
    %v1641 = vpop.f32.mrf.mxu0
    %1642 = vdwg.mxu0
    %1643 = vmatpush.bf16.msra.mxu0 %v1390
    %1644 = vmatpush.bf16.msra.mxu0 %v1386
    %1645 = vmatpush.bf16.msra.mxu0 %v1382
    %1646 = vmatpush.bf16.msra.mxu0 %v1378
    %1647 = vmatpush.bf16.msra.mxu0 %v1374
    %1648 = vmatpush.bf16.msra.mxu0 %v1370
    %1649 = vmatpush.bf16.msra.mxu0 %v1366
    %1650 = vmatpush.bf16.msra.mxu0 %v1362
    %1651 = vmatmul.bf16.gmra.mxu0 %v781
    %v1652 = vpop.f32.mrf.mxu0
    %v1653 = vadd.f32 %v1640, %v1652
    %v1654 = vpop.f32.mrf.mxu0
    %1655 = vdwg.mxu0
    %1656 = vmatpush.bf16.msra.mxu0 %v1557
    %1657 = vmatpush.bf16.msra.mxu0 %v1418
    %1658 = vmatpush.bf16.msra.mxu0 %v1414
    %1659 = vmatpush.bf16.msra.mxu0 %v1410
    %1660 = vmatpush.bf16.msra.mxu0 %v1406
    %1661 = vmatpush.bf16.msra.mxu0 %v1402
    %1662 = vmatpush.bf16.msra.mxu0 %v1398
    %1663 = vmatpush.bf16.msra.mxu0 %v1394
    %1664 = vmatmul.bf16.gmra.mxu0 %v1551
    %v1665 = vpop.f32.mrf.mxu0
    %v1666 = vadd.f32 %v1653, %v1665
    %v1667 = vpop.f32.mrf.mxu0
    %1668 = vdwg.mxu0
    %1669 = vmatpush.bf16.msra.mxu0 %v1327
    %1670 = vmatpush.bf16.msra.mxu0 %v1323
    %1671 = vmatpush.bf16.msra.mxu0 %v1319
    %1672 = vmatpush.bf16.msra.mxu0 %v1315
    %1673 = vmatpush.bf16.msra.mxu0 %v1311
    %1674 = vmatpush.bf16.msra.mxu0 %v1307
    %1675 = vmatpush.bf16.msra.mxu0 %v1303
    %1676 = vmatpush.bf16.msra.mxu0 %v1299
    %1677 = vmatmul.bf16.gmra.mxu0 %v779
    %v1678 = vpop.f32.mrf.mxu0
    %v1679 = vadd.f32 %v913, %v1678
    %v1680 = vpop.f32.mrf.mxu0
    %1681 = vdwg.mxu0
    %1682 = vmatpush.bf16.msra.mxu0 %v1359
    %1683 = vmatpush.bf16.msra.mxu0 %v1355
    %1684 = vmatpush.bf16.msra.mxu0 %v1351
    %1685 = vmatpush.bf16.msra.mxu0 %v1347
    %1686 = vmatpush.bf16.msra.mxu0 %v1343
    %1687 = vmatpush.bf16.msra.mxu0 %v1339
    %1688 = vmatpush.bf16.msra.mxu0 %v1335
    %1689 = vmatpush.bf16.msra.mxu0 %v1331
    %1690 = vmatmul.bf16.gmra.mxu0 %v780
    %v1691 = vpop.f32.mrf.mxu0
    %v1692 = vadd.f32 %v1679, %v1691
    %v1693 = vpop.f32.mrf.mxu0
    %1694 = vdwg.mxu0
    %1695 = vmatpush.bf16.msra.mxu0 %v1391
    %1696 = vmatpush.bf16.msra.mxu0 %v1387
    %1697 = vmatpush.bf16.msra.mxu0 %v1383
    %1698 = vmatpush.bf16.msra.mxu0 %v1379
    %1699 = vmatpush.bf16.msra.mxu0 %v1375
    %1700 = vmatpush.bf16.msra.mxu0 %v1371
    %1701 = vmatpush.bf16.msra.mxu0 %v1367
    %1702 = vmatpush.bf16.msra.mxu0 %v1363
    %1703 = vmatmul.bf16.gmra.mxu0 %v781
    %v1704 = vpop.f32.mrf.mxu0
    %v1705 = vadd.f32 %v1692, %v1704
    %v1706 = vpop.f32.mrf.mxu0
    %1707 = vdwg.mxu0
    %1708 = vmatpush.bf16.msra.mxu0 %v1560
    %1709 = vmatpush.bf16.msra.mxu0 %v1419
    %1710 = vmatpush.bf16.msra.mxu0 %v1415
    %1711 = vmatpush.bf16.msra.mxu0 %v1411
    %1712 = vmatpush.bf16.msra.mxu0 %v1407
    %1713 = vmatpush.bf16.msra.mxu0 %v1403
    %1714 = vmatpush.bf16.msra.mxu0 %v1399
    %1715 = vmatpush.bf16.msra.mxu0 %v1395
    %1716 = vmatmul.bf16.gmra.mxu0 %v1551
    %v1717 = vpop.f32.mrf.mxu0
    %v1718 = vadd.f32 %v1705, %v1717
    %v1719 = vpop.f32.mrf.mxu0
    %1720 = vdwg.mxu0
    %1721 = vmatpush.bf16.msra.mxu0 %v1328
    %1722 = vmatpush.bf16.msra.mxu0 %v1324
    %1723 = vmatpush.bf16.msra.mxu0 %v1320
    %1724 = vmatpush.bf16.msra.mxu0 %v1316
    %1725 = vmatpush.bf16.msra.mxu0 %v1312
    %1726 = vmatpush.bf16.msra.mxu0 %v1308
    %1727 = vmatpush.bf16.msra.mxu0 %v1304
    %1728 = vmatpush.bf16.msra.mxu0 %v1300
    %1729 = vmatmul.bf16.gmra.mxu0 %v779
    %v1730 = vpop.f32.mrf.mxu0
    %v1731 = vadd.f32 %v914, %v1730
    %v1732 = vpop.f32.mrf.mxu0
    %1733 = vdwg.mxu0
    %1734 = vmatpush.bf16.msra.mxu0 %v1360
    %1735 = vmatpush.bf16.msra.mxu0 %v1356
    %1736 = vmatpush.bf16.msra.mxu0 %v1352
    %1737 = vmatpush.bf16.msra.mxu0 %v1348
    %1738 = vmatpush.bf16.msra.mxu0 %v1344
    %1739 = vmatpush.bf16.msra.mxu0 %v1340
    %1740 = vmatpush.bf16.msra.mxu0 %v1336
    %1741 = vmatpush.bf16.msra.mxu0 %v1332
    %1742 = vmatmul.bf16.gmra.mxu0 %v780
    %v1743 = vpop.f32.mrf.mxu0
    %v1744 = vadd.f32 %v1731, %v1743
    %v1745 = vpop.f32.mrf.mxu0
    %1746 = vdwg.mxu0
    %1747 = vmatpush.bf16.msra.mxu0 %v1392
    %1748 = vmatpush.bf16.msra.mxu0 %v1388
    %1749 = vmatpush.bf16.msra.mxu0 %v1384
    %1750 = vmatpush.bf16.msra.mxu0 %v1380
    %1751 = vmatpush.bf16.msra.mxu0 %v1376
    %1752 = vmatpush.bf16.msra.mxu0 %v1372
    %1753 = vmatpush.bf16.msra.mxu0 %v1368
    %1754 = vmatpush.bf16.msra.mxu0 %v1364
    %1755 = vmatmul.bf16.gmra.mxu0 %v781
    %v1756 = vpop.f32.mrf.mxu0
    %v1757 = vadd.f32 %v1744, %v1756
    %v1758 = vpop.f32.mrf.mxu0
    %1759 = vdwg.mxu0
    %1760 = vmatpush.bf16.msra.mxu0 %v1563
    %1761 = vmatpush.bf16.msra.mxu0 %v1420
    %1762 = vmatpush.bf16.msra.mxu0 %v1416
    %1763 = vmatpush.bf16.msra.mxu0 %v1412
    %1764 = vmatpush.bf16.msra.mxu0 %v1408
    %1765 = vmatpush.bf16.msra.mxu0 %v1404
    %1766 = vmatpush.bf16.msra.mxu0 %v1400
    %1767 = vmatpush.bf16.msra.mxu0 %v1396
    %1768 = vmatmul.bf16.gmra.mxu0 %v1551
    %v1769 = vpop.f32.mrf.mxu0
    %v1770 = vadd.f32 %v1757, %v1769
    %v1771 = vpop.f32.mrf.mxu0
    %1772 = vdwg.mxu0
    %v1773 = vtanh.pop %v1614
    %v1774 = vtanh.pop %v1666
    %v1775 = vtanh.pop %v1718
    %v1776 = vtanh.pop %v1770
    %v1777 = vpack.c.bf16 %v1773, %v1773
    %v1778 = vpack.c.bf16 %v1774, %v1774
    %v1779 = vpack.c.bf16 %v1775, %v1775
    %v1780 = vpack.c.bf16 %v1776, %v1776
    %v1781 = vld [vmem:[#allocation7] sm:$0xff]
    %v1782 = vld [vmem:[#allocation7 + $0x8] sm:$0xff]
    %v1783 = vld [vmem:[#allocation7 + $0x10] sm:$0xff]
    %v1784 = vld [vmem:[#allocation7 + $0x18] sm:$0xff]
    %v1785 = vld [vmem:[#allocation7 + $0x20] sm:$0xff]
    %v1786 = vld [vmem:[#allocation7 + $0x28] sm:$0xff]
    %v1787 = vld [vmem:[#allocation7 + $0x30] sm:$0xff]
    %v1788 = vld [vmem:[#allocation7 + $0x38] sm:$0xff]
    %v1789 = vld [vmem:[#allocation7 + $0x40] sm:$0xff]
    %v1790 = vld [vmem:[#allocation7 + $0x48] sm:$0xff]
    %v1791 = vld [vmem:[#allocation7 + $0x50] sm:$0xff]
    %v1792 = vld [vmem:[#allocation7 + $0x58] sm:$0xff]
    %v1793 = vld [vmem:[#allocation7 + $0x60] sm:$0xff]
    %v1794 = vld [vmem:[#allocation7 + $0x68] sm:$0xff]
    %v1795 = vld [vmem:[#allocation7 + $0x70] sm:$0xff]
    %v1796 = vld [vmem:[#allocation7 + $0x78] sm:$0xff]
    %v1797 = vld [vmem:[#allocation7 + $0x80] sm:$0xff]
    %v1798 = vld [vmem:[#allocation7 + $0x88] sm:$0xff]
    %v1799 = vld [vmem:[#allocation7 + $0x90] sm:$0xff]
    %v1800 = vld [vmem:[#allocation7 + $0x98] sm:$0xff]
    %v1801 = vld [vmem:[#allocation7 + $0xa0] sm:$0xff]
    %v1802 = vld [vmem:[#allocation7 + $0xa8] sm:$0xff]
    %v1803 = vld [vmem:[#allocation7 + $0xb0] sm:$0xff]
    %v1804 = vld [vmem:[#allocation7 + $0xb8] sm:$0xff]
    %v1805 = vld [vmem:[#allocation7 + $0xc0] sm:$0xff]
    %v1806 = vld [vmem:[#allocation7 + $0xc8] sm:$0xff]
    %v1807 = vld [vmem:[#allocation7 + $0xd0] sm:$0xff]
    %v1808 = vld [vmem:[#allocation7 + $0xd8] sm:$0xff]
    %v1809 = vld [vmem:[#allocation7 + $0xe0] sm:$0xff]
    %v1810 = vld [vmem:[#allocation7 + $0xe8] sm:$0xff]
    %v1811 = vld [vmem:[#allocation7 + $0xf0] sm:$0xff]
    %v1812 = vld [vmem:[#allocation7 + $0xf8] sm:$0xff]
    %v1813 = vld [vmem:[#allocation7 + $0x100] sm:$0xff]
    %v1814 = vld [vmem:[#allocation7 + $0x108] sm:$0xff]
    %v1815 = vld [vmem:[#allocation7 + $0x110] sm:$0xff]
    %v1816 = vld [vmem:[#allocation7 + $0x118] sm:$0xff]
    %v1817 = vld [vmem:[#allocation7 + $0x120] sm:$0xff]
    %v1818 = vld [vmem:[#allocation7 + $0x128] sm:$0xff]
    %v1819 = vld [vmem:[#allocation7 + $0x130] sm:$0xff]
    %v1820 = vld [vmem:[#allocation7 + $0x138] sm:$0xff]
    %v1821 = vld [vmem:[#allocation7 + $0x140] sm:$0xff]
    %v1822 = vld [vmem:[#allocation7 + $0x148] sm:$0xff]
    %v1823 = vld [vmem:[#allocation7 + $0x150] sm:$0xff]
    %v1824 = vld [vmem:[#allocation7 + $0x158] sm:$0xff]
    %v1825 = vld [vmem:[#allocation7 + $0x160] sm:$0xff]
    %v1826 = vld [vmem:[#allocation7 + $0x168] sm:$0xff]
    %v1827 = vld [vmem:[#allocation7 + $0x170] sm:$0xff]
    %v1828 = vld [vmem:[#allocation7 + $0x178] sm:$0xff]
    %v1829 = vld [vmem:[#allocation7 + $0x180] sm:$0xff]
    %v1830 = vld [vmem:[#allocation7 + $0x188] sm:$0xff]
    %v1831 = vld [vmem:[#allocation7 + $0x190] sm:$0xff]
    %v1832 = vld [vmem:[#allocation7 + $0x198] sm:$0xff]
    %v1833 = vld [vmem:[#allocation7 + $0x1a0] sm:$0xff]
    %v1834 = vld [vmem:[#allocation7 + $0x1a8] sm:$0xff]
    %v1835 = vld [vmem:[#allocation7 + $0x1b0] sm:$0xff]
    %v1836 = vld [vmem:[#allocation7 + $0x1b8] sm:$0xff]
    %v1837 = vld [vmem:[#allocation7 + $0x1c0] sm:$0xff]
    %v1838 = vld [vmem:[#allocation7 + $0x1c8] sm:$0xff]
    %v1839 = vld [vmem:[#allocation7 + $0x1d0] sm:$0xff]
    %v1840 = vld [vmem:[#allocation7 + $0x1d8] sm:$0xff]
    %v1841 = vld [vmem:[#allocation7 + $0x1e0] sm:$0xff]
    %v1842 = vld [vmem:[#allocation7 + $0x1e8] sm:$0xff]
    %v1843 = vld [vmem:[#allocation7 + $0x1f0] sm:$0xff]
    %v1844 = vld [vmem:[#allocation7 + $0x1f8] sm:$0xff]
    %v1845 = vld [vmem:[#allocation7 + $0x200] sm:$0xff]
    %v1846 = vld [vmem:[#allocation7 + $0x208] sm:$0xff]
    %v1847 = vld [vmem:[#allocation7 + $0x210] sm:$0xff]
    %v1848 = vld [vmem:[#allocation7 + $0x218] sm:$0xff]
    %v1849 = vld [vmem:[#allocation7 + $0x220] sm:$0xff]
    %v1850 = vld [vmem:[#allocation7 + $0x228] sm:$0xff]
    %v1851 = vld [vmem:[#allocation7 + $0x230] sm:$0xff]
    %v1852 = vld [vmem:[#allocation7 + $0x238] sm:$0xff]
    %v1853 = vld [vmem:[#allocation7 + $0x240] sm:$0xff]
    %v1854 = vld [vmem:[#allocation7 + $0x248] sm:$0xff]
    %v1855 = vld [vmem:[#allocation7 + $0x250] sm:$0xff]
    %v1856 = vld [vmem:[#allocation7 + $0x258] sm:$0xff]
    %v1857 = vld [vmem:[#allocation7 + $0x260] sm:$0xff]
    %v1858 = vld [vmem:[#allocation7 + $0x268] sm:$0xff]
    %v1859 = vld [vmem:[#allocation7 + $0x270] sm:$0xff]
    %v1860 = vld [vmem:[#allocation7 + $0x278] sm:$0xff]
    %v1861 = vld [vmem:[#allocation7 + $0x280] sm:$0xff]
    %v1862 = vld [vmem:[#allocation7 + $0x288] sm:$0xff]
    %v1863 = vld [vmem:[#allocation7 + $0x290] sm:$0xff]
    %v1864 = vld [vmem:[#allocation7 + $0x298] sm:$0xff]
    %v1865 = vld [vmem:[#allocation7 + $0x2a0] sm:$0xff]
    %v1866 = vld [vmem:[#allocation7 + $0x2a8] sm:$0xff]
    %v1867 = vld [vmem:[#allocation7 + $0x2b0] sm:$0xff]
    %v1868 = vld [vmem:[#allocation7 + $0x2b8] sm:$0xff]
    %v1869 = vld [vmem:[#allocation7 + $0x2c0] sm:$0xff]
    %v1870 = vld [vmem:[#allocation7 + $0x2c8] sm:$0xff]
    %v1871 = vld [vmem:[#allocation7 + $0x2d0] sm:$0xff]
    %v1872 = vld [vmem:[#allocation7 + $0x2d8] sm:$0xff]
    %v1873 = vld [vmem:[#allocation7 + $0x2e0] sm:$0xff]
    %v1874 = vld [vmem:[#allocation7 + $0x2e8] sm:$0xff]
    %v1875 = vld [vmem:[#allocation7 + $0x2f0] sm:$0xff]
    %v1876 = vld [vmem:[#allocation7 + $0x2f8] sm:$0xff]
    %v1877 = vld [vmem:[#allocation7 + $0x300] sm:$0xff]
    %v1878 = vld [vmem:[#allocation7 + $0x308] sm:$0xff]
    %v1879 = vld [vmem:[#allocation7 + $0x310] sm:$0xff]
    %v1880 = vld [vmem:[#allocation7 + $0x318] sm:$0xff]
    %v1881 = vld [vmem:[#allocation7 + $0x320] sm:$0xff]
    %v1882 = vld [vmem:[#allocation7 + $0x328] sm:$0xff]
    %v1883 = vld [vmem:[#allocation7 + $0x330] sm:$0xff]
    %v1884 = vld [vmem:[#allocation7 + $0x338] sm:$0xff]
    %v1885 = vld [vmem:[#allocation7 + $0x340] sm:$0xff]
    %v1886 = vld [vmem:[#allocation7 + $0x348] sm:$0xff]
    %v1887 = vld [vmem:[#allocation7 + $0x350] sm:$0xff]
    %v1888 = vld [vmem:[#allocation7 + $0x358] sm:$0xff]
    %v1889 = vld [vmem:[#allocation7 + $0x360] sm:$0xff]
    %v1890 = vld [vmem:[#allocation7 + $0x368] sm:$0xff]
    %v1891 = vld [vmem:[#allocation7 + $0x370] sm:$0xff]
    %v1892 = vld [vmem:[#allocation7 + $0x378] sm:$0xff]
    %v1893 = vld [vmem:[#allocation7 + $0x380] sm:$0xff]
    %v1894 = vld [vmem:[#allocation7 + $0x388] sm:$0xff]
    %v1895 = vld [vmem:[#allocation7 + $0x390] sm:$0xff]
    %v1896 = vld [vmem:[#allocation7 + $0x398] sm:$0xff]
    %v1897 = vld [vmem:[#allocation7 + $0x3a0] sm:$0xff]
    %v1898 = vld [vmem:[#allocation7 + $0x3a8] sm:$0xff]
    %v1899 = vld [vmem:[#allocation7 + $0x3b0] sm:$0xff]
    %v1900 = vld [vmem:[#allocation7 + $0x3b8] sm:$0xff]
    %v1901 = vld [vmem:[#allocation7 + $0x3c0] sm:$0xff]
    %v1902 = vld [vmem:[#allocation7 + $0x3c8] sm:$0xff]
    %v1903 = vld [vmem:[#allocation7 + $0x3d0] sm:$0xff]
    %v1904 = vld [vmem:[#allocation7 + $0x3d8] sm:$0xff]
    %v1905 = vld [vmem:[#allocation7 + $0x3e0] sm:$0x33]
    %v1906 = vld [vmem:[#allocation7 + $0x3e8] sm:$0x33]
    %v1907 = vld [vmem:[%s6] sm:$0xf]
    %v1909 = vperm.slane %v1907, 0
    %v1910 = vperm.slane %v1907, 1
    %v1911 = vperm.slane %v1907, 2
    %v1912 = vperm.slane %v1907, 3
    %v2043 = vunpack.c.l.b16 %v1781
    %v2044 = vunpack.c.h.b16 %v1781
    %v2045 = vunpack.c.l.b16 %v1782
    %v2046 = vunpack.c.h.b16 %v1782
    %v2047 = vunpack.c.l.b16 %v1783
    %v2048 = vunpack.c.h.b16 %v1783
    %v2049 = vunpack.c.l.b16 %v1784
    %v2050 = vunpack.c.h.b16 %v1784
    %v2051 = vunpack.c.l.b16 %v1785
    %v2052 = vunpack.c.h.b16 %v1785
    %v2053 = vunpack.c.l.b16 %v1786
    %v2054 = vunpack.c.h.b16 %v1786
    %v2055 = vunpack.c.l.b16 %v1787
    %v2056 = vunpack.c.h.b16 %v1787
    %v2057 = vunpack.c.l.b16 %v1788
    %v2058 = vunpack.c.h.b16 %v1788
    %v2059 = vunpack.c.l.b16 %v1789
    %v2060 = vunpack.c.h.b16 %v1789
    %v2061 = vunpack.c.l.b16 %v1790
    %v2062 = vunpack.c.h.b16 %v1790
    %v2063 = vunpack.c.l.b16 %v1791
    %v2064 = vunpack.c.h.b16 %v1791
    %v2065 = vunpack.c.l.b16 %v1792
    %v2066 = vunpack.c.h.b16 %v1792
    %v2067 = vunpack.c.l.b16 %v1793
    %v2068 = vunpack.c.h.b16 %v1793
    %v2069 = vunpack.c.l.b16 %v1794
    %v2070 = vunpack.c.h.b16 %v1794
    %v2071 = vunpack.c.l.b16 %v1795
    %v2072 = vunpack.c.h.b16 %v1795
    %v2073 = vunpack.c.l.b16 %v1796
    %v2074 = vunpack.c.h.b16 %v1796
    %v2075 = vunpack.c.l.b16 %v1797
    %v2076 = vunpack.c.h.b16 %v1797
    %v2077 = vunpack.c.l.b16 %v1798
    %v2078 = vunpack.c.h.b16 %v1798
    %v2079 = vunpack.c.l.b16 %v1799
    %v2080 = vunpack.c.h.b16 %v1799
    %v2081 = vunpack.c.l.b16 %v1800
    %v2082 = vunpack.c.h.b16 %v1800
    %v2083 = vunpack.c.l.b16 %v1801
    %v2084 = vunpack.c.h.b16 %v1801
    %v2085 = vunpack.c.l.b16 %v1802
    %v2086 = vunpack.c.h.b16 %v1802
    %v2087 = vunpack.c.l.b16 %v1803
    %v2088 = vunpack.c.h.b16 %v1803
    %v2089 = vunpack.c.l.b16 %v1804
    %v2090 = vunpack.c.h.b16 %v1804
    %v2091 = vunpack.c.l.b16 %v1805
    %v2092 = vunpack.c.h.b16 %v1805
    %v2093 = vunpack.c.l.b16 %v1806
    %v2094 = vunpack.c.h.b16 %v1806
    %v2095 = vunpack.c.l.b16 %v1807
    %v2096 = vunpack.c.h.b16 %v1807
    %v2097 = vunpack.c.l.b16 %v1808
    %v2098 = vunpack.c.h.b16 %v1808
    %v2099 = vunpack.c.l.b16 %v1809
    %v2100 = vunpack.c.h.b16 %v1809
    %v2101 = vunpack.c.l.b16 %v1810
    %v2102 = vunpack.c.h.b16 %v1810
    %v2103 = vunpack.c.l.b16 %v1811
    %v2104 = vunpack.c.h.b16 %v1811
    %v2105 = vunpack.c.l.b16 %v1812
    %v2106 = vunpack.c.h.b16 %v1812
    %v2107 = vunpack.c.l.b16 %v1813
    %v2108 = vunpack.c.h.b16 %v1813
    %v2109 = vunpack.c.l.b16 %v1814
    %v2110 = vunpack.c.h.b16 %v1814
    %v2111 = vunpack.c.l.b16 %v1815
    %v2112 = vunpack.c.h.b16 %v1815
    %v2113 = vunpack.c.l.b16 %v1816
    %v2114 = vunpack.c.h.b16 %v1816
    %v2115 = vunpack.c.l.b16 %v1817
    %v2116 = vunpack.c.h.b16 %v1817
    %v2117 = vunpack.c.l.b16 %v1818
    %v2118 = vunpack.c.h.b16 %v1818
    %v2119 = vunpack.c.l.b16 %v1819
    %v2120 = vunpack.c.h.b16 %v1819
    %v2121 = vunpack.c.l.b16 %v1820
    %v2122 = vunpack.c.h.b16 %v1820
    %v2123 = vunpack.c.l.b16 %v1821
    %v2124 = vunpack.c.h.b16 %v1821
    %v2125 = vunpack.c.l.b16 %v1822
    %v2126 = vunpack.c.h.b16 %v1822
    %v2127 = vunpack.c.l.b16 %v1823
    %v2128 = vunpack.c.h.b16 %v1823
    %v2129 = vunpack.c.l.b16 %v1824
    %v2130 = vunpack.c.h.b16 %v1824
    %v2131 = vunpack.c.l.b16 %v1825
    %v2132 = vunpack.c.h.b16 %v1825
    %v2133 = vunpack.c.l.b16 %v1826
    %v2134 = vunpack.c.h.b16 %v1826
    %v2135 = vunpack.c.l.b16 %v1827
    %v2136 = vunpack.c.h.b16 %v1827
    %v2137 = vunpack.c.l.b16 %v1828
    %v2138 = vunpack.c.h.b16 %v1828
    %v2139 = vunpack.c.l.b16 %v1829
    %v2140 = vunpack.c.h.b16 %v1829
    %v2141 = vunpack.c.l.b16 %v1830
    %v2142 = vunpack.c.h.b16 %v1830
    %v2143 = vunpack.c.l.b16 %v1831
    %v2144 = vunpack.c.h.b16 %v1831
    %v2145 = vunpack.c.l.b16 %v1832
    %v2146 = vunpack.c.h.b16 %v1832
    %v2147 = vunpack.c.l.b16 %v1833
    %v2148 = vunpack.c.h.b16 %v1833
    %v2149 = vunpack.c.l.b16 %v1834
    %v2150 = vunpack.c.h.b16 %v1834
    %v2151 = vunpack.c.l.b16 %v1835
    %v2152 = vunpack.c.h.b16 %v1835
    %v2153 = vunpack.c.l.b16 %v1836
    %v2154 = vunpack.c.h.b16 %v1836
    %v2155 = vunpack.c.l.b16 %v1837
    %v2156 = vunpack.c.h.b16 %v1837
    %v2157 = vunpack.c.l.b16 %v1838
    %v2158 = vunpack.c.h.b16 %v1838
    %v2159 = vunpack.c.l.b16 %v1839
    %v2160 = vunpack.c.h.b16 %v1839
    %v2161 = vunpack.c.l.b16 %v1840
    %v2162 = vunpack.c.h.b16 %v1840
    %v2163 = vunpack.c.l.b16 %v1841
    %v2164 = vunpack.c.h.b16 %v1841
    %v2165 = vunpack.c.l.b16 %v1842
    %v2166 = vunpack.c.h.b16 %v1842
    %v2167 = vunpack.c.l.b16 %v1843
    %v2168 = vunpack.c.h.b16 %v1843
    %v2169 = vunpack.c.l.b16 %v1844
    %v2170 = vunpack.c.h.b16 %v1844
    %v2171 = vunpack.c.l.b16 %v1845
    %v2172 = vunpack.c.h.b16 %v1845
    %v2173 = vunpack.c.l.b16 %v1846
    %v2174 = vunpack.c.h.b16 %v1846
    %v2175 = vunpack.c.l.b16 %v1847
    %v2176 = vunpack.c.h.b16 %v1847
    %v2177 = vunpack.c.l.b16 %v1848
    %v2178 = vunpack.c.h.b16 %v1848
    %v2179 = vunpack.c.l.b16 %v1849
    %v2180 = vunpack.c.h.b16 %v1849
    %v2181 = vunpack.c.l.b16 %v1850
    %v2182 = vunpack.c.h.b16 %v1850
    %v2183 = vunpack.c.l.b16 %v1851
    %v2184 = vunpack.c.h.b16 %v1851
    %v2185 = vunpack.c.l.b16 %v1852
    %v2186 = vunpack.c.h.b16 %v1852
    %v2187 = vunpack.c.l.b16 %v1853
    %v2188 = vunpack.c.h.b16 %v1853
    %v2189 = vunpack.c.l.b16 %v1854
    %v2190 = vunpack.c.h.b16 %v1854
    %v2191 = vunpack.c.l.b16 %v1855
    %v2192 = vunpack.c.h.b16 %v1855
    %v2193 = vunpack.c.l.b16 %v1856
    %v2194 = vunpack.c.h.b16 %v1856
    %v2195 = vunpack.c.l.b16 %v1857
    %v2196 = vunpack.c.h.b16 %v1857
    %v2197 = vunpack.c.l.b16 %v1858
    %v2198 = vunpack.c.h.b16 %v1858
    %v2199 = vunpack.c.l.b16 %v1859
    %v2200 = vunpack.c.h.b16 %v1859
    %v2201 = vunpack.c.l.b16 %v1860
    %v2202 = vunpack.c.h.b16 %v1860
    %v2203 = vunpack.c.l.b16 %v1861
    %v2204 = vunpack.c.h.b16 %v1861
    %v2205 = vunpack.c.l.b16 %v1862
    %v2206 = vunpack.c.h.b16 %v1862
    %v2207 = vunpack.c.l.b16 %v1863
    %v2208 = vunpack.c.h.b16 %v1863
    %v2209 = vunpack.c.l.b16 %v1864
    %v2210 = vunpack.c.h.b16 %v1864
    %v2211 = vunpack.c.l.b16 %v1865
    %v2212 = vunpack.c.h.b16 %v1865
    %v2213 = vunpack.c.l.b16 %v1866
    %v2214 = vunpack.c.h.b16 %v1866
    %v2215 = vunpack.c.l.b16 %v1867
    %v2216 = vunpack.c.h.b16 %v1867
    %v2217 = vunpack.c.l.b16 %v1868
    %v2218 = vunpack.c.h.b16 %v1868
    %v2219 = vunpack.c.l.b16 %v1869
    %v2220 = vunpack.c.h.b16 %v1869
    %v2221 = vunpack.c.l.b16 %v1870
    %v2222 = vunpack.c.h.b16 %v1870
    %v2223 = vunpack.c.l.b16 %v1871
    %v2224 = vunpack.c.h.b16 %v1871
    %v2225 = vunpack.c.l.b16 %v1872
    %v2226 = vunpack.c.h.b16 %v1872
    %v2227 = vunpack.c.l.b16 %v1873
    %v2228 = vunpack.c.h.b16 %v1873
    %v2229 = vunpack.c.l.b16 %v1874
    %v2230 = vunpack.c.h.b16 %v1874
    %v2231 = vunpack.c.l.b16 %v1875
    %v2232 = vunpack.c.h.b16 %v1875
    %v2233 = vunpack.c.l.b16 %v1876
    %v2234 = vunpack.c.h.b16 %v1876
    %v2235 = vunpack.c.l.b16 %v1877
    %v2236 = vunpack.c.h.b16 %v1877
    %v2237 = vunpack.c.l.b16 %v1878
    %v2238 = vunpack.c.h.b16 %v1878
    %v2239 = vunpack.c.l.b16 %v1879
    %v2240 = vunpack.c.h.b16 %v1879
    %v2241 = vunpack.c.l.b16 %v1880
    %v2242 = vunpack.c.h.b16 %v1880
    %v2243 = vunpack.c.l.b16 %v1881
    %v2244 = vunpack.c.h.b16 %v1881
    %v2245 = vunpack.c.l.b16 %v1882
    %v2246 = vunpack.c.h.b16 %v1882
    %v2247 = vunpack.c.l.b16 %v1883
    %v2248 = vunpack.c.h.b16 %v1883
    %v2249 = vunpack.c.l.b16 %v1884
    %v2250 = vunpack.c.h.b16 %v1884
    %v2251 = vunpack.c.l.b16 %v1885
    %v2252 = vunpack.c.h.b16 %v1885
    %v2253 = vunpack.c.l.b16 %v1886
    %v2254 = vunpack.c.h.b16 %v1886
    %v2255 = vunpack.c.l.b16 %v1887
    %v2256 = vunpack.c.h.b16 %v1887
    %v2257 = vunpack.c.l.b16 %v1888
    %v2258 = vunpack.c.h.b16 %v1888
    %v2259 = vunpack.c.l.b16 %v1889
    %v2260 = vunpack.c.h.b16 %v1889
    %v2261 = vunpack.c.l.b16 %v1890
    %v2262 = vunpack.c.h.b16 %v1890
    %v2263 = vunpack.c.l.b16 %v1891
    %v2264 = vunpack.c.h.b16 %v1891
    %v2265 = vunpack.c.l.b16 %v1892
    %v2266 = vunpack.c.h.b16 %v1892
    %v2267 = vunpack.c.l.b16 %v1893
    %v2268 = vunpack.c.h.b16 %v1893
    %v2269 = vunpack.c.l.b16 %v1894
    %v2270 = vunpack.c.h.b16 %v1894
    %v2271 = vunpack.c.l.b16 %v1895
    %v2272 = vunpack.c.h.b16 %v1895
    %v2273 = vunpack.c.l.b16 %v1896
    %v2274 = vunpack.c.h.b16 %v1896
    %v2275 = vunpack.c.l.b16 %v1897
    %v2276 = vunpack.c.h.b16 %v1897
    %v2277 = vunpack.c.l.b16 %v1898
    %v2278 = vunpack.c.h.b16 %v1898
    %v2279 = vunpack.c.l.b16 %v1899
    %v2280 = vunpack.c.h.b16 %v1899
    %v2281 = vunpack.c.l.b16 %v1900
    %v2282 = vunpack.c.h.b16 %v1900
    %v2283 = vunpack.c.l.b16 %v1901
    %v2284 = vunpack.c.h.b16 %v1901
    %v2285 = vunpack.c.l.b16 %v1902
    %v2286 = vunpack.c.h.b16 %v1902
    %v2287 = vunpack.c.l.b16 %v1903
    %v2288 = vunpack.c.h.b16 %v1903
    %v2289 = vunpack.c.l.b16 %v1904
    %v2290 = vunpack.c.h.b16 %v1904
    %v2291 = vunpack.c.l.b16 %v1905
    %v2292 = vunpack.c.h.b16 %v1905
    %v2293 = vunpack.c.l.b16 %v1906
    %v2294 = vunpack.c.h.b16 %v1906
    %v2295 = vpack.c.b16 %v2047, %v2043
    %v2296 = vpack.c.b16 %v2048, %v2044
    %v2297 = vpack.c.b16 %v2049, %v2045
    %v2298 = vpack.c.b16 %v2050, %v2046
    %v2299 = vpack.c.b16 %v2055, %v2051
    %v2300 = vpack.c.b16 %v2056, %v2052
    %v2301 = vpack.c.b16 %v2057, %v2053
    %v2302 = vpack.c.b16 %v2058, %v2054
    %v2303 = vpack.c.b16 %v2063, %v2059
    %v2304 = vpack.c.b16 %v2064, %v2060
    %v2305 = vpack.c.b16 %v2065, %v2061
    %v2306 = vpack.c.b16 %v2066, %v2062
    %v2307 = vpack.c.b16 %v2071, %v2067
    %v2308 = vpack.c.b16 %v2072, %v2068
    %v2309 = vpack.c.b16 %v2073, %v2069
    %v2310 = vpack.c.b16 %v2074, %v2070
    %v2311 = vpack.c.b16 %v2079, %v2075
    %v2312 = vpack.c.b16 %v2080, %v2076
    %v2313 = vpack.c.b16 %v2081, %v2077
    %v2314 = vpack.c.b16 %v2082, %v2078
    %v2315 = vpack.c.b16 %v2087, %v2083
    %v2316 = vpack.c.b16 %v2088, %v2084
    %v2317 = vpack.c.b16 %v2089, %v2085
    %v2318 = vpack.c.b16 %v2090, %v2086
    %v2319 = vpack.c.b16 %v2095, %v2091
    %v2320 = vpack.c.b16 %v2096, %v2092
    %v2321 = vpack.c.b16 %v2097, %v2093
    %v2322 = vpack.c.b16 %v2098, %v2094
    %v2323 = vpack.c.b16 %v2103, %v2099
    %v2324 = vpack.c.b16 %v2104, %v2100
    %v2325 = vpack.c.b16 %v2105, %v2101
    %v2326 = vpack.c.b16 %v2106, %v2102
    %v2327 = vpack.c.b16 %v2111, %v2107
    %v2328 = vpack.c.b16 %v2112, %v2108
    %v2329 = vpack.c.b16 %v2113, %v2109
    %v2330 = vpack.c.b16 %v2114, %v2110
    %v2331 = vpack.c.b16 %v2119, %v2115
    %v2332 = vpack.c.b16 %v2120, %v2116
    %v2333 = vpack.c.b16 %v2121, %v2117
    %v2334 = vpack.c.b16 %v2122, %v2118
    %v2335 = vpack.c.b16 %v2127, %v2123
    %v2336 = vpack.c.b16 %v2128, %v2124
    %v2337 = vpack.c.b16 %v2129, %v2125
    %v2338 = vpack.c.b16 %v2130, %v2126
    %v2339 = vpack.c.b16 %v2135, %v2131
    %v2340 = vpack.c.b16 %v2136, %v2132
    %v2341 = vpack.c.b16 %v2137, %v2133
    %v2342 = vpack.c.b16 %v2138, %v2134
    %v2343 = vpack.c.b16 %v2143, %v2139
    %v2344 = vpack.c.b16 %v2144, %v2140
    %v2345 = vpack.c.b16 %v2145, %v2141
    %v2346 = vpack.c.b16 %v2146, %v2142
    %v2347 = vpack.c.b16 %v2151, %v2147
    %v2348 = vpack.c.b16 %v2152, %v2148
    %v2349 = vpack.c.b16 %v2153, %v2149
    %v2350 = vpack.c.b16 %v2154, %v2150
    %v2351 = vpack.c.b16 %v2159, %v2155
    %v2352 = vpack.c.b16 %v2160, %v2156
    %v2353 = vpack.c.b16 %v2161, %v2157
    %v2354 = vpack.c.b16 %v2162, %v2158
    %v2355 = vpack.c.b16 %v2167, %v2163
    %v2356 = vpack.c.b16 %v2168, %v2164
    %v2357 = vpack.c.b16 %v2169, %v2165
    %v2358 = vpack.c.b16 %v2170, %v2166
    %v2359 = vpack.c.b16 %v2175, %v2171
    %v2360 = vpack.c.b16 %v2176, %v2172
    %v2361 = vpack.c.b16 %v2177, %v2173
    %v2362 = vpack.c.b16 %v2178, %v2174
    %v2363 = vpack.c.b16 %v2183, %v2179
    %v2364 = vpack.c.b16 %v2184, %v2180
    %v2365 = vpack.c.b16 %v2185, %v2181
    %v2366 = vpack.c.b16 %v2186, %v2182
    %v2367 = vpack.c.b16 %v2191, %v2187
    %v2368 = vpack.c.b16 %v2192, %v2188
    %v2369 = vpack.c.b16 %v2193, %v2189
    %v2370 = vpack.c.b16 %v2194, %v2190
    %v2371 = vpack.c.b16 %v2199, %v2195
    %v2372 = vpack.c.b16 %v2200, %v2196
    %v2373 = vpack.c.b16 %v2201, %v2197
    %v2374 = vpack.c.b16 %v2202, %v2198
    %v2375 = vpack.c.b16 %v2207, %v2203
    %v2376 = vpack.c.b16 %v2208, %v2204
    %v2377 = vpack.c.b16 %v2209, %v2205
    %v2378 = vpack.c.b16 %v2210, %v2206
    %v2379 = vpack.c.b16 %v2215, %v2211
    %v2380 = vpack.c.b16 %v2216, %v2212
    %v2381 = vpack.c.b16 %v2217, %v2213
    %v2382 = vpack.c.b16 %v2218, %v2214
    %v2383 = vpack.c.b16 %v2223, %v2219
    %v2384 = vpack.c.b16 %v2224, %v2220
    %v2385 = vpack.c.b16 %v2225, %v2221
    %v2386 = vpack.c.b16 %v2226, %v2222
    %v2387 = vpack.c.b16 %v2231, %v2227
    %v2388 = vpack.c.b16 %v2232, %v2228
    %v2389 = vpack.c.b16 %v2233, %v2229
    %v2390 = vpack.c.b16 %v2234, %v2230
    %v2391 = vpack.c.b16 %v2239, %v2235
    %v2392 = vpack.c.b16 %v2240, %v2236
    %v2393 = vpack.c.b16 %v2241, %v2237
    %v2394 = vpack.c.b16 %v2242, %v2238
    %v2395 = vpack.c.b16 %v2247, %v2243
    %v2396 = vpack.c.b16 %v2248, %v2244
    %v2397 = vpack.c.b16 %v2249, %v2245
    %v2398 = vpack.c.b16 %v2250, %v2246
    %v2399 = vpack.c.b16 %v2255, %v2251
    %v2400 = vpack.c.b16 %v2256, %v2252
    %v2401 = vpack.c.b16 %v2257, %v2253
    %v2402 = vpack.c.b16 %v2258, %v2254
    %v2403 = vpack.c.b16 %v2263, %v2259
    %v2404 = vpack.c.b16 %v2264, %v2260
    %v2405 = vpack.c.b16 %v2265, %v2261
    %v2406 = vpack.c.b16 %v2266, %v2262
    %v2407 = vpack.c.b16 %v2271, %v2267
    %v2408 = vpack.c.b16 %v2272, %v2268
    %v2409 = vpack.c.b16 %v2273, %v2269
    %v2410 = vpack.c.b16 %v2274, %v2270
    %v2411 = vpack.c.b16 %v2279, %v2275
    %v2412 = vpack.c.b16 %v2280, %v2276
    %v2413 = vpack.c.b16 %v2281, %v2277
    %v2414 = vpack.c.b16 %v2282, %v2278
    %v2415 = vpack.c.b16 %v2287, %v2283
    %v2416 = vpack.c.b16 %v2288, %v2284
    %v2417 = vpack.c.b16 %v2289, %v2285
    %v2418 = vpack.c.b16 %v2290, %v2286
    %v2419 = vpack.c.b16 %v2291, %v2291
    %v2420 = vpack.c.b16 %v2292, %v2292
    %v2421 = vpack.c.b16 %v2293, %v2293
    %v2422 = vpack.c.b16 %v2294, %v2294
    %v2548 = vsel %vm1549, %v1780, 0
    %v2551 = vsel %vm606, %v2419, 0
    %v2554 = vsel %vm606, %v2420, 0
    %v2557 = vsel %vm606, %v2421, 0
    %v2560 = vsel %vm606, %v2422, 0
    %2562 = vmatpush.bf16.msra.mxu0 %v2323
    %2563 = vmatpush.bf16.msra.mxu0 %v2319
    %2564 = vmatpush.bf16.msra.mxu0 %v2315
    %2565 = vmatpush.bf16.msra.mxu0 %v2311
    %2566 = vmatpush.bf16.msra.mxu0 %v2307
    %2567 = vmatpush.bf16.msra.mxu0 %v2303
    %2568 = vmatpush.bf16.msra.mxu0 %v2299
    %2569 = vmatpush.bf16.msra.mxu0 %v2295
    %2570 = vmatmul.bf16.gmra.mxu0 %v1777
    %v2571 = vpop.f32.mrf.mxu0
    %v2572 = vadd.f32 %v1909, %v2571
    %v2573 = vpop.f32.mrf.mxu0
    %2574 = vdwg.mxu0
    %2575 = vmatpush.bf16.msra.mxu0 %v2355
    %2576 = vmatpush.bf16.msra.mxu0 %v2351
    %2577 = vmatpush.bf16.msra.mxu0 %v2347
    %2578 = vmatpush.bf16.msra.mxu0 %v2343
    %2579 = vmatpush.bf16.msra.mxu0 %v2339
    %2580 = vmatpush.bf16.msra.mxu0 %v2335
    %2581 = vmatpush.bf16.msra.mxu0 %v2331
    %2582 = vmatpush.bf16.msra.mxu0 %v2327
    %2583 = vmatmul.bf16.gmra.mxu0 %v1778
    %v2584 = vpop.f32.mrf.mxu0
    %v2585 = vadd.f32 %v2572, %v2584
    %v2586 = vpop.f32.mrf.mxu0
    %2587 = vdwg.mxu0
    %2588 = vmatpush.bf16.msra.mxu0 %v2387
    %2589 = vmatpush.bf16.msra.mxu0 %v2383
    %2590 = vmatpush.bf16.msra.mxu0 %v2379
    %2591 = vmatpush.bf16.msra.mxu0 %v2375
    %2592 = vmatpush.bf16.msra.mxu0 %v2371
    %2593 = vmatpush.bf16.msra.mxu0 %v2367
    %2594 = vmatpush.bf16.msra.mxu0 %v2363
    %2595 = vmatpush.bf16.msra.mxu0 %v2359
    %2596 = vmatmul.bf16.gmra.mxu0 %v1779
    %v2597 = vpop.f32.mrf.mxu0
    %v2598 = vadd.f32 %v2585, %v2597
    %v2599 = vpop.f32.mrf.mxu0
    %2600 = vdwg.mxu0
    %2601 = vmatpush.bf16.msra.mxu0 %v2551
    %2602 = vmatpush.bf16.msra.mxu0 %v2415
    %2603 = vmatpush.bf16.msra.mxu0 %v2411
    %2604 = vmatpush.bf16.msra.mxu0 %v2407
    %2605 = vmatpush.bf16.msra.mxu0 %v2403
    %2606 = vmatpush.bf16.msra.mxu0 %v2399
    %2607 = vmatpush.bf16.msra.mxu0 %v2395
    %2608 = vmatpush.bf16.msra.mxu0 %v2391
    %2609 = vmatmul.bf16.gmra.mxu0 %v2548
    %v2610 = vpop.f32.mrf.mxu0
    %v2611 = vadd.f32 %v2598, %v2610
    %v2612 = vpop.f32.mrf.mxu0
    %2613 = vdwg.mxu0
    %2614 = vmatpush.bf16.msra.mxu0 %v2324
    %2615 = vmatpush.bf16.msra.mxu0 %v2320
    %2616 = vmatpush.bf16.msra.mxu0 %v2316
    %2617 = vmatpush.bf16.msra.mxu0 %v2312
    %2618 = vmatpush.bf16.msra.mxu0 %v2308
    %2619 = vmatpush.bf16.msra.mxu0 %v2304
    %2620 = vmatpush.bf16.msra.mxu0 %v2300
    %2621 = vmatpush.bf16.msra.mxu0 %v2296
    %2622 = vmatmul.bf16.gmra.mxu0 %v1777
    %v2623 = vpop.f32.mrf.mxu0
    %v2624 = vadd.f32 %v1910, %v2623
    %v2625 = vpop.f32.mrf.mxu0
    %2626 = vdwg.mxu0
    %2627 = vmatpush.bf16.msra.mxu0 %v2356
    %2628 = vmatpush.bf16.msra.mxu0 %v2352
    %2629 = vmatpush.bf16.msra.mxu0 %v2348
    %2630 = vmatpush.bf16.msra.mxu0 %v2344
    %2631 = vmatpush.bf16.msra.mxu0 %v2340
    %2632 = vmatpush.bf16.msra.mxu0 %v2336
    %2633 = vmatpush.bf16.msra.mxu0 %v2332
    %2634 = vmatpush.bf16.msra.mxu0 %v2328
    %2635 = vmatmul.bf16.gmra.mxu0 %v1778
    %v2636 = vpop.f32.mrf.mxu0
    %v2637 = vadd.f32 %v2624, %v2636
    %v2638 = vpop.f32.mrf.mxu0
    %2639 = vdwg.mxu0
    %2640 = vmatpush.bf16.msra.mxu0 %v2388
    %2641 = vmatpush.bf16.msra.mxu0 %v2384
    %2642 = vmatpush.bf16.msra.mxu0 %v2380
    %2643 = vmatpush.bf16.msra.mxu0 %v2376
    %2644 = vmatpush.bf16.msra.mxu0 %v2372
    %2645 = vmatpush.bf16.msra.mxu0 %v2368
    %2646 = vmatpush.bf16.msra.mxu0 %v2364
    %2647 = vmatpush.bf16.msra.mxu0 %v2360
    %2648 = vmatmul.bf16.gmra.mxu0 %v1779
    %v2649 = vpop.f32.mrf.mxu0
    %v2650 = vadd.f32 %v2637, %v2649
    %v2651 = vpop.f32.mrf.mxu0
    %2652 = vdwg.mxu0
    %2653 = vmatpush.bf16.msra.mxu0 %v2554
    %2654 = vmatpush.bf16.msra.mxu0 %v2416
    %2655 = vmatpush.bf16.msra.mxu0 %v2412
    %2656 = vmatpush.bf16.msra.mxu0 %v2408
    %2657 = vmatpush.bf16.msra.mxu0 %v2404
    %2658 = vmatpush.bf16.msra.mxu0 %v2400
    %2659 = vmatpush.bf16.msra.mxu0 %v2396
    %2660 = vmatpush.bf16.msra.mxu0 %v2392
    %2661 = vmatmul.bf16.gmra.mxu0 %v2548
    %v2662 = vpop.f32.mrf.mxu0
    %v2663 = vadd.f32 %v2650, %v2662
    %v2664 = vpop.f32.mrf.mxu0
    %2665 = vdwg.mxu0
    %2666 = vmatpush.bf16.msra.mxu0 %v2325
    %2667 = vmatpush.bf16.msra.mxu0 %v2321
    %2668 = vmatpush.bf16.msra.mxu0 %v2317
    %2669 = vmatpush.bf16.msra.mxu0 %v2313
    %2670 = vmatpush.bf16.msra.mxu0 %v2309
    %2671 = vmatpush.bf16.msra.mxu0 %v2305
    %2672 = vmatpush.bf16.msra.mxu0 %v2301
    %2673 = vmatpush.bf16.msra.mxu0 %v2297
    %2674 = vmatmul.bf16.gmra.mxu0 %v1777
    %v2675 = vpop.f32.mrf.mxu0
    %v2676 = vadd.f32 %v1911, %v2675
    %v2677 = vpop.f32.mrf.mxu0
    %2678 = vdwg.mxu0
    %2679 = vmatpush.bf16.msra.mxu0 %v2357
    %2680 = vmatpush.bf16.msra.mxu0 %v2353
    %2681 = vmatpush.bf16.msra.mxu0 %v2349
    %2682 = vmatpush.bf16.msra.mxu0 %v2345
    %2683 = vmatpush.bf16.msra.mxu0 %v2341
    %2684 = vmatpush.bf16.msra.mxu0 %v2337
    %2685 = vmatpush.bf16.msra.mxu0 %v2333
    %2686 = vmatpush.bf16.msra.mxu0 %v2329
    %2687 = vmatmul.bf16.gmra.mxu0 %v1778
    %v2688 = vpop.f32.mrf.mxu0
    %v2689 = vadd.f32 %v2676, %v2688
    %v2690 = vpop.f32.mrf.mxu0
    %2691 = vdwg.mxu0
    %2692 = vmatpush.bf16.msra.mxu0 %v2389
    %2693 = vmatpush.bf16.msra.mxu0 %v2385
    %2694 = vmatpush.bf16.msra.mxu0 %v2381
    %2695 = vmatpush.bf16.msra.mxu0 %v2377
    %2696 = vmatpush.bf16.msra.mxu0 %v2373
    %2697 = vmatpush.bf16.msra.mxu0 %v2369
    %2698 = vmatpush.bf16.msra.mxu0 %v2365
    %2699 = vmatpush.bf16.msra.mxu0 %v2361
    %2700 = vmatmul.bf16.gmra.mxu0 %v1779
    %v2701 = vpop.f32.mrf.mxu0
    %v2702 = vadd.f32 %v2689, %v2701
    %v2703 = vpop.f32.mrf.mxu0
    %2704 = vdwg.mxu0
    %2705 = vmatpush.bf16.msra.mxu0 %v2557
    %2706 = vmatpush.bf16.msra.mxu0 %v2417
    %2707 = vmatpush.bf16.msra.mxu0 %v2413
    %2708 = vmatpush.bf16.msra.mxu0 %v2409
    %2709 = vmatpush.bf16.msra.mxu0 %v2405
    %2710 = vmatpush.bf16.msra.mxu0 %v2401
    %2711 = vmatpush.bf16.msra.mxu0 %v2397
    %2712 = vmatpush.bf16.msra.mxu0 %v2393
    %2713 = vmatmul.bf16.gmra.mxu0 %v2548
    %v2714 = vpop.f32.mrf.mxu0
    %v2715 = vadd.f32 %v2702, %v2714
    %v2716 = vpop.f32.mrf.mxu0
    %2717 = vdwg.mxu0
    %2718 = vmatpush.bf16.msra.mxu0 %v2326
    %2719 = vmatpush.bf16.msra.mxu0 %v2322
    %2720 = vmatpush.bf16.msra.mxu0 %v2318
    %2721 = vmatpush.bf16.msra.mxu0 %v2314
    %2722 = vmatpush.bf16.msra.mxu0 %v2310
    %2723 = vmatpush.bf16.msra.mxu0 %v2306
    %2724 = vmatpush.bf16.msra.mxu0 %v2302
    %2725 = vmatpush.bf16.msra.mxu0 %v2298
    %2726 = vmatmul.bf16.gmra.mxu0 %v1777
    %v2727 = vpop.f32.mrf.mxu0
    %v2728 = vadd.f32 %v1912, %v2727
    %v2729 = vpop.f32.mrf.mxu0
    %2730 = vdwg.mxu0
    %2731 = vmatpush.bf16.msra.mxu0 %v2358
    %2732 = vmatpush.bf16.msra.mxu0 %v2354
    %2733 = vmatpush.bf16.msra.mxu0 %v2350
    %2734 = vmatpush.bf16.msra.mxu0 %v2346
    %2735 = vmatpush.bf16.msra.mxu0 %v2342
    %2736 = vmatpush.bf16.msra.mxu0 %v2338
    %2737 = vmatpush.bf16.msra.mxu0 %v2334
    %2738 = vmatpush.bf16.msra.mxu0 %v2330
    %2739 = vmatmul.bf16.gmra.mxu0 %v1778
    %v2740 = vpop.f32.mrf.mxu0
    %v2741 = vadd.f32 %v2728, %v2740
    %v2742 = vpop.f32.mrf.mxu0
    %2743 = vdwg.mxu0
    %2744 = vmatpush.bf16.msra.mxu0 %v2390
    %2745 = vmatpush.bf16.msra.mxu0 %v2386
    %2746 = vmatpush.bf16.msra.mxu0 %v2382
    %2747 = vmatpush.bf16.msra.mxu0 %v2378
    %2748 = vmatpush.bf16.msra.mxu0 %v2374
    %2749 = vmatpush.bf16.msra.mxu0 %v2370
    %2750 = vmatpush.bf16.msra.mxu0 %v2366
    %2751 = vmatpush.bf16.msra.mxu0 %v2362
    %2752 = vmatmul.bf16.gmra.mxu0 %v1779
    %v2753 = vpop.f32.mrf.mxu0
    %v2754 = vadd.f32 %v2741, %v2753
    %v2755 = vpop.f32.mrf.mxu0
    %2756 = vdwg.mxu0
    %2757 = vmatpush.bf16.msra.mxu0 %v2560
    %2758 = vmatpush.bf16.msra.mxu0 %v2418
    %2759 = vmatpush.bf16.msra.mxu0 %v2414
    %2760 = vmatpush.bf16.msra.mxu0 %v2410
    %2761 = vmatpush.bf16.msra.mxu0 %v2406
    %2762 = vmatpush.bf16.msra.mxu0 %v2402
    %2763 = vmatpush.bf16.msra.mxu0 %v2398
    %2764 = vmatpush.bf16.msra.mxu0 %v2394
    %2765 = vmatmul.bf16.gmra.mxu0 %v2548
    %v2766 = vpop.f32.mrf.mxu0
    %v2767 = vadd.f32 %v2754, %v2766
    %v2768 = vpop.f32.mrf.mxu0
    %2769 = vdwg.mxu0
    %v2770 = vtanh.pop %v2611
    %v2771 = vtanh.pop %v2663
    %v2772 = vtanh.pop %v2715
    %v2773 = vtanh.pop %v2767
    %v2774 = vpack.c.bf16 %v2770, %v2770
    %v2775 = vpack.c.bf16 %v2771, %v2771
    %v2776 = vpack.c.bf16 %v2772, %v2772
    %v2777 = vpack.c.bf16 %v2773, %v2773
    %v2778 = vld [vmem:[%s7] sm:$0xf]
    %v2779 = vld [vmem:[%s7 + $0x4] sm:$0xf]
    %v2780 = vld [vmem:[%s7 + $0x8] sm:$0xf]
    %v2781 = vld [vmem:[%s7 + $0xc] sm:$0xf]
    %v2782 = vld [vmem:[%s7 + $0x10] sm:$0xf]
    %v2783 = vld [vmem:[%s7 + $0x14] sm:$0xf]
    %v2784 = vld [vmem:[%s7 + $0x18] sm:$0xf]
    %v2785 = vld [vmem:[%s7 + $0x1c] sm:$0xf]
    %v2786 = vld [vmem:[%s7 + $0x20] sm:$0xf]
    %v2787 = vld [vmem:[%s7 + $0x24] sm:$0xf]
    %v2788 = vld [vmem:[%s7 + $0x28] sm:$0xf]
    %v2789 = vld [vmem:[%s7 + $0x2c] sm:$0xf]
    %v2790 = vld [vmem:[%s7 + $0x30] sm:$0xf]
    %v2791 = vld [vmem:[%s7 + $0x34] sm:$0xf]
    %v2792 = vld [vmem:[%s7 + $0x38] sm:$0xf]
    %v2793 = vld [vmem:[%s7 + $0x3c] sm:$0xf]
    %v2794 = vld [vmem:[%s7 + $0x40] sm:$0xf]
    %v2795 = vld [vmem:[%s7 + $0x44] sm:$0xf]
    %v2796 = vld [vmem:[%s7 + $0x48] sm:$0xf]
    %v2797 = vld [vmem:[%s7 + $0x4c] sm:$0xf]
    %v2798 = vld [vmem:[%s7 + $0x50] sm:$0xf]
    %v2799 = vld [vmem:[%s7 + $0x54] sm:$0xf]
    %v2800 = vld [vmem:[%s7 + $0x58] sm:$0xf]
    %v2801 = vld [vmem:[%s7 + $0x5c] sm:$0xf]
    %v2802 = vld [vmem:[%s7 + $0x60] sm:$0xf]
    %v2803 = vld [vmem:[%s7 + $0x64] sm:$0xf]
    %v2804 = vld [vmem:[%s7 + $0x68] sm:$0xf]
    %v2805 = vld [vmem:[%s7 + $0x6c] sm:$0xf]
    %v2806 = vld [vmem:[%s7 + $0x70] sm:$0xf]
    %v2807 = vld [vmem:[%s7 + $0x74] sm:$0xf]
    %v2808 = vld [vmem:[%s7 + $0x78] sm:$0xf]
    %v2809 = vld [vmem:[%s7 + $0x7c] sm:$0xf]
    %v2810 = vld [vmem:[%s7 + $0x80] sm:$0xf]
    %v2811 = vld [vmem:[%s7 + $0x84] sm:$0xf]
    %v2812 = vld [vmem:[%s7 + $0x88] sm:$0xf]
    %v2813 = vld [vmem:[%s7 + $0x8c] sm:$0xf]
    %v2814 = vld [vmem:[%s7 + $0x90] sm:$0xf]
    %v2815 = vld [vmem:[%s7 + $0x94] sm:$0xf]
    %v2816 = vld [vmem:[%s7 + $0x98] sm:$0xf]
    %v2817 = vld [vmem:[%s7 + $0x9c] sm:$0xf]
    %v2818 = vld [vmem:[%s7 + $0xa0] sm:$0xf]
    %v2819 = vld [vmem:[%s7 + $0xa4] sm:$0xf]
    %v2820 = vld [vmem:[%s7 + $0xa8] sm:$0xf]
    %v2821 = vld [vmem:[%s7 + $0xac] sm:$0xf]
    %v2822 = vld [vmem:[%s7 + $0xb0] sm:$0xf]
    %v2823 = vld [vmem:[%s7 + $0xb4] sm:$0xf]
    %v2824 = vld [vmem:[%s7 + $0xb8] sm:$0xf]
    %v2825 = vld [vmem:[%s7 + $0xbc] sm:$0xf]
    %v2826 = vld [vmem:[%s7 + $0xc0] sm:$0xf]
    %v2827 = vld [vmem:[%s7 + $0xc4] sm:$0xf]
    %v2828 = vld [vmem:[%s7 + $0xc8] sm:$0xf]
    %v2829 = vld [vmem:[%s7 + $0xcc] sm:$0xf]
    %v2830 = vld [vmem:[%s7 + $0xd0] sm:$0xf]
    %v2831 = vld [vmem:[%s7 + $0xd4] sm:$0xf]
    %v2832 = vld [vmem:[%s7 + $0xd8] sm:$0xf]
    %v2833 = vld [vmem:[%s7 + $0xdc] sm:$0xf]
    %v2834 = vld [vmem:[%s7 + $0xe0] sm:$0xf]
    %v2835 = vld [vmem:[%s7 + $0xe4] sm:$0xf]
    %v2836 = vld [vmem:[%s7 + $0xe8] sm:$0xf]
    %v2837 = vld [vmem:[%s7 + $0xec] sm:$0xf]
    %v2838 = vld [vmem:[%s7 + $0xf0] sm:$0xf]
    %v2839 = vld [vmem:[%s7 + $0xf4] sm:$0xf]
    %v2840 = vld [vmem:[%s7 + $0xf8] sm:$0x3]
    %v2841 = vld [vmem:[%s8] sm:$0x1]
    %v2843 = vperm.slane %v2841, 0
    %v2908 = vunpack.c.l.b16 %v2778
    %v2909 = vunpack.c.l.b16 %v2779
    %v2910 = vunpack.c.l.b16 %v2780
    %v2911 = vunpack.c.l.b16 %v2781
    %v2912 = vunpack.c.l.b16 %v2782
    %v2913 = vunpack.c.l.b16 %v2783
    %v2914 = vunpack.c.l.b16 %v2784
    %v2915 = vunpack.c.l.b16 %v2785
    %v2916 = vunpack.c.l.b16 %v2786
    %v2917 = vunpack.c.l.b16 %v2787
    %v2918 = vunpack.c.l.b16 %v2788
    %v2919 = vunpack.c.l.b16 %v2789
    %v2920 = vunpack.c.l.b16 %v2790
    %v2921 = vunpack.c.l.b16 %v2791
    %v2922 = vunpack.c.l.b16 %v2792
    %v2923 = vunpack.c.l.b16 %v2793
    %v2924 = vunpack.c.l.b16 %v2794
    %v2925 = vunpack.c.l.b16 %v2795
    %v2926 = vunpack.c.l.b16 %v2796
    %v2927 = vunpack.c.l.b16 %v2797
    %v2928 = vunpack.c.l.b16 %v2798
    %v2929 = vunpack.c.l.b16 %v2799
    %v2930 = vunpack.c.l.b16 %v2800
    %v2931 = vunpack.c.l.b16 %v2801
    %v2932 = vunpack.c.l.b16 %v2802
    %v2933 = vunpack.c.l.b16 %v2803
    %v2934 = vunpack.c.l.b16 %v2804
    %v2935 = vunpack.c.l.b16 %v2805
    %v2936 = vunpack.c.l.b16 %v2806
    %v2937 = vunpack.c.l.b16 %v2807
    %v2938 = vunpack.c.l.b16 %v2808
    %v2939 = vunpack.c.l.b16 %v2809
    %v2940 = vunpack.c.l.b16 %v2810
    %v2941 = vunpack.c.l.b16 %v2811
    %v2942 = vunpack.c.l.b16 %v2812
    %v2943 = vunpack.c.l.b16 %v2813
    %v2944 = vunpack.c.l.b16 %v2814
    %v2945 = vunpack.c.l.b16 %v2815
    %v2946 = vunpack.c.l.b16 %v2816
    %v2947 = vunpack.c.l.b16 %v2817
    %v2948 = vunpack.c.l.b16 %v2818
    %v2949 = vunpack.c.l.b16 %v2819
    %v2950 = vunpack.c.l.b16 %v2820
    %v2951 = vunpack.c.l.b16 %v2821
    %v2952 = vunpack.c.l.b16 %v2822
    %v2953 = vunpack.c.l.b16 %v2823
    %v2954 = vunpack.c.l.b16 %v2824
    %v2955 = vunpack.c.l.b16 %v2825
    %v2956 = vunpack.c.l.b16 %v2826
    %v2957 = vunpack.c.l.b16 %v2827
    %v2958 = vunpack.c.l.b16 %v2828
    %v2959 = vunpack.c.l.b16 %v2829
    %v2960 = vunpack.c.l.b16 %v2830
    %v2961 = vunpack.c.l.b16 %v2831
    %v2962 = vunpack.c.l.b16 %v2832
    %v2963 = vunpack.c.l.b16 %v2833
    %v2964 = vunpack.c.l.b16 %v2834
    %v2965 = vunpack.c.l.b16 %v2835
    %v2966 = vunpack.c.l.b16 %v2836
    %v2967 = vunpack.c.l.b16 %v2837
    %v2968 = vunpack.c.l.b16 %v2838
    %v2969 = vunpack.c.l.b16 %v2839
    %v2970 = vunpack.c.l.b16 %v2840
    %v2971 = vpack.c.b16 %v2909, %v2908
    %v2972 = vpack.c.b16 %v2911, %v2910
    %v2973 = vpack.c.b16 %v2913, %v2912
    %v2974 = vpack.c.b16 %v2915, %v2914
    %v2975 = vpack.c.b16 %v2917, %v2916
    %v2976 = vpack.c.b16 %v2919, %v2918
    %v2977 = vpack.c.b16 %v2921, %v2920
    %v2978 = vpack.c.b16 %v2923, %v2922
    %v2979 = vpack.c.b16 %v2925, %v2924
    %v2980 = vpack.c.b16 %v2927, %v2926
    %v2981 = vpack.c.b16 %v2929, %v2928
    %v2982 = vpack.c.b16 %v2931, %v2930
    %v2983 = vpack.c.b16 %v2933, %v2932
    %v2984 = vpack.c.b16 %v2935, %v2934
    %v2985 = vpack.c.b16 %v2937, %v2936
    %v2986 = vpack.c.b16 %v2939, %v2938
    %v2987 = vpack.c.b16 %v2941, %v2940
    %v2988 = vpack.c.b16 %v2943, %v2942
    %v2989 = vpack.c.b16 %v2945, %v2944
    %v2990 = vpack.c.b16 %v2947, %v2946
    %v2991 = vpack.c.b16 %v2949, %v2948
    %v2992 = vpack.c.b16 %v2951, %v2950
    %v2993 = vpack.c.b16 %v2953, %v2952
    %v2994 = vpack.c.b16 %v2955, %v2954
    %v2995 = vpack.c.b16 %v2957, %v2956
    %v2996 = vpack.c.b16 %v2959, %v2958
    %v2997 = vpack.c.b16 %v2961, %v2960
    %v2998 = vpack.c.b16 %v2963, %v2962
    %v2999 = vpack.c.b16 %v2965, %v2964
    %v3000 = vpack.c.b16 %v2967, %v2966
    %v3001 = vpack.c.b16 %v2969, %v2968
    %v3002 = vpack.c.b16 %v2970, %v2970
    %v3035 = vsel %vm1549, %v2777, 0
    %v3038 = vsel %vm606, %v3002, 0
    %3040 = vmatpush.bf16.msra.mxu0 %v2978
    %3041 = vmatpush.bf16.msra.mxu0 %v2977
    %3042 = vmatpush.bf16.msra.mxu0 %v2976
    %3043 = vmatpush.bf16.msra.mxu0 %v2975
    %3044 = vmatpush.bf16.msra.mxu0 %v2974
    %3045 = vmatpush.bf16.msra.mxu0 %v2973
    %3046 = vmatpush.bf16.msra.mxu0 %v2972
    %3047 = vmatpush.bf16.msra.mxu0 %v2971
    %3048 = vmatmul.bf16.gmra.mxu0 %v2774
    %v3049 = vpop.f32.mrf.mxu0
    %v3050 = vadd.f32 %v2843, %v3049
    %v3051 = vpop.f32.mrf.mxu0
    %3052 = vdwg.mxu0
    %3053 = vmatpush.bf16.msra.mxu0 %v2986
    %3054 = vmatpush.bf16.msra.mxu0 %v2985
    %3055 = vmatpush.bf16.msra.mxu0 %v2984
    %3056 = vmatpush.bf16.msra.mxu0 %v2983
    %3057 = vmatpush.bf16.msra.mxu0 %v2982
    %3058 = vmatpush.bf16.msra.mxu0 %v2981
    %3059 = vmatpush.bf16.msra.mxu0 %v2980
    %3060 = vmatpush.bf16.msra.mxu0 %v2979
    %3061 = vmatmul.bf16.gmra.mxu0 %v2775
    %v3062 = vpop.f32.mrf.mxu0
    %v3063 = vadd.f32 %v3050, %v3062
    %v3064 = vpop.f32.mrf.mxu0
    %3065 = vdwg.mxu0
    %3066 = vmatpush.bf16.msra.mxu0 %v2994
    %3067 = vmatpush.bf16.msra.mxu0 %v2993
    %3068 = vmatpush.bf16.msra.mxu0 %v2992
    %3069 = vmatpush.bf16.msra.mxu0 %v2991
    %3070 = vmatpush.bf16.msra.mxu0 %v2990
    %3071 = vmatpush.bf16.msra.mxu0 %v2989
    %3072 = vmatpush.bf16.msra.mxu0 %v2988
    %3073 = vmatpush.bf16.msra.mxu0 %v2987
    %3074 = vmatmul.bf16.gmra.mxu0 %v2776
    %v3075 = vpop.f32.mrf.mxu0
    %v3076 = vadd.f32 %v3063, %v3075
    %v3077 = vpop.f32.mrf.mxu0
    %3078 = vdwg.mxu0
    %3079 = vmatpush.bf16.msra.mxu0 %v3038
    %3080 = vmatpush.bf16.msra.mxu0 %v3001
    %3081 = vmatpush.bf16.msra.mxu0 %v3000
    %3082 = vmatpush.bf16.msra.mxu0 %v2999
    %3083 = vmatpush.bf16.msra.mxu0 %v2998
    %3084 = vmatpush.bf16.msra.mxu0 %v2997
    %3085 = vmatpush.bf16.msra.mxu0 %v2996
    %3086 = vmatpush.bf16.msra.mxu0 %v2995
    %3087 = vmatmul.bf16.gmra.mxu0 %v3035
    %v3088 = vpop.f32.mrf.mxu0
    %v3089 = vadd.f32 %v3076, %v3088
    %v3090 = vpop.f32.mrf.mxu0
    %3091 = vdwg.mxu0
    %vm3092 = vcmask 15360
    %3093 = vst.msk [vmem:[%s19] sm:$0xff] %vm3092, %v3089
    %v3094 = vld [vmem:[%s9] sm:$0xff]
    %3096 = vset.pattern.permute.xlu0 0
    %3097 = vperm.xlu0 %3096, %v3089
    %v3098 = vpop.permute.xlu0 %3097
    %v3101 = vperm.slane %v3094, 0
    %v3102 = vperm.slane %v3094, 2
    %v3103 = vperm.slane %v3094, 4
    %v3104 = vperm.slane %v3094, 6
    %v3109 = vperm.slane %v3101, 0
    %v3110 = vperm.slane %v3102, 0
    %v3111 = vperm.slane %v3103, 0
    %v3112 = vperm.slane %v3104, 0
    %v3113 = vmul.f32 %v3098, %v3109
    %v3114 = vmul.f32 %v3098, %v3110
    %v3115 = vmul.f32 %v3098, %v3111
    %v3116 = vmul.f32 %v3098, %v3112
    %3117 = vset.pattern.permute.xlu0 1
    %3118 = vperm.xlu0 %3117, %v3089
    %v3119 = vpop.permute.xlu0 %3118
    %v3121 = vperm.slane %v3094, 1
    %v3122 = vperm.slane %v3094, 3
    %v3123 = vperm.slane %v3094, 5
    %v3124 = vperm.slane %v3094, 7
    %v3129 = vperm.slane %v3121, 1
    %v3130 = vperm.slane %v3122, 1
    %v3131 = vperm.slane %v3123, 1
    %v3132 = vperm.slane %v3124, 1
    %v3133 = vmul.f32 %v3119, %v3129
    %v3134 = vmul.f32 %v3119, %v3130
    %v3135 = vmul.f32 %v3119, %v3131
    %v3136 = vmul.f32 %v3119, %v3132
    %v3137 = vadd.f32 %v3113, %v3133
    %v3138 = vadd.f32 %v3114, %v3134
    %v3139 = vadd.f32 %v3115, %v3135
    %v3140 = vadd.f32 %v3116, %v3136
    %v3141 = vld [vmem:[%s10] sm:$0xf]
    %v3143 = vperm.slane %v3141, 0
    %v3144 = vperm.slane %v3141, 1
    %v3145 = vperm.slane %v3141, 2
    %v3146 = vperm.slane %v3141, 3
    %v3151 = vadd.f32 %v3137, %v3143
    %v3152 = vadd.f32 %v3138, %v3144
    %v3153 = vadd.f32 %v3139, %v3145
    %v3154 = vadd.f32 %v3140, %v3146
    %v3155 = vtanh.pop %v3151
    %v3156 = vtanh.pop %v3152
    %v3157 = vtanh.pop %v3153
    %v3158 = vtanh.pop %v3154
    %v3159 = vpack.c.bf16 %v3155, %v3155
    %v3160 = vpack.c.bf16 %v3156, %v3156
    %v3161 = vpack.c.bf16 %v3157, %v3157
    %v3162 = vpack.c.bf16 %v3158, %v3158
    %v3163 = vld [vmem:[#allocation8] sm:$0xff]
    %v3164 = vld [vmem:[#allocation8 + $0x8] sm:$0xff]
    %v3165 = vld [vmem:[#allocation8 + $0x10] sm:$0xff]
    %v3166 = vld [vmem:[#allocation8 + $0x18] sm:$0xff]
    %v3167 = vld [vmem:[#allocation8 + $0x20] sm:$0xff]
    %v3168 = vld [vmem:[#allocation8 + $0x28] sm:$0xff]
    %v3169 = vld [vmem:[#allocation8 + $0x30] sm:$0xff]
    %v3170 = vld [vmem:[#allocation8 + $0x38] sm:$0xff]
    %v3171 = vld [vmem:[#allocation8 + $0x40] sm:$0xff]
    %v3172 = vld [vmem:[#allocation8 + $0x48] sm:$0xff]
    %v3173 = vld [vmem:[#allocation8 + $0x50] sm:$0xff]
    %v3174 = vld [vmem:[#allocation8 + $0x58] sm:$0xff]
    %v3175 = vld [vmem:[#allocation8 + $0x60] sm:$0xff]
    %v3176 = vld [vmem:[#allocation8 + $0x68] sm:$0xff]
    %v3177 = vld [vmem:[#allocation8 + $0x70] sm:$0xff]
    %v3178 = vld [vmem:[#allocation8 + $0x78] sm:$0xff]
    %v3179 = vld [vmem:[#allocation8 + $0x80] sm:$0xff]
    %v3180 = vld [vmem:[#allocation8 + $0x88] sm:$0xff]
    %v3181 = vld [vmem:[#allocation8 + $0x90] sm:$0xff]
    %v3182 = vld [vmem:[#allocation8 + $0x98] sm:$0xff]
    %v3183 = vld [vmem:[#allocation8 + $0xa0] sm:$0xff]
    %v3184 = vld [vmem:[#allocation8 + $0xa8] sm:$0xff]
    %v3185 = vld [vmem:[#allocation8 + $0xb0] sm:$0xff]
    %v3186 = vld [vmem:[#allocation8 + $0xb8] sm:$0xff]
    %v3187 = vld [vmem:[#allocation8 + $0xc0] sm:$0xff]
    %v3188 = vld [vmem:[#allocation8 + $0xc8] sm:$0xff]
    %v3189 = vld [vmem:[#allocation8 + $0xd0] sm:$0xff]
    %v3190 = vld [vmem:[#allocation8 + $0xd8] sm:$0xff]
    %v3191 = vld [vmem:[#allocation8 + $0xe0] sm:$0xff]
    %v3192 = vld [vmem:[#allocation8 + $0xe8] sm:$0xff]
    %v3193 = vld [vmem:[#allocation8 + $0xf0] sm:$0xff]
    %v3194 = vld [vmem:[#allocation8 + $0xf8] sm:$0xff]
    %v3195 = vld [vmem:[#allocation8 + $0x100] sm:$0xff]
    %v3196 = vld [vmem:[#allocation8 + $0x108] sm:$0xff]
    %v3197 = vld [vmem:[#allocation8 + $0x110] sm:$0xff]
    %v3198 = vld [vmem:[#allocation8 + $0x118] sm:$0xff]
    %v3199 = vld [vmem:[#allocation8 + $0x120] sm:$0xff]
    %v3200 = vld [vmem:[#allocation8 + $0x128] sm:$0xff]
    %v3201 = vld [vmem:[#allocation8 + $0x130] sm:$0xff]
    %v3202 = vld [vmem:[#allocation8 + $0x138] sm:$0xff]
    %v3203 = vld [vmem:[#allocation8 + $0x140] sm:$0xff]
    %v3204 = vld [vmem:[#allocation8 + $0x148] sm:$0xff]
    %v3205 = vld [vmem:[#allocation8 + $0x150] sm:$0xff]
    %v3206 = vld [vmem:[#allocation8 + $0x158] sm:$0xff]
    %v3207 = vld [vmem:[#allocation8 + $0x160] sm:$0xff]
    %v3208 = vld [vmem:[#allocation8 + $0x168] sm:$0xff]
    %v3209 = vld [vmem:[#allocation8 + $0x170] sm:$0xff]
    %v3210 = vld [vmem:[#allocation8 + $0x178] sm:$0xff]
    %v3211 = vld [vmem:[#allocation8 + $0x180] sm:$0xff]
    %v3212 = vld [vmem:[#allocation8 + $0x188] sm:$0xff]
    %v3213 = vld [vmem:[#allocation8 + $0x190] sm:$0xff]
    %v3214 = vld [vmem:[#allocation8 + $0x198] sm:$0xff]
    %v3215 = vld [vmem:[#allocation8 + $0x1a0] sm:$0xff]
    %v3216 = vld [vmem:[#allocation8 + $0x1a8] sm:$0xff]
    %v3217 = vld [vmem:[#allocation8 + $0x1b0] sm:$0xff]
    %v3218 = vld [vmem:[#allocation8 + $0x1b8] sm:$0xff]
    %v3219 = vld [vmem:[#allocation8 + $0x1c0] sm:$0xff]
    %v3220 = vld [vmem:[#allocation8 + $0x1c8] sm:$0xff]
    %v3221 = vld [vmem:[#allocation8 + $0x1d0] sm:$0xff]
    %v3222 = vld [vmem:[#allocation8 + $0x1d8] sm:$0xff]
    %v3223 = vld [vmem:[#allocation8 + $0x1e0] sm:$0xff]
    %v3224 = vld [vmem:[#allocation8 + $0x1e8] sm:$0xff]
    %v3225 = vld [vmem:[#allocation8 + $0x1f0] sm:$0xff]
    %v3226 = vld [vmem:[#allocation8 + $0x1f8] sm:$0xff]
    %v3227 = vld [vmem:[#allocation8 + $0x200] sm:$0xff]
    %v3228 = vld [vmem:[#allocation8 + $0x208] sm:$0xff]
    %v3229 = vld [vmem:[#allocation8 + $0x210] sm:$0xff]
    %v3230 = vld [vmem:[#allocation8 + $0x218] sm:$0xff]
    %v3231 = vld [vmem:[#allocation8 + $0x220] sm:$0xff]
    %v3232 = vld [vmem:[#allocation8 + $0x228] sm:$0xff]
    %v3233 = vld [vmem:[#allocation8 + $0x230] sm:$0xff]
    %v3234 = vld [vmem:[#allocation8 + $0x238] sm:$0xff]
    %v3235 = vld [vmem:[#allocation8 + $0x240] sm:$0xff]
    %v3236 = vld [vmem:[#allocation8 + $0x248] sm:$0xff]
    %v3237 = vld [vmem:[#allocation8 + $0x250] sm:$0xff]
    %v3238 = vld [vmem:[#allocation8 + $0x258] sm:$0xff]
    %v3239 = vld [vmem:[#allocation8 + $0x260] sm:$0xff]
    %v3240 = vld [vmem:[#allocation8 + $0x268] sm:$0xff]
    %v3241 = vld [vmem:[#allocation8 + $0x270] sm:$0xff]
    %v3242 = vld [vmem:[#allocation8 + $0x278] sm:$0xff]
    %v3243 = vld [vmem:[#allocation8 + $0x280] sm:$0xff]
    %v3244 = vld [vmem:[#allocation8 + $0x288] sm:$0xff]
    %v3245 = vld [vmem:[#allocation8 + $0x290] sm:$0xff]
    %v3246 = vld [vmem:[#allocation8 + $0x298] sm:$0xff]
    %v3247 = vld [vmem:[#allocation8 + $0x2a0] sm:$0xff]
    %v3248 = vld [vmem:[#allocation8 + $0x2a8] sm:$0xff]
    %v3249 = vld [vmem:[#allocation8 + $0x2b0] sm:$0xff]
    %v3250 = vld [vmem:[#allocation8 + $0x2b8] sm:$0xff]
    %v3251 = vld [vmem:[#allocation8 + $0x2c0] sm:$0xff]
    %v3252 = vld [vmem:[#allocation8 + $0x2c8] sm:$0xff]
    %v3253 = vld [vmem:[#allocation8 + $0x2d0] sm:$0xff]
    %v3254 = vld [vmem:[#allocation8 + $0x2d8] sm:$0xff]
    %v3255 = vld [vmem:[#allocation8 + $0x2e0] sm:$0xff]
    %v3256 = vld [vmem:[#allocation8 + $0x2e8] sm:$0xff]
    %v3257 = vld [vmem:[#allocation8 + $0x2f0] sm:$0xff]
    %v3258 = vld [vmem:[#allocation8 + $0x2f8] sm:$0xff]
    %v3259 = vld [vmem:[#allocation8 + $0x300] sm:$0xff]
    %v3260 = vld [vmem:[#allocation8 + $0x308] sm:$0xff]
    %v3261 = vld [vmem:[#allocation8 + $0x310] sm:$0xff]
    %v3262 = vld [vmem:[#allocation8 + $0x318] sm:$0xff]
    %v3263 = vld [vmem:[#allocation8 + $0x320] sm:$0xff]
    %v3264 = vld [vmem:[#allocation8 + $0x328] sm:$0xff]
    %v3265 = vld [vmem:[#allocation8 + $0x330] sm:$0xff]
    %v3266 = vld [vmem:[#allocation8 + $0x338] sm:$0xff]
    %v3267 = vld [vmem:[#allocation8 + $0x340] sm:$0xff]
    %v3268 = vld [vmem:[#allocation8 + $0x348] sm:$0xff]
    %v3269 = vld [vmem:[#allocation8 + $0x350] sm:$0xff]
    %v3270 = vld [vmem:[#allocation8 + $0x358] sm:$0xff]
    %v3271 = vld [vmem:[#allocation8 + $0x360] sm:$0xff]
    %v3272 = vld [vmem:[#allocation8 + $0x368] sm:$0xff]
    %v3273 = vld [vmem:[#allocation8 + $0x370] sm:$0xff]
    %v3274 = vld [vmem:[#allocation8 + $0x378] sm:$0xff]
    %v3275 = vld [vmem:[#allocation8 + $0x380] sm:$0xff]
    %v3276 = vld [vmem:[#allocation8 + $0x388] sm:$0xff]
    %v3277 = vld [vmem:[#allocation8 + $0x390] sm:$0xff]
    %v3278 = vld [vmem:[#allocation8 + $0x398] sm:$0xff]
    %v3279 = vld [vmem:[#allocation8 + $0x3a0] sm:$0xff]
    %v3280 = vld [vmem:[#allocation8 + $0x3a8] sm:$0xff]
    %v3281 = vld [vmem:[#allocation8 + $0x3b0] sm:$0xff]
    %v3282 = vld [vmem:[#allocation8 + $0x3b8] sm:$0xff]
    %v3283 = vld [vmem:[#allocation8 + $0x3c0] sm:$0xff]
    %v3284 = vld [vmem:[#allocation8 + $0x3c8] sm:$0xff]
    %v3285 = vld [vmem:[#allocation8 + $0x3d0] sm:$0xff]
    %v3286 = vld [vmem:[#allocation8 + $0x3d8] sm:$0xff]
    %v3287 = vld [vmem:[#allocation8 + $0x3e0] sm:$0x33]
    %v3288 = vld [vmem:[#allocation8 + $0x3e8] sm:$0x33]
    %v3289 = vld [vmem:[%s12] sm:$0xf]
    %v3291 = vperm.slane %v3289, 0
    %v3292 = vperm.slane %v3289, 1
    %v3293 = vperm.slane %v3289, 2
    %v3294 = vperm.slane %v3289, 3
    %v3425 = vunpack.c.l.b16 %v3163
    %v3426 = vunpack.c.h.b16 %v3163
    %v3427 = vunpack.c.l.b16 %v3164
    %v3428 = vunpack.c.h.b16 %v3164
    %v3429 = vunpack.c.l.b16 %v3165
    %v3430 = vunpack.c.h.b16 %v3165
    %v3431 = vunpack.c.l.b16 %v3166
    %v3432 = vunpack.c.h.b16 %v3166
    %v3433 = vunpack.c.l.b16 %v3167
    %v3434 = vunpack.c.h.b16 %v3167
    %v3435 = vunpack.c.l.b16 %v3168
    %v3436 = vunpack.c.h.b16 %v3168
    %v3437 = vunpack.c.l.b16 %v3169
    %v3438 = vunpack.c.h.b16 %v3169
    %v3439 = vunpack.c.l.b16 %v3170
    %v3440 = vunpack.c.h.b16 %v3170
    %v3441 = vunpack.c.l.b16 %v3171
    %v3442 = vunpack.c.h.b16 %v3171
    %v3443 = vunpack.c.l.b16 %v3172
    %v3444 = vunpack.c.h.b16 %v3172
    %v3445 = vunpack.c.l.b16 %v3173
    %v3446 = vunpack.c.h.b16 %v3173
    %v3447 = vunpack.c.l.b16 %v3174
    %v3448 = vunpack.c.h.b16 %v3174
    %v3449 = vunpack.c.l.b16 %v3175
    %v3450 = vunpack.c.h.b16 %v3175
    %v3451 = vunpack.c.l.b16 %v3176
    %v3452 = vunpack.c.h.b16 %v3176
    %v3453 = vunpack.c.l.b16 %v3177
    %v3454 = vunpack.c.h.b16 %v3177
    %v3455 = vunpack.c.l.b16 %v3178
    %v3456 = vunpack.c.h.b16 %v3178
    %v3457 = vunpack.c.l.b16 %v3179
    %v3458 = vunpack.c.h.b16 %v3179
    %v3459 = vunpack.c.l.b16 %v3180
    %v3460 = vunpack.c.h.b16 %v3180
    %v3461 = vunpack.c.l.b16 %v3181
    %v3462 = vunpack.c.h.b16 %v3181
    %v3463 = vunpack.c.l.b16 %v3182
    %v3464 = vunpack.c.h.b16 %v3182
    %v3465 = vunpack.c.l.b16 %v3183
    %v3466 = vunpack.c.h.b16 %v3183
    %v3467 = vunpack.c.l.b16 %v3184
    %v3468 = vunpack.c.h.b16 %v3184
    %v3469 = vunpack.c.l.b16 %v3185
    %v3470 = vunpack.c.h.b16 %v3185
    %v3471 = vunpack.c.l.b16 %v3186
    %v3472 = vunpack.c.h.b16 %v3186
    %v3473 = vunpack.c.l.b16 %v3187
    %v3474 = vunpack.c.h.b16 %v3187
    %v3475 = vunpack.c.l.b16 %v3188
    %v3476 = vunpack.c.h.b16 %v3188
    %v3477 = vunpack.c.l.b16 %v3189
    %v3478 = vunpack.c.h.b16 %v3189
    %v3479 = vunpack.c.l.b16 %v3190
    %v3480 = vunpack.c.h.b16 %v3190
    %v3481 = vunpack.c.l.b16 %v3191
    %v3482 = vunpack.c.h.b16 %v3191
    %v3483 = vunpack.c.l.b16 %v3192
    %v3484 = vunpack.c.h.b16 %v3192
    %v3485 = vunpack.c.l.b16 %v3193
    %v3486 = vunpack.c.h.b16 %v3193
    %v3487 = vunpack.c.l.b16 %v3194
    %v3488 = vunpack.c.h.b16 %v3194
    %v3489 = vunpack.c.l.b16 %v3195
    %v3490 = vunpack.c.h.b16 %v3195
    %v3491 = vunpack.c.l.b16 %v3196
    %v3492 = vunpack.c.h.b16 %v3196
    %v3493 = vunpack.c.l.b16 %v3197
    %v3494 = vunpack.c.h.b16 %v3197
    %v3495 = vunpack.c.l.b16 %v3198
    %v3496 = vunpack.c.h.b16 %v3198
    %v3497 = vunpack.c.l.b16 %v3199
    %v3498 = vunpack.c.h.b16 %v3199
    %v3499 = vunpack.c.l.b16 %v3200
    %v3500 = vunpack.c.h.b16 %v3200
    %v3501 = vunpack.c.l.b16 %v3201
    %v3502 = vunpack.c.h.b16 %v3201
    %v3503 = vunpack.c.l.b16 %v3202
    %v3504 = vunpack.c.h.b16 %v3202
    %v3505 = vunpack.c.l.b16 %v3203
    %v3506 = vunpack.c.h.b16 %v3203
    %v3507 = vunpack.c.l.b16 %v3204
    %v3508 = vunpack.c.h.b16 %v3204
    %v3509 = vunpack.c.l.b16 %v3205
    %v3510 = vunpack.c.h.b16 %v3205
    %v3511 = vunpack.c.l.b16 %v3206
    %v3512 = vunpack.c.h.b16 %v3206
    %v3513 = vunpack.c.l.b16 %v3207
    %v3514 = vunpack.c.h.b16 %v3207
    %v3515 = vunpack.c.l.b16 %v3208
    %v3516 = vunpack.c.h.b16 %v3208
    %v3517 = vunpack.c.l.b16 %v3209
    %v3518 = vunpack.c.h.b16 %v3209
    %v3519 = vunpack.c.l.b16 %v3210
    %v3520 = vunpack.c.h.b16 %v3210
    %v3521 = vunpack.c.l.b16 %v3211
    %v3522 = vunpack.c.h.b16 %v3211
    %v3523 = vunpack.c.l.b16 %v3212
    %v3524 = vunpack.c.h.b16 %v3212
    %v3525 = vunpack.c.l.b16 %v3213
    %v3526 = vunpack.c.h.b16 %v3213
    %v3527 = vunpack.c.l.b16 %v3214
    %v3528 = vunpack.c.h.b16 %v3214
    %v3529 = vunpack.c.l.b16 %v3215
    %v3530 = vunpack.c.h.b16 %v3215
    %v3531 = vunpack.c.l.b16 %v3216
    %v3532 = vunpack.c.h.b16 %v3216
    %v3533 = vunpack.c.l.b16 %v3217
    %v3534 = vunpack.c.h.b16 %v3217
    %v3535 = vunpack.c.l.b16 %v3218
    %v3536 = vunpack.c.h.b16 %v3218
    %v3537 = vunpack.c.l.b16 %v3219
    %v3538 = vunpack.c.h.b16 %v3219
    %v3539 = vunpack.c.l.b16 %v3220
    %v3540 = vunpack.c.h.b16 %v3220
    %v3541 = vunpack.c.l.b16 %v3221
    %v3542 = vunpack.c.h.b16 %v3221
    %v3543 = vunpack.c.l.b16 %v3222
    %v3544 = vunpack.c.h.b16 %v3222
    %v3545 = vunpack.c.l.b16 %v3223
    %v3546 = vunpack.c.h.b16 %v3223
    %v3547 = vunpack.c.l.b16 %v3224
    %v3548 = vunpack.c.h.b16 %v3224
    %v3549 = vunpack.c.l.b16 %v3225
    %v3550 = vunpack.c.h.b16 %v3225
    %v3551 = vunpack.c.l.b16 %v3226
    %v3552 = vunpack.c.h.b16 %v3226
    %v3553 = vunpack.c.l.b16 %v3227
    %v3554 = vunpack.c.h.b16 %v3227
    %v3555 = vunpack.c.l.b16 %v3228
    %v3556 = vunpack.c.h.b16 %v3228
    %v3557 = vunpack.c.l.b16 %v3229
    %v3558 = vunpack.c.h.b16 %v3229
    %v3559 = vunpack.c.l.b16 %v3230
    %v3560 = vunpack.c.h.b16 %v3230
    %v3561 = vunpack.c.l.b16 %v3231
    %v3562 = vunpack.c.h.b16 %v3231
    %v3563 = vunpack.c.l.b16 %v3232
    %v3564 = vunpack.c.h.b16 %v3232
    %v3565 = vunpack.c.l.b16 %v3233
    %v3566 = vunpack.c.h.b16 %v3233
    %v3567 = vunpack.c.l.b16 %v3234
    %v3568 = vunpack.c.h.b16 %v3234
    %v3569 = vunpack.c.l.b16 %v3235
    %v3570 = vunpack.c.h.b16 %v3235
    %v3571 = vunpack.c.l.b16 %v3236
    %v3572 = vunpack.c.h.b16 %v3236
    %v3573 = vunpack.c.l.b16 %v3237
    %v3574 = vunpack.c.h.b16 %v3237
    %v3575 = vunpack.c.l.b16 %v3238
    %v3576 = vunpack.c.h.b16 %v3238
    %v3577 = vunpack.c.l.b16 %v3239
    %v3578 = vunpack.c.h.b16 %v3239
    %v3579 = vunpack.c.l.b16 %v3240
    %v3580 = vunpack.c.h.b16 %v3240
    %v3581 = vunpack.c.l.b16 %v3241
    %v3582 = vunpack.c.h.b16 %v3241
    %v3583 = vunpack.c.l.b16 %v3242
    %v3584 = vunpack.c.h.b16 %v3242
    %v3585 = vunpack.c.l.b16 %v3243
    %v3586 = vunpack.c.h.b16 %v3243
    %v3587 = vunpack.c.l.b16 %v3244
    %v3588 = vunpack.c.h.b16 %v3244
    %v3589 = vunpack.c.l.b16 %v3245
    %v3590 = vunpack.c.h.b16 %v3245
    %v3591 = vunpack.c.l.b16 %v3246
    %v3592 = vunpack.c.h.b16 %v3246
    %v3593 = vunpack.c.l.b16 %v3247
    %v3594 = vunpack.c.h.b16 %v3247
    %v3595 = vunpack.c.l.b16 %v3248
    %v3596 = vunpack.c.h.b16 %v3248
    %v3597 = vunpack.c.l.b16 %v3249
    %v3598 = vunpack.c.h.b16 %v3249
    %v3599 = vunpack.c.l.b16 %v3250
    %v3600 = vunpack.c.h.b16 %v3250
    %v3601 = vunpack.c.l.b16 %v3251
    %v3602 = vunpack.c.h.b16 %v3251
    %v3603 = vunpack.c.l.b16 %v3252
    %v3604 = vunpack.c.h.b16 %v3252
    %v3605 = vunpack.c.l.b16 %v3253
    %v3606 = vunpack.c.h.b16 %v3253
    %v3607 = vunpack.c.l.b16 %v3254
    %v3608 = vunpack.c.h.b16 %v3254
    %v3609 = vunpack.c.l.b16 %v3255
    %v3610 = vunpack.c.h.b16 %v3255
    %v3611 = vunpack.c.l.b16 %v3256
    %v3612 = vunpack.c.h.b16 %v3256
    %v3613 = vunpack.c.l.b16 %v3257
    %v3614 = vunpack.c.h.b16 %v3257
    %v3615 = vunpack.c.l.b16 %v3258
    %v3616 = vunpack.c.h.b16 %v3258
    %v3617 = vunpack.c.l.b16 %v3259
    %v3618 = vunpack.c.h.b16 %v3259
    %v3619 = vunpack.c.l.b16 %v3260
    %v3620 = vunpack.c.h.b16 %v3260
    %v3621 = vunpack.c.l.b16 %v3261
    %v3622 = vunpack.c.h.b16 %v3261
    %v3623 = vunpack.c.l.b16 %v3262
    %v3624 = vunpack.c.h.b16 %v3262
    %v3625 = vunpack.c.l.b16 %v3263
    %v3626 = vunpack.c.h.b16 %v3263
    %v3627 = vunpack.c.l.b16 %v3264
    %v3628 = vunpack.c.h.b16 %v3264
    %v3629 = vunpack.c.l.b16 %v3265
    %v3630 = vunpack.c.h.b16 %v3265
    %v3631 = vunpack.c.l.b16 %v3266
    %v3632 = vunpack.c.h.b16 %v3266
    %v3633 = vunpack.c.l.b16 %v3267
    %v3634 = vunpack.c.h.b16 %v3267
    %v3635 = vunpack.c.l.b16 %v3268
    %v3636 = vunpack.c.h.b16 %v3268
    %v3637 = vunpack.c.l.b16 %v3269
    %v3638 = vunpack.c.h.b16 %v3269
    %v3639 = vunpack.c.l.b16 %v3270
    %v3640 = vunpack.c.h.b16 %v3270
    %v3641 = vunpack.c.l.b16 %v3271
    %v3642 = vunpack.c.h.b16 %v3271
    %v3643 = vunpack.c.l.b16 %v3272
    %v3644 = vunpack.c.h.b16 %v3272
    %v3645 = vunpack.c.l.b16 %v3273
    %v3646 = vunpack.c.h.b16 %v3273
    %v3647 = vunpack.c.l.b16 %v3274
    %v3648 = vunpack.c.h.b16 %v3274
    %v3649 = vunpack.c.l.b16 %v3275
    %v3650 = vunpack.c.h.b16 %v3275
    %v3651 = vunpack.c.l.b16 %v3276
    %v3652 = vunpack.c.h.b16 %v3276
    %v3653 = vunpack.c.l.b16 %v3277
    %v3654 = vunpack.c.h.b16 %v3277
    %v3655 = vunpack.c.l.b16 %v3278
    %v3656 = vunpack.c.h.b16 %v3278
    %v3657 = vunpack.c.l.b16 %v3279
    %v3658 = vunpack.c.h.b16 %v3279
    %v3659 = vunpack.c.l.b16 %v3280
    %v3660 = vunpack.c.h.b16 %v3280
    %v3661 = vunpack.c.l.b16 %v3281
    %v3662 = vunpack.c.h.b16 %v3281
    %v3663 = vunpack.c.l.b16 %v3282
    %v3664 = vunpack.c.h.b16 %v3282
    %v3665 = vunpack.c.l.b16 %v3283
    %v3666 = vunpack.c.h.b16 %v3283
    %v3667 = vunpack.c.l.b16 %v3284
    %v3668 = vunpack.c.h.b16 %v3284
    %v3669 = vunpack.c.l.b16 %v3285
    %v3670 = vunpack.c.h.b16 %v3285
    %v3671 = vunpack.c.l.b16 %v3286
    %v3672 = vunpack.c.h.b16 %v3286
    %v3673 = vunpack.c.l.b16 %v3287
    %v3674 = vunpack.c.h.b16 %v3287
    %v3675 = vunpack.c.l.b16 %v3288
    %v3676 = vunpack.c.h.b16 %v3288
    %v3677 = vpack.c.b16 %v3429, %v3425
    %v3678 = vpack.c.b16 %v3430, %v3426
    %v3679 = vpack.c.b16 %v3431, %v3427
    %v3680 = vpack.c.b16 %v3432, %v3428
    %v3681 = vpack.c.b16 %v3437, %v3433
    %v3682 = vpack.c.b16 %v3438, %v3434
    %v3683 = vpack.c.b16 %v3439, %v3435
    %v3684 = vpack.c.b16 %v3440, %v3436
    %v3685 = vpack.c.b16 %v3445, %v3441
    %v3686 = vpack.c.b16 %v3446, %v3442
    %v3687 = vpack.c.b16 %v3447, %v3443
    %v3688 = vpack.c.b16 %v3448, %v3444
    %v3689 = vpack.c.b16 %v3453, %v3449
    %v3690 = vpack.c.b16 %v3454, %v3450
    %v3691 = vpack.c.b16 %v3455, %v3451
    %v3692 = vpack.c.b16 %v3456, %v3452
    %v3693 = vpack.c.b16 %v3461, %v3457
    %v3694 = vpack.c.b16 %v3462, %v3458
    %v3695 = vpack.c.b16 %v3463, %v3459
    %v3696 = vpack.c.b16 %v3464, %v3460
    %v3697 = vpack.c.b16 %v3469, %v3465
    %v3698 = vpack.c.b16 %v3470, %v3466
    %v3699 = vpack.c.b16 %v3471, %v3467
    %v3700 = vpack.c.b16 %v3472, %v3468
    %v3701 = vpack.c.b16 %v3477, %v3473
    %v3702 = vpack.c.b16 %v3478, %v3474
    %v3703 = vpack.c.b16 %v3479, %v3475
    %v3704 = vpack.c.b16 %v3480, %v3476
    %v3705 = vpack.c.b16 %v3485, %v3481
    %v3706 = vpack.c.b16 %v3486, %v3482
    %v3707 = vpack.c.b16 %v3487, %v3483
    %v3708 = vpack.c.b16 %v3488, %v3484
    %v3709 = vpack.c.b16 %v3493, %v3489
    %v3710 = vpack.c.b16 %v3494, %v3490
    %v3711 = vpack.c.b16 %v3495, %v3491
    %v3712 = vpack.c.b16 %v3496, %v3492
    %v3713 = vpack.c.b16 %v3501, %v3497
    %v3714 = vpack.c.b16 %v3502, %v3498
    %v3715 = vpack.c.b16 %v3503, %v3499
    %v3716 = vpack.c.b16 %v3504, %v3500
    %v3717 = vpack.c.b16 %v3509, %v3505
    %v3718 = vpack.c.b16 %v3510, %v3506
    %v3719 = vpack.c.b16 %v3511, %v3507
    %v3720 = vpack.c.b16 %v3512, %v3508
    %v3721 = vpack.c.b16 %v3517, %v3513
    %v3722 = vpack.c.b16 %v3518, %v3514
    %v3723 = vpack.c.b16 %v3519, %v3515
    %v3724 = vpack.c.b16 %v3520, %v3516
    %v3725 = vpack.c.b16 %v3525, %v3521
    %v3726 = vpack.c.b16 %v3526, %v3522
    %v3727 = vpack.c.b16 %v3527, %v3523
    %v3728 = vpack.c.b16 %v3528, %v3524
    %v3729 = vpack.c.b16 %v3533, %v3529
    %v3730 = vpack.c.b16 %v3534, %v3530
    %v3731 = vpack.c.b16 %v3535, %v3531
    %v3732 = vpack.c.b16 %v3536, %v3532
    %v3733 = vpack.c.b16 %v3541, %v3537
    %v3734 = vpack.c.b16 %v3542, %v3538
    %v3735 = vpack.c.b16 %v3543, %v3539
    %v3736 = vpack.c.b16 %v3544, %v3540
    %v3737 = vpack.c.b16 %v3549, %v3545
    %v3738 = vpack.c.b16 %v3550, %v3546
    %v3739 = vpack.c.b16 %v3551, %v3547
    %v3740 = vpack.c.b16 %v3552, %v3548
    %v3741 = vpack.c.b16 %v3557, %v3553
    %v3742 = vpack.c.b16 %v3558, %v3554
    %v3743 = vpack.c.b16 %v3559, %v3555
    %v3744 = vpack.c.b16 %v3560, %v3556
    %v3745 = vpack.c.b16 %v3565, %v3561
    %v3746 = vpack.c.b16 %v3566, %v3562
    %v3747 = vpack.c.b16 %v3567, %v3563
    %v3748 = vpack.c.b16 %v3568, %v3564
    %v3749 = vpack.c.b16 %v3573, %v3569
    %v3750 = vpack.c.b16 %v3574, %v3570
    %v3751 = vpack.c.b16 %v3575, %v3571
    %v3752 = vpack.c.b16 %v3576, %v3572
    %v3753 = vpack.c.b16 %v3581, %v3577
    %v3754 = vpack.c.b16 %v3582, %v3578
    %v3755 = vpack.c.b16 %v3583, %v3579
    %v3756 = vpack.c.b16 %v3584, %v3580
    %v3757 = vpack.c.b16 %v3589, %v3585
    %v3758 = vpack.c.b16 %v3590, %v3586
    %v3759 = vpack.c.b16 %v3591, %v3587
    %v3760 = vpack.c.b16 %v3592, %v3588
    %v3761 = vpack.c.b16 %v3597, %v3593
    %v3762 = vpack.c.b16 %v3598, %v3594
    %v3763 = vpack.c.b16 %v3599, %v3595
    %v3764 = vpack.c.b16 %v3600, %v3596
    %v3765 = vpack.c.b16 %v3605, %v3601
    %v3766 = vpack.c.b16 %v3606, %v3602
    %v3767 = vpack.c.b16 %v3607, %v3603
    %v3768 = vpack.c.b16 %v3608, %v3604
    %v3769 = vpack.c.b16 %v3613, %v3609
    %v3770 = vpack.c.b16 %v3614, %v3610
    %v3771 = vpack.c.b16 %v3615, %v3611
    %v3772 = vpack.c.b16 %v3616, %v3612
    %v3773 = vpack.c.b16 %v3621, %v3617
    %v3774 = vpack.c.b16 %v3622, %v3618
    %v3775 = vpack.c.b16 %v3623, %v3619
    %v3776 = vpack.c.b16 %v3624, %v3620
    %v3777 = vpack.c.b16 %v3629, %v3625
    %v3778 = vpack.c.b16 %v3630, %v3626
    %v3779 = vpack.c.b16 %v3631, %v3627
    %v3780 = vpack.c.b16 %v3632, %v3628
    %v3781 = vpack.c.b16 %v3637, %v3633
    %v3782 = vpack.c.b16 %v3638, %v3634
    %v3783 = vpack.c.b16 %v3639, %v3635
    %v3784 = vpack.c.b16 %v3640, %v3636
    %v3785 = vpack.c.b16 %v3645, %v3641
    %v3786 = vpack.c.b16 %v3646, %v3642
    %v3787 = vpack.c.b16 %v3647, %v3643
    %v3788 = vpack.c.b16 %v3648, %v3644
    %v3789 = vpack.c.b16 %v3653, %v3649
    %v3790 = vpack.c.b16 %v3654, %v3650
    %v3791 = vpack.c.b16 %v3655, %v3651
    %v3792 = vpack.c.b16 %v3656, %v3652
    %v3793 = vpack.c.b16 %v3661, %v3657
    %v3794 = vpack.c.b16 %v3662, %v3658
    %v3795 = vpack.c.b16 %v3663, %v3659
    %v3796 = vpack.c.b16 %v3664, %v3660
    %v3797 = vpack.c.b16 %v3669, %v3665
    %v3798 = vpack.c.b16 %v3670, %v3666
    %v3799 = vpack.c.b16 %v3671, %v3667
    %v3800 = vpack.c.b16 %v3672, %v3668
    %v3801 = vpack.c.b16 %v3673, %v3673
    %v3802 = vpack.c.b16 %v3674, %v3674
    %v3803 = vpack.c.b16 %v3675, %v3675
    %v3804 = vpack.c.b16 %v3676, %v3676
    %v3930 = vsel %vm1549, %v3162, 0
    %v3933 = vsel %vm606, %v3801, 0
    %v3936 = vsel %vm606, %v3802, 0
    %v3939 = vsel %vm606, %v3803, 0
    %v3942 = vsel %vm606, %v3804, 0
    %3944 = vmatpush.bf16.msra.mxu0 %v3705
    %3945 = vmatpush.bf16.msra.mxu0 %v3701
    %3946 = vmatpush.bf16.msra.mxu0 %v3697
    %3947 = vmatpush.bf16.msra.mxu0 %v3693
    %3948 = vmatpush.bf16.msra.mxu0 %v3689
    %3949 = vmatpush.bf16.msra.mxu0 %v3685
    %3950 = vmatpush.bf16.msra.mxu0 %v3681
    %3951 = vmatpush.bf16.msra.mxu0 %v3677
    %3952 = vmatmul.bf16.gmra.mxu0 %v3159
    %v3953 = vpop.f32.mrf.mxu0
    %v3954 = vadd.f32 %v3291, %v3953
    %v3955 = vpop.f32.mrf.mxu0
    %3956 = vdwg.mxu0
    %3957 = vmatpush.bf16.msra.mxu0 %v3737
    %3958 = vmatpush.bf16.msra.mxu0 %v3733
    %3959 = vmatpush.bf16.msra.mxu0 %v3729
    %3960 = vmatpush.bf16.msra.mxu0 %v3725
    %3961 = vmatpush.bf16.msra.mxu0 %v3721
    %3962 = vmatpush.bf16.msra.mxu0 %v3717
    %3963 = vmatpush.bf16.msra.mxu0 %v3713
    %3964 = vmatpush.bf16.msra.mxu0 %v3709
    %3965 = vmatmul.bf16.gmra.mxu0 %v3160
    %v3966 = vpop.f32.mrf.mxu0
    %v3967 = vadd.f32 %v3954, %v3966
    %v3968 = vpop.f32.mrf.mxu0
    %3969 = vdwg.mxu0
    %3970 = vmatpush.bf16.msra.mxu0 %v3769
    %3971 = vmatpush.bf16.msra.mxu0 %v3765
    %3972 = vmatpush.bf16.msra.mxu0 %v3761
    %3973 = vmatpush.bf16.msra.mxu0 %v3757
    %3974 = vmatpush.bf16.msra.mxu0 %v3753
    %3975 = vmatpush.bf16.msra.mxu0 %v3749
    %3976 = vmatpush.bf16.msra.mxu0 %v3745
    %3977 = vmatpush.bf16.msra.mxu0 %v3741
    %3978 = vmatmul.bf16.gmra.mxu0 %v3161
    %v3979 = vpop.f32.mrf.mxu0
    %v3980 = vadd.f32 %v3967, %v3979
    %v3981 = vpop.f32.mrf.mxu0
    %3982 = vdwg.mxu0
    %3983 = vmatpush.bf16.msra.mxu0 %v3933
    %3984 = vmatpush.bf16.msra.mxu0 %v3797
    %3985 = vmatpush.bf16.msra.mxu0 %v3793
    %3986 = vmatpush.bf16.msra.mxu0 %v3789
    %3987 = vmatpush.bf16.msra.mxu0 %v3785
    %3988 = vmatpush.bf16.msra.mxu0 %v3781
    %3989 = vmatpush.bf16.msra.mxu0 %v3777
    %3990 = vmatpush.bf16.msra.mxu0 %v3773
    %3991 = vmatmul.bf16.gmra.mxu0 %v3930
    %v3992 = vpop.f32.mrf.mxu0
    %v3993 = vadd.f32 %v3980, %v3992
    %v3994 = vpop.f32.mrf.mxu0
    %3995 = vdwg.mxu0
    %3996 = vmatpush.bf16.msra.mxu0 %v3706
    %3997 = vmatpush.bf16.msra.mxu0 %v3702
    %3998 = vmatpush.bf16.msra.mxu0 %v3698
    %3999 = vmatpush.bf16.msra.mxu0 %v3694
    %4000 = vmatpush.bf16.msra.mxu0 %v3690
    %4001 = vmatpush.bf16.msra.mxu0 %v3686
    %4002 = vmatpush.bf16.msra.mxu0 %v3682
    %4003 = vmatpush.bf16.msra.mxu0 %v3678
    %4004 = vmatmul.bf16.gmra.mxu0 %v3159
    %v4005 = vpop.f32.mrf.mxu0
    %v4006 = vadd.f32 %v3292, %v4005
    %v4007 = vpop.f32.mrf.mxu0
    %4008 = vdwg.mxu0
    %4009 = vmatpush.bf16.msra.mxu0 %v3738
    %4010 = vmatpush.bf16.msra.mxu0 %v3734
    %4011 = vmatpush.bf16.msra.mxu0 %v3730
    %4012 = vmatpush.bf16.msra.mxu0 %v3726
    %4013 = vmatpush.bf16.msra.mxu0 %v3722
    %4014 = vmatpush.bf16.msra.mxu0 %v3718
    %4015 = vmatpush.bf16.msra.mxu0 %v3714
    %4016 = vmatpush.bf16.msra.mxu0 %v3710
    %4017 = vmatmul.bf16.gmra.mxu0 %v3160
    %v4018 = vpop.f32.mrf.mxu0
    %v4019 = vadd.f32 %v4006, %v4018
    %v4020 = vpop.f32.mrf.mxu0
    %4021 = vdwg.mxu0
    %4022 = vmatpush.bf16.msra.mxu0 %v3770
    %4023 = vmatpush.bf16.msra.mxu0 %v3766
    %4024 = vmatpush.bf16.msra.mxu0 %v3762
    %4025 = vmatpush.bf16.msra.mxu0 %v3758
    %4026 = vmatpush.bf16.msra.mxu0 %v3754
    %4027 = vmatpush.bf16.msra.mxu0 %v3750
    %4028 = vmatpush.bf16.msra.mxu0 %v3746
    %4029 = vmatpush.bf16.msra.mxu0 %v3742
    %4030 = vmatmul.bf16.gmra.mxu0 %v3161
    %v4031 = vpop.f32.mrf.mxu0
    %v4032 = vadd.f32 %v4019, %v4031
    %v4033 = vpop.f32.mrf.mxu0
    %4034 = vdwg.mxu0
    %4035 = vmatpush.bf16.msra.mxu0 %v3936
    %4036 = vmatpush.bf16.msra.mxu0 %v3798
    %4037 = vmatpush.bf16.msra.mxu0 %v3794
    %4038 = vmatpush.bf16.msra.mxu0 %v3790
    %4039 = vmatpush.bf16.msra.mxu0 %v3786
    %4040 = vmatpush.bf16.msra.mxu0 %v3782
    %4041 = vmatpush.bf16.msra.mxu0 %v3778
    %4042 = vmatpush.bf16.msra.mxu0 %v3774
    %4043 = vmatmul.bf16.gmra.mxu0 %v3930
    %v4044 = vpop.f32.mrf.mxu0
    %v4045 = vadd.f32 %v4032, %v4044
    %v4046 = vpop.f32.mrf.mxu0
    %4047 = vdwg.mxu0
    %4048 = vmatpush.bf16.msra.mxu0 %v3707
    %4049 = vmatpush.bf16.msra.mxu0 %v3703
    %4050 = vmatpush.bf16.msra.mxu0 %v3699
    %4051 = vmatpush.bf16.msra.mxu0 %v3695
    %4052 = vmatpush.bf16.msra.mxu0 %v3691
    %4053 = vmatpush.bf16.msra.mxu0 %v3687
    %4054 = vmatpush.bf16.msra.mxu0 %v3683
    %4055 = vmatpush.bf16.msra.mxu0 %v3679
    %4056 = vmatmul.bf16.gmra.mxu0 %v3159
    %v4057 = vpop.f32.mrf.mxu0
    %v4058 = vadd.f32 %v3293, %v4057
    %v4059 = vpop.f32.mrf.mxu0
    %4060 = vdwg.mxu0
    %4061 = vmatpush.bf16.msra.mxu0 %v3739
    %4062 = vmatpush.bf16.msra.mxu0 %v3735
    %4063 = vmatpush.bf16.msra.mxu0 %v3731
    %4064 = vmatpush.bf16.msra.mxu0 %v3727
    %4065 = vmatpush.bf16.msra.mxu0 %v3723
    %4066 = vmatpush.bf16.msra.mxu0 %v3719
    %4067 = vmatpush.bf16.msra.mxu0 %v3715
    %4068 = vmatpush.bf16.msra.mxu0 %v3711
    %4069 = vmatmul.bf16.gmra.mxu0 %v3160
    %v4070 = vpop.f32.mrf.mxu0
    %v4071 = vadd.f32 %v4058, %v4070
    %v4072 = vpop.f32.mrf.mxu0
    %4073 = vdwg.mxu0
    %4074 = vmatpush.bf16.msra.mxu0 %v3771
    %4075 = vmatpush.bf16.msra.mxu0 %v3767
    %4076 = vmatpush.bf16.msra.mxu0 %v3763
    %4077 = vmatpush.bf16.msra.mxu0 %v3759
    %4078 = vmatpush.bf16.msra.mxu0 %v3755
    %4079 = vmatpush.bf16.msra.mxu0 %v3751
    %4080 = vmatpush.bf16.msra.mxu0 %v3747
    %4081 = vmatpush.bf16.msra.mxu0 %v3743
    %4082 = vmatmul.bf16.gmra.mxu0 %v3161
    %v4083 = vpop.f32.mrf.mxu0
    %v4084 = vadd.f32 %v4071, %v4083
    %v4085 = vpop.f32.mrf.mxu0
    %4086 = vdwg.mxu0
    %4087 = vmatpush.bf16.msra.mxu0 %v3939
    %4088 = vmatpush.bf16.msra.mxu0 %v3799
    %4089 = vmatpush.bf16.msra.mxu0 %v3795
    %4090 = vmatpush.bf16.msra.mxu0 %v3791
    %4091 = vmatpush.bf16.msra.mxu0 %v3787
    %4092 = vmatpush.bf16.msra.mxu0 %v3783
    %4093 = vmatpush.bf16.msra.mxu0 %v3779
    %4094 = vmatpush.bf16.msra.mxu0 %v3775
    %4095 = vmatmul.bf16.gmra.mxu0 %v3930
    %v4096 = vpop.f32.mrf.mxu0
    %v4097 = vadd.f32 %v4084, %v4096
    %v4098 = vpop.f32.mrf.mxu0
    %4099 = vdwg.mxu0
    %4100 = vmatpush.bf16.msra.mxu0 %v3708
    %4101 = vmatpush.bf16.msra.mxu0 %v3704
    %4102 = vmatpush.bf16.msra.mxu0 %v3700
    %4103 = vmatpush.bf16.msra.mxu0 %v3696
    %4104 = vmatpush.bf16.msra.mxu0 %v3692
    %4105 = vmatpush.bf16.msra.mxu0 %v3688
    %4106 = vmatpush.bf16.msra.mxu0 %v3684
    %4107 = vmatpush.bf16.msra.mxu0 %v3680
    %4108 = vmatmul.bf16.gmra.mxu0 %v3159
    %v4109 = vpop.f32.mrf.mxu0
    %v4110 = vadd.f32 %v3294, %v4109
    %v4111 = vpop.f32.mrf.mxu0
    %4112 = vdwg.mxu0
    %4113 = vmatpush.bf16.msra.mxu0 %v3740
    %4114 = vmatpush.bf16.msra.mxu0 %v3736
    %4115 = vmatpush.bf16.msra.mxu0 %v3732
    %4116 = vmatpush.bf16.msra.mxu0 %v3728
    %4117 = vmatpush.bf16.msra.mxu0 %v3724
    %4118 = vmatpush.bf16.msra.mxu0 %v3720
    %4119 = vmatpush.bf16.msra.mxu0 %v3716
    %4120 = vmatpush.bf16.msra.mxu0 %v3712
    %4121 = vmatmul.bf16.gmra.mxu0 %v3160
    %v4122 = vpop.f32.mrf.mxu0
    %v4123 = vadd.f32 %v4110, %v4122
    %v4124 = vpop.f32.mrf.mxu0
    %4125 = vdwg.mxu0
    %4126 = vmatpush.bf16.msra.mxu0 %v3772
    %4127 = vmatpush.bf16.msra.mxu0 %v3768
    %4128 = vmatpush.bf16.msra.mxu0 %v3764
    %4129 = vmatpush.bf16.msra.mxu0 %v3760
    %4130 = vmatpush.bf16.msra.mxu0 %v3756
    %4131 = vmatpush.bf16.msra.mxu0 %v3752
    %4132 = vmatpush.bf16.msra.mxu0 %v3748
    %4133 = vmatpush.bf16.msra.mxu0 %v3744
    %4134 = vmatmul.bf16.gmra.mxu0 %v3161
    %v4135 = vpop.f32.mrf.mxu0
    %v4136 = vadd.f32 %v4123, %v4135
    %v4137 = vpop.f32.mrf.mxu0
    %4138 = vdwg.mxu0
    %4139 = vmatpush.bf16.msra.mxu0 %v3942
    %4140 = vmatpush.bf16.msra.mxu0 %v3800
    %4141 = vmatpush.bf16.msra.mxu0 %v3796
    %4142 = vmatpush.bf16.msra.mxu0 %v3792
    %4143 = vmatpush.bf16.msra.mxu0 %v3788
    %4144 = vmatpush.bf16.msra.mxu0 %v3784
    %4145 = vmatpush.bf16.msra.mxu0 %v3780
    %4146 = vmatpush.bf16.msra.mxu0 %v3776
    %4147 = vmatmul.bf16.gmra.mxu0 %v3930
    %v4148 = vpop.f32.mrf.mxu0
    %v4149 = vadd.f32 %v4136, %v4148
    %v4150 = vpop.f32.mrf.mxu0
    %4151 = vdwg.mxu0
    %v4152 = vtanh.pop %v3993
    %v4153 = vtanh.pop %v4045
    %v4154 = vtanh.pop %v4097
    %v4155 = vtanh.pop %v4149
    %v4156 = vpack.c.bf16 %v4152, %v4152
    %v4157 = vpack.c.bf16 %v4153, %v4153
    %v4158 = vpack.c.bf16 %v4154, %v4154
    %v4159 = vpack.c.bf16 %v4155, %v4155
    %v4160 = vld [vmem:[#allocation10] sm:$0xff]
    %v4161 = vld [vmem:[#allocation10 + $0x8] sm:$0xff]
    %v4162 = vld [vmem:[#allocation10 + $0x10] sm:$0xff]
    %v4163 = vld [vmem:[#allocation10 + $0x18] sm:$0xff]
    %v4164 = vld [vmem:[#allocation10 + $0x20] sm:$0xff]
    %v4165 = vld [vmem:[#allocation10 + $0x28] sm:$0xff]
    %v4166 = vld [vmem:[#allocation10 + $0x30] sm:$0xff]
    %v4167 = vld [vmem:[#allocation10 + $0x38] sm:$0xff]
    %v4168 = vld [vmem:[#allocation10 + $0x40] sm:$0xff]
    %v4169 = vld [vmem:[#allocation10 + $0x48] sm:$0xff]
    %v4170 = vld [vmem:[#allocation10 + $0x50] sm:$0xff]
    %v4171 = vld [vmem:[#allocation10 + $0x58] sm:$0xff]
    %v4172 = vld [vmem:[#allocation10 + $0x60] sm:$0xff]
    %v4173 = vld [vmem:[#allocation10 + $0x68] sm:$0xff]
    %v4174 = vld [vmem:[#allocation10 + $0x70] sm:$0xff]
    %v4175 = vld [vmem:[#allocation10 + $0x78] sm:$0xff]
    %v4176 = vld [vmem:[#allocation10 + $0x80] sm:$0xff]
    %v4177 = vld [vmem:[#allocation10 + $0x88] sm:$0xff]
    %v4178 = vld [vmem:[#allocation10 + $0x90] sm:$0xff]
    %v4179 = vld [vmem:[#allocation10 + $0x98] sm:$0xff]
    %v4180 = vld [vmem:[#allocation10 + $0xa0] sm:$0xff]
    %v4181 = vld [vmem:[#allocation10 + $0xa8] sm:$0xff]
    %v4182 = vld [vmem:[#allocation10 + $0xb0] sm:$0xff]
    %v4183 = vld [vmem:[#allocation10 + $0xb8] sm:$0xff]
    %v4184 = vld [vmem:[#allocation10 + $0xc0] sm:$0xff]
    %v4185 = vld [vmem:[#allocation10 + $0xc8] sm:$0xff]
    %v4186 = vld [vmem:[#allocation10 + $0xd0] sm:$0xff]
    %v4187 = vld [vmem:[#allocation10 + $0xd8] sm:$0xff]
    %v4188 = vld [vmem:[#allocation10 + $0xe0] sm:$0xff]
    %v4189 = vld [vmem:[#allocation10 + $0xe8] sm:$0xff]
    %v4190 = vld [vmem:[#allocation10 + $0xf0] sm:$0xff]
    %v4191 = vld [vmem:[#allocation10 + $0xf8] sm:$0xff]
    %v4192 = vld [vmem:[#allocation10 + $0x100] sm:$0xff]
    %v4193 = vld [vmem:[#allocation10 + $0x108] sm:$0xff]
    %v4194 = vld [vmem:[#allocation10 + $0x110] sm:$0xff]
    %v4195 = vld [vmem:[#allocation10 + $0x118] sm:$0xff]
    %v4196 = vld [vmem:[#allocation10 + $0x120] sm:$0xff]
    %v4197 = vld [vmem:[#allocation10 + $0x128] sm:$0xff]
    %v4198 = vld [vmem:[#allocation10 + $0x130] sm:$0xff]
    %v4199 = vld [vmem:[#allocation10 + $0x138] sm:$0xff]
    %v4200 = vld [vmem:[#allocation10 + $0x140] sm:$0xff]
    %v4201 = vld [vmem:[#allocation10 + $0x148] sm:$0xff]
    %v4202 = vld [vmem:[#allocation10 + $0x150] sm:$0xff]
    %v4203 = vld [vmem:[#allocation10 + $0x158] sm:$0xff]
    %v4204 = vld [vmem:[#allocation10 + $0x160] sm:$0xff]
    %v4205 = vld [vmem:[#allocation10 + $0x168] sm:$0xff]
    %v4206 = vld [vmem:[#allocation10 + $0x170] sm:$0xff]
    %v4207 = vld [vmem:[#allocation10 + $0x178] sm:$0xff]
    %v4208 = vld [vmem:[#allocation10 + $0x180] sm:$0xff]
    %v4209 = vld [vmem:[#allocation10 + $0x188] sm:$0xff]
    %v4210 = vld [vmem:[#allocation10 + $0x190] sm:$0xff]
    %v4211 = vld [vmem:[#allocation10 + $0x198] sm:$0xff]
    %v4212 = vld [vmem:[#allocation10 + $0x1a0] sm:$0xff]
    %v4213 = vld [vmem:[#allocation10 + $0x1a8] sm:$0xff]
    %v4214 = vld [vmem:[#allocation10 + $0x1b0] sm:$0xff]
    %v4215 = vld [vmem:[#allocation10 + $0x1b8] sm:$0xff]
    %v4216 = vld [vmem:[#allocation10 + $0x1c0] sm:$0xff]
    %v4217 = vld [vmem:[#allocation10 + $0x1c8] sm:$0xff]
    %v4218 = vld [vmem:[#allocation10 + $0x1d0] sm:$0xff]
    %v4219 = vld [vmem:[#allocation10 + $0x1d8] sm:$0xff]
    %v4220 = vld [vmem:[#allocation10 + $0x1e0] sm:$0xff]
    %v4221 = vld [vmem:[#allocation10 + $0x1e8] sm:$0xff]
    %v4222 = vld [vmem:[#allocation10 + $0x1f0] sm:$0xff]
    %v4223 = vld [vmem:[#allocation10 + $0x1f8] sm:$0xff]
    %v4224 = vld [vmem:[#allocation10 + $0x200] sm:$0xff]
    %v4225 = vld [vmem:[#allocation10 + $0x208] sm:$0xff]
    %v4226 = vld [vmem:[#allocation10 + $0x210] sm:$0xff]
    %v4227 = vld [vmem:[#allocation10 + $0x218] sm:$0xff]
    %v4228 = vld [vmem:[#allocation10 + $0x220] sm:$0xff]
    %v4229 = vld [vmem:[#allocation10 + $0x228] sm:$0xff]
    %v4230 = vld [vmem:[#allocation10 + $0x230] sm:$0xff]
    %v4231 = vld [vmem:[#allocation10 + $0x238] sm:$0xff]
    %v4232 = vld [vmem:[#allocation10 + $0x240] sm:$0xff]
    %v4233 = vld [vmem:[#allocation10 + $0x248] sm:$0xff]
    %v4234 = vld [vmem:[#allocation10 + $0x250] sm:$0xff]
    %v4235 = vld [vmem:[#allocation10 + $0x258] sm:$0xff]
    %v4236 = vld [vmem:[#allocation10 + $0x260] sm:$0xff]
    %v4237 = vld [vmem:[#allocation10 + $0x268] sm:$0xff]
    %v4238 = vld [vmem:[#allocation10 + $0x270] sm:$0xff]
    %v4239 = vld [vmem:[#allocation10 + $0x278] sm:$0xff]
    %v4240 = vld [vmem:[#allocation10 + $0x280] sm:$0xff]
    %v4241 = vld [vmem:[#allocation10 + $0x288] sm:$0xff]
    %v4242 = vld [vmem:[#allocation10 + $0x290] sm:$0xff]
    %v4243 = vld [vmem:[#allocation10 + $0x298] sm:$0xff]
    %v4244 = vld [vmem:[#allocation10 + $0x2a0] sm:$0xff]
    %v4245 = vld [vmem:[#allocation10 + $0x2a8] sm:$0xff]
    %v4246 = vld [vmem:[#allocation10 + $0x2b0] sm:$0xff]
    %v4247 = vld [vmem:[#allocation10 + $0x2b8] sm:$0xff]
    %v4248 = vld [vmem:[#allocation10 + $0x2c0] sm:$0xff]
    %v4249 = vld [vmem:[#allocation10 + $0x2c8] sm:$0xff]
    %v4250 = vld [vmem:[#allocation10 + $0x2d0] sm:$0xff]
    %v4251 = vld [vmem:[#allocation10 + $0x2d8] sm:$0xff]
    %v4252 = vld [vmem:[#allocation10 + $0x2e0] sm:$0xff]
    %v4253 = vld [vmem:[#allocation10 + $0x2e8] sm:$0xff]
    %v4254 = vld [vmem:[#allocation10 + $0x2f0] sm:$0xff]
    %v4255 = vld [vmem:[#allocation10 + $0x2f8] sm:$0xff]
    %v4256 = vld [vmem:[#allocation10 + $0x300] sm:$0xff]
    %v4257 = vld [vmem:[#allocation10 + $0x308] sm:$0xff]
    %v4258 = vld [vmem:[#allocation10 + $0x310] sm:$0xff]
    %v4259 = vld [vmem:[#allocation10 + $0x318] sm:$0xff]
    %v4260 = vld [vmem:[#allocation10 + $0x320] sm:$0xff]
    %v4261 = vld [vmem:[#allocation10 + $0x328] sm:$0xff]
    %v4262 = vld [vmem:[#allocation10 + $0x330] sm:$0xff]
    %v4263 = vld [vmem:[#allocation10 + $0x338] sm:$0xff]
    %v4264 = vld [vmem:[#allocation10 + $0x340] sm:$0xff]
    %v4265 = vld [vmem:[#allocation10 + $0x348] sm:$0xff]
    %v4266 = vld [vmem:[#allocation10 + $0x350] sm:$0xff]
    %v4267 = vld [vmem:[#allocation10 + $0x358] sm:$0xff]
    %v4268 = vld [vmem:[#allocation10 + $0x360] sm:$0xff]
    %v4269 = vld [vmem:[#allocation10 + $0x368] sm:$0xff]
    %v4270 = vld [vmem:[#allocation10 + $0x370] sm:$0xff]
    %v4271 = vld [vmem:[#allocation10 + $0x378] sm:$0xff]
    %v4272 = vld [vmem:[#allocation10 + $0x380] sm:$0xff]
    %v4273 = vld [vmem:[#allocation10 + $0x388] sm:$0xff]
    %v4274 = vld [vmem:[#allocation10 + $0x390] sm:$0xff]
    %v4275 = vld [vmem:[#allocation10 + $0x398] sm:$0xff]
    %v4276 = vld [vmem:[#allocation10 + $0x3a0] sm:$0xff]
    %v4277 = vld [vmem:[#allocation10 + $0x3a8] sm:$0xff]
    %v4278 = vld [vmem:[#allocation10 + $0x3b0] sm:$0xff]
    %v4279 = vld [vmem:[#allocation10 + $0x3b8] sm:$0xff]
    %v4280 = vld [vmem:[#allocation10 + $0x3c0] sm:$0xff]
    %v4281 = vld [vmem:[#allocation10 + $0x3c8] sm:$0xff]
    %v4282 = vld [vmem:[#allocation10 + $0x3d0] sm:$0xff]
    %v4283 = vld [vmem:[#allocation10 + $0x3d8] sm:$0xff]
    %v4284 = vld [vmem:[#allocation10 + $0x3e0] sm:$0x33]
    %v4285 = vld [vmem:[#allocation10 + $0x3e8] sm:$0x33]
    %v4286 = vld [vmem:[%s14] sm:$0xf]
    %v4288 = vperm.slane %v4286, 0
    %v4289 = vperm.slane %v4286, 1
    %v4290 = vperm.slane %v4286, 2
    %v4291 = vperm.slane %v4286, 3
    %v4422 = vunpack.c.l.b16 %v4160
    %v4423 = vunpack.c.h.b16 %v4160
    %v4424 = vunpack.c.l.b16 %v4161
    %v4425 = vunpack.c.h.b16 %v4161
    %v4426 = vunpack.c.l.b16 %v4162
    %v4427 = vunpack.c.h.b16 %v4162
    %v4428 = vunpack.c.l.b16 %v4163
    %v4429 = vunpack.c.h.b16 %v4163
    %v4430 = vunpack.c.l.b16 %v4164
    %v4431 = vunpack.c.h.b16 %v4164
    %v4432 = vunpack.c.l.b16 %v4165
    %v4433 = vunpack.c.h.b16 %v4165
    %v4434 = vunpack.c.l.b16 %v4166
    %v4435 = vunpack.c.h.b16 %v4166
    %v4436 = vunpack.c.l.b16 %v4167
    %v4437 = vunpack.c.h.b16 %v4167
    %v4438 = vunpack.c.l.b16 %v4168
    %v4439 = vunpack.c.h.b16 %v4168
    %v4440 = vunpack.c.l.b16 %v4169
    %v4441 = vunpack.c.h.b16 %v4169
    %v4442 = vunpack.c.l.b16 %v4170
    %v4443 = vunpack.c.h.b16 %v4170
    %v4444 = vunpack.c.l.b16 %v4171
    %v4445 = vunpack.c.h.b16 %v4171
    %v4446 = vunpack.c.l.b16 %v4172
    %v4447 = vunpack.c.h.b16 %v4172
    %v4448 = vunpack.c.l.b16 %v4173
    %v4449 = vunpack.c.h.b16 %v4173
    %v4450 = vunpack.c.l.b16 %v4174
    %v4451 = vunpack.c.h.b16 %v4174
    %v4452 = vunpack.c.l.b16 %v4175
    %v4453 = vunpack.c.h.b16 %v4175
    %v4454 = vunpack.c.l.b16 %v4176
    %v4455 = vunpack.c.h.b16 %v4176
    %v4456 = vunpack.c.l.b16 %v4177
    %v4457 = vunpack.c.h.b16 %v4177
    %v4458 = vunpack.c.l.b16 %v4178
    %v4459 = vunpack.c.h.b16 %v4178
    %v4460 = vunpack.c.l.b16 %v4179
    %v4461 = vunpack.c.h.b16 %v4179
    %v4462 = vunpack.c.l.b16 %v4180
    %v4463 = vunpack.c.h.b16 %v4180
    %v4464 = vunpack.c.l.b16 %v4181
    %v4465 = vunpack.c.h.b16 %v4181
    %v4466 = vunpack.c.l.b16 %v4182
    %v4467 = vunpack.c.h.b16 %v4182
    %v4468 = vunpack.c.l.b16 %v4183
    %v4469 = vunpack.c.h.b16 %v4183
    %v4470 = vunpack.c.l.b16 %v4184
    %v4471 = vunpack.c.h.b16 %v4184
    %v4472 = vunpack.c.l.b16 %v4185
    %v4473 = vunpack.c.h.b16 %v4185
    %v4474 = vunpack.c.l.b16 %v4186
    %v4475 = vunpack.c.h.b16 %v4186
    %v4476 = vunpack.c.l.b16 %v4187
    %v4477 = vunpack.c.h.b16 %v4187
    %v4478 = vunpack.c.l.b16 %v4188
    %v4479 = vunpack.c.h.b16 %v4188
    %v4480 = vunpack.c.l.b16 %v4189
    %v4481 = vunpack.c.h.b16 %v4189
    %v4482 = vunpack.c.l.b16 %v4190
    %v4483 = vunpack.c.h.b16 %v4190
    %v4484 = vunpack.c.l.b16 %v4191
    %v4485 = vunpack.c.h.b16 %v4191
    %v4486 = vunpack.c.l.b16 %v4192
    %v4487 = vunpack.c.h.b16 %v4192
    %v4488 = vunpack.c.l.b16 %v4193
    %v4489 = vunpack.c.h.b16 %v4193
    %v4490 = vunpack.c.l.b16 %v4194
    %v4491 = vunpack.c.h.b16 %v4194
    %v4492 = vunpack.c.l.b16 %v4195
    %v4493 = vunpack.c.h.b16 %v4195
    %v4494 = vunpack.c.l.b16 %v4196
    %v4495 = vunpack.c.h.b16 %v4196
    %v4496 = vunpack.c.l.b16 %v4197
    %v4497 = vunpack.c.h.b16 %v4197
    %v4498 = vunpack.c.l.b16 %v4198
    %v4499 = vunpack.c.h.b16 %v4198
    %v4500 = vunpack.c.l.b16 %v4199
    %v4501 = vunpack.c.h.b16 %v4199
    %v4502 = vunpack.c.l.b16 %v4200
    %v4503 = vunpack.c.h.b16 %v4200
    %v4504 = vunpack.c.l.b16 %v4201
    %v4505 = vunpack.c.h.b16 %v4201
    %v4506 = vunpack.c.l.b16 %v4202
    %v4507 = vunpack.c.h.b16 %v4202
    %v4508 = vunpack.c.l.b16 %v4203
    %v4509 = vunpack.c.h.b16 %v4203
    %v4510 = vunpack.c.l.b16 %v4204
    %v4511 = vunpack.c.h.b16 %v4204
    %v4512 = vunpack.c.l.b16 %v4205
    %v4513 = vunpack.c.h.b16 %v4205
    %v4514 = vunpack.c.l.b16 %v4206
    %v4515 = vunpack.c.h.b16 %v4206
    %v4516 = vunpack.c.l.b16 %v4207
    %v4517 = vunpack.c.h.b16 %v4207
    %v4518 = vunpack.c.l.b16 %v4208
    %v4519 = vunpack.c.h.b16 %v4208
    %v4520 = vunpack.c.l.b16 %v4209
    %v4521 = vunpack.c.h.b16 %v4209
    %v4522 = vunpack.c.l.b16 %v4210
    %v4523 = vunpack.c.h.b16 %v4210
    %v4524 = vunpack.c.l.b16 %v4211
    %v4525 = vunpack.c.h.b16 %v4211
    %v4526 = vunpack.c.l.b16 %v4212
    %v4527 = vunpack.c.h.b16 %v4212
    %v4528 = vunpack.c.l.b16 %v4213
    %v4529 = vunpack.c.h.b16 %v4213
    %v4530 = vunpack.c.l.b16 %v4214
    %v4531 = vunpack.c.h.b16 %v4214
    %v4532 = vunpack.c.l.b16 %v4215
    %v4533 = vunpack.c.h.b16 %v4215
    %v4534 = vunpack.c.l.b16 %v4216
    %v4535 = vunpack.c.h.b16 %v4216
    %v4536 = vunpack.c.l.b16 %v4217
    %v4537 = vunpack.c.h.b16 %v4217
    %v4538 = vunpack.c.l.b16 %v4218
    %v4539 = vunpack.c.h.b16 %v4218
    %v4540 = vunpack.c.l.b16 %v4219
    %v4541 = vunpack.c.h.b16 %v4219
    %v4542 = vunpack.c.l.b16 %v4220
    %v4543 = vunpack.c.h.b16 %v4220
    %v4544 = vunpack.c.l.b16 %v4221
    %v4545 = vunpack.c.h.b16 %v4221
    %v4546 = vunpack.c.l.b16 %v4222
    %v4547 = vunpack.c.h.b16 %v4222
    %v4548 = vunpack.c.l.b16 %v4223
    %v4549 = vunpack.c.h.b16 %v4223
    %v4550 = vunpack.c.l.b16 %v4224
    %v4551 = vunpack.c.h.b16 %v4224
    %v4552 = vunpack.c.l.b16 %v4225
    %v4553 = vunpack.c.h.b16 %v4225
    %v4554 = vunpack.c.l.b16 %v4226
    %v4555 = vunpack.c.h.b16 %v4226
    %v4556 = vunpack.c.l.b16 %v4227
    %v4557 = vunpack.c.h.b16 %v4227
    %v4558 = vunpack.c.l.b16 %v4228
    %v4559 = vunpack.c.h.b16 %v4228
    %v4560 = vunpack.c.l.b16 %v4229
    %v4561 = vunpack.c.h.b16 %v4229
    %v4562 = vunpack.c.l.b16 %v4230
    %v4563 = vunpack.c.h.b16 %v4230
    %v4564 = vunpack.c.l.b16 %v4231
    %v4565 = vunpack.c.h.b16 %v4231
    %v4566 = vunpack.c.l.b16 %v4232
    %v4567 = vunpack.c.h.b16 %v4232
    %v4568 = vunpack.c.l.b16 %v4233
    %v4569 = vunpack.c.h.b16 %v4233
    %v4570 = vunpack.c.l.b16 %v4234
    %v4571 = vunpack.c.h.b16 %v4234
    %v4572 = vunpack.c.l.b16 %v4235
    %v4573 = vunpack.c.h.b16 %v4235
    %v4574 = vunpack.c.l.b16 %v4236
    %v4575 = vunpack.c.h.b16 %v4236
    %v4576 = vunpack.c.l.b16 %v4237
    %v4577 = vunpack.c.h.b16 %v4237
    %v4578 = vunpack.c.l.b16 %v4238
    %v4579 = vunpack.c.h.b16 %v4238
    %v4580 = vunpack.c.l.b16 %v4239
    %v4581 = vunpack.c.h.b16 %v4239
    %v4582 = vunpack.c.l.b16 %v4240
    %v4583 = vunpack.c.h.b16 %v4240
    %v4584 = vunpack.c.l.b16 %v4241
    %v4585 = vunpack.c.h.b16 %v4241
    %v4586 = vunpack.c.l.b16 %v4242
    %v4587 = vunpack.c.h.b16 %v4242
    %v4588 = vunpack.c.l.b16 %v4243
    %v4589 = vunpack.c.h.b16 %v4243
    %v4590 = vunpack.c.l.b16 %v4244
    %v4591 = vunpack.c.h.b16 %v4244
    %v4592 = vunpack.c.l.b16 %v4245
    %v4593 = vunpack.c.h.b16 %v4245
    %v4594 = vunpack.c.l.b16 %v4246
    %v4595 = vunpack.c.h.b16 %v4246
    %v4596 = vunpack.c.l.b16 %v4247
    %v4597 = vunpack.c.h.b16 %v4247
    %v4598 = vunpack.c.l.b16 %v4248
    %v4599 = vunpack.c.h.b16 %v4248
    %v4600 = vunpack.c.l.b16 %v4249
    %v4601 = vunpack.c.h.b16 %v4249
    %v4602 = vunpack.c.l.b16 %v4250
    %v4603 = vunpack.c.h.b16 %v4250
    %v4604 = vunpack.c.l.b16 %v4251
    %v4605 = vunpack.c.h.b16 %v4251
    %v4606 = vunpack.c.l.b16 %v4252
    %v4607 = vunpack.c.h.b16 %v4252
    %v4608 = vunpack.c.l.b16 %v4253
    %v4609 = vunpack.c.h.b16 %v4253
    %v4610 = vunpack.c.l.b16 %v4254
    %v4611 = vunpack.c.h.b16 %v4254
    %v4612 = vunpack.c.l.b16 %v4255
    %v4613 = vunpack.c.h.b16 %v4255
    %v4614 = vunpack.c.l.b16 %v4256
    %v4615 = vunpack.c.h.b16 %v4256
    %v4616 = vunpack.c.l.b16 %v4257
    %v4617 = vunpack.c.h.b16 %v4257
    %v4618 = vunpack.c.l.b16 %v4258
    %v4619 = vunpack.c.h.b16 %v4258
    %v4620 = vunpack.c.l.b16 %v4259
    %v4621 = vunpack.c.h.b16 %v4259
    %v4622 = vunpack.c.l.b16 %v4260
    %v4623 = vunpack.c.h.b16 %v4260
    %v4624 = vunpack.c.l.b16 %v4261
    %v4625 = vunpack.c.h.b16 %v4261
    %v4626 = vunpack.c.l.b16 %v4262
    %v4627 = vunpack.c.h.b16 %v4262
    %v4628 = vunpack.c.l.b16 %v4263
    %v4629 = vunpack.c.h.b16 %v4263
    %v4630 = vunpack.c.l.b16 %v4264
    %v4631 = vunpack.c.h.b16 %v4264
    %v4632 = vunpack.c.l.b16 %v4265
    %v4633 = vunpack.c.h.b16 %v4265
    %v4634 = vunpack.c.l.b16 %v4266
    %v4635 = vunpack.c.h.b16 %v4266
    %v4636 = vunpack.c.l.b16 %v4267
    %v4637 = vunpack.c.h.b16 %v4267
    %v4638 = vunpack.c.l.b16 %v4268
    %v4639 = vunpack.c.h.b16 %v4268
    %v4640 = vunpack.c.l.b16 %v4269
    %v4641 = vunpack.c.h.b16 %v4269
    %v4642 = vunpack.c.l.b16 %v4270
    %v4643 = vunpack.c.h.b16 %v4270
    %v4644 = vunpack.c.l.b16 %v4271
    %v4645 = vunpack.c.h.b16 %v4271
    %v4646 = vunpack.c.l.b16 %v4272
    %v4647 = vunpack.c.h.b16 %v4272
    %v4648 = vunpack.c.l.b16 %v4273
    %v4649 = vunpack.c.h.b16 %v4273
    %v4650 = vunpack.c.l.b16 %v4274
    %v4651 = vunpack.c.h.b16 %v4274
    %v4652 = vunpack.c.l.b16 %v4275
    %v4653 = vunpack.c.h.b16 %v4275
    %v4654 = vunpack.c.l.b16 %v4276
    %v4655 = vunpack.c.h.b16 %v4276
    %v4656 = vunpack.c.l.b16 %v4277
    %v4657 = vunpack.c.h.b16 %v4277
    %v4658 = vunpack.c.l.b16 %v4278
    %v4659 = vunpack.c.h.b16 %v4278
    %v4660 = vunpack.c.l.b16 %v4279
    %v4661 = vunpack.c.h.b16 %v4279
    %v4662 = vunpack.c.l.b16 %v4280
    %v4663 = vunpack.c.h.b16 %v4280
    %v4664 = vunpack.c.l.b16 %v4281
    %v4665 = vunpack.c.h.b16 %v4281
    %v4666 = vunpack.c.l.b16 %v4282
    %v4667 = vunpack.c.h.b16 %v4282
    %v4668 = vunpack.c.l.b16 %v4283
    %v4669 = vunpack.c.h.b16 %v4283
    %v4670 = vunpack.c.l.b16 %v4284
    %v4671 = vunpack.c.h.b16 %v4284
    %v4672 = vunpack.c.l.b16 %v4285
    %v4673 = vunpack.c.h.b16 %v4285
    %v4674 = vpack.c.b16 %v4426, %v4422
    %v4675 = vpack.c.b16 %v4427, %v4423
    %v4676 = vpack.c.b16 %v4428, %v4424
    %v4677 = vpack.c.b16 %v4429, %v4425
    %v4678 = vpack.c.b16 %v4434, %v4430
    %v4679 = vpack.c.b16 %v4435, %v4431
    %v4680 = vpack.c.b16 %v4436, %v4432
    %v4681 = vpack.c.b16 %v4437, %v4433
    %v4682 = vpack.c.b16 %v4442, %v4438
    %v4683 = vpack.c.b16 %v4443, %v4439
    %v4684 = vpack.c.b16 %v4444, %v4440
    %v4685 = vpack.c.b16 %v4445, %v4441
    %v4686 = vpack.c.b16 %v4450, %v4446
    %v4687 = vpack.c.b16 %v4451, %v4447
    %v4688 = vpack.c.b16 %v4452, %v4448
    %v4689 = vpack.c.b16 %v4453, %v4449
    %v4690 = vpack.c.b16 %v4458, %v4454
    %v4691 = vpack.c.b16 %v4459, %v4455
    %v4692 = vpack.c.b16 %v4460, %v4456
    %v4693 = vpack.c.b16 %v4461, %v4457
    %v4694 = vpack.c.b16 %v4466, %v4462
    %v4695 = vpack.c.b16 %v4467, %v4463
    %v4696 = vpack.c.b16 %v4468, %v4464
    %v4697 = vpack.c.b16 %v4469, %v4465
    %v4698 = vpack.c.b16 %v4474, %v4470
    %v4699 = vpack.c.b16 %v4475, %v4471
    %v4700 = vpack.c.b16 %v4476, %v4472
    %v4701 = vpack.c.b16 %v4477, %v4473
    %v4702 = vpack.c.b16 %v4482, %v4478
    %v4703 = vpack.c.b16 %v4483, %v4479
    %v4704 = vpack.c.b16 %v4484, %v4480
    %v4705 = vpack.c.b16 %v4485, %v4481
    %v4706 = vpack.c.b16 %v4490, %v4486
    %v4707 = vpack.c.b16 %v4491, %v4487
    %v4708 = vpack.c.b16 %v4492, %v4488
    %v4709 = vpack.c.b16 %v4493, %v4489
    %v4710 = vpack.c.b16 %v4498, %v4494
    %v4711 = vpack.c.b16 %v4499, %v4495
    %v4712 = vpack.c.b16 %v4500, %v4496
    %v4713 = vpack.c.b16 %v4501, %v4497
    %v4714 = vpack.c.b16 %v4506, %v4502
    %v4715 = vpack.c.b16 %v4507, %v4503
    %v4716 = vpack.c.b16 %v4508, %v4504
    %v4717 = vpack.c.b16 %v4509, %v4505
    %v4718 = vpack.c.b16 %v4514, %v4510
    %v4719 = vpack.c.b16 %v4515, %v4511
    %v4720 = vpack.c.b16 %v4516, %v4512
    %v4721 = vpack.c.b16 %v4517, %v4513
    %v4722 = vpack.c.b16 %v4522, %v4518
    %v4723 = vpack.c.b16 %v4523, %v4519
    %v4724 = vpack.c.b16 %v4524, %v4520
    %v4725 = vpack.c.b16 %v4525, %v4521
    %v4726 = vpack.c.b16 %v4530, %v4526
    %v4727 = vpack.c.b16 %v4531, %v4527
    %v4728 = vpack.c.b16 %v4532, %v4528
    %v4729 = vpack.c.b16 %v4533, %v4529
    %v4730 = vpack.c.b16 %v4538, %v4534
    %v4731 = vpack.c.b16 %v4539, %v4535
    %v4732 = vpack.c.b16 %v4540, %v4536
    %v4733 = vpack.c.b16 %v4541, %v4537
    %v4734 = vpack.c.b16 %v4546, %v4542
    %v4735 = vpack.c.b16 %v4547, %v4543
    %v4736 = vpack.c.b16 %v4548, %v4544
    %v4737 = vpack.c.b16 %v4549, %v4545
    %v4738 = vpack.c.b16 %v4554, %v4550
    %v4739 = vpack.c.b16 %v4555, %v4551
    %v4740 = vpack.c.b16 %v4556, %v4552
    %v4741 = vpack.c.b16 %v4557, %v4553
    %v4742 = vpack.c.b16 %v4562, %v4558
    %v4743 = vpack.c.b16 %v4563, %v4559
    %v4744 = vpack.c.b16 %v4564, %v4560
    %v4745 = vpack.c.b16 %v4565, %v4561
    %v4746 = vpack.c.b16 %v4570, %v4566
    %v4747 = vpack.c.b16 %v4571, %v4567
    %v4748 = vpack.c.b16 %v4572, %v4568
    %v4749 = vpack.c.b16 %v4573, %v4569
    %v4750 = vpack.c.b16 %v4578, %v4574
    %v4751 = vpack.c.b16 %v4579, %v4575
    %v4752 = vpack.c.b16 %v4580, %v4576
    %v4753 = vpack.c.b16 %v4581, %v4577
    %v4754 = vpack.c.b16 %v4586, %v4582
    %v4755 = vpack.c.b16 %v4587, %v4583
    %v4756 = vpack.c.b16 %v4588, %v4584
    %v4757 = vpack.c.b16 %v4589, %v4585
    %v4758 = vpack.c.b16 %v4594, %v4590
    %v4759 = vpack.c.b16 %v4595, %v4591
    %v4760 = vpack.c.b16 %v4596, %v4592
    %v4761 = vpack.c.b16 %v4597, %v4593
    %v4762 = vpack.c.b16 %v4602, %v4598
    %v4763 = vpack.c.b16 %v4603, %v4599
    %v4764 = vpack.c.b16 %v4604, %v4600
    %v4765 = vpack.c.b16 %v4605, %v4601
    %v4766 = vpack.c.b16 %v4610, %v4606
    %v4767 = vpack.c.b16 %v4611, %v4607
    %v4768 = vpack.c.b16 %v4612, %v4608
    %v4769 = vpack.c.b16 %v4613, %v4609
    %v4770 = vpack.c.b16 %v4618, %v4614
    %v4771 = vpack.c.b16 %v4619, %v4615
    %v4772 = vpack.c.b16 %v4620, %v4616
    %v4773 = vpack.c.b16 %v4621, %v4617
    %v4774 = vpack.c.b16 %v4626, %v4622
    %v4775 = vpack.c.b16 %v4627, %v4623
    %v4776 = vpack.c.b16 %v4628, %v4624
    %v4777 = vpack.c.b16 %v4629, %v4625
    %v4778 = vpack.c.b16 %v4634, %v4630
    %v4779 = vpack.c.b16 %v4635, %v4631
    %v4780 = vpack.c.b16 %v4636, %v4632
    %v4781 = vpack.c.b16 %v4637, %v4633
    %v4782 = vpack.c.b16 %v4642, %v4638
    %v4783 = vpack.c.b16 %v4643, %v4639
    %v4784 = vpack.c.b16 %v4644, %v4640
    %v4785 = vpack.c.b16 %v4645, %v4641
    %v4786 = vpack.c.b16 %v4650, %v4646
    %v4787 = vpack.c.b16 %v4651, %v4647
    %v4788 = vpack.c.b16 %v4652, %v4648
    %v4789 = vpack.c.b16 %v4653, %v4649
    %v4790 = vpack.c.b16 %v4658, %v4654
    %v4791 = vpack.c.b16 %v4659, %v4655
    %v4792 = vpack.c.b16 %v4660, %v4656
    %v4793 = vpack.c.b16 %v4661, %v4657
    %v4794 = vpack.c.b16 %v4666, %v4662
    %v4795 = vpack.c.b16 %v4667, %v4663
    %v4796 = vpack.c.b16 %v4668, %v4664
    %v4797 = vpack.c.b16 %v4669, %v4665
    %v4798 = vpack.c.b16 %v4670, %v4670
    %v4799 = vpack.c.b16 %v4671, %v4671
    %v4800 = vpack.c.b16 %v4672, %v4672
    %v4801 = vpack.c.b16 %v4673, %v4673
    %v4927 = vsel %vm1549, %v4159, 0
    %v4930 = vsel %vm606, %v4798, 0
    %v4933 = vsel %vm606, %v4799, 0
    %v4936 = vsel %vm606, %v4800, 0
    %v4939 = vsel %vm606, %v4801, 0
    %4941 = vmatpush.bf16.msra.mxu0 %v4702
    %4942 = vmatpush.bf16.msra.mxu0 %v4698
    %4943 = vmatpush.bf16.msra.mxu0 %v4694
    %4944 = vmatpush.bf16.msra.mxu0 %v4690
    %4945 = vmatpush.bf16.msra.mxu0 %v4686
    %4946 = vmatpush.bf16.msra.mxu0 %v4682
    %4947 = vmatpush.bf16.msra.mxu0 %v4678
    %4948 = vmatpush.bf16.msra.mxu0 %v4674
    %4949 = vmatmul.bf16.gmra.mxu0 %v4156
    %v4950 = vpop.f32.mrf.mxu0
    %v4951 = vadd.f32 %v4288, %v4950
    %v4952 = vpop.f32.mrf.mxu0
    %4953 = vdwg.mxu0
    %4954 = vmatpush.bf16.msra.mxu0 %v4734
    %4955 = vmatpush.bf16.msra.mxu0 %v4730
    %4956 = vmatpush.bf16.msra.mxu0 %v4726
    %4957 = vmatpush.bf16.msra.mxu0 %v4722
    %4958 = vmatpush.bf16.msra.mxu0 %v4718
    %4959 = vmatpush.bf16.msra.mxu0 %v4714
    %4960 = vmatpush.bf16.msra.mxu0 %v4710
    %4961 = vmatpush.bf16.msra.mxu0 %v4706
    %4962 = vmatmul.bf16.gmra.mxu0 %v4157
    %v4963 = vpop.f32.mrf.mxu0
    %v4964 = vadd.f32 %v4951, %v4963
    %v4965 = vpop.f32.mrf.mxu0
    %4966 = vdwg.mxu0
    %4967 = vmatpush.bf16.msra.mxu0 %v4766
    %4968 = vmatpush.bf16.msra.mxu0 %v4762
    %4969 = vmatpush.bf16.msra.mxu0 %v4758
    %4970 = vmatpush.bf16.msra.mxu0 %v4754
    %4971 = vmatpush.bf16.msra.mxu0 %v4750
    %4972 = vmatpush.bf16.msra.mxu0 %v4746
    %4973 = vmatpush.bf16.msra.mxu0 %v4742
    %4974 = vmatpush.bf16.msra.mxu0 %v4738
    %4975 = vmatmul.bf16.gmra.mxu0 %v4158
    %v4976 = vpop.f32.mrf.mxu0
    %v4977 = vadd.f32 %v4964, %v4976
    %v4978 = vpop.f32.mrf.mxu0
    %4979 = vdwg.mxu0
    %4980 = vmatpush.bf16.msra.mxu0 %v4930
    %4981 = vmatpush.bf16.msra.mxu0 %v4794
    %4982 = vmatpush.bf16.msra.mxu0 %v4790
    %4983 = vmatpush.bf16.msra.mxu0 %v4786
    %4984 = vmatpush.bf16.msra.mxu0 %v4782
    %4985 = vmatpush.bf16.msra.mxu0 %v4778
    %4986 = vmatpush.bf16.msra.mxu0 %v4774
    %4987 = vmatpush.bf16.msra.mxu0 %v4770
    %4988 = vmatmul.bf16.gmra.mxu0 %v4927
    %v4989 = vpop.f32.mrf.mxu0
    %v4990 = vadd.f32 %v4977, %v4989
    %v4991 = vpop.f32.mrf.mxu0
    %4992 = vdwg.mxu0
    %4993 = vmatpush.bf16.msra.mxu0 %v4703
    %4994 = vmatpush.bf16.msra.mxu0 %v4699
    %4995 = vmatpush.bf16.msra.mxu0 %v4695
    %4996 = vmatpush.bf16.msra.mxu0 %v4691
    %4997 = vmatpush.bf16.msra.mxu0 %v4687
    %4998 = vmatpush.bf16.msra.mxu0 %v4683
    %4999 = vmatpush.bf16.msra.mxu0 %v4679
    %5000 = vmatpush.bf16.msra.mxu0 %v4675
    %5001 = vmatmul.bf16.gmra.mxu0 %v4156
    %v5002 = vpop.f32.mrf.mxu0
    %v5003 = vadd.f32 %v4289, %v5002
    %v5004 = vpop.f32.mrf.mxu0
    %5005 = vdwg.mxu0
    %5006 = vmatpush.bf16.msra.mxu0 %v4735
    %5007 = vmatpush.bf16.msra.mxu0 %v4731
    %5008 = vmatpush.bf16.msra.mxu0 %v4727
    %5009 = vmatpush.bf16.msra.mxu0 %v4723
    %5010 = vmatpush.bf16.msra.mxu0 %v4719
    %5011 = vmatpush.bf16.msra.mxu0 %v4715
    %5012 = vmatpush.bf16.msra.mxu0 %v4711
    %5013 = vmatpush.bf16.msra.mxu0 %v4707
    %5014 = vmatmul.bf16.gmra.mxu0 %v4157
    %v5015 = vpop.f32.mrf.mxu0
    %v5016 = vadd.f32 %v5003, %v5015
    %v5017 = vpop.f32.mrf.mxu0
    %5018 = vdwg.mxu0
    %5019 = vmatpush.bf16.msra.mxu0 %v4767
    %5020 = vmatpush.bf16.msra.mxu0 %v4763
    %5021 = vmatpush.bf16.msra.mxu0 %v4759
    %5022 = vmatpush.bf16.msra.mxu0 %v4755
    %5023 = vmatpush.bf16.msra.mxu0 %v4751
    %5024 = vmatpush.bf16.msra.mxu0 %v4747
    %5025 = vmatpush.bf16.msra.mxu0 %v4743
    %5026 = vmatpush.bf16.msra.mxu0 %v4739
    %5027 = vmatmul.bf16.gmra.mxu0 %v4158
    %v5028 = vpop.f32.mrf.mxu0
    %v5029 = vadd.f32 %v5016, %v5028
    %v5030 = vpop.f32.mrf.mxu0
    %5031 = vdwg.mxu0
    %5032 = vmatpush.bf16.msra.mxu0 %v4933
    %5033 = vmatpush.bf16.msra.mxu0 %v4795
    %5034 = vmatpush.bf16.msra.mxu0 %v4791
    %5035 = vmatpush.bf16.msra.mxu0 %v4787
    %5036 = vmatpush.bf16.msra.mxu0 %v4783
    %5037 = vmatpush.bf16.msra.mxu0 %v4779
    %5038 = vmatpush.bf16.msra.mxu0 %v4775
    %5039 = vmatpush.bf16.msra.mxu0 %v4771
    %5040 = vmatmul.bf16.gmra.mxu0 %v4927
    %v5041 = vpop.f32.mrf.mxu0
    %v5042 = vadd.f32 %v5029, %v5041
    %v5043 = vpop.f32.mrf.mxu0
    %5044 = vdwg.mxu0
    %5045 = vmatpush.bf16.msra.mxu0 %v4704
    %5046 = vmatpush.bf16.msra.mxu0 %v4700
    %5047 = vmatpush.bf16.msra.mxu0 %v4696
    %5048 = vmatpush.bf16.msra.mxu0 %v4692
    %5049 = vmatpush.bf16.msra.mxu0 %v4688
    %5050 = vmatpush.bf16.msra.mxu0 %v4684
    %5051 = vmatpush.bf16.msra.mxu0 %v4680
    %5052 = vmatpush.bf16.msra.mxu0 %v4676
    %5053 = vmatmul.bf16.gmra.mxu0 %v4156
    %v5054 = vpop.f32.mrf.mxu0
    %v5055 = vadd.f32 %v4290, %v5054
    %v5056 = vpop.f32.mrf.mxu0
    %5057 = vdwg.mxu0
    %5058 = vmatpush.bf16.msra.mxu0 %v4736
    %5059 = vmatpush.bf16.msra.mxu0 %v4732
    %5060 = vmatpush.bf16.msra.mxu0 %v4728
    %5061 = vmatpush.bf16.msra.mxu0 %v4724
    %5062 = vmatpush.bf16.msra.mxu0 %v4720
    %5063 = vmatpush.bf16.msra.mxu0 %v4716
    %5064 = vmatpush.bf16.msra.mxu0 %v4712
    %5065 = vmatpush.bf16.msra.mxu0 %v4708
    %5066 = vmatmul.bf16.gmra.mxu0 %v4157
    %v5067 = vpop.f32.mrf.mxu0
    %v5068 = vadd.f32 %v5055, %v5067
    %v5069 = vpop.f32.mrf.mxu0
    %5070 = vdwg.mxu0
    %5071 = vmatpush.bf16.msra.mxu0 %v4768
    %5072 = vmatpush.bf16.msra.mxu0 %v4764
    %5073 = vmatpush.bf16.msra.mxu0 %v4760
    %5074 = vmatpush.bf16.msra.mxu0 %v4756
    %5075 = vmatpush.bf16.msra.mxu0 %v4752
    %5076 = vmatpush.bf16.msra.mxu0 %v4748
    %5077 = vmatpush.bf16.msra.mxu0 %v4744
    %5078 = vmatpush.bf16.msra.mxu0 %v4740
    %5079 = vmatmul.bf16.gmra.mxu0 %v4158
    %v5080 = vpop.f32.mrf.mxu0
    %v5081 = vadd.f32 %v5068, %v5080
    %v5082 = vpop.f32.mrf.mxu0
    %5083 = vdwg.mxu0
    %5084 = vmatpush.bf16.msra.mxu0 %v4936
    %5085 = vmatpush.bf16.msra.mxu0 %v4796
    %5086 = vmatpush.bf16.msra.mxu0 %v4792
    %5087 = vmatpush.bf16.msra.mxu0 %v4788
    %5088 = vmatpush.bf16.msra.mxu0 %v4784
    %5089 = vmatpush.bf16.msra.mxu0 %v4780
    %5090 = vmatpush.bf16.msra.mxu0 %v4776
    %5091 = vmatpush.bf16.msra.mxu0 %v4772
    %5092 = vmatmul.bf16.gmra.mxu0 %v4927
    %v5093 = vpop.f32.mrf.mxu0
    %v5094 = vadd.f32 %v5081, %v5093
    %v5095 = vpop.f32.mrf.mxu0
    %5096 = vdwg.mxu0
    %5097 = vmatpush.bf16.msra.mxu0 %v4705
    %5098 = vmatpush.bf16.msra.mxu0 %v4701
    %5099 = vmatpush.bf16.msra.mxu0 %v4697
    %5100 = vmatpush.bf16.msra.mxu0 %v4693
    %5101 = vmatpush.bf16.msra.mxu0 %v4689
    %5102 = vmatpush.bf16.msra.mxu0 %v4685
    %5103 = vmatpush.bf16.msra.mxu0 %v4681
    %5104 = vmatpush.bf16.msra.mxu0 %v4677
    %5105 = vmatmul.bf16.gmra.mxu0 %v4156
    %v5106 = vpop.f32.mrf.mxu0
    %v5107 = vadd.f32 %v4291, %v5106
    %v5108 = vpop.f32.mrf.mxu0
    %5109 = vdwg.mxu0
    %5110 = vmatpush.bf16.msra.mxu0 %v4737
    %5111 = vmatpush.bf16.msra.mxu0 %v4733
    %5112 = vmatpush.bf16.msra.mxu0 %v4729
    %5113 = vmatpush.bf16.msra.mxu0 %v4725
    %5114 = vmatpush.bf16.msra.mxu0 %v4721
    %5115 = vmatpush.bf16.msra.mxu0 %v4717
    %5116 = vmatpush.bf16.msra.mxu0 %v4713
    %5117 = vmatpush.bf16.msra.mxu0 %v4709
    %5118 = vmatmul.bf16.gmra.mxu0 %v4157
    %v5119 = vpop.f32.mrf.mxu0
    %v5120 = vadd.f32 %v5107, %v5119
    %v5121 = vpop.f32.mrf.mxu0
    %5122 = vdwg.mxu0
    %5123 = vmatpush.bf16.msra.mxu0 %v4769
    %5124 = vmatpush.bf16.msra.mxu0 %v4765
    %5125 = vmatpush.bf16.msra.mxu0 %v4761
    %5126 = vmatpush.bf16.msra.mxu0 %v4757
    %5127 = vmatpush.bf16.msra.mxu0 %v4753
    %5128 = vmatpush.bf16.msra.mxu0 %v4749
    %5129 = vmatpush.bf16.msra.mxu0 %v4745
    %5130 = vmatpush.bf16.msra.mxu0 %v4741
    %5131 = vmatmul.bf16.gmra.mxu0 %v4158
    %v5132 = vpop.f32.mrf.mxu0
    %v5133 = vadd.f32 %v5120, %v5132
    %v5134 = vpop.f32.mrf.mxu0
    %5135 = vdwg.mxu0
    %5136 = vmatpush.bf16.msra.mxu0 %v4939
    %5137 = vmatpush.bf16.msra.mxu0 %v4797
    %5138 = vmatpush.bf16.msra.mxu0 %v4793
    %5139 = vmatpush.bf16.msra.mxu0 %v4789
    %5140 = vmatpush.bf16.msra.mxu0 %v4785
    %5141 = vmatpush.bf16.msra.mxu0 %v4781
    %5142 = vmatpush.bf16.msra.mxu0 %v4777
    %5143 = vmatpush.bf16.msra.mxu0 %v4773
    %5144 = vmatmul.bf16.gmra.mxu0 %v4927
    %v5145 = vpop.f32.mrf.mxu0
    %v5146 = vadd.f32 %v5133, %v5145
    %v5147 = vpop.f32.mrf.mxu0
    %5148 = vdwg.mxu0
    %v5149 = vtanh.pop %v4990
    %v5150 = vtanh.pop %v5042
    %v5151 = vtanh.pop %v5094
    %v5152 = vtanh.pop %v5146
    %v5153 = vpack.c.bf16 %v5149, %v5149
    %v5154 = vpack.c.bf16 %v5150, %v5150
    %v5155 = vpack.c.bf16 %v5151, %v5151
    %v5156 = vpack.c.bf16 %v5152, %v5152
    %v5157 = vld [vmem:[%s15] sm:$0xf]
    %v5158 = vld [vmem:[%s15 + $0x4] sm:$0xf]
    %v5159 = vld [vmem:[%s15 + $0x8] sm:$0xf]
    %v5160 = vld [vmem:[%s15 + $0xc] sm:$0xf]
    %v5161 = vld [vmem:[%s15 + $0x10] sm:$0xf]
    %v5162 = vld [vmem:[%s15 + $0x14] sm:$0xf]
    %v5163 = vld [vmem:[%s15 + $0x18] sm:$0xf]
    %v5164 = vld [vmem:[%s15 + $0x1c] sm:$0xf]
    %v5165 = vld [vmem:[%s15 + $0x20] sm:$0xf]
    %v5166 = vld [vmem:[%s15 + $0x24] sm:$0xf]
    %v5167 = vld [vmem:[%s15 + $0x28] sm:$0xf]
    %v5168 = vld [vmem:[%s15 + $0x2c] sm:$0xf]
    %v5169 = vld [vmem:[%s15 + $0x30] sm:$0xf]
    %v5170 = vld [vmem:[%s15 + $0x34] sm:$0xf]
    %v5171 = vld [vmem:[%s15 + $0x38] sm:$0xf]
    %v5172 = vld [vmem:[%s15 + $0x3c] sm:$0xf]
    %v5173 = vld [vmem:[%s15 + $0x40] sm:$0xf]
    %v5174 = vld [vmem:[%s15 + $0x44] sm:$0xf]
    %v5175 = vld [vmem:[%s15 + $0x48] sm:$0xf]
    %v5176 = vld [vmem:[%s15 + $0x4c] sm:$0xf]
    %v5177 = vld [vmem:[%s15 + $0x50] sm:$0xf]
    %v5178 = vld [vmem:[%s15 + $0x54] sm:$0xf]
    %v5179 = vld [vmem:[%s15 + $0x58] sm:$0xf]
    %v5180 = vld [vmem:[%s15 + $0x5c] sm:$0xf]
    %v5181 = vld [vmem:[%s15 + $0x60] sm:$0xf]
    %v5182 = vld [vmem:[%s15 + $0x64] sm:$0xf]
    %v5183 = vld [vmem:[%s15 + $0x68] sm:$0xf]
    %v5184 = vld [vmem:[%s15 + $0x6c] sm:$0xf]
    %v5185 = vld [vmem:[%s15 + $0x70] sm:$0xf]
    %v5186 = vld [vmem:[%s15 + $0x74] sm:$0xf]
    %v5187 = vld [vmem:[%s15 + $0x78] sm:$0xf]
    %v5188 = vld [vmem:[%s15 + $0x7c] sm:$0xf]
    %v5189 = vld [vmem:[%s15 + $0x80] sm:$0xf]
    %v5190 = vld [vmem:[%s15 + $0x84] sm:$0xf]
    %v5191 = vld [vmem:[%s15 + $0x88] sm:$0xf]
    %v5192 = vld [vmem:[%s15 + $0x8c] sm:$0xf]
    %v5193 = vld [vmem:[%s15 + $0x90] sm:$0xf]
    %v5194 = vld [vmem:[%s15 + $0x94] sm:$0xf]
    %v5195 = vld [vmem:[%s15 + $0x98] sm:$0xf]
    %v5196 = vld [vmem:[%s15 + $0x9c] sm:$0xf]
    %v5197 = vld [vmem:[%s15 + $0xa0] sm:$0xf]
    %v5198 = vld [vmem:[%s15 + $0xa4] sm:$0xf]
    %v5199 = vld [vmem:[%s15 + $0xa8] sm:$0xf]
    %v5200 = vld [vmem:[%s15 + $0xac] sm:$0xf]
    %v5201 = vld [vmem:[%s15 + $0xb0] sm:$0xf]
    %v5202 = vld [vmem:[%s15 + $0xb4] sm:$0xf]
    %v5203 = vld [vmem:[%s15 + $0xb8] sm:$0xf]
    %v5204 = vld [vmem:[%s15 + $0xbc] sm:$0xf]
    %v5205 = vld [vmem:[%s15 + $0xc0] sm:$0xf]
    %v5206 = vld [vmem:[%s15 + $0xc4] sm:$0xf]
    %v5207 = vld [vmem:[%s15 + $0xc8] sm:$0xf]
    %v5208 = vld [vmem:[%s15 + $0xcc] sm:$0xf]
    %v5209 = vld [vmem:[%s15 + $0xd0] sm:$0xf]
    %v5210 = vld [vmem:[%s15 + $0xd4] sm:$0xf]
    %v5211 = vld [vmem:[%s15 + $0xd8] sm:$0xf]
    %v5212 = vld [vmem:[%s15 + $0xdc] sm:$0xf]
    %v5213 = vld [vmem:[%s15 + $0xe0] sm:$0xf]
    %v5214 = vld [vmem:[%s15 + $0xe4] sm:$0xf]
    %v5215 = vld [vmem:[%s15 + $0xe8] sm:$0xf]
    %v5216 = vld [vmem:[%s15 + $0xec] sm:$0xf]
    %v5217 = vld [vmem:[%s15 + $0xf0] sm:$0xf]
    %v5218 = vld [vmem:[%s15 + $0xf4] sm:$0xf]
    %v5219 = vld [vmem:[%s15 + $0xf8] sm:$0x3]
    %v5220 = vld [vmem:[%s16] sm:$0x1]
    %v5222 = vperm.slane %v5220, 0
    %v5287 = vunpack.c.l.b16 %v5157
    %v5288 = vunpack.c.l.b16 %v5158
    %v5289 = vunpack.c.l.b16 %v5159
    %v5290 = vunpack.c.l.b16 %v5160
    %v5291 = vunpack.c.l.b16 %v5161
    %v5292 = vunpack.c.l.b16 %v5162
    %v5293 = vunpack.c.l.b16 %v5163
    %v5294 = vunpack.c.l.b16 %v5164
    %v5295 = vunpack.c.l.b16 %v5165
    %v5296 = vunpack.c.l.b16 %v5166
    %v5297 = vunpack.c.l.b16 %v5167
    %v5298 = vunpack.c.l.b16 %v5168
    %v5299 = vunpack.c.l.b16 %v5169
    %v5300 = vunpack.c.l.b16 %v5170
    %v5301 = vunpack.c.l.b16 %v5171
    %v5302 = vunpack.c.l.b16 %v5172
    %v5303 = vunpack.c.l.b16 %v5173
    %v5304 = vunpack.c.l.b16 %v5174
    %v5305 = vunpack.c.l.b16 %v5175
    %v5306 = vunpack.c.l.b16 %v5176
    %v5307 = vunpack.c.l.b16 %v5177
    %v5308 = vunpack.c.l.b16 %v5178
    %v5309 = vunpack.c.l.b16 %v5179
    %v5310 = vunpack.c.l.b16 %v5180
    %v5311 = vunpack.c.l.b16 %v5181
    %v5312 = vunpack.c.l.b16 %v5182
    %v5313 = vunpack.c.l.b16 %v5183
    %v5314 = vunpack.c.l.b16 %v5184
    %v5315 = vunpack.c.l.b16 %v5185
    %v5316 = vunpack.c.l.b16 %v5186
    %v5317 = vunpack.c.l.b16 %v5187
    %v5318 = vunpack.c.l.b16 %v5188
    %v5319 = vunpack.c.l.b16 %v5189
    %v5320 = vunpack.c.l.b16 %v5190
    %v5321 = vunpack.c.l.b16 %v5191
    %v5322 = vunpack.c.l.b16 %v5192
    %v5323 = vunpack.c.l.b16 %v5193
    %v5324 = vunpack.c.l.b16 %v5194
    %v5325 = vunpack.c.l.b16 %v5195
    %v5326 = vunpack.c.l.b16 %v5196
    %v5327 = vunpack.c.l.b16 %v5197
    %v5328 = vunpack.c.l.b16 %v5198
    %v5329 = vunpack.c.l.b16 %v5199
    %v5330 = vunpack.c.l.b16 %v5200
    %v5331 = vunpack.c.l.b16 %v5201
    %v5332 = vunpack.c.l.b16 %v5202
    %v5333 = vunpack.c.l.b16 %v5203
    %v5334 = vunpack.c.l.b16 %v5204
    %v5335 = vunpack.c.l.b16 %v5205
    %v5336 = vunpack.c.l.b16 %v5206
    %v5337 = vunpack.c.l.b16 %v5207
    %v5338 = vunpack.c.l.b16 %v5208
    %v5339 = vunpack.c.l.b16 %v5209
    %v5340 = vunpack.c.l.b16 %v5210
    %v5341 = vunpack.c.l.b16 %v5211
    %v5342 = vunpack.c.l.b16 %v5212
    %v5343 = vunpack.c.l.b16 %v5213
    %v5344 = vunpack.c.l.b16 %v5214
    %v5345 = vunpack.c.l.b16 %v5215
    %v5346 = vunpack.c.l.b16 %v5216
    %v5347 = vunpack.c.l.b16 %v5217
    %v5348 = vunpack.c.l.b16 %v5218
    %v5349 = vunpack.c.l.b16 %v5219
    %v5350 = vpack.c.b16 %v5288, %v5287
    %v5351 = vpack.c.b16 %v5290, %v5289
    %v5352 = vpack.c.b16 %v5292, %v5291
    %v5353 = vpack.c.b16 %v5294, %v5293
    %v5354 = vpack.c.b16 %v5296, %v5295
    %v5355 = vpack.c.b16 %v5298, %v5297
    %v5356 = vpack.c.b16 %v5300, %v5299
    %v5357 = vpack.c.b16 %v5302, %v5301
    %v5358 = vpack.c.b16 %v5304, %v5303
    %v5359 = vpack.c.b16 %v5306, %v5305
    %v5360 = vpack.c.b16 %v5308, %v5307
    %v5361 = vpack.c.b16 %v5310, %v5309
    %v5362 = vpack.c.b16 %v5312, %v5311
    %v5363 = vpack.c.b16 %v5314, %v5313
    %v5364 = vpack.c.b16 %v5316, %v5315
    %v5365 = vpack.c.b16 %v5318, %v5317
    %v5366 = vpack.c.b16 %v5320, %v5319
    %v5367 = vpack.c.b16 %v5322, %v5321
    %v5368 = vpack.c.b16 %v5324, %v5323
    %v5369 = vpack.c.b16 %v5326, %v5325
    %v5370 = vpack.c.b16 %v5328, %v5327
    %v5371 = vpack.c.b16 %v5330, %v5329
    %v5372 = vpack.c.b16 %v5332, %v5331
    %v5373 = vpack.c.b16 %v5334, %v5333
    %v5374 = vpack.c.b16 %v5336, %v5335
    %v5375 = vpack.c.b16 %v5338, %v5337
    %v5376 = vpack.c.b16 %v5340, %v5339
    %v5377 = vpack.c.b16 %v5342, %v5341
    %v5378 = vpack.c.b16 %v5344, %v5343
    %v5379 = vpack.c.b16 %v5346, %v5345
    %v5380 = vpack.c.b16 %v5348, %v5347
    %v5381 = vpack.c.b16 %v5349, %v5349
    %v5414 = vsel %vm1549, %v5156, 0
    %v5417 = vsel %vm606, %v5381, 0
    %5419 = vmatpush.bf16.msra.mxu0 %v5357
    %5420 = vmatpush.bf16.msra.mxu0 %v5356
    %5421 = vmatpush.bf16.msra.mxu0 %v5355
    %5422 = vmatpush.bf16.msra.mxu0 %v5354
    %5423 = vmatpush.bf16.msra.mxu0 %v5353
    %5424 = vmatpush.bf16.msra.mxu0 %v5352
    %5425 = vmatpush.bf16.msra.mxu0 %v5351
    %5426 = vmatpush.bf16.msra.mxu0 %v5350
    %5427 = vmatmul.bf16.gmra.mxu0 %v5153
    %v5428 = vpop.f32.mrf.mxu0
    %v5429 = vadd.f32 %v5222, %v5428
    %v5430 = vpop.f32.mrf.mxu0
    %5431 = vdwg.mxu0
    %5432 = vmatpush.bf16.msra.mxu0 %v5365
    %5433 = vmatpush.bf16.msra.mxu0 %v5364
    %5434 = vmatpush.bf16.msra.mxu0 %v5363
    %5435 = vmatpush.bf16.msra.mxu0 %v5362
    %5436 = vmatpush.bf16.msra.mxu0 %v5361
    %5437 = vmatpush.bf16.msra.mxu0 %v5360
    %5438 = vmatpush.bf16.msra.mxu0 %v5359
    %5439 = vmatpush.bf16.msra.mxu0 %v5358
    %5440 = vmatmul.bf16.gmra.mxu0 %v5154
    %v5441 = vpop.f32.mrf.mxu0
    %v5442 = vadd.f32 %v5429, %v5441
    %v5443 = vpop.f32.mrf.mxu0
    %5444 = vdwg.mxu0
    %5445 = vmatpush.bf16.msra.mxu0 %v5373
    %5446 = vmatpush.bf16.msra.mxu0 %v5372
    %5447 = vmatpush.bf16.msra.mxu0 %v5371
    %5448 = vmatpush.bf16.msra.mxu0 %v5370
    %5449 = vmatpush.bf16.msra.mxu0 %v5369
    %5450 = vmatpush.bf16.msra.mxu0 %v5368
    %5451 = vmatpush.bf16.msra.mxu0 %v5367
    %5452 = vmatpush.bf16.msra.mxu0 %v5366
    %5453 = vmatmul.bf16.gmra.mxu0 %v5155
    %v5454 = vpop.f32.mrf.mxu0
    %v5455 = vadd.f32 %v5442, %v5454
    %v5456 = vpop.f32.mrf.mxu0
    %5457 = vdwg.mxu0
    %5458 = vmatpush.bf16.msra.mxu0 %v5417
    %5459 = vmatpush.bf16.msra.mxu0 %v5380
    %5460 = vmatpush.bf16.msra.mxu0 %v5379
    %5461 = vmatpush.bf16.msra.mxu0 %v5378
    %5462 = vmatpush.bf16.msra.mxu0 %v5377
    %5463 = vmatpush.bf16.msra.mxu0 %v5376
    %5464 = vmatpush.bf16.msra.mxu0 %v5375
    %5465 = vmatpush.bf16.msra.mxu0 %v5374
    %5466 = vmatmul.bf16.gmra.mxu0 %v5414
    %v5467 = vpop.f32.mrf.mxu0
    %v5468 = vadd.f32 %v5455, %v5467
    %v5469 = vpop.f32.mrf.mxu0
    %5470 = vdwg.mxu0
    %v5471 = vmul.f32 %v5468, 0.5
    %v5472 = vtanh.pop %v5471
    %v5473 = vadd.f32 %v5472, 1.0
    %v5474 = vmul.f32 %v5473, 0.5
    %v5475 = vpack.c.bf16 %v5474, %v5474
    %v5476 = vld [vmem:[#allocation11] sm:$0xff]
    %v5477 = vld [vmem:[#allocation11 + $0x8] sm:$0xff]
    %v5478 = vld [vmem:[#allocation11 + $0x10] sm:$0xff]
    %v5479 = vld [vmem:[#allocation11 + $0x18] sm:$0xff]
    %v5480 = vld [vmem:[#allocation11 + $0x20] sm:$0xff]
    %v5481 = vld [vmem:[#allocation11 + $0x28] sm:$0xff]
    %v5482 = vld [vmem:[#allocation11 + $0x30] sm:$0xff]
    %v5483 = vld [vmem:[#allocation11 + $0x38] sm:$0xff]
    %v5484 = vld [vmem:[#allocation11 + $0x40] sm:$0xff]
    %v5485 = vld [vmem:[#allocation11 + $0x48] sm:$0xff]
    %v5486 = vld [vmem:[#allocation11 + $0x50] sm:$0xff]
    %v5487 = vld [vmem:[#allocation11 + $0x58] sm:$0xff]
    %v5488 = vld [vmem:[#allocation11 + $0x60] sm:$0xff]
    %v5489 = vld [vmem:[#allocation11 + $0x68] sm:$0xff]
    %v5490 = vld [vmem:[#allocation11 + $0x70] sm:$0xff]
    %v5491 = vld [vmem:[#allocation11 + $0x78] sm:$0xff]
    %v5492 = vld [vmem:[#allocation11 + $0x80] sm:$0xff]
    %v5493 = vld [vmem:[#allocation11 + $0x88] sm:$0xff]
    %v5494 = vld [vmem:[#allocation11 + $0x90] sm:$0xff]
    %v5495 = vld [vmem:[#allocation11 + $0x98] sm:$0xff]
    %v5496 = vld [vmem:[#allocation11 + $0xa0] sm:$0xff]
    %v5497 = vld [vmem:[#allocation11 + $0xa8] sm:$0xff]
    %v5498 = vld [vmem:[#allocation11 + $0xb0] sm:$0xff]
    %v5499 = vld [vmem:[#allocation11 + $0xb8] sm:$0xff]
    %v5500 = vld [vmem:[#allocation11 + $0xc0] sm:$0xff]
    %v5501 = vld [vmem:[#allocation11 + $0xc8] sm:$0xff]
    %v5502 = vld [vmem:[#allocation11 + $0xd0] sm:$0xff]
    %v5503 = vld [vmem:[#allocation11 + $0xd8] sm:$0xff]
    %v5504 = vld [vmem:[#allocation11 + $0xe0] sm:$0xff]
    %v5505 = vld [vmem:[#allocation11 + $0xe8] sm:$0xff]
    %v5506 = vld [vmem:[#allocation11 + $0xf0] sm:$0xff]
    %v5507 = vld [vmem:[#allocation11 + $0xf8] sm:$0xff]
    %v5508 = vld [vmem:[#allocation11 + $0x100] sm:$0xff]
    %v5509 = vld [vmem:[#allocation11 + $0x108] sm:$0xff]
    %v5510 = vld [vmem:[#allocation11 + $0x110] sm:$0xff]
    %v5511 = vld [vmem:[#allocation11 + $0x118] sm:$0xff]
    %v5512 = vld [vmem:[#allocation11 + $0x120] sm:$0xff]
    %v5513 = vld [vmem:[#allocation11 + $0x128] sm:$0xff]
    %v5514 = vld [vmem:[#allocation11 + $0x130] sm:$0xff]
    %v5515 = vld [vmem:[#allocation11 + $0x138] sm:$0xff]
    %v5516 = vld [vmem:[#allocation11 + $0x140] sm:$0xff]
    %v5517 = vld [vmem:[#allocation11 + $0x148] sm:$0xff]
    %v5518 = vld [vmem:[#allocation11 + $0x150] sm:$0xff]
    %v5519 = vld [vmem:[#allocation11 + $0x158] sm:$0xff]
    %v5520 = vld [vmem:[#allocation11 + $0x160] sm:$0xff]
    %v5521 = vld [vmem:[#allocation11 + $0x168] sm:$0xff]
    %v5522 = vld [vmem:[#allocation11 + $0x170] sm:$0xff]
    %v5523 = vld [vmem:[#allocation11 + $0x178] sm:$0xff]
    %v5524 = vld [vmem:[#allocation11 + $0x180] sm:$0xff]
    %v5525 = vld [vmem:[#allocation11 + $0x188] sm:$0xff]
    %v5526 = vld [vmem:[#allocation11 + $0x190] sm:$0xff]
    %v5527 = vld [vmem:[#allocation11 + $0x198] sm:$0xff]
    %v5528 = vld [vmem:[#allocation11 + $0x1a0] sm:$0xff]
    %v5529 = vld [vmem:[#allocation11 + $0x1a8] sm:$0xff]
    %v5530 = vld [vmem:[#allocation11 + $0x1b0] sm:$0xff]
    %v5531 = vld [vmem:[#allocation11 + $0x1b8] sm:$0xff]
    %v5532 = vld [vmem:[#allocation11 + $0x1c0] sm:$0xff]
    %v5533 = vld [vmem:[#allocation11 + $0x1c8] sm:$0xff]
    %v5534 = vld [vmem:[#allocation11 + $0x1d0] sm:$0xff]
    %v5535 = vld [vmem:[#allocation11 + $0x1d8] sm:$0xff]
    %v5536 = vld [vmem:[#allocation11 + $0x1e0] sm:$0x11]
    %v5537 = vld [vmem:[#allocation11 + $0x1e8] sm:$0x11]
    %v5538 = vld [vmem:[#allocation11 + $0x1f0] sm:$0x11]
    %v5539 = vld [vmem:[#allocation11 + $0x1f8] sm:$0x11]
    %v5540 = vld [vmem:[#allocation11 + $0x200] sm:$0x11]
    %v5541 = vld [vmem:[#allocation11 + $0x208] sm:$0x11]
    %v5542 = vld [vmem:[#allocation11 + $0x210] sm:$0x11]
    %v5543 = vld [vmem:[#allocation11 + $0x218] sm:$0x11]
    %v5544 = vld [vmem:[#allocation11 + $0x220] sm:$0x11]
    %v5545 = vld [vmem:[#allocation11 + $0x228] sm:$0x11]
    %v5546 = vld [vmem:[%s18] sm:$0xff]
    %v5547 = vld [vmem:[%s18 + $0x8] sm:$0xff]
    %v5548 = vld [vmem:[%s18 + $0x10] sm:$0xf]
    %v5552 = vperm.slane %v5546, 0
    %v5553 = vperm.slane %v5546, 1
    %v5554 = vperm.slane %v5546, 2
    %v5555 = vperm.slane %v5546, 3
    %v5556 = vperm.slane %v5546, 4
    %v5557 = vperm.slane %v5546, 5
    %v5558 = vperm.slane %v5546, 6
    %v5559 = vperm.slane %v5546, 7
    %v5560 = vperm.slane %v5547, 0
    %v5561 = vperm.slane %v5547, 1
    %v5562 = vperm.slane %v5547, 2
    %v5563 = vperm.slane %v5547, 3
    %v5564 = vperm.slane %v5547, 4
    %v5565 = vperm.slane %v5547, 5
    %v5566 = vperm.slane %v5547, 6
    %v5567 = vperm.slane %v5547, 7
    %v5568 = vperm.slane %v5548, 0
    %v5569 = vperm.slane %v5548, 1
    %v5570 = vperm.slane %v5548, 2
    %v5571 = vperm.slane %v5548, 3
    %v5662 = vunpack.c.l.b16 %v5476
    %v5663 = vunpack.c.h.b16 %v5476
    %v5664 = vunpack.c.l.b16 %v5477
    %v5665 = vunpack.c.h.b16 %v5477
    %v5666 = vunpack.c.l.b16 %v5478
    %v5667 = vunpack.c.h.b16 %v5478
    %v5668 = vunpack.c.l.b16 %v5479
    %v5669 = vunpack.c.h.b16 %v5479
    %v5670 = vunpack.c.l.b16 %v5480
    %v5671 = vunpack.c.h.b16 %v5480
    %v5672 = vunpack.c.l.b16 %v5481
    %v5673 = vunpack.c.h.b16 %v5481
    %v5674 = vunpack.c.l.b16 %v5482
    %v5675 = vunpack.c.h.b16 %v5482
    %v5676 = vunpack.c.l.b16 %v5483
    %v5677 = vunpack.c.h.b16 %v5483
    %v5678 = vunpack.c.l.b16 %v5484
    %v5679 = vunpack.c.h.b16 %v5484
    %v5680 = vunpack.c.l.b16 %v5485
    %v5681 = vunpack.c.h.b16 %v5485
    %v5682 = vunpack.c.l.b16 %v5486
    %v5683 = vunpack.c.h.b16 %v5486
    %v5684 = vunpack.c.l.b16 %v5487
    %v5685 = vunpack.c.h.b16 %v5487
    %v5686 = vunpack.c.l.b16 %v5488
    %v5687 = vunpack.c.h.b16 %v5488
    %v5688 = vunpack.c.l.b16 %v5489
    %v5689 = vunpack.c.h.b16 %v5489
    %v5690 = vunpack.c.l.b16 %v5490
    %v5691 = vunpack.c.h.b16 %v5490
    %v5692 = vunpack.c.l.b16 %v5491
    %v5693 = vunpack.c.h.b16 %v5491
    %v5694 = vunpack.c.l.b16 %v5492
    %v5695 = vunpack.c.h.b16 %v5492
    %v5696 = vunpack.c.l.b16 %v5493
    %v5697 = vunpack.c.h.b16 %v5493
    %v5698 = vunpack.c.l.b16 %v5494
    %v5699 = vunpack.c.h.b16 %v5494
    %v5700 = vunpack.c.l.b16 %v5495
    %v5701 = vunpack.c.h.b16 %v5495
    %v5702 = vunpack.c.l.b16 %v5496
    %v5703 = vunpack.c.h.b16 %v5496
    %v5704 = vunpack.c.l.b16 %v5497
    %v5705 = vunpack.c.h.b16 %v5497
    %v5706 = vunpack.c.l.b16 %v5498
    %v5707 = vunpack.c.h.b16 %v5498
    %v5708 = vunpack.c.l.b16 %v5499
    %v5709 = vunpack.c.h.b16 %v5499
    %v5710 = vunpack.c.l.b16 %v5500
    %v5711 = vunpack.c.h.b16 %v5500
    %v5712 = vunpack.c.l.b16 %v5501
    %v5713 = vunpack.c.h.b16 %v5501
    %v5714 = vunpack.c.l.b16 %v5502
    %v5715 = vunpack.c.h.b16 %v5502
    %v5716 = vunpack.c.l.b16 %v5503
    %v5717 = vunpack.c.h.b16 %v5503
    %v5718 = vunpack.c.l.b16 %v5504
    %v5719 = vunpack.c.h.b16 %v5504
    %v5720 = vunpack.c.l.b16 %v5505
    %v5721 = vunpack.c.h.b16 %v5505
    %v5722 = vunpack.c.l.b16 %v5506
    %v5723 = vunpack.c.h.b16 %v5506
    %v5724 = vunpack.c.l.b16 %v5507
    %v5725 = vunpack.c.h.b16 %v5507
    %v5726 = vunpack.c.l.b16 %v5508
    %v5727 = vunpack.c.h.b16 %v5508
    %v5728 = vunpack.c.l.b16 %v5509
    %v5729 = vunpack.c.h.b16 %v5509
    %v5730 = vunpack.c.l.b16 %v5510
    %v5731 = vunpack.c.h.b16 %v5510
    %v5732 = vunpack.c.l.b16 %v5511
    %v5733 = vunpack.c.h.b16 %v5511
    %v5734 = vunpack.c.l.b16 %v5512
    %v5735 = vunpack.c.h.b16 %v5512
    %v5736 = vunpack.c.l.b16 %v5513
    %v5737 = vunpack.c.h.b16 %v5513
    %v5738 = vunpack.c.l.b16 %v5514
    %v5739 = vunpack.c.h.b16 %v5514
    %v5740 = vunpack.c.l.b16 %v5515
    %v5741 = vunpack.c.h.b16 %v5515
    %v5742 = vunpack.c.l.b16 %v5516
    %v5743 = vunpack.c.h.b16 %v5516
    %v5744 = vunpack.c.l.b16 %v5517
    %v5745 = vunpack.c.h.b16 %v5517
    %v5746 = vunpack.c.l.b16 %v5518
    %v5747 = vunpack.c.h.b16 %v5518
    %v5748 = vunpack.c.l.b16 %v5519
    %v5749 = vunpack.c.h.b16 %v5519
    %v5750 = vunpack.c.l.b16 %v5520
    %v5751 = vunpack.c.h.b16 %v5520
    %v5752 = vunpack.c.l.b16 %v5521
    %v5753 = vunpack.c.h.b16 %v5521
    %v5754 = vunpack.c.l.b16 %v5522
    %v5755 = vunpack.c.h.b16 %v5522
    %v5756 = vunpack.c.l.b16 %v5523
    %v5757 = vunpack.c.h.b16 %v5523
    %v5758 = vunpack.c.l.b16 %v5524
    %v5759 = vunpack.c.h.b16 %v5524
    %v5760 = vunpack.c.l.b16 %v5525
    %v5761 = vunpack.c.h.b16 %v5525
    %v5762 = vunpack.c.l.b16 %v5526
    %v5763 = vunpack.c.h.b16 %v5526
    %v5764 = vunpack.c.l.b16 %v5527
    %v5765 = vunpack.c.h.b16 %v5527
    %v5766 = vunpack.c.l.b16 %v5528
    %v5767 = vunpack.c.h.b16 %v5528
    %v5768 = vunpack.c.l.b16 %v5529
    %v5769 = vunpack.c.h.b16 %v5529
    %v5770 = vunpack.c.l.b16 %v5530
    %v5771 = vunpack.c.h.b16 %v5530
    %v5772 = vunpack.c.l.b16 %v5531
    %v5773 = vunpack.c.h.b16 %v5531
    %v5774 = vunpack.c.l.b16 %v5532
    %v5775 = vunpack.c.h.b16 %v5532
    %v5776 = vunpack.c.l.b16 %v5533
    %v5777 = vunpack.c.h.b16 %v5533
    %v5778 = vunpack.c.l.b16 %v5534
    %v5779 = vunpack.c.h.b16 %v5534
    %v5780 = vunpack.c.l.b16 %v5535
    %v5781 = vunpack.c.h.b16 %v5535
    %v5782 = vunpack.c.l.b16 %v5536
    %v5783 = vunpack.c.h.b16 %v5536
    %v5784 = vunpack.c.l.b16 %v5537
    %v5785 = vunpack.c.h.b16 %v5537
    %v5786 = vunpack.c.l.b16 %v5538
    %v5787 = vunpack.c.h.b16 %v5538
    %v5788 = vunpack.c.l.b16 %v5539
    %v5789 = vunpack.c.h.b16 %v5539
    %v5790 = vunpack.c.l.b16 %v5540
    %v5791 = vunpack.c.h.b16 %v5540
    %v5792 = vunpack.c.l.b16 %v5541
    %v5793 = vunpack.c.h.b16 %v5541
    %v5794 = vunpack.c.l.b16 %v5542
    %v5795 = vunpack.c.h.b16 %v5542
    %v5796 = vunpack.c.l.b16 %v5543
    %v5797 = vunpack.c.h.b16 %v5543
    %v5798 = vunpack.c.l.b16 %v5544
    %v5799 = vunpack.c.h.b16 %v5544
    %v5800 = vunpack.c.l.b16 %v5545
    %v5801 = vunpack.c.h.b16 %v5545
    %v5802 = vpack.c.b16 %v5682, %v5662
    %v5803 = vpack.c.b16 %v5683, %v5663
    %v5804 = vpack.c.b16 %v5684, %v5664
    %v5805 = vpack.c.b16 %v5685, %v5665
    %v5806 = vpack.c.b16 %v5686, %v5666
    %v5807 = vpack.c.b16 %v5687, %v5667
    %v5808 = vpack.c.b16 %v5688, %v5668
    %v5809 = vpack.c.b16 %v5689, %v5669
    %v5810 = vpack.c.b16 %v5690, %v5670
    %v5811 = vpack.c.b16 %v5691, %v5671
    %v5812 = vpack.c.b16 %v5692, %v5672
    %v5813 = vpack.c.b16 %v5693, %v5673
    %v5814 = vpack.c.b16 %v5694, %v5674
    %v5815 = vpack.c.b16 %v5695, %v5675
    %v5816 = vpack.c.b16 %v5696, %v5676
    %v5817 = vpack.c.b16 %v5697, %v5677
    %v5818 = vpack.c.b16 %v5698, %v5678
    %v5819 = vpack.c.b16 %v5699, %v5679
    %v5820 = vpack.c.b16 %v5700, %v5680
    %v5821 = vpack.c.b16 %v5701, %v5681
    %v5822 = vpack.c.b16 %v5722, %v5702
    %v5823 = vpack.c.b16 %v5723, %v5703
    %v5824 = vpack.c.b16 %v5724, %v5704
    %v5825 = vpack.c.b16 %v5725, %v5705
    %v5826 = vpack.c.b16 %v5726, %v5706
    %v5827 = vpack.c.b16 %v5727, %v5707
    %v5828 = vpack.c.b16 %v5728, %v5708
    %v5829 = vpack.c.b16 %v5729, %v5709
    %v5830 = vpack.c.b16 %v5730, %v5710
    %v5831 = vpack.c.b16 %v5731, %v5711
    %v5832 = vpack.c.b16 %v5732, %v5712
    %v5833 = vpack.c.b16 %v5733, %v5713
    %v5834 = vpack.c.b16 %v5734, %v5714
    %v5835 = vpack.c.b16 %v5735, %v5715
    %v5836 = vpack.c.b16 %v5736, %v5716
    %v5837 = vpack.c.b16 %v5737, %v5717
    %v5838 = vpack.c.b16 %v5738, %v5718
    %v5839 = vpack.c.b16 %v5739, %v5719
    %v5840 = vpack.c.b16 %v5740, %v5720
    %v5841 = vpack.c.b16 %v5741, %v5721
    %v5842 = vpack.c.b16 %v5762, %v5742
    %v5843 = vpack.c.b16 %v5763, %v5743
    %v5844 = vpack.c.b16 %v5764, %v5744
    %v5845 = vpack.c.b16 %v5765, %v5745
    %v5846 = vpack.c.b16 %v5766, %v5746
    %v5847 = vpack.c.b16 %v5767, %v5747
    %v5848 = vpack.c.b16 %v5768, %v5748
    %v5849 = vpack.c.b16 %v5769, %v5749
    %v5850 = vpack.c.b16 %v5770, %v5750
    %v5851 = vpack.c.b16 %v5771, %v5751
    %v5852 = vpack.c.b16 %v5772, %v5752
    %v5853 = vpack.c.b16 %v5773, %v5753
    %v5854 = vpack.c.b16 %v5774, %v5754
    %v5855 = vpack.c.b16 %v5775, %v5755
    %v5856 = vpack.c.b16 %v5776, %v5756
    %v5857 = vpack.c.b16 %v5777, %v5757
    %v5858 = vpack.c.b16 %v5778, %v5758
    %v5859 = vpack.c.b16 %v5779, %v5759
    %v5860 = vpack.c.b16 %v5780, %v5760
    %v5861 = vpack.c.b16 %v5781, %v5761
    %v5862 = vpack.c.b16 %v5782, %v5782
    %v5863 = vpack.c.b16 %v5783, %v5783
    %v5864 = vpack.c.b16 %v5784, %v5784
    %v5865 = vpack.c.b16 %v5785, %v5785
    %v5866 = vpack.c.b16 %v5786, %v5786
    %v5867 = vpack.c.b16 %v5787, %v5787
    %v5868 = vpack.c.b16 %v5788, %v5788
    %v5869 = vpack.c.b16 %v5789, %v5789
    %v5870 = vpack.c.b16 %v5790, %v5790
    %v5871 = vpack.c.b16 %v5791, %v5791
    %v5872 = vpack.c.b16 %v5792, %v5792
    %v5873 = vpack.c.b16 %v5793, %v5793
    %v5874 = vpack.c.b16 %v5794, %v5794
    %v5875 = vpack.c.b16 %v5795, %v5795
    %v5876 = vpack.c.b16 %v5796, %v5796
    %v5877 = vpack.c.b16 %v5797, %v5797
    %v5878 = vpack.c.b16 %v5798, %v5798
    %v5879 = vpack.c.b16 %v5799, %v5799
    %v5880 = vpack.c.b16 %v5800, %v5800
    %v5881 = vpack.c.b16 %v5801, %v5801
    %vm5942 = vcmask 408576
    %v5944 = vsel %vm5942, %v5475, 0
    %vm5946 = vcmask 1040384
    %v5948 = vsel %vm5946, %v5862, 0
    %v5951 = vsel %vm5946, %v5863, 0
    %v5954 = vsel %vm5946, %v5864, 0
    %v5957 = vsel %vm5946, %v5865, 0
    %v5960 = vsel %vm5946, %v5866, 0
    %v5963 = vsel %vm5946, %v5867, 0
    %v5966 = vsel %vm5946, %v5868, 0
    %v5969 = vsel %vm5946, %v5869, 0
    %v5972 = vsel %vm5946, %v5870, 0
    %v5975 = vsel %vm5946, %v5871, 0
    %v5978 = vsel %vm5946, %v5872, 0
    %v5981 = vsel %vm5946, %v5873, 0
    %v5984 = vsel %vm5946, %v5874, 0
    %v5987 = vsel %vm5946, %v5875, 0
    %v5990 = vsel %vm5946, %v5876, 0
    %v5993 = vsel %vm5946, %v5877, 0
    %v5996 = vsel %vm5946, %v5878, 0
    %v5999 = vsel %vm5946, %v5879, 0
    %v6002 = vsel %vm5946, %v5880, 0
    %v6005 = vsel %vm5946, %v5881, 0
    %6007 = vmatpush.bf16.msra.mxu0 0
    %6008 = vmatpush.bf16.msra.mxu0 0
    %6009 = vmatpush.bf16.msra.mxu0 0
    %6010 = vmatpush.bf16.msra.mxu0 0
    %6011 = vmatpush.bf16.msra.mxu0 %v5948
    %6012 = vmatpush.bf16.msra.mxu0 %v5842
    %6013 = vmatpush.bf16.msra.mxu0 %v5822
    %6014 = vmatpush.bf16.msra.mxu0 %v5802
    %6015 = vmatmul.bf16.gmra.mxu0 %v5944
    %v6016 = vpop.f32.mrf.mxu0
    %v6017 = vadd.f32 %v5552, %v6016
    %v6018 = vpop.f32.mrf.mxu0
    %6019 = vdwg.mxu0
    %6020 = vmatpush.bf16.msra.mxu0 0
    %6021 = vmatpush.bf16.msra.mxu0 0
    %6022 = vmatpush.bf16.msra.mxu0 0
    %6023 = vmatpush.bf16.msra.mxu0 0
    %6024 = vmatpush.bf16.msra.mxu0 %v5951
    %6025 = vmatpush.bf16.msra.mxu0 %v5843
    %6026 = vmatpush.bf16.msra.mxu0 %v5823
    %6027 = vmatpush.bf16.msra.mxu0 %v5803
    %6028 = vmatmul.bf16.gmra.mxu0 %v5944
    %v6029 = vpop.f32.mrf.mxu0
    %v6030 = vadd.f32 %v5553, %v6029
    %v6031 = vpop.f32.mrf.mxu0
    %6032 = vdwg.mxu0
    %6033 = vmatpush.bf16.msra.mxu0 0
    %6034 = vmatpush.bf16.msra.mxu0 0
    %6035 = vmatpush.bf16.msra.mxu0 0
    %6036 = vmatpush.bf16.msra.mxu0 0
    %6037 = vmatpush.bf16.msra.mxu0 %v5954
    %6038 = vmatpush.bf16.msra.mxu0 %v5844
    %6039 = vmatpush.bf16.msra.mxu0 %v5824
    %6040 = vmatpush.bf16.msra.mxu0 %v5804
    %6041 = vmatmul.bf16.gmra.mxu0 %v5944
    %v6042 = vpop.f32.mrf.mxu0
    %v6043 = vadd.f32 %v5554, %v6042
    %v6044 = vpop.f32.mrf.mxu0
    %6045 = vdwg.mxu0
    %6046 = vmatpush.bf16.msra.mxu0 0
    %6047 = vmatpush.bf16.msra.mxu0 0
    %6048 = vmatpush.bf16.msra.mxu0 0
    %6049 = vmatpush.bf16.msra.mxu0 0
    %6050 = vmatpush.bf16.msra.mxu0 %v5957
    %6051 = vmatpush.bf16.msra.mxu0 %v5845
    %6052 = vmatpush.bf16.msra.mxu0 %v5825
    %6053 = vmatpush.bf16.msra.mxu0 %v5805
    %6054 = vmatmul.bf16.gmra.mxu0 %v5944
    %v6055 = vpop.f32.mrf.mxu0
    %v6056 = vadd.f32 %v5555, %v6055
    %v6057 = vpop.f32.mrf.mxu0
    %6058 = vdwg.mxu0
    %6059 = vmatpush.bf16.msra.mxu0 0
    %6060 = vmatpush.bf16.msra.mxu0 0
    %6061 = vmatpush.bf16.msra.mxu0 0
    %6062 = vmatpush.bf16.msra.mxu0 0
    %6063 = vmatpush.bf16.msra.mxu0 %v5960
    %6064 = vmatpush.bf16.msra.mxu0 %v5846
    %6065 = vmatpush.bf16.msra.mxu0 %v5826
    %6066 = vmatpush.bf16.msra.mxu0 %v5806
    %6067 = vmatmul.bf16.gmra.mxu0 %v5944
    %v6068 = vpop.f32.mrf.mxu0
    %v6069 = vadd.f32 %v5556, %v6068
    %v6070 = vpop.f32.mrf.mxu0
    %6071 = vdwg.mxu0
    %6072 = vmatpush.bf16.msra.mxu0 0
    %6073 = vmatpush.bf16.msra.mxu0 0
    %6074 = vmatpush.bf16.msra.mxu0 0
    %6075 = vmatpush.bf16.msra.mxu0 0
    %6076 = vmatpush.bf16.msra.mxu0 %v5963
    %6077 = vmatpush.bf16.msra.mxu0 %v5847
    %6078 = vmatpush.bf16.msra.mxu0 %v5827
    %6079 = vmatpush.bf16.msra.mxu0 %v5807
    %6080 = vmatmul.bf16.gmra.mxu0 %v5944
    %v6081 = vpop.f32.mrf.mxu0
    %v6082 = vadd.f32 %v5557, %v6081
    %v6083 = vpop.f32.mrf.mxu0
    %6084 = vdwg.mxu0
    %6085 = vmatpush.bf16.msra.mxu0 0
    %6086 = vmatpush.bf16.msra.mxu0 0
    %6087 = vmatpush.bf16.msra.mxu0 0
    %6088 = vmatpush.bf16.msra.mxu0 0
    %6089 = vmatpush.bf16.msra.mxu0 %v5966
    %6090 = vmatpush.bf16.msra.mxu0 %v5848
    %6091 = vmatpush.bf16.msra.mxu0 %v5828
    %6092 = vmatpush.bf16.msra.mxu0 %v5808
    %6093 = vmatmul.bf16.gmra.mxu0 %v5944
    %v6094 = vpop.f32.mrf.mxu0
    %v6095 = vadd.f32 %v5558, %v6094
    %v6096 = vpop.f32.mrf.mxu0
    %6097 = vdwg.mxu0
    %6098 = vmatpush.bf16.msra.mxu0 0
    %6099 = vmatpush.bf16.msra.mxu0 0
    %6100 = vmatpush.bf16.msra.mxu0 0
    %6101 = vmatpush.bf16.msra.mxu0 0
    %6102 = vmatpush.bf16.msra.mxu0 %v5969
    %6103 = vmatpush.bf16.msra.mxu0 %v5849
    %6104 = vmatpush.bf16.msra.mxu0 %v5829
    %6105 = vmatpush.bf16.msra.mxu0 %v5809
    %6106 = vmatmul.bf16.gmra.mxu0 %v5944
    %v6107 = vpop.f32.mrf.mxu0
    %v6108 = vadd.f32 %v5559, %v6107
    %v6109 = vpop.f32.mrf.mxu0
    %6110 = vdwg.mxu0
    %6111 = vmatpush.bf16.msra.mxu0 0
    %6112 = vmatpush.bf16.msra.mxu0 0
    %6113 = vmatpush.bf16.msra.mxu0 0
    %6114 = vmatpush.bf16.msra.mxu0 0
    %6115 = vmatpush.bf16.msra.mxu0 %v5972
    %6116 = vmatpush.bf16.msra.mxu0 %v5850
    %6117 = vmatpush.bf16.msra.mxu0 %v5830
    %6118 = vmatpush.bf16.msra.mxu0 %v5810
    %6119 = vmatmul.bf16.gmra.mxu0 %v5944
    %v6120 = vpop.f32.mrf.mxu0
    %v6121 = vadd.f32 %v5560, %v6120
    %v6122 = vpop.f32.mrf.mxu0
    %6123 = vdwg.mxu0
    %6124 = vmatpush.bf16.msra.mxu0 0
    %6125 = vmatpush.bf16.msra.mxu0 0
    %6126 = vmatpush.bf16.msra.mxu0 0
    %6127 = vmatpush.bf16.msra.mxu0 0
    %6128 = vmatpush.bf16.msra.mxu0 %v5975
    %6129 = vmatpush.bf16.msra.mxu0 %v5851
    %6130 = vmatpush.bf16.msra.mxu0 %v5831
    %6131 = vmatpush.bf16.msra.mxu0 %v5811
    %6132 = vmatmul.bf16.gmra.mxu0 %v5944
    %v6133 = vpop.f32.mrf.mxu0
    %v6134 = vadd.f32 %v5561, %v6133
    %v6135 = vpop.f32.mrf.mxu0
    %6136 = vdwg.mxu0
    %6137 = vmatpush.bf16.msra.mxu0 0
    %6138 = vmatpush.bf16.msra.mxu0 0
    %6139 = vmatpush.bf16.msra.mxu0 0
    %6140 = vmatpush.bf16.msra.mxu0 0
    %6141 = vmatpush.bf16.msra.mxu0 %v5978
    %6142 = vmatpush.bf16.msra.mxu0 %v5852
    %6143 = vmatpush.bf16.msra.mxu0 %v5832
    %6144 = vmatpush.bf16.msra.mxu0 %v5812
    %6145 = vmatmul.bf16.gmra.mxu0 %v5944
    %v6146 = vpop.f32.mrf.mxu0
    %v6147 = vadd.f32 %v5562, %v6146
    %v6148 = vpop.f32.mrf.mxu0
    %6149 = vdwg.mxu0
    %6150 = vmatpush.bf16.msra.mxu0 0
    %6151 = vmatpush.bf16.msra.mxu0 0
    %6152 = vmatpush.bf16.msra.mxu0 0
    %6153 = vmatpush.bf16.msra.mxu0 0
    %6154 = vmatpush.bf16.msra.mxu0 %v5981
    %6155 = vmatpush.bf16.msra.mxu0 %v5853
    %6156 = vmatpush.bf16.msra.mxu0 %v5833
    %6157 = vmatpush.bf16.msra.mxu0 %v5813
    %6158 = vmatmul.bf16.gmra.mxu0 %v5944
    %v6159 = vpop.f32.mrf.mxu0
    %v6160 = vadd.f32 %v5563, %v6159
    %v6161 = vpop.f32.mrf.mxu0
    %6162 = vdwg.mxu0
    %6163 = vmatpush.bf16.msra.mxu0 0
    %6164 = vmatpush.bf16.msra.mxu0 0
    %6165 = vmatpush.bf16.msra.mxu0 0
    %6166 = vmatpush.bf16.msra.mxu0 0
    %6167 = vmatpush.bf16.msra.mxu0 %v5984
    %6168 = vmatpush.bf16.msra.mxu0 %v5854
    %6169 = vmatpush.bf16.msra.mxu0 %v5834
    %6170 = vmatpush.bf16.msra.mxu0 %v5814
    %6171 = vmatmul.bf16.gmra.mxu0 %v5944
    %v6172 = vpop.f32.mrf.mxu0
    %v6173 = vadd.f32 %v5564, %v6172
    %v6174 = vpop.f32.mrf.mxu0
    %6175 = vdwg.mxu0
    %6176 = vmatpush.bf16.msra.mxu0 0
    %6177 = vmatpush.bf16.msra.mxu0 0
    %6178 = vmatpush.bf16.msra.mxu0 0
    %6179 = vmatpush.bf16.msra.mxu0 0
    %6180 = vmatpush.bf16.msra.mxu0 %v5987
    %6181 = vmatpush.bf16.msra.mxu0 %v5855
    %6182 = vmatpush.bf16.msra.mxu0 %v5835
    %6183 = vmatpush.bf16.msra.mxu0 %v5815
    %6184 = vmatmul.bf16.gmra.mxu0 %v5944
    %v6185 = vpop.f32.mrf.mxu0
    %v6186 = vadd.f32 %v5565, %v6185
    %v6187 = vpop.f32.mrf.mxu0
    %6188 = vdwg.mxu0
    %6189 = vmatpush.bf16.msra.mxu0 0
    %6190 = vmatpush.bf16.msra.mxu0 0
    %6191 = vmatpush.bf16.msra.mxu0 0
    %6192 = vmatpush.bf16.msra.mxu0 0
    %6193 = vmatpush.bf16.msra.mxu0 %v5990
    %6194 = vmatpush.bf16.msra.mxu0 %v5856
    %6195 = vmatpush.bf16.msra.mxu0 %v5836
    %6196 = vmatpush.bf16.msra.mxu0 %v5816
    %6197 = vmatmul.bf16.gmra.mxu0 %v5944
    %v6198 = vpop.f32.mrf.mxu0
    %v6199 = vadd.f32 %v5566, %v6198
    %v6200 = vpop.f32.mrf.mxu0
    %6201 = vdwg.mxu0
    %6202 = vmatpush.bf16.msra.mxu0 0
    %6203 = vmatpush.bf16.msra.mxu0 0
    %6204 = vmatpush.bf16.msra.mxu0 0
    %6205 = vmatpush.bf16.msra.mxu0 0
    %6206 = vmatpush.bf16.msra.mxu0 %v5993
    %6207 = vmatpush.bf16.msra.mxu0 %v5857
    %6208 = vmatpush.bf16.msra.mxu0 %v5837
    %6209 = vmatpush.bf16.msra.mxu0 %v5817
    %6210 = vmatmul.bf16.gmra.mxu0 %v5944
    %v6211 = vpop.f32.mrf.mxu0
    %v6212 = vadd.f32 %v5567, %v6211
    %v6213 = vpop.f32.mrf.mxu0
    %6214 = vdwg.mxu0
    %6215 = vmatpush.bf16.msra.mxu0 0
    %6216 = vmatpush.bf16.msra.mxu0 0
    %6217 = vmatpush.bf16.msra.mxu0 0
    %6218 = vmatpush.bf16.msra.mxu0 0
    %6219 = vmatpush.bf16.msra.mxu0 %v5996
    %6220 = vmatpush.bf16.msra.mxu0 %v5858
    %6221 = vmatpush.bf16.msra.mxu0 %v5838
    %6222 = vmatpush.bf16.msra.mxu0 %v5818
    %6223 = vmatmul.bf16.gmra.mxu0 %v5944
    %v6224 = vpop.f32.mrf.mxu0
    %v6225 = vadd.f32 %v5568, %v6224
    %v6226 = vpop.f32.mrf.mxu0
    %6227 = vdwg.mxu0
    %6228 = vmatpush.bf16.msra.mxu0 0
    %6229 = vmatpush.bf16.msra.mxu0 0
    %6230 = vmatpush.bf16.msra.mxu0 0
    %6231 = vmatpush.bf16.msra.mxu0 0
    %6232 = vmatpush.bf16.msra.mxu0 %v5999
    %6233 = vmatpush.bf16.msra.mxu0 %v5859
    %6234 = vmatpush.bf16.msra.mxu0 %v5839
    %6235 = vmatpush.bf16.msra.mxu0 %v5819
    %6236 = vmatmul.bf16.gmra.mxu0 %v5944
    %v6237 = vpop.f32.mrf.mxu0
    %v6238 = vadd.f32 %v5569, %v6237
    %v6239 = vpop.f32.mrf.mxu0
    %6240 = vdwg.mxu0
    %6241 = vmatpush.bf16.msra.mxu0 0
    %6242 = vmatpush.bf16.msra.mxu0 0
    %6243 = vmatpush.bf16.msra.mxu0 0
    %6244 = vmatpush.bf16.msra.mxu0 0
    %6245 = vmatpush.bf16.msra.mxu0 %v6002
    %6246 = vmatpush.bf16.msra.mxu0 %v5860
    %6247 = vmatpush.bf16.msra.mxu0 %v5840
    %6248 = vmatpush.bf16.msra.mxu0 %v5820
    %6249 = vmatmul.bf16.gmra.mxu0 %v5944
    %v6250 = vpop.f32.mrf.mxu0
    %v6251 = vadd.f32 %v5570, %v6250
    %v6252 = vpop.f32.mrf.mxu0
    %6253 = vdwg.mxu0
    %6254 = vmatpush.bf16.msra.mxu0 0
    %6255 = vmatpush.bf16.msra.mxu0 0
    %6256 = vmatpush.bf16.msra.mxu0 0
    %6257 = vmatpush.bf16.msra.mxu0 0
    %6258 = vmatpush.bf16.msra.mxu0 %v6005
    %6259 = vmatpush.bf16.msra.mxu0 %v5861
    %6260 = vmatpush.bf16.msra.mxu0 %v5841
    %6261 = vmatpush.bf16.msra.mxu0 %v5821
    %6262 = vmatmul.bf16.gmra.mxu0 %v5944
    %v6263 = vpop.f32.mrf.mxu0
    %v6264 = vadd.f32 %v5571, %v6263
    %v6265 = vpop.f32.mrf.mxu0
    %6266 = vdwg.mxu0
    %6270 = vrot.lane.b32.xlu0 %v6043, 108
    %v6271 = vpop.permute.xlu0 %6270
    %6272 = vrot.lane.b32.xlu0 %v6056, 108
    %v6273 = vpop.permute.xlu0 %6272
    %6274 = vrot.lane.b32.xlu0 %v6069, 108
    %v6275 = vpop.permute.xlu0 %6274
    %vm6276 = vcmask 883712
    %v6277 = vsel %vm6276, %v6271, %v6273
    %v6278 = vsel %vm6276, %v6273, %v6275
    %v6282 = vmax.f32 %v6017, %v6277
    %v6283 = vmax.f32 %v6030, %v6278
    %v6284 = vmax.f32 %v6043, %v6275
    %6287 = vrot.lane.b32.xlu0 %v6069, 88
    %v6288 = vpop.permute.xlu0 %6287
    %6289 = vrot.lane.b32.xlu0 %v6082, 88
    %v6290 = vpop.permute.xlu0 %6289
    %6291 = vrot.lane.b32.xlu0 %v6095, 88
    %v6292 = vpop.permute.xlu0 %6291
    %vm6293 = vcmask 719872
    %v6294 = vsel %vm6293, %v6288, %v6290
    %v6295 = vsel %vm6293, %v6290, %v6292
    %v6299 = vmax.f32 %v6282, %v6294
    %v6300 = vmax.f32 %v6283, %v6295
    %v6301 = vmax.f32 %v6284, %v6292
    %v6302 = vsub.f32 %v6017, %v6299
    %v6303 = vsub.f32 %v6030, %v6300
    %v6304 = vsub.f32 %v6043, %v6301
    %v6305 = vmul.f32 %v6302, 1.442695
    %v6306 = vpow.pop %v6305
    %v6307 = vmul.f32 %v6303, 1.442695
    %v6308 = vpow.pop %v6307
    %v6309 = vmul.f32 %v6304, 1.442695
    %v6310 = vpow.pop %v6309
    %6314 = vrot.lane.b32.xlu0 %v6299, 20
    %v6315 = vpop.permute.xlu0 %6314
    %6316 = vrot.lane.b32.xlu0 %v6300, 20
    %v6317 = vpop.permute.xlu0 %6316
    %6318 = vrot.lane.b32.xlu0 %v6301, 20
    %v6319 = vpop.permute.xlu0 %6318
    %v6320 = vsel %vm602, %v6315, %v6317
    %v6321 = vsel %vm602, %v6317, %v6319
    %v6325 = vsub.f32 %v6043, %v6315
    %v6326 = vsub.f32 %v6056, %v6320
    %v6327 = vsub.f32 %v6069, %v6321
    %v6328 = vmul.f32 %v6325, 1.442695
    %v6329 = vpow.pop %v6328
    %v6330 = vmul.f32 %v6326, 1.442695
    %v6331 = vpow.pop %v6330
    %v6332 = vmul.f32 %v6327, 1.442695
    %v6333 = vpow.pop %v6332
    %6334 = vrot.lane.b32.xlu0 %v6299, 40
    %v6335 = vpop.permute.xlu0 %6334
    %6336 = vrot.lane.b32.xlu0 %v6300, 40
    %v6337 = vpop.permute.xlu0 %6336
    %6338 = vrot.lane.b32.xlu0 %v6301, 40
    %v6339 = vpop.permute.xlu0 %6338
    %vm6340 = vcmask 326656
    %v6341 = vsel %vm6340, %v6335, %v6337
    %v6342 = vsel %vm6340, %v6337, %v6339
    %v6346 = vsub.f32 %v6069, %v6335
    %v6347 = vsub.f32 %v6082, %v6341
    %v6348 = vsub.f32 %v6095, %v6342
    %v6349 = vmul.f32 %v6346, 1.442695
    %v6350 = vpow.pop %v6349
    %v6351 = vmul.f32 %v6347, 1.442695
    %v6352 = vpow.pop %v6351
    %v6353 = vmul.f32 %v6348, 1.442695
    %v6354 = vpow.pop %v6353
    %6358 = vrot.lane.b32.xlu0 %v6329, 108
    %v6359 = vpop.permute.xlu0 %6358
    %6360 = vrot.lane.b32.xlu0 %v6331, 108
    %v6361 = vpop.permute.xlu0 %6360
    %6362 = vrot.lane.b32.xlu0 %v6333, 108
    %v6363 = vpop.permute.xlu0 %6362
    %v6364 = vsel %vm6276, %v6359, %v6361
    %v6365 = vsel %vm6276, %v6361, %v6363
    %v6369 = vadd.f32 %v6306, %v6364
    %v6370 = vadd.f32 %v6308, %v6365
    %v6371 = vadd.f32 %v6310, %v6363
    %6375 = vrot.lane.b32.xlu0 %v6350, 88
    %v6376 = vpop.permute.xlu0 %6375
    %6377 = vrot.lane.b32.xlu0 %v6352, 88
    %v6378 = vpop.permute.xlu0 %6377
    %6379 = vrot.lane.b32.xlu0 %v6354, 88
    %v6380 = vpop.permute.xlu0 %6379
    %v6381 = vsel %vm6293, %v6376, %v6378
    %v6382 = vsel %vm6293, %v6378, %v6380
    %v6386 = vadd.f32 %v6369, %v6381
    %v6387 = vadd.f32 %v6370, %v6382
    %v6388 = vadd.f32 %v6371, %v6380
    %v6389 = vrcp.pop %v6386
    %v6390 = vrcp.pop %v6387
    %v6391 = vrcp.pop %v6388
    %v6392 = vmul.f32 %v6306, %v6389
    %v6393 = vmul.f32 %v6308, %v6390
    %v6394 = vmul.f32 %v6310, %v6391
    %v6395 = vpack.c.bf16 %v6393, %v6392
    %v6396 = vpack.c.bf16 %v6394, %v6394
    %6397 = vst [vmem:[#allocation13] sm:$0xff] %v6395
    %vm6398 = vcmask 158720
    %6399 = vst.msk [vmem:[#allocation13 + $0x8] sm:$0xf] %vm6398, %v6396
    %6403 = vrot.lane.b32.xlu0 %v6389, 20
    %v6404 = vpop.permute.xlu0 %6403
    %6405 = vrot.lane.b32.xlu0 %v6390, 20
    %v6406 = vpop.permute.xlu0 %6405
    %6407 = vrot.lane.b32.xlu0 %v6391, 20
    %v6408 = vpop.permute.xlu0 %6407
    %v6409 = vsel %vm602, %v6404, %v6406
    %v6410 = vsel %vm602, %v6406, %v6408
    %v6414 = vmul.f32 %v6329, %v6404
    %v6415 = vmul.f32 %v6331, %v6409
    %v6416 = vmul.f32 %v6333, %v6410
    %v6417 = vpack.c.bf16 %v6415, %v6414
    %v6418 = vpack.c.bf16 %v6416, %v6416
    %vm6419 = vcmask 1043616
    %vm6420 = vcmask 1047556
    %vm6421 = vmor %vm6420, %vm6419
    %6422 = vst.msk [vmem:[#allocation13 + $0x8] sm:$0xff] %vm6421, %v6417
    %vm6423 = vcmask 322560
    %6424 = vst.msk [vmem:[#allocation13 + $0x10] sm:$0xf] %vm6423, %v6418
    %6425 = vrot.lane.b32.xlu0 %v6389, 40
    %v6426 = vpop.permute.xlu0 %6425
    %6427 = vrot.lane.b32.xlu0 %v6390, 40
    %v6428 = vpop.permute.xlu0 %6427
    %6429 = vrot.lane.b32.xlu0 %v6391, 40
    %v6430 = vpop.permute.xlu0 %6429
    %v6431 = vsel %vm6340, %v6426, %v6428
    %v6432 = vsel %vm6340, %v6428, %v6430
    %v6436 = vmul.f32 %v6350, %v6426
    %v6437 = vmul.f32 %v6352, %v6431
    %v6438 = vmul.f32 %v6354, %v6432
    %v6439 = vpack.c.bf16 %v6437, %v6436
    %v6440 = vpack.c.bf16 %v6438, %v6438
    %vm6441 = vcmask 1043776
    %vm6442 = vmor %vm6420, %vm6441
    %6443 = vst.msk [vmem:[#allocation13 + $0x10] sm:$0xff] %vm6442, %v6439
    %vm6444 = vcmask 486400
    %6445 = vst.msk [vmem:[#allocation13 + $0x18] sm:$0xf] %vm6444, %v6440
    %v6446 = vpack.c.bf16 %v6108, %v6095
    %v6447 = vpack.c.bf16 %v6134, %v6121
    %v6448 = vpack.c.bf16 %v6147, %v6147
    %vm6449 = vcmask 1043936
    %vm6450 = vmor %vm6420, %vm6449
    %6451 = vst.msk [vmem:[#allocation13 + $0x18] sm:$0xff] %vm6450, %v6446
    %6452 = vst [vmem:[#allocation13 + $0x20] sm:$0xff] %v6447
    %vm6453 = vcmask 814080
    %6454 = vst.msk [vmem:[#allocation13 + $0x28] sm:$0xf] %vm6453, %v6448
    %v6455 = vmul.f32 %v6147, 0.5
    %v6456 = vmul.f32 %v6160, 0.5
    %v6457 = vmul.f32 %v6173, 0.5
    %v6458 = vmul.f32 %v6186, 0.5
    %v6459 = vmul.f32 %v6199, 0.5
    %v6460 = vmul.f32 %v6212, 0.5
    %v6461 = vtanh.pop %v6455
    %v6462 = vtanh.pop %v6456
    %v6463 = vtanh.pop %v6457
    %v6464 = vtanh.pop %v6458
    %v6465 = vtanh.pop %v6459
    %v6466 = vtanh.pop %v6460
    %v6467 = vadd.f32 %v6461, 1.0
    %v6468 = vadd.f32 %v6462, 1.0
    %v6469 = vadd.f32 %v6463, 1.0
    %v6470 = vadd.f32 %v6464, 1.0
    %v6471 = vadd.f32 %v6465, 1.0
    %v6472 = vadd.f32 %v6466, 1.0
    %v6473 = vmul.f32 %v6467, 0.5
    %v6474 = vmul.f32 %v6468, 0.5
    %v6475 = vmul.f32 %v6469, 0.5
    %v6476 = vmul.f32 %v6470, 0.5
    %v6477 = vmul.f32 %v6471, 0.5
    %v6478 = vmul.f32 %v6472, 0.5
    %v6479 = vmul.f32 %v6473, 0.8
    %v6480 = vmul.f32 %v6474, 0.8
    %v6481 = vmul.f32 %v6475, 0.8
    %v6482 = vmul.f32 %v6476, 0.8
    %v6483 = vmul.f32 %v6477, 0.8
    %v6484 = vmul.f32 %v6478, 0.8
    %v6485 = vpack.c.bf16 %v6480, %v6479
    %v6486 = vpack.c.bf16 %v6482, %v6481
    %v6487 = vpack.c.bf16 %v6484, %v6483
    %vm6488 = vcmask 1044256
    %vm6489 = vmor %vm6420, %vm6488
    %6490 = vst.msk [vmem:[#allocation13 + $0x28] sm:$0xff] %vm6489, %v6485
    %6491 = vst [vmem:[#allocation13 + $0x30] sm:$0xff] %v6486
    %vm6492 = vcmask 1043456
    %vm6493 = vcmask 97284
    %vm6494 = vmor %vm6493, %vm6492
    %6495 = vst.msk [vmem:[#allocation13 + $0x38] sm:$0xff] %vm6494, %v6487
    %v6496 = vpack.c.bf16 %v6225, %v6212
    %v6497 = vpack.c.bf16 %v6238, %v6238
    %vm6498 = vcmask 1043552
    %vm6499 = vmor %vm6420, %vm6498
    %6500 = vst.msk [vmem:[#allocation13 + $0x3c] sm:$0xff] %vm6499, %v6496
    %vm6501 = vcmask 257024
    %6502 = vst.msk [vmem:[#allocation13 + $0x44] sm:$0xf] %vm6501, %v6497
    %v6503 = vmax.f32 %v6238, 0.0
    %v6504 = vmax.f32 %v6251, 0.0
    %v6505 = vmax.f32 %v6264, 0.0
    %v6506 = vand.u32 2147483647, %v6238
    %v6507 = vand.u32 2147483647, %v6251
    %v6508 = vand.u32 2147483647, %v6264
    %v6509 = vsub.f32 0.0, %v6506
    %v6510 = vsub.f32 0.0, %v6507
    %v6511 = vsub.f32 0.0, %v6508
    %v6512 = vmul.f32 %v6509, 1.442695
    %v6513 = vpow.pop %v6512
    %v6514 = vmul.f32 %v6510, 1.442695
    %v6515 = vpow.pop %v6514
    %v6516 = vmul.f32 %v6511, 1.442695
    %v6517 = vpow.pop %v6516
    %v6518 = vadd.f32 %v6513, 1.0
    %v6519 = vadd.f32 %v6515, 1.0
    %v6520 = vadd.f32 %v6517, 1.0
    %v6521 = vlog2.pop %v6518
    %v6522 = vmul.f32 %v6521, 0.6931472
    %v6523 = vlog2.pop %v6519
    %v6524 = vmul.f32 %v6523, 0.6931472
    %v6525 = vlog2.pop %v6520
    %v6526 = vmul.f32 %v6525, 0.6931472
    %v6527 = vadd.f32 %v6503, %v6522
    %v6528 = vadd.f32 %v6504, %v6524
    %v6529 = vadd.f32 %v6505, %v6526
    %v6530 = vpack.c.bf16 %v6528, %v6527
    %v6531 = vpack.c.bf16 %v6529, %v6529
    %vm6532 = vcmask 1043712
    %vm6533 = vmor %vm6420, %vm6532
    %6534 = vst.msk [vmem:[#allocation13 + $0x44] sm:$0xff] %vm6533, %v6530
    %vm6535 = vcmask 420864
    %6536 = vst.msk [vmem:[#allocation13 + $0x4c] sm:$0xf] %vm6535, %v6531
    // Predicated region
    $region102: #{tpu_custom_call.1} parent=1 // pred_check
      _
    $region103: #{tpu_custom_call.1} parent=1 // pred_check_branch
      %6538 = sbr.rel (0) target = $region105
    $region104: #{tpu_custom_call.1} parent=1 // pred_region
      _
    $region105: #{tpu_custom_call.1} parent=1 // pred_fallthru
      _
    // Predicated region
    $region106: #{tpu_custom_call.1} parent=1 // pred_check
      _
    $region107: #{tpu_custom_call.1} parent=1 // pred_check_branch
      %6540 = sbr.rel (0) target = $region109
    $region108: #{tpu_custom_call.1} parent=1 // pred_region
      %6542 = vsyncadd [#allocation4], 0
      %s6544 = sshll.u32 [#allocation13], 4
      %s6545 = int_to_ptr.vmem [resolvable:$true] %s6544
      %s6546 = sshll.u32 %s20, 4
      %s6547 = int_to_ptr.hbm [resolvable:$true] %s6546
      %6549 = dma.vmem_to_hbm [thread:$0]  %s6545, 1280, %s6547, [#allocation4]
    $region109: #{tpu_custom_call.1} parent=1 // pred_fallthru
      _
    // Predicated region
    $region110: #{tpu_custom_call.1} parent=1 // pred_check
      _
    $region111: #{tpu_custom_call.1} parent=1 // pred_check_branch
      %6551 = sbr.rel (0) target = $region113
    $region112: #{tpu_custom_call.1} parent=1 // pred_region
      _
    $region113: #{tpu_custom_call.1} parent=1 // pred_fallthru
      _
    // Predicated region
    $region114: #{tpu_custom_call.1} parent=1 // pred_check
      _
    $region115: #{tpu_custom_call.1} parent=1 // pred_check_branch
      %6553 = sbr.rel (0) target = $region117
    $region116: #{tpu_custom_call.1} parent=1 // pred_region
      %6555 = dma.done [#allocation4], 1280
    $region117: #{tpu_custom_call.1} parent=1 // pred_fallthru
      _
    %6556 = vsyncpa [#allocation3], 1
    %6557 = vsyncpa [#allocation6], 1
    %6558 = vsyncpa [#allocation9], 1
    %6559 = vsyncpa [#allocation12], 1
    %6560 = vsyncpa [#allocation4], 1

// kernel: tpu_custom_call.1
$region0: #{tpu_custom_call.1}
  #allocation0 [shape = 'u32[]', space=smem, size = 0x4, offset = 0x4, fixed_abs, tag = 'smem constant byte address 0x4 - core index']
  #allocation1 [shape = 'u32[72,128]{1,0:T(1,128)}', space=vmem, size = 0x9000, scoped, tag = 'internal scratch']
  %s0 = inlined_call_operand.vmem [shape: bf16[8,276], index: 0, kind: input, shape index: {}]
  %s1 = inlined_call_operand.hbm [shape: bf16[276,500], index: 1, kind: input, shape index: {}]
  %s2 = inlined_call_operand.vmem [shape: f32[1,500], index: 2, kind: input, shape index: {}]
  %s3 = inlined_call_operand.hbm [shape: bf16[500,500], index: 3, kind: input, shape index: {}]
  %s4 = inlined_call_operand.vmem [shape: f32[1,500], index: 4, kind: input, shape index: {}]
  %s5 = inlined_call_operand.hbm [shape: bf16[500,500], index: 5, kind: input, shape index: {}]
  %s6 = inlined_call_operand.vmem [shape: f32[1,500], index: 6, kind: input, shape index: {}]
  %s7 = inlined_call_operand.vmem [shape: bf16[500,2], index: 7, kind: input, shape index: {}]
  %s8 = inlined_call_operand.vmem [shape: f32[1,2], index: 8, kind: input, shape index: {}]
  %s9 = inlined_call_operand.vmem [shape: f32[2,500], index: 9, kind: input, shape index: {}]
  %s10 = inlined_call_operand.vmem [shape: f32[1,500], index: 10, kind: input, shape index: {}]
  %s11 = inlined_call_operand.hbm [shape: bf16[500,500], index: 11, kind: input, shape index: {}]
  %s12 = inlined_call_operand.vmem [shape: f32[1,500], index: 12, kind: input, shape index: {}]
  %s13 = inlined_call_operand.hbm [shape: bf16[500,500], index: 13, kind: input, shape index: {}]
  %s14 = inlined_call_operand.vmem [shape: f32[1,500], index: 14, kind: input, shape index: {}]
  %s15 = inlined_call_operand.vmem [shape: bf16[500,50], index: 15, kind: input, shape index: {}]
  %s16 = inlined_call_operand.vmem [shape: f32[1,50], index: 16, kind: input, shape index: {}]
  %s17 = inlined_call_operand.hbm [shape: bf16[50,2484], index: 17, kind: input, shape index: {}]
  %s18 = inlined_call_operand.vmem [shape: f32[1,2484], index: 18, kind: input, shape index: {}]
  %s19 = inlined_call_operand.vmem [shape: f32[8,2], index: 19, kind: output, shape index: {0}]
  %s20 = inlined_call_operand.hbm [shape: bf16[8,2484], index: 20, kind: output, shape index: {1}]
  %21 = xla_tuple %s19, %s20
  %s22 = sld [smem:[#allocation0]]
  $region118: #{tpu_custom_call.1} parent=0
    _
  %s24 = ssub.s32 1, %s22
  %s25 = scalar_select 0, %s24, %s22
  $region1: #{tpu_custom_call.1} parent=0
    #allocation2 [shape = 'u8[286720]{0}', space=vmem, size = 0x46000, scoped, tag = 'input window, operand 1, single buffered']
    #allocation3 [shape = 's32[1]{0}', space=sflag, size = 0x4, scoped, tag = 'scoped memory for tpu_custom_call.1']
    #allocation4 [shape = 's32[1]{0}', space=sflag, size = 0x4, scoped, tag = 'scoped memory for tpu_custom_call.1']
    #allocation5 [shape = 'u8[516096]{0}', space=vmem, size = 0x7e000, scoped, tag = 'input window, operand 3, single buffered']
    #allocation6 [shape = 's32[1]{0}', space=sflag, size = 0x4, scoped, tag = 'scoped memory for tpu_custom_call.1']
    #allocation7 [shape = 'u8[516096]{0}', space=vmem, size = 0x7e000, scoped, tag = 'input window, operand 5, single buffered']
    #allocation8 [shape = 'u8[516096]{0}', space=vmem, size = 0x7e000, scoped, tag = 'input window, operand 11, single buffered']
    #allocation9 [shape = 's32[1]{0}', space=sflag, size = 0x4, scoped, tag = 'scoped memory for tpu_custom_call.1']
    #allocation10 [shape = 'u8[516096]{0}', space=vmem, size = 0x7e000, scoped, tag = 'input window, operand 13, single buffered']
    #allocation11 [shape = 'u8[286720]{0}', space=vmem, size = 0x46000, scoped, tag = 'input window, operand 17, single buffered']
    #allocation12 [shape = 's32[1]{0}', space=sflag, size = 0x4, scoped, tag = 'scoped memory for tpu_custom_call.1']
    #allocation13 [shape = 'u8[40960]{0}', space=vmem, size = 0xa000, scoped, tag = 'output window, operand 1, single buffered']
    %26 = vsyncpa [#allocation3], 0
    %27 = vsyncpa [#allocation6], 0
    %28 = vsyncpa [#allocation9], 0
    %29 = vsyncpa [#allocation12], 0
    %30 = vsyncpa [#allocation4], 0
    // Predicated region
    $region2: #{tpu_custom_call.1} parent=1 // pred_check
      _
    $region3: #{tpu_custom_call.1} parent=1 // pred_check_branch
      %32 = sbr.rel (0) target = $region5
    $region4: #{tpu_custom_call.1} parent=1 // pred_region
      _
    $region5: #{tpu_custom_call.1} parent=1 // pred_fallthru
      _
    // Predicated region
    $region6: #{tpu_custom_call.1} parent=1 // pred_check
      _
    $region7: #{tpu_custom_call.1} parent=1 // pred_check_branch
      %34 = sbr.rel (0) target = $region9
    $region8: #{tpu_custom_call.1} parent=1 // pred_region
      %36 = vsyncadd [#allocation3], 0
      %s37 = sshll.u32 %s1, 4
      %s38 = int_to_ptr.hbm [resolvable:$true] %s37
      %s39 = sshll.u32 [#allocation2], 4
      %s40 = int_to_ptr.vmem [resolvable:$true] %s39
      %45 = dma.hbm_to_vmem [thread:$0]  %s38, 8960, %s40, [#allocation3], 256, 256, 16
    $region9: #{tpu_custom_call.1} parent=1 // pred_fallthru
      _
    // Predicated region
    $region10: #{tpu_custom_call.1} parent=1 // pred_check
      _
    $region11: #{tpu_custom_call.1} parent=1 // pred_check_branch
      %47 = sbr.rel (0) target = $region13
    $region12: #{tpu_custom_call.1} parent=1 // pred_region
      _
    $region13: #{tpu_custom_call.1} parent=1 // pred_fallthru
      _
    // Predicated region
    $region14: #{tpu_custom_call.1} parent=1 // pred_check
      _
    $region15: #{tpu_custom_call.1} parent=1 // pred_check_branch
      %49 = sbr.rel (0) target = $region17
    $region16: #{tpu_custom_call.1} parent=1 // pred_region
      %51 = vsyncadd [#allocation6], 0
      %s52 = sshll.u32 %s3, 4
      %s53 = int_to_ptr.hbm [resolvable:$true] %s52
      %s54 = sshll.u32 [#allocation5], 4
      %s55 = int_to_ptr.vmem [resolvable:$true] %s54
      %60 = dma.hbm_to_vmem [thread:$0]  %s53, 16128, %s55, [#allocation6], 256, 256, 16
    $region17: #{tpu_custom_call.1} parent=1 // pred_fallthru
      _
    // Predicated region
    $region18: #{tpu_custom_call.1} parent=1 // pred_check
      _
    $region19: #{tpu_custom_call.1} parent=1 // pred_check_branch
      %62 = sbr.rel (0) target = $region21
    $region20: #{tpu_custom_call.1} parent=1 // pred_region
      _
    $region21: #{tpu_custom_call.1} parent=1 // pred_fallthru
      _
    // Predicated region
    $region22: #{tpu_custom_call.1} parent=1 // pred_check
      _
    $region23: #{tpu_custom_call.1} parent=1 // pred_check_branch
      %64 = sbr.rel (0) target = $region25
    $region24: #{tpu_custom_call.1} parent=1 // pred_region
      %66 = vsyncadd [#allocation6], 0
      %s67 = sshll.u32 %s5, 4
      %s68 = int_to_ptr.hbm [resolvable:$true] %s67
      %s69 = sshll.u32 [#allocation7], 4
      %s70 = int_to_ptr.vmem [resolvable:$true] %s69
      %75 = dma.hbm_to_vmem [thread:$0]  %s68, 16128, %s70, [#allocation6], 256, 256, 16
    $region25: #{tpu_custom_call.1} parent=1 // pred_fallthru
      _
    // Predicated region
    $region26: #{tpu_custom_call.1} parent=1 // pred_check
      _
    $region27: #{tpu_custom_call.1} parent=1 // pred_check_branch
      %77 = sbr.rel (0) target = $region29
    $region28: #{tpu_custom_call.1} parent=1 // pred_region
      _
    $region29: #{tpu_custom_call.1} parent=1 // pred_fallthru
      _
    // Predicated region
    $region30: #{tpu_custom_call.1} parent=1 // pred_check
      _
    $region31: #{tpu_custom_call.1} parent=1 // pred_check_branch
      %79 = sbr.rel (0) target = $region33
    $region32: #{tpu_custom_call.1} parent=1 // pred_region
      _
    $region33: #{tpu_custom_call.1} parent=1 // pred_fallthru
      _
    // Predicated region
    $region34: #{tpu_custom_call.1} parent=1 // pred_check
      _
    $region35: #{tpu_custom_call.1} parent=1 // pred_check_branch
      %81 = sbr.rel (0) target = $region37
    $region36: #{tpu_custom_call.1} parent=1 // pred_region
      _
    $region37: #{tpu_custom_call.1} parent=1 // pred_fallthru
      _
    // Predicated region
    $region38: #{tpu_custom_call.1} parent=1 // pred_check
      _
    $region39: #{tpu_custom_call.1} parent=1 // pred_check_branch
      %83 = sbr.rel (0) target = $region41
    $region40: #{tpu_custom_call.1} parent=1 // pred_region
      _
    $region41: #{tpu_custom_call.1} parent=1 // pred_fallthru
      _
    // Predicated region
    $region42: #{tpu_custom_call.1} parent=1 // pred_check
      _
    $region43: #{tpu_custom_call.1} parent=1 // pred_check_branch
      %85 = sbr.rel (0) target = $region45
    $region44: #{tpu_custom_call.1} parent=1 // pred_region
      _
    $region45: #{tpu_custom_call.1} parent=1 // pred_fallthru
      _
    // Predicated region
    $region46: #{tpu_custom_call.1} parent=1 // pred_check
      _
    $region47: #{tpu_custom_call.1} parent=1 // pred_check_branch
      %87 = sbr.rel (0) target = $region49
    $region48: #{tpu_custom_call.1} parent=1 // pred_region
      %89 = vsyncadd [#allocation9], 0
      %s90 = sshll.u32 %s11, 4
      %s91 = int_to_ptr.hbm [resolvable:$true] %s90
      %s92 = sshll.u32 [#allocation8], 4
      %s93 = int_to_ptr.vmem [resolvable:$true] %s92
      %98 = dma.hbm_to_vmem [thread:$0]  %s91, 16128, %s93, [#allocation9], 256, 256, 16
    $region49: #{tpu_custom_call.1} parent=1 // pred_fallthru
      _
    // Predicated region
    $region50: #{tpu_custom_call.1} parent=1 // pred_check
      _
    $region51: #{tpu_custom_call.1} parent=1 // pred_check_branch
      %100 = sbr.rel (0) target = $region53
    $region52: #{tpu_custom_call.1} parent=1 // pred_region
      _
    $region53: #{tpu_custom_call.1} parent=1 // pred_fallthru
      _
    // Predicated region
    $region54: #{tpu_custom_call.1} parent=1 // pred_check
      _
    $region55: #{tpu_custom_call.1} parent=1 // pred_check_branch
      %102 = sbr.rel (0) target = $region57
    $region56: #{tpu_custom_call.1} parent=1 // pred_region
      %104 = vsyncadd [#allocation9], 0
      %s105 = sshll.u32 %s13, 4
      %s106 = int_to_ptr.hbm [resolvable:$true] %s105
      %s107 = sshll.u32 [#allocation10], 4
      %s108 = int_to_ptr.vmem [resolvable:$true] %s107
      %113 = dma.hbm_to_vmem [thread:$0]  %s106, 16128, %s108, [#allocation9], 256, 256, 16
    $region57: #{tpu_custom_call.1} parent=1 // pred_fallthru
      _
    // Predicated region
    $region58: #{tpu_custom_call.1} parent=1 // pred_check
      _
    $region59: #{tpu_custom_call.1} parent=1 // pred_check_branch
      %115 = sbr.rel (0) target = $region61
    $region60: #{tpu_custom_call.1} parent=1 // pred_region
      _
    $region61: #{tpu_custom_call.1} parent=1 // pred_fallthru
      _
    // Predicated region
    $region62: #{tpu_custom_call.1} parent=1 // pred_check
      _
    $region63: #{tpu_custom_call.1} parent=1 // pred_check_branch
      %117 = sbr.rel (0) target = $region65
    $region64: #{tpu_custom_call.1} parent=1 // pred_region
      _
    $region65: #{tpu_custom_call.1} parent=1 // pred_fallthru
      _
    // Predicated region
    $region66: #{tpu_custom_call.1} parent=1 // pred_check
      _
    $region67: #{tpu_custom_call.1} parent=1 // pred_check_branch
      %119 = sbr.rel (0) target = $region69
    $region68: #{tpu_custom_call.1} parent=1 // pred_region
      _
    $region69: #{tpu_custom_call.1} parent=1 // pred_fallthru
      _
    // Predicated region
    $region70: #{tpu_custom_call.1} parent=1 // pred_check
      _
    $region71: #{tpu_custom_call.1} parent=1 // pred_check_branch
      %121 = sbr.rel (0) target = $region73
    $region72: #{tpu_custom_call.1} parent=1 // pred_region
      %123 = vsyncadd [#allocation12], 0
      %s124 = sshll.u32 %s17, 4
      %s125 = int_to_ptr.hbm [resolvable:$true] %s124
      %s126 = sshll.u32 [#allocation11], 4
      %s127 = int_to_ptr.vmem [resolvable:$true] %s126
      %132 = dma.hbm_to_vmem [thread:$0]  %s125, 8960, %s127, [#allocation12], 1280, 1280, 80
    $region73: #{tpu_custom_call.1} parent=1 // pred_fallthru
      _
    // Predicated region
    $region74: #{tpu_custom_call.1} parent=1 // pred_check
      _
    $region75: #{tpu_custom_call.1} parent=1 // pred_check_branch
      %134 = sbr.rel (0) target = $region77
    $region76: #{tpu_custom_call.1} parent=1 // pred_region
      _
    $region77: #{tpu_custom_call.1} parent=1 // pred_fallthru
      _
    // Predicated region
    $region78: #{tpu_custom_call.1} parent=1 // pred_check
      _
    $region79: #{tpu_custom_call.1} parent=1 // pred_check_branch
      %136 = sbr.rel (0) target = $region81
    $region80: #{tpu_custom_call.1} parent=1 // pred_region
      %138 = dma.done [#allocation3], 8960
    $region81: #{tpu_custom_call.1} parent=1 // pred_fallthru
      _
    // Predicated region
    $region82: #{tpu_custom_call.1} parent=1 // pred_check
      _
    $region83: #{tpu_custom_call.1} parent=1 // pred_check_branch
      %140 = sbr.rel (0) target = $region85
    $region84: #{tpu_custom_call.1} parent=1 // pred_region
      %142 = dma.done [#allocation6], 16128
    $region85: #{tpu_custom_call.1} parent=1 // pred_fallthru
      _
    // Predicated region
    $region86: #{tpu_custom_call.1} parent=1 // pred_check
      _
    $region87: #{tpu_custom_call.1} parent=1 // pred_check_branch
      %144 = sbr.rel (0) target = $region89
    $region88: #{tpu_custom_call.1} parent=1 // pred_region
      %146 = dma.done [#allocation6], 16128
    $region89: #{tpu_custom_call.1} parent=1 // pred_fallthru
      _
    // Predicated region
    $region90: #{tpu_custom_call.1} parent=1 // pred_check
      _
    $region91: #{tpu_custom_call.1} parent=1 // pred_check_branch
      %148 = sbr.rel (0) target = $region93
    $region92: #{tpu_custom_call.1} parent=1 // pred_region
      %150 = dma.done [#allocation9], 16128
    $region93: #{tpu_custom_call.1} parent=1 // pred_fallthru
      _
    // Predicated region
    $region94: #{tpu_custom_call.1} parent=1 // pred_check
      _
    $region95: #{tpu_custom_call.1} parent=1 // pred_check_branch
      %152 = sbr.rel (0) target = $region97
    $region96: #{tpu_custom_call.1} parent=1 // pred_region
      %154 = dma.done [#allocation9], 16128
    $region97: #{tpu_custom_call.1} parent=1 // pred_fallthru
      _
    // Predicated region
    $region98: #{tpu_custom_call.1} parent=1 // pred_check
      _
    $region99: #{tpu_custom_call.1} parent=1 // pred_check_branch
      %156 = sbr.rel (0) target = $region101
    $region100: #{tpu_custom_call.1} parent=1 // pred_region
      %158 = dma.done [#allocation12], 8960
    $region101: #{tpu_custom_call.1} parent=1 // pred_fallthru
      _
    %v160 = vld [vmem:[%s0] sm:$0xff]
    %v161 = vld [vmem:[%s0 + $0x8] sm:$0xf]
    %v162 = vld [vmem:[#allocation2] sm:$0xff]
    %v163 = vld [vmem:[#allocation2 + $0x8] sm:$0xff]
    %v164 = vld [vmem:[#allocation2 + $0x10] sm:$0xff]
    %v165 = vld [vmem:[#allocation2 + $0x18] sm:$0xff]
    %v166 = vld [vmem:[#allocation2 + $0x20] sm:$0xff]
    %v167 = vld [vmem:[#allocation2 + $0x28] sm:$0xff]
    %v168 = vld [vmem:[#allocation2 + $0x30] sm:$0xff]
    %v169 = vld [vmem:[#allocation2 + $0x38] sm:$0xff]
    %v170 = vld [vmem:[#allocation2 + $0x40] sm:$0xff]
    %v171 = vld [vmem:[#allocation2 + $0x48] sm:$0xff]
    %v172 = vld [vmem:[#allocation2 + $0x50] sm:$0xff]
    %v173 = vld [vmem:[#allocation2 + $0x58] sm:$0xff]
    %v174 = vld [vmem:[#allocation2 + $0x60] sm:$0xff]
    %v175 = vld [vmem:[#allocation2 + $0x68] sm:$0xff]
    %v176 = vld [vmem:[#allocation2 + $0x70] sm:$0xff]
    %v177 = vld [vmem:[#allocation2 + $0x78] sm:$0xff]
    %v178 = vld [vmem:[#allocation2 + $0x80] sm:$0xff]
    %v179 = vld [vmem:[#allocation2 + $0x88] sm:$0xff]
    %v180 = vld [vmem:[#allocation2 + $0x90] sm:$0xff]
    %v181 = vld [vmem:[#allocation2 + $0x98] sm:$0xff]
    %v182 = vld [vmem:[#allocation2 + $0xa0] sm:$0xff]
    %v183 = vld [vmem:[#allocation2 + $0xa8] sm:$0xff]
    %v184 = vld [vmem:[#allocation2 + $0xb0] sm:$0xff]
    %v185 = vld [vmem:[#allocation2 + $0xb8] sm:$0xff]
    %v186 = vld [vmem:[#allocation2 + $0xc0] sm:$0xff]
    %v187 = vld [vmem:[#allocation2 + $0xc8] sm:$0xff]
    %v188 = vld [vmem:[#allocation2 + $0xd0] sm:$0xff]
    %v189 = vld [vmem:[#allocation2 + $0xd8] sm:$0xff]
    %v190 = vld [vmem:[#allocation2 + $0xe0] sm:$0xff]
    %v191 = vld [vmem:[#allocation2 + $0xe8] sm:$0xff]
    %v192 = vld [vmem:[#allocation2 + $0xf0] sm:$0xff]
    %v193 = vld [vmem:[#allocation2 + $0xf8] sm:$0xff]
    %v194 = vld [vmem:[#allocation2 + $0x100] sm:$0xff]
    %v195 = vld [vmem:[#allocation2 + $0x108] sm:$0xff]
    %v196 = vld [vmem:[#allocation2 + $0x110] sm:$0xff]
    %v197 = vld [vmem:[#allocation2 + $0x118] sm:$0xff]
    %v198 = vld [vmem:[#allocation2 + $0x120] sm:$0xff]
    %v199 = vld [vmem:[#allocation2 + $0x128] sm:$0xff]
    %v200 = vld [vmem:[#allocation2 + $0x130] sm:$0xff]
    %v201 = vld [vmem:[#allocation2 + $0x138] sm:$0xff]
    %v202 = vld [vmem:[#allocation2 + $0x140] sm:$0xff]
    %v203 = vld [vmem:[#allocation2 + $0x148] sm:$0xff]
    %v204 = vld [vmem:[#allocation2 + $0x150] sm:$0xff]
    %v205 = vld [vmem:[#allocation2 + $0x158] sm:$0xff]
    %v206 = vld [vmem:[#allocation2 + $0x160] sm:$0xff]
    %v207 = vld [vmem:[#allocation2 + $0x168] sm:$0xff]
    %v208 = vld [vmem:[#allocation2 + $0x170] sm:$0xff]
    %v209 = vld [vmem:[#allocation2 + $0x178] sm:$0xff]
    %v210 = vld [vmem:[#allocation2 + $0x180] sm:$0xff]
    %v211 = vld [vmem:[#allocation2 + $0x188] sm:$0xff]
    %v212 = vld [vmem:[#allocation2 + $0x190] sm:$0xff]
    %v213 = vld [vmem:[#allocation2 + $0x198] sm:$0xff]
    %v214 = vld [vmem:[#allocation2 + $0x1a0] sm:$0xff]
    %v215 = vld [vmem:[#allocation2 + $0x1a8] sm:$0xff]
    %v216 = vld [vmem:[#allocation2 + $0x1b0] sm:$0xff]
    %v217 = vld [vmem:[#allocation2 + $0x1b8] sm:$0xff]
    %v218 = vld [vmem:[#allocation2 + $0x1c0] sm:$0xff]
    %v219 = vld [vmem:[#allocation2 + $0x1c8] sm:$0xff]
    %v220 = vld [vmem:[#allocation2 + $0x1d0] sm:$0xff]
    %v221 = vld [vmem:[#allocation2 + $0x1d8] sm:$0xff]
    %v222 = vld [vmem:[#allocation2 + $0x1e0] sm:$0xff]
    %v223 = vld [vmem:[#allocation2 + $0x1e8] sm:$0xff]
    %v224 = vld [vmem:[#allocation2 + $0x1f0] sm:$0xff]
    %v225 = vld [vmem:[#allocation2 + $0x1f8] sm:$0xff]
    %v226 = vld [vmem:[#allocation2 + $0x200] sm:$0xff]
    %v227 = vld [vmem:[#allocation2 + $0x208] sm:$0xff]
    %v228 = vld [vmem:[#allocation2 + $0x210] sm:$0xff]
    %v229 = vld [vmem:[#allocation2 + $0x218] sm:$0xff]
    %v230 = vld [vmem:[#allocation2 + $0x220] sm:$0x33]
    %v231 = vld [vmem:[#allocation2 + $0x228] sm:$0x33]
    %v232 = vld [vmem:[%s2] sm:$0xf]
    %v234 = vperm.slane %v232, 0
    %v235 = vperm.slane %v232, 1
    %v236 = vperm.slane %v232, 2
    %v237 = vperm.slane %v232, 3
    %v244 = vunpack.c.l.b16 %v160
    %v245 = vunpack.c.h.b16 %v160
    %v246 = vunpack.c.l.b16 %v161
    %v247 = vpack.c.b16 %v244, %v244
    %v248 = vpack.c.b16 %v245, %v245
    %v249 = vpack.c.b16 %v246, %v246
    %v322 = vunpack.c.l.b16 %v162
    %v323 = vunpack.c.h.b16 %v162
    %v324 = vunpack.c.l.b16 %v163
    %v325 = vunpack.c.h.b16 %v163
    %v326 = vunpack.c.l.b16 %v164
    %v327 = vunpack.c.h.b16 %v164
    %v328 = vunpack.c.l.b16 %v165
    %v329 = vunpack.c.h.b16 %v165
    %v330 = vunpack.c.l.b16 %v166
    %v331 = vunpack.c.h.b16 %v166
    %v332 = vunpack.c.l.b16 %v167
    %v333 = vunpack.c.h.b16 %v167
    %v334 = vunpack.c.l.b16 %v168
    %v335 = vunpack.c.h.b16 %v168
    %v336 = vunpack.c.l.b16 %v169
    %v337 = vunpack.c.h.b16 %v169
    %v338 = vunpack.c.l.b16 %v170
    %v339 = vunpack.c.h.b16 %v170
    %v340 = vunpack.c.l.b16 %v171
    %v341 = vunpack.c.h.b16 %v171
    %v342 = vunpack.c.l.b16 %v172
    %v343 = vunpack.c.h.b16 %v172
    %v344 = vunpack.c.l.b16 %v173
    %v345 = vunpack.c.h.b16 %v173
    %v346 = vunpack.c.l.b16 %v174
    %v347 = vunpack.c.h.b16 %v174
    %v348 = vunpack.c.l.b16 %v175
    %v349 = vunpack.c.h.b16 %v175
    %v350 = vunpack.c.l.b16 %v176
    %v351 = vunpack.c.h.b16 %v176
    %v352 = vunpack.c.l.b16 %v177
    %v353 = vunpack.c.h.b16 %v177
    %v354 = vunpack.c.l.b16 %v178
    %v355 = vunpack.c.h.b16 %v178
    %v356 = vunpack.c.l.b16 %v179
    %v357 = vunpack.c.h.b16 %v179
    %v358 = vunpack.c.l.b16 %v180
    %v359 = vunpack.c.h.b16 %v180
    %v360 = vunpack.c.l.b16 %v181
    %v361 = vunpack.c.h.b16 %v181
    %v362 = vunpack.c.l.b16 %v182
    %v363 = vunpack.c.h.b16 %v182
    %v364 = vunpack.c.l.b16 %v183
    %v365 = vunpack.c.h.b16 %v183
    %v366 = vunpack.c.l.b16 %v184
    %v367 = vunpack.c.h.b16 %v184
    %v368 = vunpack.c.l.b16 %v185
    %v369 = vunpack.c.h.b16 %v185
    %v370 = vunpack.c.l.b16 %v186
    %v371 = vunpack.c.h.b16 %v186
    %v372 = vunpack.c.l.b16 %v187
    %v373 = vunpack.c.h.b16 %v187
    %v374 = vunpack.c.l.b16 %v188
    %v375 = vunpack.c.h.b16 %v188
    %v376 = vunpack.c.l.b16 %v189
    %v377 = vunpack.c.h.b16 %v189
    %v378 = vunpack.c.l.b16 %v190
    %v379 = vunpack.c.h.b16 %v190
    %v380 = vunpack.c.l.b16 %v191
    %v381 = vunpack.c.h.b16 %v191
    %v382 = vunpack.c.l.b16 %v192
    %v383 = vunpack.c.h.b16 %v192
    %v384 = vunpack.c.l.b16 %v193
    %v385 = vunpack.c.h.b16 %v193
    %v386 = vunpack.c.l.b16 %v194
    %v387 = vunpack.c.h.b16 %v194
    %v388 = vunpack.c.l.b16 %v195
    %v389 = vunpack.c.h.b16 %v195
    %v390 = vunpack.c.l.b16 %v196
    %v391 = vunpack.c.h.b16 %v196
    %v392 = vunpack.c.l.b16 %v197
    %v393 = vunpack.c.h.b16 %v197
    %v394 = vunpack.c.l.b16 %v198
    %v395 = vunpack.c.h.b16 %v198
    %v396 = vunpack.c.l.b16 %v199
    %v397 = vunpack.c.h.b16 %v199
    %v398 = vunpack.c.l.b16 %v200
    %v399 = vunpack.c.h.b16 %v200
    %v400 = vunpack.c.l.b16 %v201
    %v401 = vunpack.c.h.b16 %v201
    %v402 = vunpack.c.l.b16 %v202
    %v403 = vunpack.c.h.b16 %v202
    %v404 = vunpack.c.l.b16 %v203
    %v405 = vunpack.c.h.b16 %v203
    %v406 = vunpack.c.l.b16 %v204
    %v407 = vunpack.c.h.b16 %v204
    %v408 = vunpack.c.l.b16 %v205
    %v409 = vunpack.c.h.b16 %v205
    %v410 = vunpack.c.l.b16 %v206
    %v411 = vunpack.c.h.b16 %v206
    %v412 = vunpack.c.l.b16 %v207
    %v413 = vunpack.c.h.b16 %v207
    %v414 = vunpack.c.l.b16 %v208
    %v415 = vunpack.c.h.b16 %v208
    %v416 = vunpack.c.l.b16 %v209
    %v417 = vunpack.c.h.b16 %v209
    %v418 = vunpack.c.l.b16 %v210
    %v419 = vunpack.c.h.b16 %v210
    %v420 = vunpack.c.l.b16 %v211
    %v421 = vunpack.c.h.b16 %v211
    %v422 = vunpack.c.l.b16 %v212
    %v423 = vunpack.c.h.b16 %v212
    %v424 = vunpack.c.l.b16 %v213
    %v425 = vunpack.c.h.b16 %v213
    %v426 = vunpack.c.l.b16 %v214
    %v427 = vunpack.c.h.b16 %v214
    %v428 = vunpack.c.l.b16 %v215
    %v429 = vunpack.c.h.b16 %v215
    %v430 = vunpack.c.l.b16 %v216
    %v431 = vunpack.c.h.b16 %v216
    %v432 = vunpack.c.l.b16 %v217
    %v433 = vunpack.c.h.b16 %v217
    %v434 = vunpack.c.l.b16 %v218
    %v435 = vunpack.c.h.b16 %v218
    %v436 = vunpack.c.l.b16 %v219
    %v437 = vunpack.c.h.b16 %v219
    %v438 = vunpack.c.l.b16 %v220
    %v439 = vunpack.c.h.b16 %v220
    %v440 = vunpack.c.l.b16 %v221
    %v441 = vunpack.c.h.b16 %v221
    %v442 = vunpack.c.l.b16 %v222
    %v443 = vunpack.c.h.b16 %v222
    %v444 = vunpack.c.l.b16 %v223
    %v445 = vunpack.c.h.b16 %v223
    %v446 = vunpack.c.l.b16 %v224
    %v447 = vunpack.c.h.b16 %v224
    %v448 = vunpack.c.l.b16 %v225
    %v449 = vunpack.c.h.b16 %v225
    %v450 = vunpack.c.l.b16 %v226
    %v451 = vunpack.c.h.b16 %v226
    %v452 = vunpack.c.l.b16 %v227
    %v453 = vunpack.c.h.b16 %v227
    %v454 = vunpack.c.l.b16 %v228
    %v455 = vunpack.c.h.b16 %v228
    %v456 = vunpack.c.l.b16 %v229
    %v457 = vunpack.c.h.b16 %v229
    %v458 = vunpack.c.l.b16 %v230
    %v459 = vunpack.c.h.b16 %v230
    %v460 = vunpack.c.l.b16 %v231
    %v461 = vunpack.c.h.b16 %v231
    %v462 = vpack.c.b16 %v326, %v322
    %v463 = vpack.c.b16 %v327, %v323
    %v464 = vpack.c.b16 %v328, %v324
    %v465 = vpack.c.b16 %v329, %v325
    %v466 = vpack.c.b16 %v334, %v330
    %v467 = vpack.c.b16 %v335, %v331
    %v468 = vpack.c.b16 %v336, %v332
    %v469 = vpack.c.b16 %v337, %v333
    %v470 = vpack.c.b16 %v342, %v338
    %v471 = vpack.c.b16 %v343, %v339
    %v472 = vpack.c.b16 %v344, %v340
    %v473 = vpack.c.b16 %v345, %v341
    %v474 = vpack.c.b16 %v350, %v346
    %v475 = vpack.c.b16 %v351, %v347
    %v476 = vpack.c.b16 %v352, %v348
    %v477 = vpack.c.b16 %v353, %v349
    %v478 = vpack.c.b16 %v358, %v354
    %v479 = vpack.c.b16 %v359, %v355
    %v480 = vpack.c.b16 %v360, %v356
    %v481 = vpack.c.b16 %v361, %v357
    %v482 = vpack.c.b16 %v366, %v362
    %v483 = vpack.c.b16 %v367, %v363
    %v484 = vpack.c.b16 %v368, %v364
    %v485 = vpack.c.b16 %v369, %v365
    %v486 = vpack.c.b16 %v374, %v370
    %v487 = vpack.c.b16 %v375, %v371
    %v488 = vpack.c.b16 %v376, %v372
    %v489 = vpack.c.b16 %v377, %v373
    %v490 = vpack.c.b16 %v382, %v378
    %v491 = vpack.c.b16 %v383, %v379
    %v492 = vpack.c.b16 %v384, %v380
    %v493 = vpack.c.b16 %v385, %v381
    %v494 = vpack.c.b16 %v390, %v386
    %v495 = vpack.c.b16 %v391, %v387
    %v496 = vpack.c.b16 %v392, %v388
    %v497 = vpack.c.b16 %v393, %v389
    %v498 = vpack.c.b16 %v398, %v394
    %v499 = vpack.c.b16 %v399, %v395
    %v500 = vpack.c.b16 %v400, %v396
    %v501 = vpack.c.b16 %v401, %v397
    %v502 = vpack.c.b16 %v406, %v402
    %v503 = vpack.c.b16 %v407, %v403
    %v504 = vpack.c.b16 %v408, %v404
    %v505 = vpack.c.b16 %v409, %v405
    %v506 = vpack.c.b16 %v414, %v410
    %v507 = vpack.c.b16 %v415, %v411
    %v508 = vpack.c.b16 %v416, %v412
    %v509 = vpack.c.b16 %v417, %v413
    %v510 = vpack.c.b16 %v422, %v418
    %v511 = vpack.c.b16 %v423, %v419
    %v512 = vpack.c.b16 %v424, %v420
    %v513 = vpack.c.b16 %v425, %v421
    %v514 = vpack.c.b16 %v430, %v426
    %v515 = vpack.c.b16 %v431, %v427
    %v516 = vpack.c.b16 %v432, %v428
    %v517 = vpack.c.b16 %v433, %v429
    %v518 = vpack.c.b16 %v438, %v434
    %v519 = vpack.c.b16 %v439, %v435
    %v520 = vpack.c.b16 %v440, %v436
    %v521 = vpack.c.b16 %v441, %v437
    %v522 = vpack.c.b16 %v446, %v442
    %v523 = vpack.c.b16 %v447, %v443
    %v524 = vpack.c.b16 %v448, %v444
    %v525 = vpack.c.b16 %v449, %v445
    %v526 = vpack.c.b16 %v454, %v450
    %v527 = vpack.c.b16 %v455, %v451
    %v528 = vpack.c.b16 %v456, %v452
    %v529 = vpack.c.b16 %v457, %v453
    %v530 = vpack.c.b16 %v458, %v458
    %v531 = vpack.c.b16 %v459, %v459
    %v532 = vpack.c.b16 %v460, %v460
    %v533 = vpack.c.b16 %v461, %v461
    %vm602 = vcmask 162816
    %v604 = vsel %vm602, %v249, 0
    %vm606 = vcmask 1041408
    %v608 = vsel %vm606, %v530, 0
    %v611 = vsel %vm606, %v531, 0
    %v614 = vsel %vm606, %v532, 0
    %v617 = vsel %vm606, %v533, 0
    %619 = vmatpush.bf16.msra.mxu0 %v490
    %620 = vmatpush.bf16.msra.mxu0 %v486
    %621 = vmatpush.bf16.msra.mxu0 %v482
    %622 = vmatpush.bf16.msra.mxu0 %v478
    %623 = vmatpush.bf16.msra.mxu0 %v474
    %624 = vmatpush.bf16.msra.mxu0 %v470
    %625 = vmatpush.bf16.msra.mxu0 %v466
    %626 = vmatpush.bf16.msra.mxu0 %v462
    %627 = vmatmul.bf16.gmra.mxu0 %v247
    %v628 = vpop.f32.mrf.mxu0
    %v629 = vadd.f32 %v234, %v628
    %v630 = vpop.f32.mrf.mxu0
    %631 = vdwg.mxu0
    %632 = vmatpush.bf16.msra.mxu0 %v522
    %633 = vmatpush.bf16.msra.mxu0 %v518
    %634 = vmatpush.bf16.msra.mxu0 %v514
    %635 = vmatpush.bf16.msra.mxu0 %v510
    %636 = vmatpush.bf16.msra.mxu0 %v506
    %637 = vmatpush.bf16.msra.mxu0 %v502
    %638 = vmatpush.bf16.msra.mxu0 %v498
    %639 = vmatpush.bf16.msra.mxu0 %v494
    %640 = vmatmul.bf16.gmra.mxu0 %v248
    %v641 = vpop.f32.mrf.mxu0
    %v642 = vadd.f32 %v629, %v641
    %v643 = vpop.f32.mrf.mxu0
    %644 = vdwg.mxu0
    %645 = vmatpush.bf16.msra.mxu0 0
    %646 = vmatpush.bf16.msra.mxu0 0
    %647 = vmatpush.bf16.msra.mxu0 0
    %648 = vmatpush.bf16.msra.mxu0 0
    %649 = vmatpush.bf16.msra.mxu0 0
    %650 = vmatpush.bf16.msra.mxu0 0
    %651 = vmatpush.bf16.msra.mxu0 %v608
    %652 = vmatpush.bf16.msra.mxu0 %v526
    %653 = vmatmul.bf16.gmra.mxu0 %v604
    %v654 = vpop.f32.mrf.mxu0
    %v655 = vadd.f32 %v642, %v654
    %v656 = vpop.f32.mrf.mxu0
    %657 = vdwg.mxu0
    %658 = vmatpush.bf16.msra.mxu0 %v491
    %659 = vmatpush.bf16.msra.mxu0 %v487
    %660 = vmatpush.bf16.msra.mxu0 %v483
    %661 = vmatpush.bf16.msra.mxu0 %v479
    %662 = vmatpush.bf16.msra.mxu0 %v475
    %663 = vmatpush.bf16.msra.mxu0 %v471
    %664 = vmatpush.bf16.msra.mxu0 %v467
    %665 = vmatpush.bf16.msra.mxu0 %v463
    %666 = vmatmul.bf16.gmra.mxu0 %v247
    %v667 = vpop.f32.mrf.mxu0
    %v668 = vadd.f32 %v235, %v667
    %v669 = vpop.f32.mrf.mxu0
    %670 = vdwg.mxu0
    %671 = vmatpush.bf16.msra.mxu0 %v523
    %672 = vmatpush.bf16.msra.mxu0 %v519
    %673 = vmatpush.bf16.msra.mxu0 %v515
    %674 = vmatpush.bf16.msra.mxu0 %v511
    %675 = vmatpush.bf16.msra.mxu0 %v507
    %676 = vmatpush.bf16.msra.mxu0 %v503
    %677 = vmatpush.bf16.msra.mxu0 %v499
    %678 = vmatpush.bf16.msra.mxu0 %v495
    %679 = vmatmul.bf16.gmra.mxu0 %v248
    %v680 = vpop.f32.mrf.mxu0
    %v681 = vadd.f32 %v668, %v680
    %v682 = vpop.f32.mrf.mxu0
    %683 = vdwg.mxu0
    %684 = vmatpush.bf16.msra.mxu0 0
    %685 = vmatpush.bf16.msra.mxu0 0
    %686 = vmatpush.bf16.msra.mxu0 0
    %687 = vmatpush.bf16.msra.mxu0 0
    %688 = vmatpush.bf16.msra.mxu0 0
    %689 = vmatpush.bf16.msra.mxu0 0
    %690 = vmatpush.bf16.msra.mxu0 %v611
    %691 = vmatpush.bf16.msra.mxu0 %v527
    %692 = vmatmul.bf16.gmra.mxu0 %v604
    %v693 = vpop.f32.mrf.mxu0
    %v694 = vadd.f32 %v681, %v693
    %v695 = vpop.f32.mrf.mxu0
    %696 = vdwg.mxu0
    %697 = vmatpush.bf16.msra.mxu0 %v492
    %698 = vmatpush.bf16.msra.mxu0 %v488
    %699 = vmatpush.bf16.msra.mxu0 %v484
    %700 = vmatpush.bf16.msra.mxu0 %v480
    %701 = vmatpush.bf16.msra.mxu0 %v476
    %702 = vmatpush.bf16.msra.mxu0 %v472
    %703 = vmatpush.bf16.msra.mxu0 %v468
    %704 = vmatpush.bf16.msra.mxu0 %v464
    %705 = vmatmul.bf16.gmra.mxu0 %v247
    %v706 = vpop.f32.mrf.mxu0
    %v707 = vadd.f32 %v236, %v706
    %v708 = vpop.f32.mrf.mxu0
    %709 = vdwg.mxu0
    %710 = vmatpush.bf16.msra.mxu0 %v524
    %711 = vmatpush.bf16.msra.mxu0 %v520
    %712 = vmatpush.bf16.msra.mxu0 %v516
    %713 = vmatpush.bf16.msra.mxu0 %v512
    %714 = vmatpush.bf16.msra.mxu0 %v508
    %715 = vmatpush.bf16.msra.mxu0 %v504
    %716 = vmatpush.bf16.msra.mxu0 %v500
    %717 = vmatpush.bf16.msra.mxu0 %v496
    %718 = vmatmul.bf16.gmra.mxu0 %v248
    %v719 = vpop.f32.mrf.mxu0
    %v720 = vadd.f32 %v707, %v719
    %v721 = vpop.f32.mrf.mxu0
    %722 = vdwg.mxu0
    %723 = vmatpush.bf16.msra.mxu0 0
    %724 = vmatpush.bf16.msra.mxu0 0
    %725 = vmatpush.bf16.msra.mxu0 0
    %726 = vmatpush.bf16.msra.mxu0 0
    %727 = vmatpush.bf16.msra.mxu0 0
    %728 = vmatpush.bf16.msra.mxu0 0
    %729 = vmatpush.bf16.msra.mxu0 %v614
    %730 = vmatpush.bf16.msra.mxu0 %v528
    %731 = vmatmul.bf16.gmra.mxu0 %v604
    %v732 = vpop.f32.mrf.mxu0
    %v733 = vadd.f32 %v720, %v732
    %v734 = vpop.f32.mrf.mxu0
    %735 = vdwg.mxu0
    %736 = vmatpush.bf16.msra.mxu0 %v493
    %737 = vmatpush.bf16.msra.mxu0 %v489
    %738 = vmatpush.bf16.msra.mxu0 %v485
    %739 = vmatpush.bf16.msra.mxu0 %v481
    %740 = vmatpush.bf16.msra.mxu0 %v477
    %741 = vmatpush.bf16.msra.mxu0 %v473
    %742 = vmatpush.bf16.msra.mxu0 %v469
    %743 = vmatpush.bf16.msra.mxu0 %v465
    %744 = vmatmul.bf16.gmra.mxu0 %v247
    %v745 = vpop.f32.mrf.mxu0
    %v746 = vadd.f32 %v237, %v745
    %v747 = vpop.f32.mrf.mxu0
    %748 = vdwg.mxu0
    %749 = vmatpush.bf16.msra.mxu0 %v525
    %750 = vmatpush.bf16.msra.mxu0 %v521
    %751 = vmatpush.bf16.msra.mxu0 %v517
    %752 = vmatpush.bf16.msra.mxu0 %v513
    %753 = vmatpush.bf16.msra.mxu0 %v509
    %754 = vmatpush.bf16.msra.mxu0 %v505
    %755 = vmatpush.bf16.msra.mxu0 %v501
    %756 = vmatpush.bf16.msra.mxu0 %v497
    %757 = vmatmul.bf16.gmra.mxu0 %v248
    %v758 = vpop.f32.mrf.mxu0
    %v759 = vadd.f32 %v746, %v758
    %v760 = vpop.f32.mrf.mxu0
    %761 = vdwg.mxu0
    %762 = vmatpush.bf16.msra.mxu0 0
    %763 = vmatpush.bf16.msra.mxu0 0
    %764 = vmatpush.bf16.msra.mxu0 0
    %765 = vmatpush.bf16.msra.mxu0 0
    %766 = vmatpush.bf16.msra.mxu0 0
    %767 = vmatpush.bf16.msra.mxu0 0
    %768 = vmatpush.bf16.msra.mxu0 %v617
    %769 = vmatpush.bf16.msra.mxu0 %v529
    %770 = vmatmul.bf16.gmra.mxu0 %v604
    %v771 = vpop.f32.mrf.mxu0
    %v772 = vadd.f32 %v759, %v771
    %v773 = vpop.f32.mrf.mxu0
    %774 = vdwg.mxu0
    %v775 = vtanh.pop %v655
    %v776 = vtanh.pop %v694
    %v777 = vtanh.pop %v733
    %v778 = vtanh.pop %v772
    %v779 = vpack.c.bf16 %v775, %v775
    %v780 = vpack.c.bf16 %v776, %v776
    %v781 = vpack.c.bf16 %v777, %v777
    %v782 = vpack.c.bf16 %v778, %v778
    %v783 = vld [vmem:[#allocation5] sm:$0xff]
    %v784 = vld [vmem:[#allocation5 + $0x8] sm:$0xff]
    %v785 = vld [vmem:[#allocation5 + $0x10] sm:$0xff]
    %v786 = vld [vmem:[#allocation5 + $0x18] sm:$0xff]
    %v787 = vld [vmem:[#allocation5 + $0x20] sm:$0xff]
    %v788 = vld [vmem:[#allocation5 + $0x28] sm:$0xff]
    %v789 = vld [vmem:[#allocation5 + $0x30] sm:$0xff]
    %v790 = vld [vmem:[#allocation5 + $0x38] sm:$0xff]
    %v791 = vld [vmem:[#allocation5 + $0x40] sm:$0xff]
    %v792 = vld [vmem:[#allocation5 + $0x48] sm:$0xff]
    %v793 = vld [vmem:[#allocation5 + $0x50] sm:$0xff]
    %v794 = vld [vmem:[#allocation5 + $0x58] sm:$0xff]
    %v795 = vld [vmem:[#allocation5 + $0x60] sm:$0xff]
    %v796 = vld [vmem:[#allocation5 + $0x68] sm:$0xff]
    %v797 = vld [vmem:[#allocation5 + $0x70] sm:$0xff]
    %v798 = vld [vmem:[#allocation5 + $0x78] sm:$0xff]
    %v799 = vld [vmem:[#allocation5 + $0x80] sm:$0xff]
    %v800 = vld [vmem:[#allocation5 + $0x88] sm:$0xff]
    %v801 = vld [vmem:[#allocation5 + $0x90] sm:$0xff]
    %v802 = vld [vmem:[#allocation5 + $0x98] sm:$0xff]
    %v803 = vld [vmem:[#allocation5 + $0xa0] sm:$0xff]
    %v804 = vld [vmem:[#allocation5 + $0xa8] sm:$0xff]
    %v805 = vld [vmem:[#allocation5 + $0xb0] sm:$0xff]
    %v806 = vld [vmem:[#allocation5 + $0xb8] sm:$0xff]
    %v807 = vld [vmem:[#allocation5 + $0xc0] sm:$0xff]
    %v808 = vld [vmem:[#allocation5 + $0xc8] sm:$0xff]
    %v809 = vld [vmem:[#allocation5 + $0xd0] sm:$0xff]
    %v810 = vld [vmem:[#allocation5 + $0xd8] sm:$0xff]
    %v811 = vld [vmem:[#allocation5 + $0xe0] sm:$0xff]
    %v812 = vld [vmem:[#allocation5 + $0xe8] sm:$0xff]
    %v813 = vld [vmem:[#allocation5 + $0xf0] sm:$0xff]
    %v814 = vld [vmem:[#allocation5 + $0xf8] sm:$0xff]
    %v815 = vld [vmem:[#allocation5 + $0x100] sm:$0xff]
    %v816 = vld [vmem:[#allocation5 + $0x108] sm:$0xff]
    %v817 = vld [vmem:[#allocation5 + $0x110] sm:$0xff]
    %v818 = vld [vmem:[#allocation5 + $0x118] sm:$0xff]
    %v819 = vld [vmem:[#allocation5 + $0x120] sm:$0xff]
    %v820 = vld [vmem:[#allocation5 + $0x128] sm:$0xff]
    %v821 = vld [vmem:[#allocation5 + $0x130] sm:$0xff]
    %v822 = vld [vmem:[#allocation5 + $0x138] sm:$0xff]
    %v823 = vld [vmem:[#allocation5 + $0x140] sm:$0xff]
    %v824 = vld [vmem:[#allocation5 + $0x148] sm:$0xff]
    %v825 = vld [vmem:[#allocation5 + $0x150] sm:$0xff]
    %v826 = vld [vmem:[#allocation5 + $0x158] sm:$0xff]
    %v827 = vld [vmem:[#allocation5 + $0x160] sm:$0xff]
    %v828 = vld [vmem:[#allocation5 + $0x168] sm:$0xff]
    %v829 = vld [vmem:[#allocation5 + $0x170] sm:$0xff]
    %v830 = vld [vmem:[#allocation5 + $0x178] sm:$0xff]
    %v831 = vld [vmem:[#allocation5 + $0x180] sm:$0xff]
    %v832 = vld [vmem:[#allocation5 + $0x188] sm:$0xff]
    %v833 = vld [vmem:[#allocation5 + $0x190] sm:$0xff]
    %v834 = vld [vmem:[#allocation5 + $0x198] sm:$0xff]
    %v835 = vld [vmem:[#allocation5 + $0x1a0] sm:$0xff]
    %v836 = vld [vmem:[#allocation5 + $0x1a8] sm:$0xff]
    %v837 = vld [vmem:[#allocation5 + $0x1b0] sm:$0xff]
    %v838 = vld [vmem:[#allocation5 + $0x1b8] sm:$0xff]
    %v839 = vld [vmem:[#allocation5 + $0x1c0] sm:$0xff]
    %v840 = vld [vmem:[#allocation5 + $0x1c8] sm:$0xff]
    %v841 = vld [vmem:[#allocation5 + $0x1d0] sm:$0xff]
    %v842 = vld [vmem:[#allocation5 + $0x1d8] sm:$0xff]
    %v843 = vld [vmem:[#allocation5 + $0x1e0] sm:$0xff]
    %v844 = vld [vmem:[#allocation5 + $0x1e8] sm:$0xff]
    %v845 = vld [vmem:[#allocation5 + $0x1f0] sm:$0xff]
    %v846 = vld [vmem:[#allocation5 + $0x1f8] sm:$0xff]
    %v847 = vld [vmem:[#allocation5 + $0x200] sm:$0xff]
    %v848 = vld [vmem:[#allocation5 + $0x208] sm:$0xff]
    %v849 = vld [vmem:[#allocation5 + $0x210] sm:$0xff]
    %v850 = vld [vmem:[#allocation5 + $0x218] sm:$0xff]
    %v851 = vld [vmem:[#allocation5 + $0x220] sm:$0xff]
    %v852 = vld [vmem:[#allocation5 + $0x228] sm:$0xff]
    %v853 = vld [vmem:[#allocation5 + $0x230] sm:$0xff]
    %v854 = vld [vmem:[#allocation5 + $0x238] sm:$0xff]
    %v855 = vld [vmem:[#allocation5 + $0x240] sm:$0xff]
    %v856 = vld [vmem:[#allocation5 + $0x248] sm:$0xff]
    %v857 = vld [vmem:[#allocation5 + $0x250] sm:$0xff]
    %v858 = vld [vmem:[#allocation5 + $0x258] sm:$0xff]
    %v859 = vld [vmem:[#allocation5 + $0x260] sm:$0xff]
    %v860 = vld [vmem:[#allocation5 + $0x268] sm:$0xff]
    %v861 = vld [vmem:[#allocation5 + $0x270] sm:$0xff]
    %v862 = vld [vmem:[#allocation5 + $0x278] sm:$0xff]
    %v863 = vld [vmem:[#allocation5 + $0x280] sm:$0xff]
    %v864 = vld [vmem:[#allocation5 + $0x288] sm:$0xff]
    %v865 = vld [vmem:[#allocation5 + $0x290] sm:$0xff]
    %v866 = vld [vmem:[#allocation5 + $0x298] sm:$0xff]
    %v867 = vld [vmem:[#allocation5 + $0x2a0] sm:$0xff]
    %v868 = vld [vmem:[#allocation5 + $0x2a8] sm:$0xff]
    %v869 = vld [vmem:[#allocation5 + $0x2b0] sm:$0xff]
    %v870 = vld [vmem:[#allocation5 + $0x2b8] sm:$0xff]
    %v871 = vld [vmem:[#allocation5 + $0x2c0] sm:$0xff]
    %v872 = vld [vmem:[#allocation5 + $0x2c8] sm:$0xff]
    %v873 = vld [vmem:[#allocation5 + $0x2d0] sm:$0xff]
    %v874 = vld [vmem:[#allocation5 + $0x2d8] sm:$0xff]
    %v875 = vld [vmem:[#allocation5 + $0x2e0] sm:$0xff]
    %v876 = vld [vmem:[#allocation5 + $0x2e8] sm:$0xff]
    %v877 = vld [vmem:[#allocation5 + $0x2f0] sm:$0xff]
    %v878 = vld [vmem:[#allocation5 + $0x2f8] sm:$0xff]
    %v879 = vld [vmem:[#allocation5 + $0x300] sm:$0xff]
    %v880 = vld [vmem:[#allocation5 + $0x308] sm:$0xff]
    %v881 = vld [vmem:[#allocation5 + $0x310] sm:$0xff]
    %v882 = vld [vmem:[#allocation5 + $0x318] sm:$0xff]
    %v883 = vld [vmem:[#allocation5 + $0x320] sm:$0xff]
    %v884 = vld [vmem:[#allocation5 + $0x328] sm:$0xff]
    %v885 = vld [vmem:[#allocation5 + $0x330] sm:$0xff]
    %v886 = vld [vmem:[#allocation5 + $0x338] sm:$0xff]
    %v887 = vld [vmem:[#allocation5 + $0x340] sm:$0xff]
    %v888 = vld [vmem:[#allocation5 + $0x348] sm:$0xff]
    %v889 = vld [vmem:[#allocation5 + $0x350] sm:$0xff]
    %v890 = vld [vmem:[#allocation5 + $0x358] sm:$0xff]
    %v891 = vld [vmem:[#allocation5 + $0x360] sm:$0xff]
    %v892 = vld [vmem:[#allocation5 + $0x368] sm:$0xff]
    %v893 = vld [vmem:[#allocation5 + $0x370] sm:$0xff]
    %v894 = vld [vmem:[#allocation5 + $0x378] sm:$0xff]
    %v895 = vld [vmem:[#allocation5 + $0x380] sm:$0xff]
    %v896 = vld [vmem:[#allocation5 + $0x388] sm:$0xff]
    %v897 = vld [vmem:[#allocation5 + $0x390] sm:$0xff]
    %v898 = vld [vmem:[#allocation5 + $0x398] sm:$0xff]
    %v899 = vld [vmem:[#allocation5 + $0x3a0] sm:$0xff]
    %v900 = vld [vmem:[#allocation5 + $0x3a8] sm:$0xff]
    %v901 = vld [vmem:[#allocation5 + $0x3b0] sm:$0xff]
    %v902 = vld [vmem:[#allocation5 + $0x3b8] sm:$0xff]
    %v903 = vld [vmem:[#allocation5 + $0x3c0] sm:$0xff]
    %v904 = vld [vmem:[#allocation5 + $0x3c8] sm:$0xff]
    %v905 = vld [vmem:[#allocation5 + $0x3d0] sm:$0xff]
    %v906 = vld [vmem:[#allocation5 + $0x3d8] sm:$0xff]
    %v907 = vld [vmem:[#allocation5 + $0x3e0] sm:$0x33]
    %v908 = vld [vmem:[#allocation5 + $0x3e8] sm:$0x33]
    %v909 = vld [vmem:[%s4] sm:$0xf]
    %v911 = vperm.slane %v909, 0
    %v912 = vperm.slane %v909, 1
    %v913 = vperm.slane %v909, 2
    %v914 = vperm.slane %v909, 3
    %v1045 = vunpack.c.l.b16 %v783
    %v1046 = vunpack.c.h.b16 %v783
    %v1047 = vunpack.c.l.b16 %v784
    %v1048 = vunpack.c.h.b16 %v784
    %v1049 = vunpack.c.l.b16 %v785
    %v1050 = vunpack.c.h.b16 %v785
    %v1051 = vunpack.c.l.b16 %v786
    %v1052 = vunpack.c.h.b16 %v786
    %v1053 = vunpack.c.l.b16 %v787
    %v1054 = vunpack.c.h.b16 %v787
    %v1055 = vunpack.c.l.b16 %v788
    %v1056 = vunpack.c.h.b16 %v788
    %v1057 = vunpack.c.l.b16 %v789
    %v1058 = vunpack.c.h.b16 %v789
    %v1059 = vunpack.c.l.b16 %v790
    %v1060 = vunpack.c.h.b16 %v790
    %v1061 = vunpack.c.l.b16 %v791
    %v1062 = vunpack.c.h.b16 %v791
    %v1063 = vunpack.c.l.b16 %v792
    %v1064 = vunpack.c.h.b16 %v792
    %v1065 = vunpack.c.l.b16 %v793
    %v1066 = vunpack.c.h.b16 %v793
    %v1067 = vunpack.c.l.b16 %v794
    %v1068 = vunpack.c.h.b16 %v794
    %v1069 = vunpack.c.l.b16 %v795
    %v1070 = vunpack.c.h.b16 %v795
    %v1071 = vunpack.c.l.b16 %v796
    %v1072 = vunpack.c.h.b16 %v796
    %v1073 = vunpack.c.l.b16 %v797
    %v1074 = vunpack.c.h.b16 %v797
    %v1075 = vunpack.c.l.b16 %v798
    %v1076 = vunpack.c.h.b16 %v798
    %v1077 = vunpack.c.l.b16 %v799
    %v1078 = vunpack.c.h.b16 %v799
    %v1079 = vunpack.c.l.b16 %v800
    %v1080 = vunpack.c.h.b16 %v800
    %v1081 = vunpack.c.l.b16 %v801
    %v1082 = vunpack.c.h.b16 %v801
    %v1083 = vunpack.c.l.b16 %v802
    %v1084 = vunpack.c.h.b16 %v802
    %v1085 = vunpack.c.l.b16 %v803
    %v1086 = vunpack.c.h.b16 %v803
    %v1087 = vunpack.c.l.b16 %v804
    %v1088 = vunpack.c.h.b16 %v804
    %v1089 = vunpack.c.l.b16 %v805
    %v1090 = vunpack.c.h.b16 %v805
    %v1091 = vunpack.c.l.b16 %v806
    %v1092 = vunpack.c.h.b16 %v806
    %v1093 = vunpack.c.l.b16 %v807
    %v1094 = vunpack.c.h.b16 %v807
    %v1095 = vunpack.c.l.b16 %v808
    %v1096 = vunpack.c.h.b16 %v808
    %v1097 = vunpack.c.l.b16 %v809
    %v1098 = vunpack.c.h.b16 %v809
    %v1099 = vunpack.c.l.b16 %v810
    %v1100 = vunpack.c.h.b16 %v810
    %v1101 = vunpack.c.l.b16 %v811
    %v1102 = vunpack.c.h.b16 %v811
    %v1103 = vunpack.c.l.b16 %v812
    %v1104 = vunpack.c.h.b16 %v812
    %v1105 = vunpack.c.l.b16 %v813
    %v1106 = vunpack.c.h.b16 %v813
    %v1107 = vunpack.c.l.b16 %v814
    %v1108 = vunpack.c.h.b16 %v814
    %v1109 = vunpack.c.l.b16 %v815
    %v1110 = vunpack.c.h.b16 %v815
    %v1111 = vunpack.c.l.b16 %v816
    %v1112 = vunpack.c.h.b16 %v816
    %v1113 = vunpack.c.l.b16 %v817
    %v1114 = vunpack.c.h.b16 %v817
    %v1115 = vunpack.c.l.b16 %v818
    %v1116 = vunpack.c.h.b16 %v818
    %v1117 = vunpack.c.l.b16 %v819
    %v1118 = vunpack.c.h.b16 %v819
    %v1119 = vunpack.c.l.b16 %v820
    %v1120 = vunpack.c.h.b16 %v820
    %v1121 = vunpack.c.l.b16 %v821
    %v1122 = vunpack.c.h.b16 %v821
    %v1123 = vunpack.c.l.b16 %v822
    %v1124 = vunpack.c.h.b16 %v822
    %v1125 = vunpack.c.l.b16 %v823
    %v1126 = vunpack.c.h.b16 %v823
    %v1127 = vunpack.c.l.b16 %v824
    %v1128 = vunpack.c.h.b16 %v824
    %v1129 = vunpack.c.l.b16 %v825
    %v1130 = vunpack.c.h.b16 %v825
    %v1131 = vunpack.c.l.b16 %v826
    %v1132 = vunpack.c.h.b16 %v826
    %v1133 = vunpack.c.l.b16 %v827
    %v1134 = vunpack.c.h.b16 %v827
    %v1135 = vunpack.c.l.b16 %v828
    %v1136 = vunpack.c.h.b16 %v828
    %v1137 = vunpack.c.l.b16 %v829
    %v1138 = vunpack.c.h.b16 %v829
    %v1139 = vunpack.c.l.b16 %v830
    %v1140 = vunpack.c.h.b16 %v830
    %v1141 = vunpack.c.l.b16 %v831
    %v1142 = vunpack.c.h.b16 %v831
    %v1143 = vunpack.c.l.b16 %v832
    %v1144 = vunpack.c.h.b16 %v832
    %v1145 = vunpack.c.l.b16 %v833
    %v1146 = vunpack.c.h.b16 %v833
    %v1147 = vunpack.c.l.b16 %v834
    %v1148 = vunpack.c.h.b16 %v834
    %v1149 = vunpack.c.l.b16 %v835
    %v1150 = vunpack.c.h.b16 %v835
    %v1151 = vunpack.c.l.b16 %v836
    %v1152 = vunpack.c.h.b16 %v836
    %v1153 = vunpack.c.l.b16 %v837
    %v1154 = vunpack.c.h.b16 %v837
    %v1155 = vunpack.c.l.b16 %v838
    %v1156 = vunpack.c.h.b16 %v838
    %v1157 = vunpack.c.l.b16 %v839
    %v1158 = vunpack.c.h.b16 %v839
    %v1159 = vunpack.c.l.b16 %v840
    %v1160 = vunpack.c.h.b16 %v840
    %v1161 = vunpack.c.l.b16 %v841
    %v1162 = vunpack.c.h.b16 %v841
    %v1163 = vunpack.c.l.b16 %v842
    %v1164 = vunpack.c.h.b16 %v842
    %v1165 = vunpack.c.l.b16 %v843
    %v1166 = vunpack.c.h.b16 %v843
    %v1167 = vunpack.c.l.b16 %v844
    %v1168 = vunpack.c.h.b16 %v844
    %v1169 = vunpack.c.l.b16 %v845
    %v1170 = vunpack.c.h.b16 %v845
    %v1171 = vunpack.c.l.b16 %v846
    %v1172 = vunpack.c.h.b16 %v846
    %v1173 = vunpack.c.l.b16 %v847
    %v1174 = vunpack.c.h.b16 %v847
    %v1175 = vunpack.c.l.b16 %v848
    %v1176 = vunpack.c.h.b16 %v848
    %v1177 = vunpack.c.l.b16 %v849
    %v1178 = vunpack.c.h.b16 %v849
    %v1179 = vunpack.c.l.b16 %v850
    %v1180 = vunpack.c.h.b16 %v850
    %v1181 = vunpack.c.l.b16 %v851
    %v1182 = vunpack.c.h.b16 %v851
    %v1183 = vunpack.c.l.b16 %v852
    %v1184 = vunpack.c.h.b16 %v852
    %v1185 = vunpack.c.l.b16 %v853
    %v1186 = vunpack.c.h.b16 %v853
    %v1187 = vunpack.c.l.b16 %v854
    %v1188 = vunpack.c.h.b16 %v854
    %v1189 = vunpack.c.l.b16 %v855
    %v1190 = vunpack.c.h.b16 %v855
    %v1191 = vunpack.c.l.b16 %v856
    %v1192 = vunpack.c.h.b16 %v856
    %v1193 = vunpack.c.l.b16 %v857
    %v1194 = vunpack.c.h.b16 %v857
    %v1195 = vunpack.c.l.b16 %v858
    %v1196 = vunpack.c.h.b16 %v858
    %v1197 = vunpack.c.l.b16 %v859
    %v1198 = vunpack.c.h.b16 %v859
    %v1199 = vunpack.c.l.b16 %v860
    %v1200 = vunpack.c.h.b16 %v860
    %v1201 = vunpack.c.l.b16 %v861
    %v1202 = vunpack.c.h.b16 %v861
    %v1203 = vunpack.c.l.b16 %v862
    %v1204 = vunpack.c.h.b16 %v862
    %v1205 = vunpack.c.l.b16 %v863
    %v1206 = vunpack.c.h.b16 %v863
    %v1207 = vunpack.c.l.b16 %v864
    %v1208 = vunpack.c.h.b16 %v864
    %v1209 = vunpack.c.l.b16 %v865
    %v1210 = vunpack.c.h.b16 %v865
    %v1211 = vunpack.c.l.b16 %v866
    %v1212 = vunpack.c.h.b16 %v866
    %v1213 = vunpack.c.l.b16 %v867
    %v1214 = vunpack.c.h.b16 %v867
    %v1215 = vunpack.c.l.b16 %v868
    %v1216 = vunpack.c.h.b16 %v868
    %v1217 = vunpack.c.l.b16 %v869
    %v1218 = vunpack.c.h.b16 %v869
    %v1219 = vunpack.c.l.b16 %v870
    %v1220 = vunpack.c.h.b16 %v870
    %v1221 = vunpack.c.l.b16 %v871
    %v1222 = vunpack.c.h.b16 %v871
    %v1223 = vunpack.c.l.b16 %v872
    %v1224 = vunpack.c.h.b16 %v872
    %v1225 = vunpack.c.l.b16 %v873
    %v1226 = vunpack.c.h.b16 %v873
    %v1227 = vunpack.c.l.b16 %v874
    %v1228 = vunpack.c.h.b16 %v874
    %v1229 = vunpack.c.l.b16 %v875
    %v1230 = vunpack.c.h.b16 %v875
    %v1231 = vunpack.c.l.b16 %v876
    %v1232 = vunpack.c.h.b16 %v876
    %v1233 = vunpack.c.l.b16 %v877
    %v1234 = vunpack.c.h.b16 %v877
    %v1235 = vunpack.c.l.b16 %v878
    %v1236 = vunpack.c.h.b16 %v878
    %v1237 = vunpack.c.l.b16 %v879
    %v1238 = vunpack.c.h.b16 %v879
    %v1239 = vunpack.c.l.b16 %v880
    %v1240 = vunpack.c.h.b16 %v880
    %v1241 = vunpack.c.l.b16 %v881
    %v1242 = vunpack.c.h.b16 %v881
    %v1243 = vunpack.c.l.b16 %v882
    %v1244 = vunpack.c.h.b16 %v882
    %v1245 = vunpack.c.l.b16 %v883
    %v1246 = vunpack.c.h.b16 %v883
    %v1247 = vunpack.c.l.b16 %v884
    %v1248 = vunpack.c.h.b16 %v884
    %v1249 = vunpack.c.l.b16 %v885
    %v1250 = vunpack.c.h.b16 %v885
    %v1251 = vunpack.c.l.b16 %v886
    %v1252 = vunpack.c.h.b16 %v886
    %v1253 = vunpack.c.l.b16 %v887
    %v1254 = vunpack.c.h.b16 %v887
    %v1255 = vunpack.c.l.b16 %v888
    %v1256 = vunpack.c.h.b16 %v888
    %v1257 = vunpack.c.l.b16 %v889
    %v1258 = vunpack.c.h.b16 %v889
    %v1259 = vunpack.c.l.b16 %v890
    %v1260 = vunpack.c.h.b16 %v890
    %v1261 = vunpack.c.l.b16 %v891
    %v1262 = vunpack.c.h.b16 %v891
    %v1263 = vunpack.c.l.b16 %v892
    %v1264 = vunpack.c.h.b16 %v892
    %v1265 = vunpack.c.l.b16 %v893
    %v1266 = vunpack.c.h.b16 %v893
    %v1267 = vunpack.c.l.b16 %v894
    %v1268 = vunpack.c.h.b16 %v894
    %v1269 = vunpack.c.l.b16 %v895
    %v1270 = vunpack.c.h.b16 %v895
    %v1271 = vunpack.c.l.b16 %v896
    %v1272 = vunpack.c.h.b16 %v896
    %v1273 = vunpack.c.l.b16 %v897
    %v1274 = vunpack.c.h.b16 %v897
    %v1275 = vunpack.c.l.b16 %v898
    %v1276 = vunpack.c.h.b16 %v898
    %v1277 = vunpack.c.l.b16 %v899
    %v1278 = vunpack.c.h.b16 %v899
    %v1279 = vunpack.c.l.b16 %v900
    %v1280 = vunpack.c.h.b16 %v900
    %v1281 = vunpack.c.l.b16 %v901
    %v1282 = vunpack.c.h.b16 %v901
    %v1283 = vunpack.c.l.b16 %v902
    %v1284 = vunpack.c.h.b16 %v902
    %v1285 = vunpack.c.l.b16 %v903
    %v1286 = vunpack.c.h.b16 %v903
    %v1287 = vunpack.c.l.b16 %v904
    %v1288 = vunpack.c.h.b16 %v904
    %v1289 = vunpack.c.l.b16 %v905
    %v1290 = vunpack.c.h.b16 %v905
    %v1291 = vunpack.c.l.b16 %v906
    %v1292 = vunpack.c.h.b16 %v906
    %v1293 = vunpack.c.l.b16 %v907
    %v1294 = vunpack.c.h.b16 %v907
    %v1295 = vunpack.c.l.b16 %v908
    %v1296 = vunpack.c.h.b16 %v908
    %v1297 = vpack.c.b16 %v1049, %v1045
    %v1298 = vpack.c.b16 %v1050, %v1046
    %v1299 = vpack.c.b16 %v1051, %v1047
    %v1300 = vpack.c.b16 %v1052, %v1048
    %v1301 = vpack.c.b16 %v1057, %v1053
    %v1302 = vpack.c.b16 %v1058, %v1054
    %v1303 = vpack.c.b16 %v1059, %v1055
    %v1304 = vpack.c.b16 %v1060, %v1056
    %v1305 = vpack.c.b16 %v1065, %v1061
    %v1306 = vpack.c.b16 %v1066, %v1062
    %v1307 = vpack.c.b16 %v1067, %v1063
    %v1308 = vpack.c.b16 %v1068, %v1064
    %v1309 = vpack.c.b16 %v1073, %v1069
    %v1310 = vpack.c.b16 %v1074, %v1070
    %v1311 = vpack.c.b16 %v1075, %v1071
    %v1312 = vpack.c.b16 %v1076, %v1072
    %v1313 = vpack.c.b16 %v1081, %v1077
    %v1314 = vpack.c.b16 %v1082, %v1078
    %v1315 = vpack.c.b16 %v1083, %v1079
    %v1316 = vpack.c.b16 %v1084, %v1080
    %v1317 = vpack.c.b16 %v1089, %v1085
    %v1318 = vpack.c.b16 %v1090, %v1086
    %v1319 = vpack.c.b16 %v1091, %v1087
    %v1320 = vpack.c.b16 %v1092, %v1088
    %v1321 = vpack.c.b16 %v1097, %v1093
    %v1322 = vpack.c.b16 %v1098, %v1094
    %v1323 = vpack.c.b16 %v1099, %v1095
    %v1324 = vpack.c.b16 %v1100, %v1096
    %v1325 = vpack.c.b16 %v1105, %v1101
    %v1326 = vpack.c.b16 %v1106, %v1102
    %v1327 = vpack.c.b16 %v1107, %v1103
    %v1328 = vpack.c.b16 %v1108, %v1104
    %v1329 = vpack.c.b16 %v1113, %v1109
    %v1330 = vpack.c.b16 %v1114, %v1110
    %v1331 = vpack.c.b16 %v1115, %v1111
    %v1332 = vpack.c.b16 %v1116, %v1112
    %v1333 = vpack.c.b16 %v1121, %v1117
    %v1334 = vpack.c.b16 %v1122, %v1118
    %v1335 = vpack.c.b16 %v1123, %v1119
    %v1336 = vpack.c.b16 %v1124, %v1120
    %v1337 = vpack.c.b16 %v1129, %v1125
    %v1338 = vpack.c.b16 %v1130, %v1126
    %v1339 = vpack.c.b16 %v1131, %v1127
    %v1340 = vpack.c.b16 %v1132, %v1128
    %v1341 = vpack.c.b16 %v1137, %v1133
    %v1342 = vpack.c.b16 %v1138, %v1134
    %v1343 = vpack.c.b16 %v1139, %v1135
    %v1344 = vpack.c.b16 %v1140, %v1136
    %v1345 = vpack.c.b16 %v1145, %v1141
    %v1346 = vpack.c.b16 %v1146, %v1142
    %v1347 = vpack.c.b16 %v1147, %v1143
    %v1348 = vpack.c.b16 %v1148, %v1144
    %v1349 = vpack.c.b16 %v1153, %v1149
    %v1350 = vpack.c.b16 %v1154, %v1150
    %v1351 = vpack.c.b16 %v1155, %v1151
    %v1352 = vpack.c.b16 %v1156, %v1152
    %v1353 = vpack.c.b16 %v1161, %v1157
    %v1354 = vpack.c.b16 %v1162, %v1158
    %v1355 = vpack.c.b16 %v1163, %v1159
    %v1356 = vpack.c.b16 %v1164, %v1160
    %v1357 = vpack.c.b16 %v1169, %v1165
    %v1358 = vpack.c.b16 %v1170, %v1166
    %v1359 = vpack.c.b16 %v1171, %v1167
    %v1360 = vpack.c.b16 %v1172, %v1168
    %v1361 = vpack.c.b16 %v1177, %v1173
    %v1362 = vpack.c.b16 %v1178, %v1174
    %v1363 = vpack.c.b16 %v1179, %v1175
    %v1364 = vpack.c.b16 %v1180, %v1176
    %v1365 = vpack.c.b16 %v1185, %v1181
    %v1366 = vpack.c.b16 %v1186, %v1182
    %v1367 = vpack.c.b16 %v1187, %v1183
    %v1368 = vpack.c.b16 %v1188, %v1184
    %v1369 = vpack.c.b16 %v1193, %v1189
    %v1370 = vpack.c.b16 %v1194, %v1190
    %v1371 = vpack.c.b16 %v1195, %v1191
    %v1372 = vpack.c.b16 %v1196, %v1192
    %v1373 = vpack.c.b16 %v1201, %v1197
    %v1374 = vpack.c.b16 %v1202, %v1198
    %v1375 = vpack.c.b16 %v1203, %v1199
    %v1376 = vpack.c.b16 %v1204, %v1200
    %v1377 = vpack.c.b16 %v1209, %v1205
    %v1378 = vpack.c.b16 %v1210, %v1206
    %v1379 = vpack.c.b16 %v1211, %v1207
    %v1380 = vpack.c.b16 %v1212, %v1208
    %v1381 = vpack.c.b16 %v1217, %v1213
    %v1382 = vpack.c.b16 %v1218, %v1214
    %v1383 = vpack.c.b16 %v1219, %v1215
    %v1384 = vpack.c.b16 %v1220, %v1216
    %v1385 = vpack.c.b16 %v1225, %v1221
    %v1386 = vpack.c.b16 %v1226, %v1222
    %v1387 = vpack.c.b16 %v1227, %v1223
    %v1388 = vpack.c.b16 %v1228, %v1224
    %v1389 = vpack.c.b16 %v1233, %v1229
    %v1390 = vpack.c.b16 %v1234, %v1230
    %v1391 = vpack.c.b16 %v1235, %v1231
    %v1392 = vpack.c.b16 %v1236, %v1232
    %v1393 = vpack.c.b16 %v1241, %v1237
    %v1394 = vpack.c.b16 %v1242, %v1238
    %v1395 = vpack.c.b16 %v1243, %v1239
    %v1396 = vpack.c.b16 %v1244, %v1240
    %v1397 = vpack.c.b16 %v1249, %v1245
    %v1398 = vpack.c.b16 %v1250, %v1246
    %v1399 = vpack.c.b16 %v1251, %v1247
    %v1400 = vpack.c.b16 %v1252, %v1248
    %v1401 = vpack.c.b16 %v1257, %v1253
    %v1402 = vpack.c.b16 %v1258, %v1254
    %v1403 = vpack.c.b16 %v1259, %v1255
    %v1404 = vpack.c.b16 %v1260, %v1256
    %v1405 = vpack.c.b16 %v1265, %v1261
    %v1406 = vpack.c.b16 %v1266, %v1262
    %v1407 = vpack.c.b16 %v1267, %v1263
    %v1408 = vpack.c.b16 %v1268, %v1264
    %v1409 = vpack.c.b16 %v1273, %v1269
    %v1410 = vpack.c.b16 %v1274, %v1270
    %v1411 = vpack.c.b16 %v1275, %v1271
    %v1412 = vpack.c.b16 %v1276, %v1272
    %v1413 = vpack.c.b16 %v1281, %v1277
    %v1414 = vpack.c.b16 %v1282, %v1278
    %v1415 = vpack.c.b16 %v1283, %v1279
    %v1416 = vpack.c.b16 %v1284, %v1280
    %v1417 = vpack.c.b16 %v1289, %v1285
    %v1418 = vpack.c.b16 %v1290, %v1286
    %v1419 = vpack.c.b16 %v1291, %v1287
    %v1420 = vpack.c.b16 %v1292, %v1288
    %v1421 = vpack.c.b16 %v1293, %v1293
    %v1422 = vpack.c.b16 %v1294, %v1294
    %v1423 = vpack.c.b16 %v1295, %v1295
    %v1424 = vpack.c.b16 %v1296, %v1296
    %vm1549 = vcmask 949248
    %v1551 = vsel %vm1549, %v782, 0
    %v1554 = vsel %vm606, %v1421, 0
    %v1557 = vsel %vm606, %v1422, 0
    %v1560 = vsel %vm606, %v1423, 0
    %v1563 = vsel %vm606, %v1424, 0
    %1565 = vmatpush.bf16.msra.mxu0 %v1325
    %1566 = vmatpush.bf16.msra.mxu0 %v1321
    %1567 = vmatpush.bf16.msra.mxu0 %v1317
    %1568 = vmatpush.bf16.msra.mxu0 %v1313
    %1569 = vmatpush.bf16.msra.mxu0 %v1309
    %1570 = vmatpush.bf16.msra.mxu0 %v1305
    %1571 = vmatpush.bf16.msra.mxu0 %v1301
    %1572 = vmatpush.bf16.msra.mxu0 %v1297
    %1573 = vmatmul.bf16.gmra.mxu0 %v779
    %v1574 = vpop.f32.mrf.mxu0
    %v1575 = vadd.f32 %v911, %v1574
    %v1576 = vpop.f32.mrf.mxu0
    %1577 = vdwg.mxu0
    %1578 = vmatpush.bf16.msra.mxu0 %v1357
    %1579 = vmatpush.bf16.msra.mxu0 %v1353
    %1580 = vmatpush.bf16.msra.mxu0 %v1349
    %1581 = vmatpush.bf16.msra.mxu0 %v1345
    %1582 = vmatpush.bf16.msra.mxu0 %v1341
    %1583 = vmatpush.bf16.msra.mxu0 %v1337
    %1584 = vmatpush.bf16.msra.mxu0 %v1333
    %1585 = vmatpush.bf16.msra.mxu0 %v1329
    %1586 = vmatmul.bf16.gmra.mxu0 %v780
    %v1587 = vpop.f32.mrf.mxu0
    %v1588 = vadd.f32 %v1575, %v1587
    %v1589 = vpop.f32.mrf.mxu0
    %1590 = vdwg.mxu0
    %1591 = vmatpush.bf16.msra.mxu0 %v1389
    %1592 = vmatpush.bf16.msra.mxu0 %v1385
    %1593 = vmatpush.bf16.msra.mxu0 %v1381
    %1594 = vmatpush.bf16.msra.mxu0 %v1377
    %1595 = vmatpush.bf16.msra.mxu0 %v1373
    %1596 = vmatpush.bf16.msra.mxu0 %v1369
    %1597 = vmatpush.bf16.msra.mxu0 %v1365
    %1598 = vmatpush.bf16.msra.mxu0 %v1361
    %1599 = vmatmul.bf16.gmra.mxu0 %v781
    %v1600 = vpop.f32.mrf.mxu0
    %v1601 = vadd.f32 %v1588, %v1600
    %v1602 = vpop.f32.mrf.mxu0
    %1603 = vdwg.mxu0
    %1604 = vmatpush.bf16.msra.mxu0 %v1554
    %1605 = vmatpush.bf16.msra.mxu0 %v1417
    %1606 = vmatpush.bf16.msra.mxu0 %v1413
    %1607 = vmatpush.bf16.msra.mxu0 %v1409
    %1608 = vmatpush.bf16.msra.mxu0 %v1405
    %1609 = vmatpush.bf16.msra.mxu0 %v1401
    %1610 = vmatpush.bf16.msra.mxu0 %v1397
    %1611 = vmatpush.bf16.msra.mxu0 %v1393
    %1612 = vmatmul.bf16.gmra.mxu0 %v1551
    %v1613 = vpop.f32.mrf.mxu0
    %v1614 = vadd.f32 %v1601, %v1613
    %v1615 = vpop.f32.mrf.mxu0
    %1616 = vdwg.mxu0
    %1617 = vmatpush.bf16.msra.mxu0 %v1326
    %1618 = vmatpush.bf16.msra.mxu0 %v1322
    %1619 = vmatpush.bf16.msra.mxu0 %v1318
    %1620 = vmatpush.bf16.msra.mxu0 %v1314
    %1621 = vmatpush.bf16.msra.mxu0 %v1310
    %1622 = vmatpush.bf16.msra.mxu0 %v1306
    %1623 = vmatpush.bf16.msra.mxu0 %v1302
    %1624 = vmatpush.bf16.msra.mxu0 %v1298
    %1625 = vmatmul.bf16.gmra.mxu0 %v779
    %v1626 = vpop.f32.mrf.mxu0
    %v1627 = vadd.f32 %v912, %v1626
    %v1628 = vpop.f32.mrf.mxu0
    %1629 = vdwg.mxu0
    %1630 = vmatpush.bf16.msra.mxu0 %v1358
    %1631 = vmatpush.bf16.msra.mxu0 %v1354
    %1632 = vmatpush.bf16.msra.mxu0 %v1350
    %1633 = vmatpush.bf16.msra.mxu0 %v1346
    %1634 = vmatpush.bf16.msra.mxu0 %v1342
    %1635 = vmatpush.bf16.msra.mxu0 %v1338
    %1636 = vmatpush.bf16.msra.mxu0 %v1334
    %1637 = vmatpush.bf16.msra.mxu0 %v1330
    %1638 = vmatmul.bf16.gmra.mxu0 %v780
    %v1639 = vpop.f32.mrf.mxu0
    %v1640 = vadd.f32 %v1627, %v1639
    %v1641 = vpop.f32.mrf.mxu0
    %1642 = vdwg.mxu0
    %1643 = vmatpush.bf16.msra.mxu0 %v1390
    %1644 = vmatpush.bf16.msra.mxu0 %v1386
    %1645 = vmatpush.bf16.msra.mxu0 %v1382
    %1646 = vmatpush.bf16.msra.mxu0 %v1378
    %1647 = vmatpush.bf16.msra.mxu0 %v1374
    %1648 = vmatpush.bf16.msra.mxu0 %v1370
    %1649 = vmatpush.bf16.msra.mxu0 %v1366
    %1650 = vmatpush.bf16.msra.mxu0 %v1362
    %1651 = vmatmul.bf16.gmra.mxu0 %v781
    %v1652 = vpop.f32.mrf.mxu0
    %v1653 = vadd.f32 %v1640, %v1652
    %v1654 = vpop.f32.mrf.mxu0
    %1655 = vdwg.mxu0
    %1656 = vmatpush.bf16.msra.mxu0 %v1557
    %1657 = vmatpush.bf16.msra.mxu0 %v1418
    %1658 = vmatpush.bf16.msra.mxu0 %v1414
    %1659 = vmatpush.bf16.msra.mxu0 %v1410
    %1660 = vmatpush.bf16.msra.mxu0 %v1406
    %1661 = vmatpush.bf16.msra.mxu0 %v1402
    %1662 = vmatpush.bf16.msra.mxu0 %v1398
    %1663 = vmatpush.bf16.msra.mxu0 %v1394
    %1664 = vmatmul.bf16.gmra.mxu0 %v1551
    %v1665 = vpop.f32.mrf.mxu0
    %v1666 = vadd.f32 %v1653, %v1665
    %v1667 = vpop.f32.mrf.mxu0
    %1668 = vdwg.mxu0
    %1669 = vmatpush.bf16.msra.mxu0 %v1327
    %1670 = vmatpush.bf16.msra.mxu0 %v1323
    %1671 = vmatpush.bf16.msra.mxu0 %v1319
    %1672 = vmatpush.bf16.msra.mxu0 %v1315
    %1673 = vmatpush.bf16.msra.mxu0 %v1311
    %1674 = vmatpush.bf16.msra.mxu0 %v1307
    %1675 = vmatpush.bf16.msra.mxu0 %v1303
    %1676 = vmatpush.bf16.msra.mxu0 %v1299
    %1677 = vmatmul.bf16.gmra.mxu0 %v779
    %v1678 = vpop.f32.mrf.mxu0
    %v1679 = vadd.f32 %v913, %v1678
    %v1680 = vpop.f32.mrf.mxu0
    %1681 = vdwg.mxu0
    %1682 = vmatpush.bf16.msra.mxu0 %v1359
    %1683 = vmatpush.bf16.msra.mxu0 %v1355
    %1684 = vmatpush.bf16.msra.mxu0 %v1351
    %1685 = vmatpush.bf16.msra.mxu0 %v1347
    %1686 = vmatpush.bf16.msra.mxu0 %v1343
    %1687 = vmatpush.bf16.msra.mxu0 %v1339
    %1688 = vmatpush.bf16.msra.mxu0 %v1335
    %1689 = vmatpush.bf16.msra.mxu0 %v1331
    %1690 = vmatmul.bf16.gmra.mxu0 %v780
    %v1691 = vpop.f32.mrf.mxu0
    %v1692 = vadd.f32 %v1679, %v1691
    %v1693 = vpop.f32.mrf.mxu0
    %1694 = vdwg.mxu0
    %1695 = vmatpush.bf16.msra.mxu0 %v1391
    %1696 = vmatpush.bf16.msra.mxu0 %v1387
    %1697 = vmatpush.bf16.msra.mxu0 %v1383
    %1698 = vmatpush.bf16.msra.mxu0 %v1379
    %1699 = vmatpush.bf16.msra.mxu0 %v1375
    %1700 = vmatpush.bf16.msra.mxu0 %v1371
    %1701 = vmatpush.bf16.msra.mxu0 %v1367
    %1702 = vmatpush.bf16.msra.mxu0 %v1363
    %1703 = vmatmul.bf16.gmra.mxu0 %v781
    %v1704 = vpop.f32.mrf.mxu0
    %v1705 = vadd.f32 %v1692, %v1704
    %v1706 = vpop.f32.mrf.mxu0
    %1707 = vdwg.mxu0
    %1708 = vmatpush.bf16.msra.mxu0 %v1560
    %1709 = vmatpush.bf16.msra.mxu0 %v1419
    %1710 = vmatpush.bf16.msra.mxu0 %v1415
    %1711 = vmatpush.bf16.msra.mxu0 %v1411
    %1712 = vmatpush.bf16.msra.mxu0 %v1407
    %1713 = vmatpush.bf16.msra.mxu0 %v1403
    %1714 = vmatpush.bf16.msra.mxu0 %v1399
    %1715 = vmatpush.bf16.msra.mxu0 %v1395
    %1716 = vmatmul.bf16.gmra.mxu0 %v1551
    %v1717 = vpop.f32.mrf.mxu0
    %v1718 = vadd.f32 %v1705, %v1717
    %v1719 = vpop.f32.mrf.mxu0
    %1720 = vdwg.mxu0
    %1721 = vmatpush.bf16.msra.mxu0 %v1328
    %1722 = vmatpush.bf16.msra.mxu0 %v1324
    %1723 = vmatpush.bf16.msra.mxu0 %v1320
    %1724 = vmatpush.bf16.msra.mxu0 %v1316
    %1725 = vmatpush.bf16.msra.mxu0 %v1312
    %1726 = vmatpush.bf16.msra.mxu0 %v1308
    %1727 = vmatpush.bf16.msra.mxu0 %v1304
    %1728 = vmatpush.bf16.msra.mxu0 %v1300
    %1729 = vmatmul.bf16.gmra.mxu0 %v779
    %v1730 = vpop.f32.mrf.mxu0
    %v1731 = vadd.f32 %v914, %v1730
    %v1732 = vpop.f32.mrf.mxu0
    %1733 = vdwg.mxu0
    %1734 = vmatpush.bf16.msra.mxu0 %v1360
    %1735 = vmatpush.bf16.msra.mxu0 %v1356
    %1736 = vmatpush.bf16.msra.mxu0 %v1352
    %1737 = vmatpush.bf16.msra.mxu0 %v1348
    %1738 = vmatpush.bf16.msra.mxu0 %v1344
    %1739 = vmatpush.bf16.msra.mxu0 %v1340
    %1740 = vmatpush.bf16.msra.mxu0 %v1336
    %1741 = vmatpush.bf16.msra.mxu0 %v1332
    %1742 = vmatmul.bf16.gmra.mxu0 %v780
    %v1743 = vpop.f32.mrf.mxu0
    %v1744 = vadd.f32 %v1731, %v1743
    %v1745 = vpop.f32.mrf.mxu0
    %1746 = vdwg.mxu0
    %1747 = vmatpush.bf16.msra.mxu0 %v1392
    %1748 = vmatpush.bf16.msra.mxu0 %v1388
    %1749 = vmatpush.bf16.msra.mxu0 %v1384
    %1750 = vmatpush.bf16.msra.mxu0 %v1380
    %1751 = vmatpush.bf16.msra.mxu0 %v1376
    %1752 = vmatpush.bf16.msra.mxu0 %v1372
    %1753 = vmatpush.bf16.msra.mxu0 %v1368
    %1754 = vmatpush.bf16.msra.mxu0 %v1364
    %1755 = vmatmul.bf16.gmra.mxu0 %v781
    %v1756 = vpop.f32.mrf.mxu0
    %v1757 = vadd.f32 %v1744, %v1756
    %v1758 = vpop.f32.mrf.mxu0
    %1759 = vdwg.mxu0
    %1760 = vmatpush.bf16.msra.mxu0 %v1563
    %1761 = vmatpush.bf16.msra.mxu0 %v1420
    %1762 = vmatpush.bf16.msra.mxu0 %v1416
    %1763 = vmatpush.bf16.msra.mxu0 %v1412
    %1764 = vmatpush.bf16.msra.mxu0 %v1408
    %1765 = vmatpush.bf16.msra.mxu0 %v1404
    %1766 = vmatpush.bf16.msra.mxu0 %v1400
    %1767 = vmatpush.bf16.msra.mxu0 %v1396
    %1768 = vmatmul.bf16.gmra.mxu0 %v1551
    %v1769 = vpop.f32.mrf.mxu0
    %v1770 = vadd.f32 %v1757, %v1769
    %v1771 = vpop.f32.mrf.mxu0
    %1772 = vdwg.mxu0
    %v1773 = vtanh.pop %v1614
    %v1774 = vtanh.pop %v1666
    %v1775 = vtanh.pop %v1718
    %v1776 = vtanh.pop %v1770
    %v1777 = vpack.c.bf16 %v1773, %v1773
    %v1778 = vpack.c.bf16 %v1774, %v1774
    %v1779 = vpack.c.bf16 %v1775, %v1775
    %v1780 = vpack.c.bf16 %v1776, %v1776
    %v1781 = vld [vmem:[#allocation7] sm:$0xff]
    %v1782 = vld [vmem:[#allocation7 + $0x8] sm:$0xff]
    %v1783 = vld [vmem:[#allocation7 + $0x10] sm:$0xff]
    %v1784 = vld [vmem:[#allocation7 + $0x18] sm:$0xff]
    %v1785 = vld [vmem:[#allocation7 + $0x20] sm:$0xff]
    %v1786 = vld [vmem:[#allocation7 + $0x28] sm:$0xff]
    %v1787 = vld [vmem:[#allocation7 + $0x30] sm:$0xff]
    %v1788 = vld [vmem:[#allocation7 + $0x38] sm:$0xff]
    %v1789 = vld [vmem:[#allocation7 + $0x40] sm:$0xff]
    %v1790 = vld [vmem:[#allocation7 + $0x48] sm:$0xff]
    %v1791 = vld [vmem:[#allocation7 + $0x50] sm:$0xff]
    %v1792 = vld [vmem:[#allocation7 + $0x58] sm:$0xff]
    %v1793 = vld [vmem:[#allocation7 + $0x60] sm:$0xff]
    %v1794 = vld [vmem:[#allocation7 + $0x68] sm:$0xff]
    %v1795 = vld [vmem:[#allocation7 + $0x70] sm:$0xff]
    %v1796 = vld [vmem:[#allocation7 + $0x78] sm:$0xff]
    %v1797 = vld [vmem:[#allocation7 + $0x80] sm:$0xff]
    %v1798 = vld [vmem:[#allocation7 + $0x88] sm:$0xff]
    %v1799 = vld [vmem:[#allocation7 + $0x90] sm:$0xff]
    %v1800 = vld [vmem:[#allocation7 + $0x98] sm:$0xff]
    %v1801 = vld [vmem:[#allocation7 + $0xa0] sm:$0xff]
    %v1802 = vld [vmem:[#allocation7 + $0xa8] sm:$0xff]
    %v1803 = vld [vmem:[#allocation7 + $0xb0] sm:$0xff]
    %v1804 = vld [vmem:[#allocation7 + $0xb8] sm:$0xff]
    %v1805 = vld [vmem:[#allocation7 + $0xc0] sm:$0xff]
    %v1806 = vld [vmem:[#allocation7 + $0xc8] sm:$0xff]
    %v1807 = vld [vmem:[#allocation7 + $0xd0] sm:$0xff]
    %v1808 = vld [vmem:[#allocation7 + $0xd8] sm:$0xff]
    %v1809 = vld [vmem:[#allocation7 + $0xe0] sm:$0xff]
    %v1810 = vld [vmem:[#allocation7 + $0xe8] sm:$0xff]
    %v1811 = vld [vmem:[#allocation7 + $0xf0] sm:$0xff]
    %v1812 = vld [vmem:[#allocation7 + $0xf8] sm:$0xff]
    %v1813 = vld [vmem:[#allocation7 + $0x100] sm:$0xff]
    %v1814 = vld [vmem:[#allocation7 + $0x108] sm:$0xff]
    %v1815 = vld [vmem:[#allocation7 + $0x110] sm:$0xff]
    %v1816 = vld [vmem:[#allocation7 + $0x118] sm:$0xff]
    %v1817 = vld [vmem:[#allocation7 + $0x120] sm:$0xff]
    %v1818 = vld [vmem:[#allocation7 + $0x128] sm:$0xff]
    %v1819 = vld [vmem:[#allocation7 + $0x130] sm:$0xff]
    %v1820 = vld [vmem:[#allocation7 + $0x138] sm:$0xff]
    %v1821 = vld [vmem:[#allocation7 + $0x140] sm:$0xff]
    %v1822 = vld [vmem:[#allocation7 + $0x148] sm:$0xff]
    %v1823 = vld [vmem:[#allocation7 + $0x150] sm:$0xff]
    %v1824 = vld [vmem:[#allocation7 + $0x158] sm:$0xff]
    %v1825 = vld [vmem:[#allocation7 + $0x160] sm:$0xff]
    %v1826 = vld [vmem:[#allocation7 + $0x168] sm:$0xff]
    %v1827 = vld [vmem:[#allocation7 + $0x170] sm:$0xff]
    %v1828 = vld [vmem:[#allocation7 + $0x178] sm:$0xff]
    %v1829 = vld [vmem:[#allocation7 + $0x180] sm:$0xff]
    %v1830 = vld [vmem:[#allocation7 + $0x188] sm:$0xff]
    %v1831 = vld [vmem:[#allocation7 + $0x190] sm:$0xff]
    %v1832 = vld [vmem:[#allocation7 + $0x198] sm:$0xff]
    %v1833 = vld [vmem:[#allocation7 + $0x1a0] sm:$0xff]
    %v1834 = vld [vmem:[#allocation7 + $0x1a8] sm:$0xff]
    %v1835 = vld [vmem:[#allocation7 + $0x1b0] sm:$0xff]
    %v1836 = vld [vmem:[#allocation7 + $0x1b8] sm:$0xff]
    %v1837 = vld [vmem:[#allocation7 + $0x1c0] sm:$0xff]
    %v1838 = vld [vmem:[#allocation7 + $0x1c8] sm:$0xff]
    %v1839 = vld [vmem:[#allocation7 + $0x1d0] sm:$0xff]
    %v1840 = vld [vmem:[#allocation7 + $0x1d8] sm:$0xff]
    %v1841 = vld [vmem:[#allocation7 + $0x1e0] sm:$0xff]
    %v1842 = vld [vmem:[#allocation7 + $0x1e8] sm:$0xff]
    %v1843 = vld [vmem:[#allocation7 + $0x1f0] sm:$0xff]
    %v1844 = vld [vmem:[#allocation7 + $0x1f8] sm:$0xff]
    %v1845 = vld [vmem:[#allocation7 + $0x200] sm:$0xff]
    %v1846 = vld [vmem:[#allocation7 + $0x208] sm:$0xff]
    %v1847 = vld [vmem:[#allocation7 + $0x210] sm:$0xff]
    %v1848 = vld [vmem:[#allocation7 + $0x218] sm:$0xff]
    %v1849 = vld [vmem:[#allocation7 + $0x220] sm:$0xff]
    %v1850 = vld [vmem:[#allocation7 + $0x228] sm:$0xff]
    %v1851 = vld [vmem:[#allocation7 + $0x230] sm:$0xff]
    %v1852 = vld [vmem:[#allocation7 + $0x238] sm:$0xff]
    %v1853 = vld [vmem:[#allocation7 + $0x240] sm:$0xff]
    %v1854 = vld [vmem:[#allocation7 + $0x248] sm:$0xff]
    %v1855 = vld [vmem:[#allocation7 + $0x250] sm:$0xff]
    %v1856 = vld [vmem:[#allocation7 + $0x258] sm:$0xff]
    %v1857 = vld [vmem:[#allocation7 + $0x260] sm:$0xff]
    %v1858 = vld [vmem:[#allocation7 + $0x268] sm:$0xff]
    %v1859 = vld [vmem:[#allocation7 + $0x270] sm:$0xff]
    %v1860 = vld [vmem:[#allocation7 + $0x278] sm:$0xff]
    %v1861 = vld [vmem:[#allocation7 + $0x280] sm:$0xff]
    %v1862 = vld [vmem:[#allocation7 + $0x288] sm:$0xff]
    %v1863 = vld [vmem:[#allocation7 + $0x290] sm:$0xff]
    %v1864 = vld [vmem:[#allocation7 + $0x298] sm:$0xff]
    %v1865 = vld [vmem:[#allocation7 + $0x2a0] sm:$0xff]
    %v1866 = vld [vmem:[#allocation7 + $0x2a8] sm:$0xff]
    %v1867 = vld [vmem:[#allocation7 + $0x2b0] sm:$0xff]
    %v1868 = vld [vmem:[#allocation7 + $0x2b8] sm:$0xff]
    %v1869 = vld [vmem:[#allocation7 + $0x2c0] sm:$0xff]
    %v1870 = vld [vmem:[#allocation7 + $0x2c8] sm:$0xff]
    %v1871 = vld [vmem:[#allocation7 + $0x2d0] sm:$0xff]
    %v1872 = vld [vmem:[#allocation7 + $0x2d8] sm:$0xff]
    %v1873 = vld [vmem:[#allocation7 + $0x2e0] sm:$0xff]
    %v1874 = vld [vmem:[#allocation7 + $0x2e8] sm:$0xff]
    %v1875 = vld [vmem:[#allocation7 + $0x2f0] sm:$0xff]
    %v1876 = vld [vmem:[#allocation7 + $0x2f8] sm:$0xff]
    %v1877 = vld [vmem:[#allocation7 + $0x300] sm:$0xff]
    %v1878 = vld [vmem:[#allocation7 + $0x308] sm:$0xff]
    %v1879 = vld [vmem:[#allocation7 + $0x310] sm:$0xff]
    %v1880 = vld [vmem:[#allocation7 + $0x318] sm:$0xff]
    %v1881 = vld [vmem:[#allocation7 + $0x320] sm:$0xff]
    %v1882 = vld [vmem:[#allocation7 + $0x328] sm:$0xff]
    %v1883 = vld [vmem:[#allocation7 + $0x330] sm:$0xff]
    %v1884 = vld [vmem:[#allocation7 + $0x338] sm:$0xff]
    %v1885 = vld [vmem:[#allocation7 + $0x340] sm:$0xff]
    %v1886 = vld [vmem:[#allocation7 + $0x348] sm:$0xff]
    %v1887 = vld [vmem:[#allocation7 + $0x350] sm:$0xff]
    %v1888 = vld [vmem:[#allocation7 + $0x358] sm:$0xff]
    %v1889 = vld [vmem:[#allocation7 + $0x360] sm:$0xff]
    %v1890 = vld [vmem:[#allocation7 + $0x368] sm:$0xff]
    %v1891 = vld [vmem:[#allocation7 + $0x370] sm:$0xff]
    %v1892 = vld [vmem:[#allocation7 + $0x378] sm:$0xff]
    %v1893 = vld [vmem:[#allocation7 + $0x380] sm:$0xff]
    %v1894 = vld [vmem:[#allocation7 + $0x388] sm:$0xff]
    %v1895 = vld [vmem:[#allocation7 + $0x390] sm:$0xff]
    %v1896 = vld [vmem:[#allocation7 + $0x398] sm:$0xff]
    %v1897 = vld [vmem:[#allocation7 + $0x3a0] sm:$0xff]
    %v1898 = vld [vmem:[#allocation7 + $0x3a8] sm:$0xff]
    %v1899 = vld [vmem:[#allocation7 + $0x3b0] sm:$0xff]
    %v1900 = vld [vmem:[#allocation7 + $0x3b8] sm:$0xff]
    %v1901 = vld [vmem:[#allocation7 + $0x3c0] sm:$0xff]
    %v1902 = vld [vmem:[#allocation7 + $0x3c8] sm:$0xff]
    %v1903 = vld [vmem:[#allocation7 + $0x3d0] sm:$0xff]
    %v1904 = vld [vmem:[#allocation7 + $0x3d8] sm:$0xff]
    %v1905 = vld [vmem:[#allocation7 + $0x3e0] sm:$0x33]
    %v1906 = vld [vmem:[#allocation7 + $0x3e8] sm:$0x33]
    %v1907 = vld [vmem:[%s6] sm:$0xf]
    %v1909 = vperm.slane %v1907, 0
    %v1910 = vperm.slane %v1907, 1
    %v1911 = vperm.slane %v1907, 2
    %v1912 = vperm.slane %v1907, 3
    %v2043 = vunpack.c.l.b16 %v1781
    %v2044 = vunpack.c.h.b16 %v1781
    %v2045 = vunpack.c.l.b16 %v1782
    %v2046 = vunpack.c.h.b16 %v1782
    %v2047 = vunpack.c.l.b16 %v1783
    %v2048 = vunpack.c.h.b16 %v1783
    %v2049 = vunpack.c.l.b16 %v1784
    %v2050 = vunpack.c.h.b16 %v1784
    %v2051 = vunpack.c.l.b16 %v1785
    %v2052 = vunpack.c.h.b16 %v1785
    %v2053 = vunpack.c.l.b16 %v1786
    %v2054 = vunpack.c.h.b16 %v1786
    %v2055 = vunpack.c.l.b16 %v1787
    %v2056 = vunpack.c.h.b16 %v1787
    %v2057 = vunpack.c.l.b16 %v1788
    %v2058 = vunpack.c.h.b16 %v1788
    %v2059 = vunpack.c.l.b16 %v1789
    %v2060 = vunpack.c.h.b16 %v1789
    %v2061 = vunpack.c.l.b16 %v1790
    %v2062 = vunpack.c.h.b16 %v1790
    %v2063 = vunpack.c.l.b16 %v1791
    %v2064 = vunpack.c.h.b16 %v1791
    %v2065 = vunpack.c.l.b16 %v1792
    %v2066 = vunpack.c.h.b16 %v1792
    %v2067 = vunpack.c.l.b16 %v1793
    %v2068 = vunpack.c.h.b16 %v1793
    %v2069 = vunpack.c.l.b16 %v1794
    %v2070 = vunpack.c.h.b16 %v1794
    %v2071 = vunpack.c.l.b16 %v1795
    %v2072 = vunpack.c.h.b16 %v1795
    %v2073 = vunpack.c.l.b16 %v1796
    %v2074 = vunpack.c.h.b16 %v1796
    %v2075 = vunpack.c.l.b16 %v1797
    %v2076 = vunpack.c.h.b16 %v1797
    %v2077 = vunpack.c.l.b16 %v1798
    %v2078 = vunpack.c.h.b16 %v1798
    %v2079 = vunpack.c.l.b16 %v1799
    %v2080 = vunpack.c.h.b16 %v1799
    %v2081 = vunpack.c.l.b16 %v1800
    %v2082 = vunpack.c.h.b16 %v1800
    %v2083 = vunpack.c.l.b16 %v1801
    %v2084 = vunpack.c.h.b16 %v1801
    %v2085 = vunpack.c.l.b16 %v1802
    %v2086 = vunpack.c.h.b16 %v1802
    %v2087 = vunpack.c.l.b16 %v1803
    %v2088 = vunpack.c.h.b16 %v1803
    %v2089 = vunpack.c.l.b16 %v1804
    %v2090 = vunpack.c.h.b16 %v1804
    %v2091 = vunpack.c.l.b16 %v1805
    %v2092 = vunpack.c.h.b16 %v1805
    %v2093 = vunpack.c.l.b16 %v1806
    %v2094 = vunpack.c.h.b16 %v1806
    %v2095 = vunpack.c.l.b16 %v1807
    %v2096 = vunpack.c.h.b16 %v1807
    %v2097 = vunpack.c.l.b16 %v1808
    %v2098 = vunpack.c.h.b16 %v1808
    %v2099 = vunpack.c.l.b16 %v1809
    %v2100 = vunpack.c.h.b16 %v1809
    %v2101 = vunpack.c.l.b16 %v1810
    %v2102 = vunpack.c.h.b16 %v1810
    %v2103 = vunpack.c.l.b16 %v1811
    %v2104 = vunpack.c.h.b16 %v1811
    %v2105 = vunpack.c.l.b16 %v1812
    %v2106 = vunpack.c.h.b16 %v1812
    %v2107 = vunpack.c.l.b16 %v1813
    %v2108 = vunpack.c.h.b16 %v1813
    %v2109 = vunpack.c.l.b16 %v1814
    %v2110 = vunpack.c.h.b16 %v1814
    %v2111 = vunpack.c.l.b16 %v1815
    %v2112 = vunpack.c.h.b16 %v1815
    %v2113 = vunpack.c.l.b16 %v1816
    %v2114 = vunpack.c.h.b16 %v1816
    %v2115 = vunpack.c.l.b16 %v1817
    %v2116 = vunpack.c.h.b16 %v1817
    %v2117 = vunpack.c.l.b16 %v1818
    %v2118 = vunpack.c.h.b16 %v1818
    %v2119 = vunpack.c.l.b16 %v1819
    %v2120 = vunpack.c.h.b16 %v1819
    %v2121 = vunpack.c.l.b16 %v1820
    %v2122 = vunpack.c.h.b16 %v1820
    %v2123 = vunpack.c.l.b16 %v1821
    %v2124 = vunpack.c.h.b16 %v1821
    %v2125 = vunpack.c.l.b16 %v1822
    %v2126 = vunpack.c.h.b16 %v1822
    %v2127 = vunpack.c.l.b16 %v1823
    %v2128 = vunpack.c.h.b16 %v1823
    %v2129 = vunpack.c.l.b16 %v1824
    %v2130 = vunpack.c.h.b16 %v1824
    %v2131 = vunpack.c.l.b16 %v1825
    %v2132 = vunpack.c.h.b16 %v1825
    %v2133 = vunpack.c.l.b16 %v1826
    %v2134 = vunpack.c.h.b16 %v1826
    %v2135 = vunpack.c.l.b16 %v1827
    %v2136 = vunpack.c.h.b16 %v1827
    %v2137 = vunpack.c.l.b16 %v1828
    %v2138 = vunpack.c.h.b16 %v1828
    %v2139 = vunpack.c.l.b16 %v1829
    %v2140 = vunpack.c.h.b16 %v1829
    %v2141 = vunpack.c.l.b16 %v1830
    %v2142 = vunpack.c.h.b16 %v1830
    %v2143 = vunpack.c.l.b16 %v1831
    %v2144 = vunpack.c.h.b16 %v1831
    %v2145 = vunpack.c.l.b16 %v1832
    %v2146 = vunpack.c.h.b16 %v1832
    %v2147 = vunpack.c.l.b16 %v1833
    %v2148 = vunpack.c.h.b16 %v1833
    %v2149 = vunpack.c.l.b16 %v1834
    %v2150 = vunpack.c.h.b16 %v1834
    %v2151 = vunpack.c.l.b16 %v1835
    %v2152 = vunpack.c.h.b16 %v1835
    %v2153 = vunpack.c.l.b16 %v1836
    %v2154 = vunpack.c.h.b16 %v1836
    %v2155 = vunpack.c.l.b16 %v1837
    %v2156 = vunpack.c.h.b16 %v1837
    %v2157 = vunpack.c.l.b16 %v1838
    %v2158 = vunpack.c.h.b16 %v1838
    %v2159 = vunpack.c.l.b16 %v1839
    %v2160 = vunpack.c.h.b16 %v1839
    %v2161 = vunpack.c.l.b16 %v1840
    %v2162 = vunpack.c.h.b16 %v1840
    %v2163 = vunpack.c.l.b16 %v1841
    %v2164 = vunpack.c.h.b16 %v1841
    %v2165 = vunpack.c.l.b16 %v1842
    %v2166 = vunpack.c.h.b16 %v1842
    %v2167 = vunpack.c.l.b16 %v1843
    %v2168 = vunpack.c.h.b16 %v1843
    %v2169 = vunpack.c.l.b16 %v1844
    %v2170 = vunpack.c.h.b16 %v1844
    %v2171 = vunpack.c.l.b16 %v1845
    %v2172 = vunpack.c.h.b16 %v1845
    %v2173 = vunpack.c.l.b16 %v1846
    %v2174 = vunpack.c.h.b16 %v1846
    %v2175 = vunpack.c.l.b16 %v1847
    %v2176 = vunpack.c.h.b16 %v1847
    %v2177 = vunpack.c.l.b16 %v1848
    %v2178 = vunpack.c.h.b16 %v1848
    %v2179 = vunpack.c.l.b16 %v1849
    %v2180 = vunpack.c.h.b16 %v1849
    %v2181 = vunpack.c.l.b16 %v1850
    %v2182 = vunpack.c.h.b16 %v1850
    %v2183 = vunpack.c.l.b16 %v1851
    %v2184 = vunpack.c.h.b16 %v1851
    %v2185 = vunpack.c.l.b16 %v1852
    %v2186 = vunpack.c.h.b16 %v1852
    %v2187 = vunpack.c.l.b16 %v1853
    %v2188 = vunpack.c.h.b16 %v1853
    %v2189 = vunpack.c.l.b16 %v1854
    %v2190 = vunpack.c.h.b16 %v1854
    %v2191 = vunpack.c.l.b16 %v1855
    %v2192 = vunpack.c.h.b16 %v1855
    %v2193 = vunpack.c.l.b16 %v1856
    %v2194 = vunpack.c.h.b16 %v1856
    %v2195 = vunpack.c.l.b16 %v1857
    %v2196 = vunpack.c.h.b16 %v1857
    %v2197 = vunpack.c.l.b16 %v1858
    %v2198 = vunpack.c.h.b16 %v1858
    %v2199 = vunpack.c.l.b16 %v1859
    %v2200 = vunpack.c.h.b16 %v1859
    %v2201 = vunpack.c.l.b16 %v1860
    %v2202 = vunpack.c.h.b16 %v1860
    %v2203 = vunpack.c.l.b16 %v1861
    %v2204 = vunpack.c.h.b16 %v1861
    %v2205 = vunpack.c.l.b16 %v1862
    %v2206 = vunpack.c.h.b16 %v1862
    %v2207 = vunpack.c.l.b16 %v1863
    %v2208 = vunpack.c.h.b16 %v1863
    %v2209 = vunpack.c.l.b16 %v1864
    %v2210 = vunpack.c.h.b16 %v1864
    %v2211 = vunpack.c.l.b16 %v1865
    %v2212 = vunpack.c.h.b16 %v1865
    %v2213 = vunpack.c.l.b16 %v1866
    %v2214 = vunpack.c.h.b16 %v1866
    %v2215 = vunpack.c.l.b16 %v1867
    %v2216 = vunpack.c.h.b16 %v1867
    %v2217 = vunpack.c.l.b16 %v1868
    %v2218 = vunpack.c.h.b16 %v1868
    %v2219 = vunpack.c.l.b16 %v1869
    %v2220 = vunpack.c.h.b16 %v1869
    %v2221 = vunpack.c.l.b16 %v1870
    %v2222 = vunpack.c.h.b16 %v1870
    %v2223 = vunpack.c.l.b16 %v1871
    %v2224 = vunpack.c.h.b16 %v1871
    %v2225 = vunpack.c.l.b16 %v1872
    %v2226 = vunpack.c.h.b16 %v1872
    %v2227 = vunpack.c.l.b16 %v1873
    %v2228 = vunpack.c.h.b16 %v1873
    %v2229 = vunpack.c.l.b16 %v1874
    %v2230 = vunpack.c.h.b16 %v1874
    %v2231 = vunpack.c.l.b16 %v1875
    %v2232 = vunpack.c.h.b16 %v1875
    %v2233 = vunpack.c.l.b16 %v1876
    %v2234 = vunpack.c.h.b16 %v1876
    %v2235 = vunpack.c.l.b16 %v1877
    %v2236 = vunpack.c.h.b16 %v1877
    %v2237 = vunpack.c.l.b16 %v1878
    %v2238 = vunpack.c.h.b16 %v1878
    %v2239 = vunpack.c.l.b16 %v1879
    %v2240 = vunpack.c.h.b16 %v1879
    %v2241 = vunpack.c.l.b16 %v1880
    %v2242 = vunpack.c.h.b16 %v1880
    %v2243 = vunpack.c.l.b16 %v1881
    %v2244 = vunpack.c.h.b16 %v1881
    %v2245 = vunpack.c.l.b16 %v1882
    %v2246 = vunpack.c.h.b16 %v1882
    %v2247 = vunpack.c.l.b16 %v1883
    %v2248 = vunpack.c.h.b16 %v1883
    %v2249 = vunpack.c.l.b16 %v1884
    %v2250 = vunpack.c.h.b16 %v1884
    %v2251 = vunpack.c.l.b16 %v1885
    %v2252 = vunpack.c.h.b16 %v1885
    %v2253 = vunpack.c.l.b16 %v1886
    %v2254 = vunpack.c.h.b16 %v1886
    %v2255 = vunpack.c.l.b16 %v1887
    %v2256 = vunpack.c.h.b16 %v1887
    %v2257 = vunpack.c.l.b16 %v1888
    %v2258 = vunpack.c.h.b16 %v1888
    %v2259 = vunpack.c.l.b16 %v1889
    %v2260 = vunpack.c.h.b16 %v1889
    %v2261 = vunpack.c.l.b16 %v1890
    %v2262 = vunpack.c.h.b16 %v1890
    %v2263 = vunpack.c.l.b16 %v1891
    %v2264 = vunpack.c.h.b16 %v1891
    %v2265 = vunpack.c.l.b16 %v1892
    %v2266 = vunpack.c.h.b16 %v1892
    %v2267 = vunpack.c.l.b16 %v1893
    %v2268 = vunpack.c.h.b16 %v1893
    %v2269 = vunpack.c.l.b16 %v1894
    %v2270 = vunpack.c.h.b16 %v1894
    %v2271 = vunpack.c.l.b16 %v1895
    %v2272 = vunpack.c.h.b16 %v1895
    %v2273 = vunpack.c.l.b16 %v1896
    %v2274 = vunpack.c.h.b16 %v1896
    %v2275 = vunpack.c.l.b16 %v1897
    %v2276 = vunpack.c.h.b16 %v1897
    %v2277 = vunpack.c.l.b16 %v1898
    %v2278 = vunpack.c.h.b16 %v1898
    %v2279 = vunpack.c.l.b16 %v1899
    %v2280 = vunpack.c.h.b16 %v1899
    %v2281 = vunpack.c.l.b16 %v1900
    %v2282 = vunpack.c.h.b16 %v1900
    %v2283 = vunpack.c.l.b16 %v1901
    %v2284 = vunpack.c.h.b16 %v1901
    %v2285 = vunpack.c.l.b16 %v1902
    %v2286 = vunpack.c.h.b16 %v1902
    %v2287 = vunpack.c.l.b16 %v1903
    %v2288 = vunpack.c.h.b16 %v1903
    %v2289 = vunpack.c.l.b16 %v1904
    %v2290 = vunpack.c.h.b16 %v1904
    %v2291 = vunpack.c.l.b16 %v1905
    %v2292 = vunpack.c.h.b16 %v1905
    %v2293 = vunpack.c.l.b16 %v1906
    %v2294 = vunpack.c.h.b16 %v1906
    %v2295 = vpack.c.b16 %v2047, %v2043
    %v2296 = vpack.c.b16 %v2048, %v2044
    %v2297 = vpack.c.b16 %v2049, %v2045
    %v2298 = vpack.c.b16 %v2050, %v2046
    %v2299 = vpack.c.b16 %v2055, %v2051
    %v2300 = vpack.c.b16 %v2056, %v2052
    %v2301 = vpack.c.b16 %v2057, %v2053
    %v2302 = vpack.c.b16 %v2058, %v2054
    %v2303 = vpack.c.b16 %v2063, %v2059
    %v2304 = vpack.c.b16 %v2064, %v2060
    %v2305 = vpack.c.b16 %v2065, %v2061
    %v2306 = vpack.c.b16 %v2066, %v2062
    %v2307 = vpack.c.b16 %v2071, %v2067
    %v2308 = vpack.c.b16 %v2072, %v2068
    %v2309 = vpack.c.b16 %v2073, %v2069
    %v2310 = vpack.c.b16 %v2074, %v2070
    %v2311 = vpack.c.b16 %v2079, %v2075
    %v2312 = vpack.c.b16 %v2080, %v2076
    %v2313 = vpack.c.b16 %v2081, %v2077
    %v2314 = vpack.c.b16 %v2082, %v2078
    %v2315 = vpack.c.b16 %v2087, %v2083
    %v2316 = vpack.c.b16 %v2088, %v2084
    %v2317 = vpack.c.b16 %v2089, %v2085
    %v2318 = vpack.c.b16 %v2090, %v2086
    %v2319 = vpack.c.b16 %v2095, %v2091
    %v2320 = vpack.c.b16 %v2096, %v2092
    %v2321 = vpack.c.b16 %v2097, %v2093
    %v2322 = vpack.c.b16 %v2098, %v2094
    %v2323 = vpack.c.b16 %v2103, %v2099
    %v2324 = vpack.c.b16 %v2104, %v2100
    %v2325 = vpack.c.b16 %v2105, %v2101
    %v2326 = vpack.c.b16 %v2106, %v2102
    %v2327 = vpack.c.b16 %v2111, %v2107
    %v2328 = vpack.c.b16 %v2112, %v2108
    %v2329 = vpack.c.b16 %v2113, %v2109
    %v2330 = vpack.c.b16 %v2114, %v2110
    %v2331 = vpack.c.b16 %v2119, %v2115
    %v2332 = vpack.c.b16 %v2120, %v2116
    %v2333 = vpack.c.b16 %v2121, %v2117
    %v2334 = vpack.c.b16 %v2122, %v2118
    %v2335 = vpack.c.b16 %v2127, %v2123
    %v2336 = vpack.c.b16 %v2128, %v2124
    %v2337 = vpack.c.b16 %v2129, %v2125
    %v2338 = vpack.c.b16 %v2130, %v2126
    %v2339 = vpack.c.b16 %v2135, %v2131
    %v2340 = vpack.c.b16 %v2136, %v2132
    %v2341 = vpack.c.b16 %v2137, %v2133
    %v2342 = vpack.c.b16 %v2138, %v2134
    %v2343 = vpack.c.b16 %v2143, %v2139
    %v2344 = vpack.c.b16 %v2144, %v2140
    %v2345 = vpack.c.b16 %v2145, %v2141
    %v2346 = vpack.c.b16 %v2146, %v2142
    %v2347 = vpack.c.b16 %v2151, %v2147
    %v2348 = vpack.c.b16 %v2152, %v2148
    %v2349 = vpack.c.b16 %v2153, %v2149
    %v2350 = vpack.c.b16 %v2154, %v2150
    %v2351 = vpack.c.b16 %v2159, %v2155
    %v2352 = vpack.c.b16 %v2160, %v2156
    %v2353 = vpack.c.b16 %v2161, %v2157
    %v2354 = vpack.c.b16 %v2162, %v2158
    %v2355 = vpack.c.b16 %v2167, %v2163
    %v2356 = vpack.c.b16 %v2168, %v2164
    %v2357 = vpack.c.b16 %v2169, %v2165
    %v2358 = vpack.c.b16 %v2170, %v2166
    %v2359 = vpack.c.b16 %v2175, %v2171
    %v2360 = vpack.c.b16 %v2176, %v2172
    %v2361 = vpack.c.b16 %v2177, %v2173
    %v2362 = vpack.c.b16 %v2178, %v2174
    %v2363 = vpack.c.b16 %v2183, %v2179
    %v2364 = vpack.c.b16 %v2184, %v2180
    %v2365 = vpack.c.b16 %v2185, %v2181
    %v2366 = vpack.c.b16 %v2186, %v2182
    %v2367 = vpack.c.b16 %v2191, %v2187
    %v2368 = vpack.c.b16 %v2192, %v2188
    %v2369 = vpack.c.b16 %v2193, %v2189
    %v2370 = vpack.c.b16 %v2194, %v2190
    %v2371 = vpack.c.b16 %v2199, %v2195
    %v2372 = vpack.c.b16 %v2200, %v2196
    %v2373 = vpack.c.b16 %v2201, %v2197
    %v2374 = vpack.c.b16 %v2202, %v2198
    %v2375 = vpack.c.b16 %v2207, %v2203
    %v2376 = vpack.c.b16 %v2208, %v2204
    %v2377 = vpack.c.b16 %v2209, %v2205
    %v2378 = vpack.c.b16 %v2210, %v2206
    %v2379 = vpack.c.b16 %v2215, %v2211
    %v2380 = vpack.c.b16 %v2216, %v2212
    %v2381 = vpack.c.b16 %v2217, %v2213
    %v2382 = vpack.c.b16 %v2218, %v2214
    %v2383 = vpack.c.b16 %v2223, %v2219
    %v2384 = vpack.c.b16 %v2224, %v2220
    %v2385 = vpack.c.b16 %v2225, %v2221
    %v2386 = vpack.c.b16 %v2226, %v2222
    %v2387 = vpack.c.b16 %v2231, %v2227
    %v2388 = vpack.c.b16 %v2232, %v2228
    %v2389 = vpack.c.b16 %v2233, %v2229
    %v2390 = vpack.c.b16 %v2234, %v2230
    %v2391 = vpack.c.b16 %v2239, %v2235
    %v2392 = vpack.c.b16 %v2240, %v2236
    %v2393 = vpack.c.b16 %v2241, %v2237
    %v2394 = vpack.c.b16 %v2242, %v2238
    %v2395 = vpack.c.b16 %v2247, %v2243
    %v2396 = vpack.c.b16 %v2248, %v2244
    %v2397 = vpack.c.b16 %v2249, %v2245
    %v2398 = vpack.c.b16 %v2250, %v2246
    %v2399 = vpack.c.b16 %v2255, %v2251
    %v2400 = vpack.c.b16 %v2256, %v2252
    %v2401 = vpack.c.b16 %v2257, %v2253
    %v2402 = vpack.c.b16 %v2258, %v2254
    %v2403 = vpack.c.b16 %v2263, %v2259
    %v2404 = vpack.c.b16 %v2264, %v2260
    %v2405 = vpack.c.b16 %v2265, %v2261
    %v2406 = vpack.c.b16 %v2266, %v2262
    %v2407 = vpack.c.b16 %v2271, %v2267
    %v2408 = vpack.c.b16 %v2272, %v2268
    %v2409 = vpack.c.b16 %v2273, %v2269
    %v2410 = vpack.c.b16 %v2274, %v2270
    %v2411 = vpack.c.b16 %v2279, %v2275
    %v2412 = vpack.c.b16 %v2280, %v2276
    %v2413 = vpack.c.b16 %v2281, %v2277
    %v2414 = vpack.c.b16 %v2282, %v2278
    %v2415 = vpack.c.b16 %v2287, %v2283
    %v2416 = vpack.c.b16 %v2288, %v2284
    %v2417 = vpack.c.b16 %v2289, %v2285
    %v2418 = vpack.c.b16 %v2290, %v2286
    %v2419 = vpack.c.b16 %v2291, %v2291
    %v2420 = vpack.c.b16 %v2292, %v2292
    %v2421 = vpack.c.b16 %v2293, %v2293
    %v2422 = vpack.c.b16 %v2294, %v2294
    %v2548 = vsel %vm1549, %v1780, 0
    %v2551 = vsel %vm606, %v2419, 0
    %v2554 = vsel %vm606, %v2420, 0
    %v2557 = vsel %vm606, %v2421, 0
    %v2560 = vsel %vm606, %v2422, 0
    %2562 = vmatpush.bf16.msra.mxu0 %v2323
    %2563 = vmatpush.bf16.msra.mxu0 %v2319
    %2564 = vmatpush.bf16.msra.mxu0 %v2315
    %2565 = vmatpush.bf16.msra.mxu0 %v2311
    %2566 = vmatpush.bf16.msra.mxu0 %v2307
    %2567 = vmatpush.bf16.msra.mxu0 %v2303
    %2568 = vmatpush.bf16.msra.mxu0 %v2299
    %2569 = vmatpush.bf16.msra.mxu0 %v2295
    %2570 = vmatmul.bf16.gmra.mxu0 %v1777
    %v2571 = vpop.f32.mrf.mxu0
    %v2572 = vadd.f32 %v1909, %v2571
    %v2573 = vpop.f32.mrf.mxu0
    %2574 = vdwg.mxu0
    %2575 = vmatpush.bf16.msra.mxu0 %v2355
    %2576 = vmatpush.bf16.msra.mxu0 %v2351
    %2577 = vmatpush.bf16.msra.mxu0 %v2347
    %2578 = vmatpush.bf16.msra.mxu0 %v2343
    %2579 = vmatpush.bf16.msra.mxu0 %v2339
    %2580 = vmatpush.bf16.msra.mxu0 %v2335
    %2581 = vmatpush.bf16.msra.mxu0 %v2331
    %2582 = vmatpush.bf16.msra.mxu0 %v2327
    %2583 = vmatmul.bf16.gmra.mxu0 %v1778
    %v2584 = vpop.f32.mrf.mxu0
    %v2585 = vadd.f32 %v2572, %v2584
    %v2586 = vpop.f32.mrf.mxu0
    %2587 = vdwg.mxu0
    %2588 = vmatpush.bf16.msra.mxu0 %v2387
    %2589 = vmatpush.bf16.msra.mxu0 %v2383
    %2590 = vmatpush.bf16.msra.mxu0 %v2379
    %2591 = vmatpush.bf16.msra.mxu0 %v2375
    %2592 = vmatpush.bf16.msra.mxu0 %v2371
    %2593 = vmatpush.bf16.msra.mxu0 %v2367
    %2594 = vmatpush.bf16.msra.mxu0 %v2363
    %2595 = vmatpush.bf16.msra.mxu0 %v2359
    %2596 = vmatmul.bf16.gmra.mxu0 %v1779
    %v2597 = vpop.f32.mrf.mxu0
    %v2598 = vadd.f32 %v2585, %v2597
    %v2599 = vpop.f32.mrf.mxu0
    %2600 = vdwg.mxu0
    %2601 = vmatpush.bf16.msra.mxu0 %v2551
    %2602 = vmatpush.bf16.msra.mxu0 %v2415
    %2603 = vmatpush.bf16.msra.mxu0 %v2411
    %2604 = vmatpush.bf16.msra.mxu0 %v2407
    %2605 = vmatpush.bf16.msra.mxu0 %v2403
    %2606 = vmatpush.bf16.msra.mxu0 %v2399
    %2607 = vmatpush.bf16.msra.mxu0 %v2395
    %2608 = vmatpush.bf16.msra.mxu0 %v2391
    %2609 = vmatmul.bf16.gmra.mxu0 %v2548
    %v2610 = vpop.f32.mrf.mxu0
    %v2611 = vadd.f32 %v2598, %v2610
    %v2612 = vpop.f32.mrf.mxu0
    %2613 = vdwg.mxu0
    %2614 = vmatpush.bf16.msra.mxu0 %v2324
    %2615 = vmatpush.bf16.msra.mxu0 %v2320
    %2616 = vmatpush.bf16.msra.mxu0 %v2316
    %2617 = vmatpush.bf16.msra.mxu0 %v2312
    %2618 = vmatpush.bf16.msra.mxu0 %v2308
    %2619 = vmatpush.bf16.msra.mxu0 %v2304
    %2620 = vmatpush.bf16.msra.mxu0 %v2300
    %2621 = vmatpush.bf16.msra.mxu0 %v2296
    %2622 = vmatmul.bf16.gmra.mxu0 %v1777
    %v2623 = vpop.f32.mrf.mxu0
    %v2624 = vadd.f32 %v1910, %v2623
    %v2625 = vpop.f32.mrf.mxu0
    %2626 = vdwg.mxu0
    %2627 = vmatpush.bf16.msra.mxu0 %v2356
    %2628 = vmatpush.bf16.msra.mxu0 %v2352
    %2629 = vmatpush.bf16.msra.mxu0 %v2348
    %2630 = vmatpush.bf16.msra.mxu0 %v2344
    %2631 = vmatpush.bf16.msra.mxu0 %v2340
    %2632 = vmatpush.bf16.msra.mxu0 %v2336
    %2633 = vmatpush.bf16.msra.mxu0 %v2332
    %2634 = vmatpush.bf16.msra.mxu0 %v2328
    %2635 = vmatmul.bf16.gmra.mxu0 %v1778
    %v2636 = vpop.f32.mrf.mxu0
    %v2637 = vadd.f32 %v2624, %v2636
    %v2638 = vpop.f32.mrf.mxu0
    %2639 = vdwg.mxu0
    %2640 = vmatpush.bf16.msra.mxu0 %v2388
    %2641 = vmatpush.bf16.msra.mxu0 %v2384
    %2642 = vmatpush.bf16.msra.mxu0 %v2380
    %2643 = vmatpush.bf16.msra.mxu0 %v2376
    %2644 = vmatpush.bf16.msra.mxu0 %v2372
    %2645 = vmatpush.bf16.msra.mxu0 %v2368
    %2646 = vmatpush.bf16.msra.mxu0 %v2364
    %2647 = vmatpush.bf16.msra.mxu0 %v2360
    %2648 = vmatmul.bf16.gmra.mxu0 %v1779
    %v2649 = vpop.f32.mrf.mxu0
    %v2650 = vadd.f32 %v2637, %v2649
    %v2651 = vpop.f32.mrf.mxu0
    %2652 = vdwg.mxu0
    %2653 = vmatpush.bf16.msra.mxu0 %v2554
    %2654 = vmatpush.bf16.msra.mxu0 %v2416
    %2655 = vmatpush.bf16.msra.mxu0 %v2412
    %2656 = vmatpush.bf16.msra.mxu0 %v2408
    %2657 = vmatpush.bf16.msra.mxu0 %v2404
    %2658 = vmatpush.bf16.msra.mxu0 %v2400
    %2659 = vmatpush.bf16.msra.mxu0 %v2396
    %2660 = vmatpush.bf16.msra.mxu0 %v2392
    %2661 = vmatmul.bf16.gmra.mxu0 %v2548
    %v2662 = vpop.f32.mrf.mxu0
    %v2663 = vadd.f32 %v2650, %v2662
    %v2664 = vpop.f32.mrf.mxu0
    %2665 = vdwg.mxu0
    %2666 = vmatpush.bf16.msra.mxu0 %v2325
    %2667 = vmatpush.bf16.msra.mxu0 %v2321
    %2668 = vmatpush.bf16.msra.mxu0 %v2317
    %2669 = vmatpush.bf16.msra.mxu0 %v2313
    %2670 = vmatpush.bf16.msra.mxu0 %v2309
    %2671 = vmatpush.bf16.msra.mxu0 %v2305
    %2672 = vmatpush.bf16.msra.mxu0 %v2301
    %2673 = vmatpush.bf16.msra.mxu0 %v2297
    %2674 = vmatmul.bf16.gmra.mxu0 %v1777
    %v2675 = vpop.f32.mrf.mxu0
    %v2676 = vadd.f32 %v1911, %v2675
    %v2677 = vpop.f32.mrf.mxu0
    %2678 = vdwg.mxu0
    %2679 = vmatpush.bf16.msra.mxu0 %v2357
    %2680 = vmatpush.bf16.msra.mxu0 %v2353
    %2681 = vmatpush.bf16.msra.mxu0 %v2349
    %2682 = vmatpush.bf16.msra.mxu0 %v2345
    %2683 = vmatpush.bf16.msra.mxu0 %v2341
    %2684 = vmatpush.bf16.msra.mxu0 %v2337
    %2685 = vmatpush.bf16.msra.mxu0 %v2333
    %2686 = vmatpush.bf16.msra.mxu0 %v2329
    %2687 = vmatmul.bf16.gmra.mxu0 %v1778
    %v2688 = vpop.f32.mrf.mxu0
    %v2689 = vadd.f32 %v2676, %v2688
    %v2690 = vpop.f32.mrf.mxu0
    %2691 = vdwg.mxu0
    %2692 = vmatpush.bf16.msra.mxu0 %v2389
    %2693 = vmatpush.bf16.msra.mxu0 %v2385
    %2694 = vmatpush.bf16.msra.mxu0 %v2381
    %2695 = vmatpush.bf16.msra.mxu0 %v2377
    %2696 = vmatpush.bf16.msra.mxu0 %v2373
    %2697 = vmatpush.bf16.msra.mxu0 %v2369
    %2698 = vmatpush.bf16.msra.mxu0 %v2365
    %2699 = vmatpush.bf16.msra.mxu0 %v2361
    %2700 = vmatmul.bf16.gmra.mxu0 %v1779
    %v2701 = vpop.f32.mrf.mxu0
    %v2702 = vadd.f32 %v2689, %v2701
    %v2703 = vpop.f32.mrf.mxu0
    %2704 = vdwg.mxu0
    %2705 = vmatpush.bf16.msra.mxu0 %v2557
    %2706 = vmatpush.bf16.msra.mxu0 %v2417
    %2707 = vmatpush.bf16.msra.mxu0 %v2413
    %2708 = vmatpush.bf16.msra.mxu0 %v2409
    %2709 = vmatpush.bf16.msra.mxu0 %v2405
    %2710 = vmatpush.bf16.msra.mxu0 %v2401
    %2711 = vmatpush.bf16.msra.mxu0 %v2397
    %2712 = vmatpush.bf16.msra.mxu0 %v2393
    %2713 = vmatmul.bf16.gmra.mxu0 %v2548
    %v2714 = vpop.f32.mrf.mxu0
    %v2715 = vadd.f32 %v2702, %v2714
    %v2716 = vpop.f32.mrf.mxu0
    %2717 = vdwg.mxu0
    %2718 = vmatpush.bf16.msra.mxu0 %v2326
    %2719 = vmatpush.bf16.msra.mxu0 %v2322
    %2720 = vmatpush.bf16.msra.mxu0 %v2318
    %2721 = vmatpush.bf16.msra.mxu0 %v2314
    %2722 = vmatpush.bf16.msra.mxu0 %v2310
    %2723 = vmatpush.bf16.msra.mxu0 %v2306
    %2724 = vmatpush.bf16.msra.mxu0 %v2302
    %2725 = vmatpush.bf16.msra.mxu0 %v2298
    %2726 = vmatmul.bf16.gmra.mxu0 %v1777
    %v2727 = vpop.f32.mrf.mxu0
    %v2728 = vadd.f32 %v1912, %v2727
    %v2729 = vpop.f32.mrf.mxu0
    %2730 = vdwg.mxu0
    %2731 = vmatpush.bf16.msra.mxu0 %v2358
    %2732 = vmatpush.bf16.msra.mxu0 %v2354
    %2733 = vmatpush.bf16.msra.mxu0 %v2350
    %2734 = vmatpush.bf16.msra.mxu0 %v2346
    %2735 = vmatpush.bf16.msra.mxu0 %v2342
    %2736 = vmatpush.bf16.msra.mxu0 %v2338
    %2737 = vmatpush.bf16.msra.mxu0 %v2334
    %2738 = vmatpush.bf16.msra.mxu0 %v2330
    %2739 = vmatmul.bf16.gmra.mxu0 %v1778
    %v2740 = vpop.f32.mrf.mxu0
    %v2741 = vadd.f32 %v2728, %v2740
    %v2742 = vpop.f32.mrf.mxu0
    %2743 = vdwg.mxu0
    %2744 = vmatpush.bf16.msra.mxu0 %v2390
    %2745 = vmatpush.bf16.msra.mxu0 %v2386
    %2746 = vmatpush.bf16.msra.mxu0 %v2382
    %2747 = vmatpush.bf16.msra.mxu0 %v2378
    %2748 = vmatpush.bf16.msra.mxu0 %v2374
    %2749 = vmatpush.bf16.msra.mxu0 %v2370
    %2750 = vmatpush.bf16.msra.mxu0 %v2366
    %2751 = vmatpush.bf16.msra.mxu0 %v2362
    %2752 = vmatmul.bf16.gmra.mxu0 %v1779
    %v2753 = vpop.f32.mrf.mxu0
    %v2754 = vadd.f32 %v2741, %v2753
    %v2755 = vpop.f32.mrf.mxu0
    %2756 = vdwg.mxu0
    %2757 = vmatpush.bf16.msra.mxu0 %v2560
    %2758 = vmatpush.bf16.msra.mxu0 %v2418
    %2759 = vmatpush.bf16.msra.mxu0 %v2414
    %2760 = vmatpush.bf16.msra.mxu0 %v2410
    %2761 = vmatpush.bf16.msra.mxu0 %v2406
    %2762 = vmatpush.bf16.msra.mxu0 %v2402
    %2763 = vmatpush.bf16.msra.mxu0 %v2398
    %2764 = vmatpush.bf16.msra.mxu0 %v2394
    %2765 = vmatmul.bf16.gmra.mxu0 %v2548
    %v2766 = vpop.f32.mrf.mxu0
    %v2767 = vadd.f32 %v2754, %v2766
    %v2768 = vpop.f32.mrf.mxu0
    %2769 = vdwg.mxu0
    %v2770 = vtanh.pop %v2611
    %v2771 = vtanh.pop %v2663
    %v2772 = vtanh.pop %v2715
    %v2773 = vtanh.pop %v2767
    %v2774 = vpack.c.bf16 %v2770, %v2770
    %v2775 = vpack.c.bf16 %v2771, %v2771
    %v2776 = vpack.c.bf16 %v2772, %v2772
    %v2777 = vpack.c.bf16 %v2773, %v2773
    %v2778 = vld [vmem:[%s7] sm:$0xf]
    %v2779 = vld [vmem:[%s7 + $0x4] sm:$0xf]
    %v2780 = vld [vmem:[%s7 + $0x8] sm:$0xf]
    %v2781 = vld [vmem:[%s7 + $0xc] sm:$0xf]
    %v2782 = vld [vmem:[%s7 + $0x10] sm:$0xf]
    %v2783 = vld [vmem:[%s7 + $0x14] sm:$0xf]
    %v2784 = vld [vmem:[%s7 + $0x18] sm:$0xf]
    %v2785 = vld [vmem:[%s7 + $0x1c] sm:$0xf]
    %v2786 = vld [vmem:[%s7 + $0x20] sm:$0xf]
    %v2787 = vld [vmem:[%s7 + $0x24] sm:$0xf]
    %v2788 = vld [vmem:[%s7 + $0x28] sm:$0xf]
    %v2789 = vld [vmem:[%s7 + $0x2c] sm:$0xf]
    %v2790 = vld [vmem:[%s7 + $0x30] sm:$0xf]
    %v2791 = vld [vmem:[%s7 + $0x34] sm:$0xf]
    %v2792 = vld [vmem:[%s7 + $0x38] sm:$0xf]
    %v2793 = vld [vmem:[%s7 + $0x3c] sm:$0xf]
    %v2794 = vld [vmem:[%s7 + $0x40] sm:$0xf]
    %v2795 = vld [vmem:[%s7 + $0x44] sm:$0xf]
    %v2796 = vld [vmem:[%s7 + $0x48] sm:$0xf]
    %v2797 = vld [vmem:[%s7 + $0x4c] sm:$0xf]
    %v2798 = vld [vmem:[%s7 + $0x50] sm:$0xf]
    %v2799 = vld [vmem:[%s7 + $0x54] sm:$0xf]
    %v2800 = vld [vmem:[%s7 + $0x58] sm:$0xf]
    %v2801 = vld [vmem:[%s7 + $0x5c] sm:$0xf]
    %v2802 = vld [vmem:[%s7 + $0x60] sm:$0xf]
    %v2803 = vld [vmem:[%s7 + $0x64] sm:$0xf]
    %v2804 = vld [vmem:[%s7 + $0x68] sm:$0xf]
    %v2805 = vld [vmem:[%s7 + $0x6c] sm:$0xf]
    %v2806 = vld [vmem:[%s7 + $0x70] sm:$0xf]
    %v2807 = vld [vmem:[%s7 + $0x74] sm:$0xf]
    %v2808 = vld [vmem:[%s7 + $0x78] sm:$0xf]
    %v2809 = vld [vmem:[%s7 + $0x7c] sm:$0xf]
    %v2810 = vld [vmem:[%s7 + $0x80] sm:$0xf]
    %v2811 = vld [vmem:[%s7 + $0x84] sm:$0xf]
    %v2812 = vld [vmem:[%s7 + $0x88] sm:$0xf]
    %v2813 = vld [vmem:[%s7 + $0x8c] sm:$0xf]
    %v2814 = vld [vmem:[%s7 + $0x90] sm:$0xf]
    %v2815 = vld [vmem:[%s7 + $0x94] sm:$0xf]
    %v2816 = vld [vmem:[%s7 + $0x98] sm:$0xf]
    %v2817 = vld [vmem:[%s7 + $0x9c] sm:$0xf]
    %v2818 = vld [vmem:[%s7 + $0xa0] sm:$0xf]
    %v2819 = vld [vmem:[%s7 + $0xa4] sm:$0xf]
    %v2820 = vld [vmem:[%s7 + $0xa8] sm:$0xf]
    %v2821 = vld [vmem:[%s7 + $0xac] sm:$0xf]
    %v2822 = vld [vmem:[%s7 + $0xb0] sm:$0xf]
    %v2823 = vld [vmem:[%s7 + $0xb4] sm:$0xf]
    %v2824 = vld [vmem:[%s7 + $0xb8] sm:$0xf]
    %v2825 = vld [vmem:[%s7 + $0xbc] sm:$0xf]
    %v2826 = vld [vmem:[%s7 + $0xc0] sm:$0xf]
    %v2827 = vld [vmem:[%s7 + $0xc4] sm:$0xf]
    %v2828 = vld [vmem:[%s7 + $0xc8] sm:$0xf]
    %v2829 = vld [vmem:[%s7 + $0xcc] sm:$0xf]
    %v2830 = vld [vmem:[%s7 + $0xd0] sm:$0xf]
    %v2831 = vld [vmem:[%s7 + $0xd4] sm:$0xf]
    %v2832 = vld [vmem:[%s7 + $0xd8] sm:$0xf]
    %v2833 = vld [vmem:[%s7 + $0xdc] sm:$0xf]
    %v2834 = vld [vmem:[%s7 + $0xe0] sm:$0xf]
    %v2835 = vld [vmem:[%s7 + $0xe4] sm:$0xf]
    %v2836 = vld [vmem:[%s7 + $0xe8] sm:$0xf]
    %v2837 = vld [vmem:[%s7 + $0xec] sm:$0xf]
    %v2838 = vld [vmem:[%s7 + $0xf0] sm:$0xf]
    %v2839 = vld [vmem:[%s7 + $0xf4] sm:$0xf]
    %v2840 = vld [vmem:[%s7 + $0xf8] sm:$0x3]
    %v2841 = vld [vmem:[%s8] sm:$0x1]
    %v2843 = vperm.slane %v2841, 0
    %v2908 = vunpack.c.l.b16 %v2778
    %v2909 = vunpack.c.l.b16 %v2779
    %v2910 = vunpack.c.l.b16 %v2780
    %v2911 = vunpack.c.l.b16 %v2781
    %v2912 = vunpack.c.l.b16 %v2782
    %v2913 = vunpack.c.l.b16 %v2783
    %v2914 = vunpack.c.l.b16 %v2784
    %v2915 = vunpack.c.l.b16 %v2785
    %v2916 = vunpack.c.l.b16 %v2786
    %v2917 = vunpack.c.l.b16 %v2787
    %v2918 = vunpack.c.l.b16 %v2788
    %v2919 = vunpack.c.l.b16 %v2789
    %v2920 = vunpack.c.l.b16 %v2790
    %v2921 = vunpack.c.l.b16 %v2791
    %v2922 = vunpack.c.l.b16 %v2792
    %v2923 = vunpack.c.l.b16 %v2793
    %v2924 = vunpack.c.l.b16 %v2794
    %v2925 = vunpack.c.l.b16 %v2795
    %v2926 = vunpack.c.l.b16 %v2796
    %v2927 = vunpack.c.l.b16 %v2797
    %v2928 = vunpack.c.l.b16 %v2798
    %v2929 = vunpack.c.l.b16 %v2799
    %v2930 = vunpack.c.l.b16 %v2800
    %v2931 = vunpack.c.l.b16 %v2801
    %v2932 = vunpack.c.l.b16 %v2802
    %v2933 = vunpack.c.l.b16 %v2803
    %v2934 = vunpack.c.l.b16 %v2804
    %v2935 = vunpack.c.l.b16 %v2805
    %v2936 = vunpack.c.l.b16 %v2806
    %v2937 = vunpack.c.l.b16 %v2807
    %v2938 = vunpack.c.l.b16 %v2808
    %v2939 = vunpack.c.l.b16 %v2809
    %v2940 = vunpack.c.l.b16 %v2810
    %v2941 = vunpack.c.l.b16 %v2811
    %v2942 = vunpack.c.l.b16 %v2812
    %v2943 = vunpack.c.l.b16 %v2813
    %v2944 = vunpack.c.l.b16 %v2814
    %v2945 = vunpack.c.l.b16 %v2815
    %v2946 = vunpack.c.l.b16 %v2816
    %v2947 = vunpack.c.l.b16 %v2817
    %v2948 = vunpack.c.l.b16 %v2818
    %v2949 = vunpack.c.l.b16 %v2819
    %v2950 = vunpack.c.l.b16 %v2820
    %v2951 = vunpack.c.l.b16 %v2821
    %v2952 = vunpack.c.l.b16 %v2822
    %v2953 = vunpack.c.l.b16 %v2823
    %v2954 = vunpack.c.l.b16 %v2824
    %v2955 = vunpack.c.l.b16 %v2825
    %v2956 = vunpack.c.l.b16 %v2826
    %v2957 = vunpack.c.l.b16 %v2827
    %v2958 = vunpack.c.l.b16 %v2828
    %v2959 = vunpack.c.l.b16 %v2829
    %v2960 = vunpack.c.l.b16 %v2830
    %v2961 = vunpack.c.l.b16 %v2831
    %v2962 = vunpack.c.l.b16 %v2832
    %v2963 = vunpack.c.l.b16 %v2833
    %v2964 = vunpack.c.l.b16 %v2834
    %v2965 = vunpack.c.l.b16 %v2835
    %v2966 = vunpack.c.l.b16 %v2836
    %v2967 = vunpack.c.l.b16 %v2837
    %v2968 = vunpack.c.l.b16 %v2838
    %v2969 = vunpack.c.l.b16 %v2839
    %v2970 = vunpack.c.l.b16 %v2840
    %v2971 = vpack.c.b16 %v2909, %v2908
    %v2972 = vpack.c.b16 %v2911, %v2910
    %v2973 = vpack.c.b16 %v2913, %v2912
    %v2974 = vpack.c.b16 %v2915, %v2914
    %v2975 = vpack.c.b16 %v2917, %v2916
    %v2976 = vpack.c.b16 %v2919, %v2918
    %v2977 = vpack.c.b16 %v2921, %v2920
    %v2978 = vpack.c.b16 %v2923, %v2922
    %v2979 = vpack.c.b16 %v2925, %v2924
    %v2980 = vpack.c.b16 %v2927, %v2926
    %v2981 = vpack.c.b16 %v2929, %v2928
    %v2982 = vpack.c.b16 %v2931, %v2930
    %v2983 = vpack.c.b16 %v2933, %v2932
    %v2984 = vpack.c.b16 %v2935, %v2934
    %v2985 = vpack.c.b16 %v2937, %v2936
    %v2986 = vpack.c.b16 %v2939, %v2938
    %v2987 = vpack.c.b16 %v2941, %v2940
    %v2988 = vpack.c.b16 %v2943, %v2942
    %v2989 = vpack.c.b16 %v2945, %v2944
    %v2990 = vpack.c.b16 %v2947, %v2946
    %v2991 = vpack.c.b16 %v2949, %v2948
    %v2992 = vpack.c.b16 %v2951, %v2950
    %v2993 = vpack.c.b16 %v2953, %v2952
    %v2994 = vpack.c.b16 %v2955, %v2954
    %v2995 = vpack.c.b16 %v2957, %v2956
    %v2996 = vpack.c.b16 %v2959, %v2958
    %v2997 = vpack.c.b16 %v2961, %v2960
    %v2998 = vpack.c.b16 %v2963, %v2962
    %v2999 = vpack.c.b16 %v2965, %v2964
    %v3000 = vpack.c.b16 %v2967, %v2966
    %v3001 = vpack.c.b16 %v2969, %v2968
    %v3002 = vpack.c.b16 %v2970, %v2970
    %v3035 = vsel %vm1549, %v2777, 0
    %v3038 = vsel %vm606, %v3002, 0
    %3040 = vmatpush.bf16.msra.mxu0 %v2978
    %3041 = vmatpush.bf16.msra.mxu0 %v2977
    %3042 = vmatpush.bf16.msra.mxu0 %v2976
    %3043 = vmatpush.bf16.msra.mxu0 %v2975
    %3044 = vmatpush.bf16.msra.mxu0 %v2974
    %3045 = vmatpush.bf16.msra.mxu0 %v2973
    %3046 = vmatpush.bf16.msra.mxu0 %v2972
    %3047 = vmatpush.bf16.msra.mxu0 %v2971
    %3048 = vmatmul.bf16.gmra.mxu0 %v2774
    %v3049 = vpop.f32.mrf.mxu0
    %v3050 = vadd.f32 %v2843, %v3049
    %v3051 = vpop.f32.mrf.mxu0
    %3052 = vdwg.mxu0
    %3053 = vmatpush.bf16.msra.mxu0 %v2986
    %3054 = vmatpush.bf16.msra.mxu0 %v2985
    %3055 = vmatpush.bf16.msra.mxu0 %v2984
    %3056 = vmatpush.bf16.msra.mxu0 %v2983
    %3057 = vmatpush.bf16.msra.mxu0 %v2982
    %3058 = vmatpush.bf16.msra.mxu0 %v2981
    %3059 = vmatpush.bf16.msra.mxu0 %v2980
    %3060 = vmatpush.bf16.msra.mxu0 %v2979
    %3061 = vmatmul.bf16.gmra.mxu0 %v2775
    %v3062 = vpop.f32.mrf.mxu0
    %v3063 = vadd.f32 %v3050, %v3062
    %v3064 = vpop.f32.mrf.mxu0
    %3065 = vdwg.mxu0
    %3066 = vmatpush.bf16.msra.mxu0 %v2994
    %3067 = vmatpush.bf16.msra.mxu0 %v2993
    %3068 = vmatpush.bf16.msra.mxu0 %v2992
    %3069 = vmatpush.bf16.msra.mxu0 %v2991
    %3070 = vmatpush.bf16.msra.mxu0 %v2990
    %3071 = vmatpush.bf16.msra.mxu0 %v2989
    %3072 = vmatpush.bf16.msra.mxu0 %v2988
    %3073 = vmatpush.bf16.msra.mxu0 %v2987
    %3074 = vmatmul.bf16.gmra.mxu0 %v2776
    %v3075 = vpop.f32.mrf.mxu0
    %v3076 = vadd.f32 %v3063, %v3075
    %v3077 = vpop.f32.mrf.mxu0
    %3078 = vdwg.mxu0
    %3079 = vmatpush.bf16.msra.mxu0 %v3038
    %3080 = vmatpush.bf16.msra.mxu0 %v3001
    %3081 = vmatpush.bf16.msra.mxu0 %v3000
    %3082 = vmatpush.bf16.msra.mxu0 %v2999
    %3083 = vmatpush.bf16.msra.mxu0 %v2998
    %3084 = vmatpush.bf16.msra.mxu0 %v2997
    %3085 = vmatpush.bf16.msra.mxu0 %v2996
    %3086 = vmatpush.bf16.msra.mxu0 %v2995
    %3087 = vmatmul.bf16.gmra.mxu0 %v3035
    %v3088 = vpop.f32.mrf.mxu0
    %v3089 = vadd.f32 %v3076, %v3088
    %v3090 = vpop.f32.mrf.mxu0
    %3091 = vdwg.mxu0
    %vm3092 = vcmask 15360
    %3093 = vst.msk [vmem:[%s19] sm:$0xff] %vm3092, %v3089
    %v3094 = vld [vmem:[%s9] sm:$0xff]
    %3096 = vset.pattern.permute.xlu0 0
    %3097 = vperm.xlu0 %3096, %v3089
    %v3098 = vpop.permute.xlu0 %3097
    %v3101 = vperm.slane %v3094, 0
    %v3102 = vperm.slane %v3094, 2
    %v3103 = vperm.slane %v3094, 4
    %v3104 = vperm.slane %v3094, 6
    %v3109 = vperm.slane %v3101, 0
    %v3110 = vperm.slane %v3102, 0
    %v3111 = vperm.slane %v3103, 0
    %v3112 = vperm.slane %v3104, 0
    %v3113 = vmul.f32 %v3098, %v3109
    %v3114 = vmul.f32 %v3098, %v3110
    %v3115 = vmul.f32 %v3098, %v3111
    %v3116 = vmul.f32 %v3098, %v3112
    %3117 = vset.pattern.permute.xlu0 1
    %3118 = vperm.xlu0 %3117, %v3089
    %v3119 = vpop.permute.xlu0 %3118
    %v3121 = vperm.slane %v3094, 1
    %v3122 = vperm.slane %v3094, 3
    %v3123 = vperm.slane %v3094, 5
    %v3124 = vperm.slane %v3094, 7
    %v3129 = vperm.slane %v3121, 1
    %v3130 = vperm.slane %v3122, 1
    %v3131 = vperm.slane %v3123, 1
    %v3132 = vperm.slane %v3124, 1
    %v3133 = vmul.f32 %v3119, %v3129
    %v3134 = vmul.f32 %v3119, %v3130
    %v3135 = vmul.f32 %v3119, %v3131
    %v3136 = vmul.f32 %v3119, %v3132
    %v3137 = vadd.f32 %v3113, %v3133
    %v3138 = vadd.f32 %v3114, %v3134
    %v3139 = vadd.f32 %v3115, %v3135
    %v3140 = vadd.f32 %v3116, %v3136
    %v3141 = vld [vmem:[%s10] sm:$0xf]
    %v3143 = vperm.slane %v3141, 0
    %v3144 = vperm.slane %v3141, 1
    %v3145 = vperm.slane %v3141, 2
    %v3146 = vperm.slane %v3141, 3
    %v3151 = vadd.f32 %v3137, %v3143
    %v3152 = vadd.f32 %v3138, %v3144
    %v3153 = vadd.f32 %v3139, %v3145
    %v3154 = vadd.f32 %v3140, %v3146
    %v3155 = vtanh.pop %v3151
    %v3156 = vtanh.pop %v3152
    %v3157 = vtanh.pop %v3153
    %v3158 = vtanh.pop %v3154
    %v3159 = vpack.c.bf16 %v3155, %v3155
    %v3160 = vpack.c.bf16 %v3156, %v3156
    %v3161 = vpack.c.bf16 %v3157, %v3157
    %v3162 = vpack.c.bf16 %v3158, %v3158
    %v3163 = vld [vmem:[#allocation8] sm:$0xff]
    %v3164 = vld [vmem:[#allocation8 + $0x8] sm:$0xff]
    %v3165 = vld [vmem:[#allocation8 + $0x10] sm:$0xff]
    %v3166 = vld [vmem:[#allocation8 + $0x18] sm:$0xff]
    %v3167 = vld [vmem:[#allocation8 + $0x20] sm:$0xff]
    %v3168 = vld [vmem:[#allocation8 + $0x28] sm:$0xff]
    %v3169 = vld [vmem:[#allocation8 + $0x30] sm:$0xff]
    %v3170 = vld [vmem:[#allocation8 + $0x38] sm:$0xff]
    %v3171 = vld [vmem:[#allocation8 + $0x40] sm:$0xff]
    %v3172 = vld [vmem:[#allocation8 + $0x48] sm:$0xff]
    %v3173 = vld [vmem:[#allocation8 + $0x50] sm:$0xff]
    %v3174 = vld [vmem:[#allocation8 + $0x58] sm:$0xff]
    %v3175 = vld [vmem:[#allocation8 + $0x60] sm:$0xff]
    %v3176 = vld [vmem:[#allocation8 + $0x68] sm:$0xff]
    %v3177 = vld [vmem:[#allocation8 + $0x70] sm:$0xff]
    %v3178 = vld [vmem:[#allocation8 + $0x78] sm:$0xff]
    %v3179 = vld [vmem:[#allocation8 + $0x80] sm:$0xff]
    %v3180 = vld [vmem:[#allocation8 + $0x88] sm:$0xff]
    %v3181 = vld [vmem:[#allocation8 + $0x90] sm:$0xff]
    %v3182 = vld [vmem:[#allocation8 + $0x98] sm:$0xff]
    %v3183 = vld [vmem:[#allocation8 + $0xa0] sm:$0xff]
    %v3184 = vld [vmem:[#allocation8 + $0xa8] sm:$0xff]
    %v3185 = vld [vmem:[#allocation8 + $0xb0] sm:$0xff]
    %v3186 = vld [vmem:[#allocation8 + $0xb8] sm:$0xff]
    %v3187 = vld [vmem:[#allocation8 + $0xc0] sm:$0xff]
    %v3188 = vld [vmem:[#allocation8 + $0xc8] sm:$0xff]
    %v3189 = vld [vmem:[#allocation8 + $0xd0] sm:$0xff]
    %v3190 = vld [vmem:[#allocation8 + $0xd8] sm:$0xff]
    %v3191 = vld [vmem:[#allocation8 + $0xe0] sm:$0xff]
    %v3192 = vld [vmem:[#allocation8 + $0xe8] sm:$0xff]
    %v3193 = vld [vmem:[#allocation8 + $0xf0] sm:$0xff]
    %v3194 = vld [vmem:[#allocation8 + $0xf8] sm:$0xff]
    %v3195 = vld [vmem:[#allocation8 + $0x100] sm:$0xff]
    %v3196 = vld [vmem:[#allocation8 + $0x108] sm:$0xff]
    %v3197 = vld [vmem:[#allocation8 + $0x110] sm:$0xff]
    %v3198 = vld [vmem:[#allocation8 + $0x118] sm:$0xff]
    %v3199 = vld [vmem:[#allocation8 + $0x120] sm:$0xff]
    %v3200 = vld [vmem:[#allocation8 + $0x128] sm:$0xff]
    %v3201 = vld [vmem:[#allocation8 + $0x130] sm:$0xff]
    %v3202 = vld [vmem:[#allocation8 + $0x138] sm:$0xff]
    %v3203 = vld [vmem:[#allocation8 + $0x140] sm:$0xff]
    %v3204 = vld [vmem:[#allocation8 + $0x148] sm:$0xff]
    %v3205 = vld [vmem:[#allocation8 + $0x150] sm:$0xff]
    %v3206 = vld [vmem:[#allocation8 + $0x158] sm:$0xff]
    %v3207 = vld [vmem:[#allocation8 + $0x160] sm:$0xff]
    %v3208 = vld [vmem:[#allocation8 + $0x168] sm:$0xff]
    %v3209 = vld [vmem:[#allocation8 + $0x170] sm:$0xff]
    %v3210 = vld [vmem:[#allocation8 + $0x178] sm:$0xff]
    %v3211 = vld [vmem:[#allocation8 + $0x180] sm:$0xff]
    %v3212 = vld [vmem:[#allocation8 + $0x188] sm:$0xff]
    %v3213 = vld [vmem:[#allocation8 + $0x190] sm:$0xff]
    %v3214 = vld [vmem:[#allocation8 + $0x198] sm:$0xff]
    %v3215 = vld [vmem:[#allocation8 + $0x1a0] sm:$0xff]
    %v3216 = vld [vmem:[#allocation8 + $0x1a8] sm:$0xff]
    %v3217 = vld [vmem:[#allocation8 + $0x1b0] sm:$0xff]
    %v3218 = vld [vmem:[#allocation8 + $0x1b8] sm:$0xff]
    %v3219 = vld [vmem:[#allocation8 + $0x1c0] sm:$0xff]
    %v3220 = vld [vmem:[#allocation8 + $0x1c8] sm:$0xff]
    %v3221 = vld [vmem:[#allocation8 + $0x1d0] sm:$0xff]
    %v3222 = vld [vmem:[#allocation8 + $0x1d8] sm:$0xff]
    %v3223 = vld [vmem:[#allocation8 + $0x1e0] sm:$0xff]
    %v3224 = vld [vmem:[#allocation8 + $0x1e8] sm:$0xff]
    %v3225 = vld [vmem:[#allocation8 + $0x1f0] sm:$0xff]
    %v3226 = vld [vmem:[#allocation8 + $0x1f8] sm:$0xff]
    %v3227 = vld [vmem:[#allocation8 + $0x200] sm:$0xff]
    %v3228 = vld [vmem:[#allocation8 + $0x208] sm:$0xff]
    %v3229 = vld [vmem:[#allocation8 + $0x210] sm:$0xff]
    %v3230 = vld [vmem:[#allocation8 + $0x218] sm:$0xff]
    %v3231 = vld [vmem:[#allocation8 + $0x220] sm:$0xff]
    %v3232 = vld [vmem:[#allocation8 + $0x228] sm:$0xff]
    %v3233 = vld [vmem:[#allocation8 + $0x230] sm:$0xff]
    %v3234 = vld [vmem:[#allocation8 + $0x238] sm:$0xff]
    %v3235 = vld [vmem:[#allocation8 + $0x240] sm:$0xff]
    %v3236 = vld [vmem:[#allocation8 + $0x248] sm:$0xff]
    %v3237 = vld [vmem:[#allocation8 + $0x250] sm:$0xff]
    %v3238 = vld [vmem:[#allocation8 + $0x258] sm:$0xff]
    %v3239 = vld [vmem:[#allocation8 + $0x260] sm:$0xff]
    %v3240 = vld [vmem:[#allocation8 + $0x268] sm:$0xff]
    %v3241 = vld [vmem:[#allocation8 + $0x270] sm:$0xff]
    %v3242 = vld [vmem:[#allocation8 + $0x278] sm:$0xff]
    %v3243 = vld [vmem:[#allocation8 + $0x280] sm:$0xff]
    %v3244 = vld [vmem:[#allocation8 + $0x288] sm:$0xff]
    %v3245 = vld [vmem:[#allocation8 + $0x290] sm:$0xff]
    %v3246 = vld [vmem:[#allocation8 + $0x298] sm:$0xff]
    %v3247 = vld [vmem:[#allocation8 + $0x2a0] sm:$0xff]
    %v3248 = vld [vmem:[#allocation8 + $0x2a8] sm:$0xff]
    %v3249 = vld [vmem:[#allocation8 + $0x2b0] sm:$0xff]
    %v3250 = vld [vmem:[#allocation8 + $0x2b8] sm:$0xff]
    %v3251 = vld [vmem:[#allocation8 + $0x2c0] sm:$0xff]
    %v3252 = vld [vmem:[#allocation8 + $0x2c8] sm:$0xff]
    %v3253 = vld [vmem:[#allocation8 + $0x2d0] sm:$0xff]
    %v3254 = vld [vmem:[#allocation8 + $0x2d8] sm:$0xff]
    %v3255 = vld [vmem:[#allocation8 + $0x2e0] sm:$0xff]
    %v3256 = vld [vmem:[#allocation8 + $0x2e8] sm:$0xff]
    %v3257 = vld [vmem:[#allocation8 + $0x2f0] sm:$0xff]
    %v3258 = vld [vmem:[#allocation8 + $0x2f8] sm:$0xff]
    %v3259 = vld [vmem:[#allocation8 + $0x300] sm:$0xff]
    %v3260 = vld [vmem:[#allocation8 + $0x308] sm:$0xff]
    %v3261 = vld [vmem:[#allocation8 + $0x310] sm:$0xff]
    %v3262 = vld [vmem:[#allocation8 + $0x318] sm:$0xff]
    %v3263 = vld [vmem:[#allocation8 + $0x320] sm:$0xff]
    %v3264 = vld [vmem:[#allocation8 + $0x328] sm:$0xff]
    %v3265 = vld [vmem:[#allocation8 + $0x330] sm:$0xff]
    %v3266 = vld [vmem:[#allocation8 + $0x338] sm:$0xff]
    %v3267 = vld [vmem:[#allocation8 + $0x340] sm:$0xff]
    %v3268 = vld [vmem:[#allocation8 + $0x348] sm:$0xff]
    %v3269 = vld [vmem:[#allocation8 + $0x350] sm:$0xff]
    %v3270 = vld [vmem:[#allocation8 + $0x358] sm:$0xff]
    %v3271 = vld [vmem:[#allocation8 + $0x360] sm:$0xff]
    %v3272 = vld [vmem:[#allocation8 + $0x368] sm:$0xff]
    %v3273 = vld [vmem:[#allocation8 + $0x370] sm:$0xff]
    %v3274 = vld [vmem:[#allocation8 + $0x378] sm:$0xff]
    %v3275 = vld [vmem:[#allocation8 + $0x380] sm:$0xff]
    %v3276 = vld [vmem:[#allocation8 + $0x388] sm:$0xff]
    %v3277 = vld [vmem:[#allocation8 + $0x390] sm:$0xff]
    %v3278 = vld [vmem:[#allocation8 + $0x398] sm:$0xff]
    %v3279 = vld [vmem:[#allocation8 + $0x3a0] sm:$0xff]
    %v3280 = vld [vmem:[#allocation8 + $0x3a8] sm:$0xff]
    %v3281 = vld [vmem:[#allocation8 + $0x3b0] sm:$0xff]
    %v3282 = vld [vmem:[#allocation8 + $0x3b8] sm:$0xff]
    %v3283 = vld [vmem:[#allocation8 + $0x3c0] sm:$0xff]
    %v3284 = vld [vmem:[#allocation8 + $0x3c8] sm:$0xff]
    %v3285 = vld [vmem:[#allocation8 + $0x3d0] sm:$0xff]
    %v3286 = vld [vmem:[#allocation8 + $0x3d8] sm:$0xff]
    %v3287 = vld [vmem:[#allocation8 + $0x3e0] sm:$0x33]
    %v3288 = vld [vmem:[#allocation8 + $0x3e8] sm:$0x33]
    %v3289 = vld [vmem:[%s12] sm:$0xf]
    %v3291 = vperm.slane %v3289, 0
    %v3292 = vperm.slane %v3289, 1
    %v3293 = vperm.slane %v3289, 2
    %v3294 = vperm.slane %v3289, 3
    %v3425 = vunpack.c.l.b16 %v3163
    %v3426 = vunpack.c.h.b16 %v3163
    %v3427 = vunpack.c.l.b16 %v3164
    %v3428 = vunpack.c.h.b16 %v3164
    %v3429 = vunpack.c.l.b16 %v3165
    %v3430 = vunpack.c.h.b16 %v3165
    %v3431 = vunpack.c.l.b16 %v3166
    %v3432 = vunpack.c.h.b16 %v3166
    %v3433 = vunpack.c.l.b16 %v3167
    %v3434 = vunpack.c.h.b16 %v3167
    %v3435 = vunpack.c.l.b16 %v3168
    %v3436 = vunpack.c.h.b16 %v3168
    %v3437 = vunpack.c.l.b16 %v3169
    %v3438 = vunpack.c.h.b16 %v3169
    %v3439 = vunpack.c.l.b16 %v3170
    %v3440 = vunpack.c.h.b16 %v3170
    %v3441 = vunpack.c.l.b16 %v3171
    %v3442 = vunpack.c.h.b16 %v3171
    %v3443 = vunpack.c.l.b16 %v3172
    %v3444 = vunpack.c.h.b16 %v3172
    %v3445 = vunpack.c.l.b16 %v3173
    %v3446 = vunpack.c.h.b16 %v3173
    %v3447 = vunpack.c.l.b16 %v3174
    %v3448 = vunpack.c.h.b16 %v3174
    %v3449 = vunpack.c.l.b16 %v3175
    %v3450 = vunpack.c.h.b16 %v3175
    %v3451 = vunpack.c.l.b16 %v3176
    %v3452 = vunpack.c.h.b16 %v3176
    %v3453 = vunpack.c.l.b16 %v3177
    %v3454 = vunpack.c.h.b16 %v3177
    %v3455 = vunpack.c.l.b16 %v3178
    %v3456 = vunpack.c.h.b16 %v3178
    %v3457 = vunpack.c.l.b16 %v3179
    %v3458 = vunpack.c.h.b16 %v3179
    %v3459 = vunpack.c.l.b16 %v3180
    %v3460 = vunpack.c.h.b16 %v3180
    %v3461 = vunpack.c.l.b16 %v3181
    %v3462 = vunpack.c.h.b16 %v3181
    %v3463 = vunpack.c.l.b16 %v3182
    %v3464 = vunpack.c.h.b16 %v3182
    %v3465 = vunpack.c.l.b16 %v3183
    %v3466 = vunpack.c.h.b16 %v3183
    %v3467 = vunpack.c.l.b16 %v3184
    %v3468 = vunpack.c.h.b16 %v3184
    %v3469 = vunpack.c.l.b16 %v3185
    %v3470 = vunpack.c.h.b16 %v3185
    %v3471 = vunpack.c.l.b16 %v3186
    %v3472 = vunpack.c.h.b16 %v3186
    %v3473 = vunpack.c.l.b16 %v3187
    %v3474 = vunpack.c.h.b16 %v3187
    %v3475 = vunpack.c.l.b16 %v3188
    %v3476 = vunpack.c.h.b16 %v3188
    %v3477 = vunpack.c.l.b16 %v3189
    %v3478 = vunpack.c.h.b16 %v3189
    %v3479 = vunpack.c.l.b16 %v3190
    %v3480 = vunpack.c.h.b16 %v3190
    %v3481 = vunpack.c.l.b16 %v3191
    %v3482 = vunpack.c.h.b16 %v3191
    %v3483 = vunpack.c.l.b16 %v3192
    %v3484 = vunpack.c.h.b16 %v3192
    %v3485 = vunpack.c.l.b16 %v3193
    %v3486 = vunpack.c.h.b16 %v3193
    %v3487 = vunpack.c.l.b16 %v3194
    %v3488 = vunpack.c.h.b16 %v3194
    %v3489 = vunpack.c.l.b16 %v3195
    %v3490 = vunpack.c.h.b16 %v3195
    %v3491 = vunpack.c.l.b16 %v3196
    %v3492 = vunpack.c.h.b16 %v3196
    %v3493 = vunpack.c.l.b16 %v3197
    %v3494 = vunpack.c.h.b16 %v3197
    %v3495 = vunpack.c.l.b16 %v3198
    %v3496 = vunpack.c.h.b16 %v3198
    %v3497 = vunpack.c.l.b16 %v3199
    %v3498 = vunpack.c.h.b16 %v3199
    %v3499 = vunpack.c.l.b16 %v3200
    %v3500 = vunpack.c.h.b16 %v3200
    %v3501 = vunpack.c.l.b16 %v3201
    %v3502 = vunpack.c.h.b16 %v3201
    %v3503 = vunpack.c.l.b16 %v3202
    %v3504 = vunpack.c.h.b16 %v3202
    %v3505 = vunpack.c.l.b16 %v3203
    %v3506 = vunpack.c.h.b16 %v3203
    %v3507 = vunpack.c.l.b16 %v3204
    %v3508 = vunpack.c.h.b16 %v3204
    %v3509 = vunpack.c.l.b16 %v3205
    %v3510 = vunpack.c.h.b16 %v3205
    %v3511 = vunpack.c.l.b16 %v3206
    %v3512 = vunpack.c.h.b16 %v3206
    %v3513 = vunpack.c.l.b16 %v3207
    %v3514 = vunpack.c.h.b16 %v3207
    %v3515 = vunpack.c.l.b16 %v3208
    %v3516 = vunpack.c.h.b16 %v3208
    %v3517 = vunpack.c.l.b16 %v3209
    %v3518 = vunpack.c.h.b16 %v3209
    %v3519 = vunpack.c.l.b16 %v3210
    %v3520 = vunpack.c.h.b16 %v3210
    %v3521 = vunpack.c.l.b16 %v3211
    %v3522 = vunpack.c.h.b16 %v3211
    %v3523 = vunpack.c.l.b16 %v3212
    %v3524 = vunpack.c.h.b16 %v3212
    %v3525 = vunpack.c.l.b16 %v3213
    %v3526 = vunpack.c.h.b16 %v3213
    %v3527 = vunpack.c.l.b16 %v3214
    %v3528 = vunpack.c.h.b16 %v3214
    %v3529 = vunpack.c.l.b16 %v3215
    %v3530 = vunpack.c.h.b16 %v3215
    %v3531 = vunpack.c.l.b16 %v3216
    %v3532 = vunpack.c.h.b16 %v3216
    %v3533 = vunpack.c.l.b16 %v3217
    %v3534 = vunpack.c.h.b16 %v3217
    %v3535 = vunpack.c.l.b16 %v3218
    %v3536 = vunpack.c.h.b16 %v3218
    %v3537 = vunpack.c.l.b16 %v3219
    %v3538 = vunpack.c.h.b16 %v3219
    %v3539 = vunpack.c.l.b16 %v3220
    %v3540 = vunpack.c.h.b16 %v3220
    %v3541 = vunpack.c.l.b16 %v3221
    %v3542 = vunpack.c.h.b16 %v3221
    %v3543 = vunpack.c.l.b16 %v3222
    %v3544 = vunpack.c.h.b16 %v3222
    %v3545 = vunpack.c.l.b16 %v3223
    %v3546 = vunpack.c.h.b16 %v3223
    %v3547 = vunpack.c.l.b16 %v3224
    %v3548 = vunpack.c.h.b16 %v3224
    %v3549 = vunpack.c.l.b16 %v3225
    %v3550 = vunpack.c.h.b16 %v3225
    %v3551 = vunpack.c.l.b16 %v3226
    %v3552 = vunpack.c.h.b16 %v3226
    %v3553 = vunpack.c.l.b16 %v3227
    %v3554 = vunpack.c.h.b16 %v3227
    %v3555 = vunpack.c.l.b16 %v3228
    %v3556 = vunpack.c.h.b16 %v3228
    %v3557 = vunpack.c.l.b16 %v3229
    %v3558 = vunpack.c.h.b16 %v3229
    %v3559 = vunpack.c.l.b16 %v3230
    %v3560 = vunpack.c.h.b16 %v3230
    %v3561 = vunpack.c.l.b16 %v3231
    %v3562 = vunpack.c.h.b16 %v3231
    %v3563 = vunpack.c.l.b16 %v3232
    %v3564 = vunpack.c.h.b16 %v3232
    %v3565 = vunpack.c.l.b16 %v3233
    %v3566 = vunpack.c.h.b16 %v3233
    %v3567 = vunpack.c.l.b16 %v3234
    %v3568 = vunpack.c.h.b16 %v3234
    %v3569 = vunpack.c.l.b16 %v3235
    %v3570 = vunpack.c.h.b16 %v3235
    %v3571 = vunpack.c.l.b16 %v3236
    %v3572 = vunpack.c.h.b16 %v3236
    %v3573 = vunpack.c.l.b16 %v3237
    %v3574 = vunpack.c.h.b16 %v3237
    %v3575 = vunpack.c.l.b16 %v3238
    %v3576 = vunpack.c.h.b16 %v3238
    %v3577 = vunpack.c.l.b16 %v3239
    %v3578 = vunpack.c.h.b16 %v3239
    %v3579 = vunpack.c.l.b16 %v3240
    %v3580 = vunpack.c.h.b16 %v3240
    %v3581 = vunpack.c.l.b16 %v3241
    %v3582 = vunpack.c.h.b16 %v3241
    %v3583 = vunpack.c.l.b16 %v3242
    %v3584 = vunpack.c.h.b16 %v3242
    %v3585 = vunpack.c.l.b16 %v3243
    %v3586 = vunpack.c.h.b16 %v3243
    %v3587 = vunpack.c.l.b16 %v3244
    %v3588 = vunpack.c.h.b16 %v3244
    %v3589 = vunpack.c.l.b16 %v3245
    %v3590 = vunpack.c.h.b16 %v3245
    %v3591 = vunpack.c.l.b16 %v3246
    %v3592 = vunpack.c.h.b16 %v3246
    %v3593 = vunpack.c.l.b16 %v3247
    %v3594 = vunpack.c.h.b16 %v3247
    %v3595 = vunpack.c.l.b16 %v3248
    %v3596 = vunpack.c.h.b16 %v3248
    %v3597 = vunpack.c.l.b16 %v3249
    %v3598 = vunpack.c.h.b16 %v3249
    %v3599 = vunpack.c.l.b16 %v3250
    %v3600 = vunpack.c.h.b16 %v3250
    %v3601 = vunpack.c.l.b16 %v3251
    %v3602 = vunpack.c.h.b16 %v3251
    %v3603 = vunpack.c.l.b16 %v3252
    %v3604 = vunpack.c.h.b16 %v3252
    %v3605 = vunpack.c.l.b16 %v3253
    %v3606 = vunpack.c.h.b16 %v3253
    %v3607 = vunpack.c.l.b16 %v3254
    %v3608 = vunpack.c.h.b16 %v3254
    %v3609 = vunpack.c.l.b16 %v3255
    %v3610 = vunpack.c.h.b16 %v3255
    %v3611 = vunpack.c.l.b16 %v3256
    %v3612 = vunpack.c.h.b16 %v3256
    %v3613 = vunpack.c.l.b16 %v3257
    %v3614 = vunpack.c.h.b16 %v3257
    %v3615 = vunpack.c.l.b16 %v3258
    %v3616 = vunpack.c.h.b16 %v3258
    %v3617 = vunpack.c.l.b16 %v3259
    %v3618 = vunpack.c.h.b16 %v3259
    %v3619 = vunpack.c.l.b16 %v3260
    %v3620 = vunpack.c.h.b16 %v3260
    %v3621 = vunpack.c.l.b16 %v3261
    %v3622 = vunpack.c.h.b16 %v3261
    %v3623 = vunpack.c.l.b16 %v3262
    %v3624 = vunpack.c.h.b16 %v3262
    %v3625 = vunpack.c.l.b16 %v3263
    %v3626 = vunpack.c.h.b16 %v3263
    %v3627 = vunpack.c.l.b16 %v3264
    %v3628 = vunpack.c.h.b16 %v3264
    %v3629 = vunpack.c.l.b16 %v3265
    %v3630 = vunpack.c.h.b16 %v3265
    %v3631 = vunpack.c.l.b16 %v3266
    %v3632 = vunpack.c.h.b16 %v3266
    %v3633 = vunpack.c.l.b16 %v3267
    %v3634 = vunpack.c.h.b16 %v3267
    %v3635 = vunpack.c.l.b16 %v3268
    %v3636 = vunpack.c.h.b16 %v3268
    %v3637 = vunpack.c.l.b16 %v3269
    %v3638 = vunpack.c.h.b16 %v3269
    %v3639 = vunpack.c.l.b16 %v3270
    %v3640 = vunpack.c.h.b16 %v3270
    %v3641 = vunpack.c.l.b16 %v3271
    %v3642 = vunpack.c.h.b16 %v3271
    %v3643 = vunpack.c.l.b16 %v3272
    %v3644 = vunpack.c.h.b16 %v3272
    %v3645 = vunpack.c.l.b16 %v3273
    %v3646 = vunpack.c.h.b16 %v3273
    %v3647 = vunpack.c.l.b16 %v3274
    %v3648 = vunpack.c.h.b16 %v3274
    %v3649 = vunpack.c.l.b16 %v3275
    %v3650 = vunpack.c.h.b16 %v3275
    %v3651 = vunpack.c.l.b16 %v3276
    %v3652 = vunpack.c.h.b16 %v3276
    %v3653 = vunpack.c.l.b16 %v3277
    %v3654 = vunpack.c.h.b16 %v3277
    %v3655 = vunpack.c.l.b16 %v3278
    %v3656 = vunpack.c.h.b16 %v3278
    %v3657 = vunpack.c.l.b16 %v3279
    %v3658 = vunpack.c.h.b16 %v3279
    %v3659 = vunpack.c.l.b16 %v3280
    %v3660 = vunpack.c.h.b16 %v3280
    %v3661 = vunpack.c.l.b16 %v3281
    %v3662 = vunpack.c.h.b16 %v3281
    %v3663 = vunpack.c.l.b16 %v3282
    %v3664 = vunpack.c.h.b16 %v3282
    %v3665 = vunpack.c.l.b16 %v3283
    %v3666 = vunpack.c.h.b16 %v3283
    %v3667 = vunpack.c.l.b16 %v3284
    %v3668 = vunpack.c.h.b16 %v3284
    %v3669 = vunpack.c.l.b16 %v3285
    %v3670 = vunpack.c.h.b16 %v3285
    %v3671 = vunpack.c.l.b16 %v3286
    %v3672 = vunpack.c.h.b16 %v3286
    %v3673 = vunpack.c.l.b16 %v3287
    %v3674 = vunpack.c.h.b16 %v3287
    %v3675 = vunpack.c.l.b16 %v3288
    %v3676 = vunpack.c.h.b16 %v3288
    %v3677 = vpack.c.b16 %v3429, %v3425
    %v3678 = vpack.c.b16 %v3430, %v3426
    %v3679 = vpack.c.b16 %v3431, %v3427
    %v3680 = vpack.c.b16 %v3432, %v3428
    %v3681 = vpack.c.b16 %v3437, %v3433
    %v3682 = vpack.c.b16 %v3438, %v3434
    %v3683 = vpack.c.b16 %v3439, %v3435
    %v3684 = vpack.c.b16 %v3440, %v3436
    %v3685 = vpack.c.b16 %v3445, %v3441
    %v3686 = vpack.c.b16 %v3446, %v3442
    %v3687 = vpack.c.b16 %v3447, %v3443
    %v3688 = vpack.c.b16 %v3448, %v3444
    %v3689 = vpack.c.b16 %v3453, %v3449
    %v3690 = vpack.c.b16 %v3454, %v3450
    %v3691 = vpack.c.b16 %v3455, %v3451
    %v3692 = vpack.c.b16 %v3456, %v3452
    %v3693 = vpack.c.b16 %v3461, %v3457
    %v3694 = vpack.c.b16 %v3462, %v3458
    %v3695 = vpack.c.b16 %v3463, %v3459
    %v3696 = vpack.c.b16 %v3464, %v3460
    %v3697 = vpack.c.b16 %v3469, %v3465
    %v3698 = vpack.c.b16 %v3470, %v3466
    %v3699 = vpack.c.b16 %v3471, %v3467
    %v3700 = vpack.c.b16 %v3472, %v3468
    %v3701 = vpack.c.b16 %v3477, %v3473
    %v3702 = vpack.c.b16 %v3478, %v3474
    %v3703 = vpack.c.b16 %v3479, %v3475
    %v3704 = vpack.c.b16 %v3480, %v3476
    %v3705 = vpack.c.b16 %v3485, %v3481
    %v3706 = vpack.c.b16 %v3486, %v3482
    %v3707 = vpack.c.b16 %v3487, %v3483
    %v3708 = vpack.c.b16 %v3488, %v3484
    %v3709 = vpack.c.b16 %v3493, %v3489
    %v3710 = vpack.c.b16 %v3494, %v3490
    %v3711 = vpack.c.b16 %v3495, %v3491
    %v3712 = vpack.c.b16 %v3496, %v3492
    %v3713 = vpack.c.b16 %v3501, %v3497
    %v3714 = vpack.c.b16 %v3502, %v3498
    %v3715 = vpack.c.b16 %v3503, %v3499
    %v3716 = vpack.c.b16 %v3504, %v3500
    %v3717 = vpack.c.b16 %v3509, %v3505
    %v3718 = vpack.c.b16 %v3510, %v3506
    %v3719 = vpack.c.b16 %v3511, %v3507
    %v3720 = vpack.c.b16 %v3512, %v3508
    %v3721 = vpack.c.b16 %v3517, %v3513
    %v3722 = vpack.c.b16 %v3518, %v3514
    %v3723 = vpack.c.b16 %v3519, %v3515
    %v3724 = vpack.c.b16 %v3520, %v3516
    %v3725 = vpack.c.b16 %v3525, %v3521
    %v3726 = vpack.c.b16 %v3526, %v3522
    %v3727 = vpack.c.b16 %v3527, %v3523
    %v3728 = vpack.c.b16 %v3528, %v3524
    %v3729 = vpack.c.b16 %v3533, %v3529
    %v3730 = vpack.c.b16 %v3534, %v3530
    %v3731 = vpack.c.b16 %v3535, %v3531
    %v3732 = vpack.c.b16 %v3536, %v3532
    %v3733 = vpack.c.b16 %v3541, %v3537
    %v3734 = vpack.c.b16 %v3542, %v3538
    %v3735 = vpack.c.b16 %v3543, %v3539
    %v3736 = vpack.c.b16 %v3544, %v3540
    %v3737 = vpack.c.b16 %v3549, %v3545
    %v3738 = vpack.c.b16 %v3550, %v3546
    %v3739 = vpack.c.b16 %v3551, %v3547
    %v3740 = vpack.c.b16 %v3552, %v3548
    %v3741 = vpack.c.b16 %v3557, %v3553
    %v3742 = vpack.c.b16 %v3558, %v3554
    %v3743 = vpack.c.b16 %v3559, %v3555
    %v3744 = vpack.c.b16 %v3560, %v3556
    %v3745 = vpack.c.b16 %v3565, %v3561
    %v3746 = vpack.c.b16 %v3566, %v3562
    %v3747 = vpack.c.b16 %v3567, %v3563
    %v3748 = vpack.c.b16 %v3568, %v3564
    %v3749 = vpack.c.b16 %v3573, %v3569
    %v3750 = vpack.c.b16 %v3574, %v3570
    %v3751 = vpack.c.b16 %v3575, %v3571
    %v3752 = vpack.c.b16 %v3576, %v3572
    %v3753 = vpack.c.b16 %v3581, %v3577
    %v3754 = vpack.c.b16 %v3582, %v3578
    %v3755 = vpack.c.b16 %v3583, %v3579
    %v3756 = vpack.c.b16 %v3584, %v3580
    %v3757 = vpack.c.b16 %v3589, %v3585
    %v3758 = vpack.c.b16 %v3590, %v3586
    %v3759 = vpack.c.b16 %v3591, %v3587
    %v3760 = vpack.c.b16 %v3592, %v3588
    %v3761 = vpack.c.b16 %v3597, %v3593
    %v3762 = vpack.c.b16 %v3598, %v3594
    %v3763 = vpack.c.b16 %v3599, %v3595
    %v3764 = vpack.c.b16 %v3600, %v3596
    %v3765 = vpack.c.b16 %v3605, %v3601
    %v3766 = vpack.c.b16 %v3606, %v3602
    %v3767 = vpack.c.b16 %v3607, %v3603
    %v3768 = vpack.c.b16 %v3608, %v3604
    %v3769 = vpack.c.b16 %v3613, %v3609
    %v3770 = vpack.c.b16 %v3614, %v3610
    %v3771 = vpack.c.b16 %v3615, %v3611
    %v3772 = vpack.c.b16 %v3616, %v3612
    %v3773 = vpack.c.b16 %v3621, %v3617
    %v3774 = vpack.c.b16 %v3622, %v3618
    %v3775 = vpack.c.b16 %v3623, %v3619
    %v3776 = vpack.c.b16 %v3624, %v3620
    %v3777 = vpack.c.b16 %v3629, %v3625
    %v3778 = vpack.c.b16 %v3630, %v3626
    %v3779 = vpack.c.b16 %v3631, %v3627
    %v3780 = vpack.c.b16 %v3632, %v3628
    %v3781 = vpack.c.b16 %v3637, %v3633
    %v3782 = vpack.c.b16 %v3638, %v3634
    %v3783 = vpack.c.b16 %v3639, %v3635
    %v3784 = vpack.c.b16 %v3640, %v3636
    %v3785 = vpack.c.b16 %v3645, %v3641
    %v3786 = vpack.c.b16 %v3646, %v3642
    %v3787 = vpack.c.b16 %v3647, %v3643
    %v3788 = vpack.c.b16 %v3648, %v3644
    %v3789 = vpack.c.b16 %v3653, %v3649
    %v3790 = vpack.c.b16 %v3654, %v3650
    %v3791 = vpack.c.b16 %v3655, %v3651
    %v3792 = vpack.c.b16 %v3656, %v3652
    %v3793 = vpack.c.b16 %v3661, %v3657
    %v3794 = vpack.c.b16 %v3662, %v3658
    %v3795 = vpack.c.b16 %v3663, %v3659
    %v3796 = vpack.c.b16 %v3664, %v3660
    %v3797 = vpack.c.b16 %v3669, %v3665
    %v3798 = vpack.c.b16 %v3670, %v3666
    %v3799 = vpack.c.b16 %v3671, %v3667
    %v3800 = vpack.c.b16 %v3672, %v3668
    %v3801 = vpack.c.b16 %v3673, %v3673
    %v3802 = vpack.c.b16 %v3674, %v3674
    %v3803 = vpack.c.b16 %v3675, %v3675
    %v3804 = vpack.c.b16 %v3676, %v3676
    %v3930 = vsel %vm1549, %v3162, 0
    %v3933 = vsel %vm606, %v3801, 0
    %v3936 = vsel %vm606, %v3802, 0
    %v3939 = vsel %vm606, %v3803, 0
    %v3942 = vsel %vm606, %v3804, 0
    %3944 = vmatpush.bf16.msra.mxu0 %v3705
    %3945 = vmatpush.bf16.msra.mxu0 %v3701
    %3946 = vmatpush.bf16.msra.mxu0 %v3697
    %3947 = vmatpush.bf16.msra.mxu0 %v3693
    %3948 = vmatpush.bf16.msra.mxu0 %v3689
    %3949 = vmatpush.bf16.msra.mxu0 %v3685
    %3950 = vmatpush.bf16.msra.mxu0 %v3681
    %3951 = vmatpush.bf16.msra.mxu0 %v3677
    %3952 = vmatmul.bf16.gmra.mxu0 %v3159
    %v3953 = vpop.f32.mrf.mxu0
    %v3954 = vadd.f32 %v3291, %v3953
    %v3955 = vpop.f32.mrf.mxu0
    %3956 = vdwg.mxu0
    %3957 = vmatpush.bf16.msra.mxu0 %v3737
    %3958 = vmatpush.bf16.msra.mxu0 %v3733
    %3959 = vmatpush.bf16.msra.mxu0 %v3729
    %3960 = vmatpush.bf16.msra.mxu0 %v3725
    %3961 = vmatpush.bf16.msra.mxu0 %v3721
    %3962 = vmatpush.bf16.msra.mxu0 %v3717
    %3963 = vmatpush.bf16.msra.mxu0 %v3713
    %3964 = vmatpush.bf16.msra.mxu0 %v3709
    %3965 = vmatmul.bf16.gmra.mxu0 %v3160
    %v3966 = vpop.f32.mrf.mxu0
    %v3967 = vadd.f32 %v3954, %v3966
    %v3968 = vpop.f32.mrf.mxu0
    %3969 = vdwg.mxu0
    %3970 = vmatpush.bf16.msra.mxu0 %v3769
    %3971 = vmatpush.bf16.msra.mxu0 %v3765
    %3972 = vmatpush.bf16.msra.mxu0 %v3761
    %3973 = vmatpush.bf16.msra.mxu0 %v3757
    %3974 = vmatpush.bf16.msra.mxu0 %v3753
    %3975 = vmatpush.bf16.msra.mxu0 %v3749
    %3976 = vmatpush.bf16.msra.mxu0 %v3745
    %3977 = vmatpush.bf16.msra.mxu0 %v3741
    %3978 = vmatmul.bf16.gmra.mxu0 %v3161
    %v3979 = vpop.f32.mrf.mxu0
    %v3980 = vadd.f32 %v3967, %v3979
    %v3981 = vpop.f32.mrf.mxu0
    %3982 = vdwg.mxu0
    %3983 = vmatpush.bf16.msra.mxu0 %v3933
    %3984 = vmatpush.bf16.msra.mxu0 %v3797
    %3985 = vmatpush.bf16.msra.mxu0 %v3793
    %3986 = vmatpush.bf16.msra.mxu0 %v3789
    %3987 = vmatpush.bf16.msra.mxu0 %v3785
    %3988 = vmatpush.bf16.msra.mxu0 %v3781
    %3989 = vmatpush.bf16.msra.mxu0 %v3777
    %3990 = vmatpush.bf16.msra.mxu0 %v3773
    %3991 = vmatmul.bf16.gmra.mxu0 %v3930
    %v3992 = vpop.f32.mrf.mxu0
    %v3993 = vadd.f32 %v3980, %v3992
    %v3994 = vpop.f32.mrf.mxu0
    %3995 = vdwg.mxu0
    %3996 = vmatpush.bf16.msra.mxu0 %v3706
    %3997 = vmatpush.bf16.msra.mxu0 %v3702
    %3998 = vmatpush.bf16.msra.mxu0 %v3698
    %3999 = vmatpush.bf16.msra.mxu0 %v3694
    %4000 = vmatpush.bf16.msra.mxu0 %v3690
    %4001 = vmatpush.bf16.msra.mxu0 %v3686
    %4002 = vmatpush.bf16.msra.mxu0 %v3682
    %4003 = vmatpush.bf16.msra.mxu0 %v3678
    %4004 = vmatmul.bf16.gmra.mxu0 %v3159
    %v4005 = vpop.f32.mrf.mxu0
    %v4006 = vadd.f32 %v3292, %v4005
    %v4007 = vpop.f32.mrf.mxu0
    %4008 = vdwg.mxu0
    %4009 = vmatpush.bf16.msra.mxu0 %v3738
    %4010 = vmatpush.bf16.msra.mxu0 %v3734
    %4011 = vmatpush.bf16.msra.mxu0 %v3730
    %4012 = vmatpush.bf16.msra.mxu0 %v3726
    %4013 = vmatpush.bf16.msra.mxu0 %v3722
    %4014 = vmatpush.bf16.msra.mxu0 %v3718
    %4015 = vmatpush.bf16.msra.mxu0 %v3714
    %4016 = vmatpush.bf16.msra.mxu0 %v3710
    %4017 = vmatmul.bf16.gmra.mxu0 %v3160
    %v4018 = vpop.f32.mrf.mxu0
    %v4019 = vadd.f32 %v4006, %v4018
    %v4020 = vpop.f32.mrf.mxu0
    %4021 = vdwg.mxu0
    %4022 = vmatpush.bf16.msra.mxu0 %v3770
    %4023 = vmatpush.bf16.msra.mxu0 %v3766
    %4024 = vmatpush.bf16.msra.mxu0 %v3762
    %4025 = vmatpush.bf16.msra.mxu0 %v3758
    %4026 = vmatpush.bf16.msra.mxu0 %v3754
    %4027 = vmatpush.bf16.msra.mxu0 %v3750
    %4028 = vmatpush.bf16.msra.mxu0 %v3746
    %4029 = vmatpush.bf16.msra.mxu0 %v3742
    %4030 = vmatmul.bf16.gmra.mxu0 %v3161
    %v4031 = vpop.f32.mrf.mxu0
    %v4032 = vadd.f32 %v4019, %v4031
    %v4033 = vpop.f32.mrf.mxu0
    %4034 = vdwg.mxu0
    %4035 = vmatpush.bf16.msra.mxu0 %v3936
    %4036 = vmatpush.bf16.msra.mxu0 %v3798
    %4037 = vmatpush.bf16.msra.mxu0 %v3794
    %4038 = vmatpush.bf16.msra.mxu0 %v3790
    %4039 = vmatpush.bf16.msra.mxu0 %v3786
    %4040 = vmatpush.bf16.msra.mxu0 %v3782
    %4041 = vmatpush.bf16.msra.mxu0 %v3778
    %4042 = vmatpush.bf16.msra.mxu0 %v3774
    %4043 = vmatmul.bf16.gmra.mxu0 %v3930
    %v4044 = vpop.f32.mrf.mxu0
    %v4045 = vadd.f32 %v4032, %v4044
    %v4046 = vpop.f32.mrf.mxu0
    %4047 = vdwg.mxu0
    %4048 = vmatpush.bf16.msra.mxu0 %v3707
    %4049 = vmatpush.bf16.msra.mxu0 %v3703
    %4050 = vmatpush.bf16.msra.mxu0 %v3699
    %4051 = vmatpush.bf16.msra.mxu0 %v3695
    %4052 = vmatpush.bf16.msra.mxu0 %v3691
    %4053 = vmatpush.bf16.msra.mxu0 %v3687
    %4054 = vmatpush.bf16.msra.mxu0 %v3683
    %4055 = vmatpush.bf16.msra.mxu0 %v3679
    %4056 = vmatmul.bf16.gmra.mxu0 %v3159
    %v4057 = vpop.f32.mrf.mxu0
    %v4058 = vadd.f32 %v3293, %v4057
    %v4059 = vpop.f32.mrf.mxu0
    %4060 = vdwg.mxu0
    %4061 = vmatpush.bf16.msra.mxu0 %v3739
    %4062 = vmatpush.bf16.msra.mxu0 %v3735
    %4063 = vmatpush.bf16.msra.mxu0 %v3731
    %4064 = vmatpush.bf16.msra.mxu0 %v3727
    %4065 = vmatpush.bf16.msra.mxu0 %v3723
    %4066 = vmatpush.bf16.msra.mxu0 %v3719
    %4067 = vmatpush.bf16.msra.mxu0 %v3715
    %4068 = vmatpush.bf16.msra.mxu0 %v3711
    %4069 = vmatmul.bf16.gmra.mxu0 %v3160
    %v4070 = vpop.f32.mrf.mxu0
    %v4071 = vadd.f32 %v4058, %v4070
    %v4072 = vpop.f32.mrf.mxu0
    %4073 = vdwg.mxu0
    %4074 = vmatpush.bf16.msra.mxu0 %v3771
    %4075 = vmatpush.bf16.msra.mxu0 %v3767
    %4076 = vmatpush.bf16.msra.mxu0 %v3763
    %4077 = vmatpush.bf16.msra.mxu0 %v3759
    %4078 = vmatpush.bf16.msra.mxu0 %v3755
    %4079 = vmatpush.bf16.msra.mxu0 %v3751
    %4080 = vmatpush.bf16.msra.mxu0 %v3747
    %4081 = vmatpush.bf16.msra.mxu0 %v3743
    %4082 = vmatmul.bf16.gmra.mxu0 %v3161
    %v4083 = vpop.f32.mrf.mxu0
    %v4084 = vadd.f32 %v4071, %v4083
    %v4085 = vpop.f32.mrf.mxu0
    %4086 = vdwg.mxu0
    %4087 = vmatpush.bf16.msra.mxu0 %v3939
    %4088 = vmatpush.bf16.msra.mxu0 %v3799
    %4089 = vmatpush.bf16.msra.mxu0 %v3795
    %4090 = vmatpush.bf16.msra.mxu0 %v3791
    %4091 = vmatpush.bf16.msra.mxu0 %v3787
    %4092 = vmatpush.bf16.msra.mxu0 %v3783
    %4093 = vmatpush.bf16.msra.mxu0 %v3779
    %4094 = vmatpush.bf16.msra.mxu0 %v3775
    %4095 = vmatmul.bf16.gmra.mxu0 %v3930
    %v4096 = vpop.f32.mrf.mxu0
    %v4097 = vadd.f32 %v4084, %v4096
    %v4098 = vpop.f32.mrf.mxu0
    %4099 = vdwg.mxu0
    %4100 = vmatpush.bf16.msra.mxu0 %v3708
    %4101 = vmatpush.bf16.msra.mxu0 %v3704
    %4102 = vmatpush.bf16.msra.mxu0 %v3700
    %4103 = vmatpush.bf16.msra.mxu0 %v3696
    %4104 = vmatpush.bf16.msra.mxu0 %v3692
    %4105 = vmatpush.bf16.msra.mxu0 %v3688
    %4106 = vmatpush.bf16.msra.mxu0 %v3684
    %4107 = vmatpush.bf16.msra.mxu0 %v3680
    %4108 = vmatmul.bf16.gmra.mxu0 %v3159
    %v4109 = vpop.f32.mrf.mxu0
    %v4110 = vadd.f32 %v3294, %v4109
    %v4111 = vpop.f32.mrf.mxu0
    %4112 = vdwg.mxu0
    %4113 = vmatpush.bf16.msra.mxu0 %v3740
    %4114 = vmatpush.bf16.msra.mxu0 %v3736
    %4115 = vmatpush.bf16.msra.mxu0 %v3732
    %4116 = vmatpush.bf16.msra.mxu0 %v3728
    %4117 = vmatpush.bf16.msra.mxu0 %v3724
    %4118 = vmatpush.bf16.msra.mxu0 %v3720
    %4119 = vmatpush.bf16.msra.mxu0 %v3716
    %4120 = vmatpush.bf16.msra.mxu0 %v3712
    %4121 = vmatmul.bf16.gmra.mxu0 %v3160
    %v4122 = vpop.f32.mrf.mxu0
    %v4123 = vadd.f32 %v4110, %v4122
    %v4124 = vpop.f32.mrf.mxu0
    %4125 = vdwg.mxu0
    %4126 = vmatpush.bf16.msra.mxu0 %v3772
    %4127 = vmatpush.bf16.msra.mxu0 %v3768
    %4128 = vmatpush.bf16.msra.mxu0 %v3764
    %4129 = vmatpush.bf16.msra.mxu0 %v3760
    %4130 = vmatpush.bf16.msra.mxu0 %v3756
    %4131 = vmatpush.bf16.msra.mxu0 %v3752
    %4132 = vmatpush.bf16.msra.mxu0 %v3748
    %4133 = vmatpush.bf16.msra.mxu0 %v3744
    %4134 = vmatmul.bf16.gmra.mxu0 %v3161
    %v4135 = vpop.f32.mrf.mxu0
    %v4136 = vadd.f32 %v4123, %v4135
    %v4137 = vpop.f32.mrf.mxu0
    %4138 = vdwg.mxu0
    %4139 = vmatpush.bf16.msra.mxu0 %v3942
    %4140 = vmatpush.bf16.msra.mxu0 %v3800
    %4141 = vmatpush.bf16.msra.mxu0 %v3796
    %4142 = vmatpush.bf16.msra.mxu0 %v3792
    %4143 = vmatpush.bf16.msra.mxu0 %v3788
    %4144 = vmatpush.bf16.msra.mxu0 %v3784
    %4145 = vmatpush.bf16.msra.mxu0 %v3780
    %4146 = vmatpush.bf16.msra.mxu0 %v3776
    %4147 = vmatmul.bf16.gmra.mxu0 %v3930
    %v4148 = vpop.f32.mrf.mxu0
    %v4149 = vadd.f32 %v4136, %v4148
    %v4150 = vpop.f32.mrf.mxu0
    %4151 = vdwg.mxu0
    %v4152 = vtanh.pop %v3993
    %v4153 = vtanh.pop %v4045
    %v4154 = vtanh.pop %v4097
    %v4155 = vtanh.pop %v4149
    %v4156 = vpack.c.bf16 %v4152, %v4152
    %v4157 = vpack.c.bf16 %v4153, %v4153
    %v4158 = vpack.c.bf16 %v4154, %v4154
    %v4159 = vpack.c.bf16 %v4155, %v4155
    %v4160 = vld [vmem:[#allocation10] sm:$0xff]
    %v4161 = vld [vmem:[#allocation10 + $0x8] sm:$0xff]
    %v4162 = vld [vmem:[#allocation10 + $0x10] sm:$0xff]
    %v4163 = vld [vmem:[#allocation10 + $0x18] sm:$0xff]
    %v4164 = vld [vmem:[#allocation10 + $0x20] sm:$0xff]
    %v4165 = vld [vmem:[#allocation10 + $0x28] sm:$0xff]
    %v4166 = vld [vmem:[#allocation10 + $0x30] sm:$0xff]
    %v4167 = vld [vmem:[#allocation10 + $0x38] sm:$0xff]
    %v4168 = vld [vmem:[#allocation10 + $0x40] sm:$0xff]
    %v4169 = vld [vmem:[#allocation10 + $0x48] sm:$0xff]
    %v4170 = vld [vmem:[#allocation10 + $0x50] sm:$0xff]
    %v4171 = vld [vmem:[#allocation10 + $0x58] sm:$0xff]
    %v4172 = vld [vmem:[#allocation10 + $0x60] sm:$0xff]
    %v4173 = vld [vmem:[#allocation10 + $0x68] sm:$0xff]
    %v4174 = vld [vmem:[#allocation10 + $0x70] sm:$0xff]
    %v4175 = vld [vmem:[#allocation10 + $0x78] sm:$0xff]
    %v4176 = vld [vmem:[#allocation10 + $0x80] sm:$0xff]
    %v4177 = vld [vmem:[#allocation10 + $0x88] sm:$0xff]
    %v4178 = vld [vmem:[#allocation10 + $0x90] sm:$0xff]
    %v4179 = vld [vmem:[#allocation10 + $0x98] sm:$0xff]
    %v4180 = vld [vmem:[#allocation10 + $0xa0] sm:$0xff]
    %v4181 = vld [vmem:[#allocation10 + $0xa8] sm:$0xff]
    %v4182 = vld [vmem:[#allocation10 + $0xb0] sm:$0xff]
    %v4183 = vld [vmem:[#allocation10 + $0xb8] sm:$0xff]
    %v4184 = vld [vmem:[#allocation10 + $0xc0] sm:$0xff]
    %v4185 = vld [vmem:[#allocation10 + $0xc8] sm:$0xff]
    %v4186 = vld [vmem:[#allocation10 + $0xd0] sm:$0xff]
    %v4187 = vld [vmem:[#allocation10 + $0xd8] sm:$0xff]
    %v4188 = vld [vmem:[#allocation10 + $0xe0] sm:$0xff]
    %v4189 = vld [vmem:[#allocation10 + $0xe8] sm:$0xff]
    %v4190 = vld [vmem:[#allocation10 + $0xf0] sm:$0xff]
    %v4191 = vld [vmem:[#allocation10 + $0xf8] sm:$0xff]
    %v4192 = vld [vmem:[#allocation10 + $0x100] sm:$0xff]
    %v4193 = vld [vmem:[#allocation10 + $0x108] sm:$0xff]
    %v4194 = vld [vmem:[#allocation10 + $0x110] sm:$0xff]
    %v4195 = vld [vmem:[#allocation10 + $0x118] sm:$0xff]
    %v4196 = vld [vmem:[#allocation10 + $0x120] sm:$0xff]
    %v4197 = vld [vmem:[#allocation10 + $0x128] sm:$0xff]
    %v4198 = vld [vmem:[#allocation10 + $0x130] sm:$0xff]
    %v4199 = vld [vmem:[#allocation10 + $0x138] sm:$0xff]
    %v4200 = vld [vmem:[#allocation10 + $0x140] sm:$0xff]
    %v4201 = vld [vmem:[#allocation10 + $0x148] sm:$0xff]
    %v4202 = vld [vmem:[#allocation10 + $0x150] sm:$0xff]
    %v4203 = vld [vmem:[#allocation10 + $0x158] sm:$0xff]
    %v4204 = vld [vmem:[#allocation10 + $0x160] sm:$0xff]
    %v4205 = vld [vmem:[#allocation10 + $0x168] sm:$0xff]
    %v4206 = vld [vmem:[#allocation10 + $0x170] sm:$0xff]
    %v4207 = vld [vmem:[#allocation10 + $0x178] sm:$0xff]
    %v4208 = vld [vmem:[#allocation10 + $0x180] sm:$0xff]
    %v4209 = vld [vmem:[#allocation10 + $0x188] sm:$0xff]
    %v4210 = vld [vmem:[#allocation10 + $0x190] sm:$0xff]
    %v4211 = vld [vmem:[#allocation10 + $0x198] sm:$0xff]
    %v4212 = vld [vmem:[#allocation10 + $0x1a0] sm:$0xff]
    %v4213 = vld [vmem:[#allocation10 + $0x1a8] sm:$0xff]
    %v4214 = vld [vmem:[#allocation10 + $0x1b0] sm:$0xff]
    %v4215 = vld [vmem:[#allocation10 + $0x1b8] sm:$0xff]
    %v4216 = vld [vmem:[#allocation10 + $0x1c0] sm:$0xff]
    %v4217 = vld [vmem:[#allocation10 + $0x1c8] sm:$0xff]
    %v4218 = vld [vmem:[#allocation10 + $0x1d0] sm:$0xff]
    %v4219 = vld [vmem:[#allocation10 + $0x1d8] sm:$0xff]
    %v4220 = vld [vmem:[#allocation10 + $0x1e0] sm:$0xff]
    %v4221 = vld [vmem:[#allocation10 + $0x1e8] sm:$0xff]
    %v4222 = vld [vmem:[#allocation10 + $0x1f0] sm:$0xff]
    %v4223 = vld [vmem:[#allocation10 + $0x1f8] sm:$0xff]
    %v4224 = vld [vmem:[#allocation10 + $0x200] sm:$0xff]
    %v4225 = vld [vmem:[#allocation10 + $0x208] sm:$0xff]
    %v4226 = vld [vmem:[#allocation10 + $0x210] sm:$0xff]
    %v4227 = vld [vmem:[#allocation10 + $0x218] sm:$0xff]
    %v4228 = vld [vmem:[#allocation10 + $0x220] sm:$0xff]
    %v4229 = vld [vmem:[#allocation10 + $0x228] sm:$0xff]
    %v4230 = vld [vmem:[#allocation10 + $0x230] sm:$0xff]
    %v4231 = vld [vmem:[#allocation10 + $0x238] sm:$0xff]
    %v4232 = vld [vmem:[#allocation10 + $0x240] sm:$0xff]
    %v4233 = vld [vmem:[#allocation10 + $0x248] sm:$0xff]
    %v4234 = vld [vmem:[#allocation10 + $0x250] sm:$0xff]
    %v4235 = vld [vmem:[#allocation10 + $0x258] sm:$0xff]
    %v4236 = vld [vmem:[#allocation10 + $0x260] sm:$0xff]
    %v4237 = vld [vmem:[#allocation10 + $0x268] sm:$0xff]
    %v4238 = vld [vmem:[#allocation10 + $0x270] sm:$0xff]
    %v4239 = vld [vmem:[#allocation10 + $0x278] sm:$0xff]
    %v4240 = vld [vmem:[#allocation10 + $0x280] sm:$0xff]
    %v4241 = vld [vmem:[#allocation10 + $0x288] sm:$0xff]
    %v4242 = vld [vmem:[#allocation10 + $0x290] sm:$0xff]
    %v4243 = vld [vmem:[#allocation10 + $0x298] sm:$0xff]
    %v4244 = vld [vmem:[#allocation10 + $0x2a0] sm:$0xff]
    %v4245 = vld [vmem:[#allocation10 + $0x2a8] sm:$0xff]
    %v4246 = vld [vmem:[#allocation10 + $0x2b0] sm:$0xff]
    %v4247 = vld [vmem:[#allocation10 + $0x2b8] sm:$0xff]
    %v4248 = vld [vmem:[#allocation10 + $0x2c0] sm:$0xff]
    %v4249 = vld [vmem:[#allocation10 + $0x2c8] sm:$0xff]
    %v4250 = vld [vmem:[#allocation10 + $0x2d0] sm:$0xff]
    %v4251 = vld [vmem:[#allocation10 + $0x2d8] sm:$0xff]
    %v4252 = vld [vmem:[#allocation10 + $0x2e0] sm:$0xff]
    %v4253 = vld [vmem:[#allocation10 + $0x2e8] sm:$0xff]
    %v4254 = vld [vmem:[#allocation10 + $0x2f0] sm:$0xff]
    %v4255 = vld [vmem:[#allocation10 + $0x2f8] sm:$0xff]
    %v4256 = vld [vmem:[#allocation10 + $0x300] sm:$0xff]
    %v4257 = vld [vmem:[#allocation10 + $0x308] sm:$0xff]
    %v4258 = vld [vmem:[#allocation10 + $0x310] sm:$0xff]
    %v4259 = vld [vmem:[#allocation10 + $0x318] sm:$0xff]
    %v4260 = vld [vmem:[#allocation10 + $0x320] sm:$0xff]
    %v4261 = vld [vmem:[#allocation10 + $0x328] sm:$0xff]
    %v4262 = vld [vmem:[#allocation10 + $0x330] sm:$0xff]
    %v4263 = vld [vmem:[#allocation10 + $0x338] sm:$0xff]
    %v4264 = vld [vmem:[#allocation10 + $0x340] sm:$0xff]
    %v4265 = vld [vmem:[#allocation10 + $0x348] sm:$0xff]
    %v4266 = vld [vmem:[#allocation10 + $0x350] sm:$0xff]
    %v4267 = vld [vmem:[#allocation10 + $0x358] sm:$0xff]
    %v4268 = vld [vmem:[#allocation10 + $0x360] sm:$0xff]
    %v4269 = vld [vmem:[#allocation10 + $0x368] sm:$0xff]
    %v4270 = vld [vmem:[#allocation10 + $0x370] sm:$0xff]
    %v4271 = vld [vmem:[#allocation10 + $0x378] sm:$0xff]
    %v4272 = vld [vmem:[#allocation10 + $0x380] sm:$0xff]
    %v4273 = vld [vmem:[#allocation10 + $0x388] sm:$0xff]
    %v4274 = vld [vmem:[#allocation10 + $0x390] sm:$0xff]
    %v4275 = vld [vmem:[#allocation10 + $0x398] sm:$0xff]
    %v4276 = vld [vmem:[#allocation10 + $0x3a0] sm:$0xff]
    %v4277 = vld [vmem:[#allocation10 + $0x3a8] sm:$0xff]
    %v4278 = vld [vmem:[#allocation10 + $0x3b0] sm:$0xff]
    %v4279 = vld [vmem:[#allocation10 + $0x3b8] sm:$0xff]
    %v4280 = vld [vmem:[#allocation10 + $0x3c0] sm:$0xff]
    %v4281 = vld [vmem:[#allocation10 + $0x3c8] sm:$0xff]
    %v4282 = vld [vmem:[#allocation10 + $0x3d0] sm:$0xff]
    %v4283 = vld [vmem:[#allocation10 + $0x3d8] sm:$0xff]
    %v4284 = vld [vmem:[#allocation10 + $0x3e0] sm:$0x33]
    %v4285 = vld [vmem:[#allocation10 + $0x3e8] sm:$0x33]
    %v4286 = vld [vmem:[%s14] sm:$0xf]
    %v4288 = vperm.slane %v4286, 0
    %v4289 = vperm.slane %v4286, 1
    %v4290 = vperm.slane %v4286, 2
    %v4291 = vperm.slane %v4286, 3
    %v4422 = vunpack.c.l.b16 %v4160
    %v4423 = vunpack.c.h.b16 %v4160
    %v4424 = vunpack.c.l.b16 %v4161
    %v4425 = vunpack.c.h.b16 %v4161
    %v4426 = vunpack.c.l.b16 %v4162
    %v4427 = vunpack.c.h.b16 %v4162
    %v4428 = vunpack.c.l.b16 %v4163
    %v4429 = vunpack.c.h.b16 %v4163
    %v4430 = vunpack.c.l.b16 %v4164
    %v4431 = vunpack.c.h.b16 %v4164
    %v4432 = vunpack.c.l.b16 %v4165
    %v4433 = vunpack.c.h.b16 %v4165
    %v4434 = vunpack.c.l.b16 %v4166
    %v4435 = vunpack.c.h.b16 %v4166
    %v4436 = vunpack.c.l.b16 %v4167
    %v4437 = vunpack.c.h.b16 %v4167
    %v4438 = vunpack.c.l.b16 %v4168
    %v4439 = vunpack.c.h.b16 %v4168
    %v4440 = vunpack.c.l.b16 %v4169
    %v4441 = vunpack.c.h.b16 %v4169
    %v4442 = vunpack.c.l.b16 %v4170
    %v4443 = vunpack.c.h.b16 %v4170
    %v4444 = vunpack.c.l.b16 %v4171
    %v4445 = vunpack.c.h.b16 %v4171
    %v4446 = vunpack.c.l.b16 %v4172
    %v4447 = vunpack.c.h.b16 %v4172
    %v4448 = vunpack.c.l.b16 %v4173
    %v4449 = vunpack.c.h.b16 %v4173
    %v4450 = vunpack.c.l.b16 %v4174
    %v4451 = vunpack.c.h.b16 %v4174
    %v4452 = vunpack.c.l.b16 %v4175
    %v4453 = vunpack.c.h.b16 %v4175
    %v4454 = vunpack.c.l.b16 %v4176
    %v4455 = vunpack.c.h.b16 %v4176
    %v4456 = vunpack.c.l.b16 %v4177
    %v4457 = vunpack.c.h.b16 %v4177
    %v4458 = vunpack.c.l.b16 %v4178
    %v4459 = vunpack.c.h.b16 %v4178
    %v4460 = vunpack.c.l.b16 %v4179
    %v4461 = vunpack.c.h.b16 %v4179
    %v4462 = vunpack.c.l.b16 %v4180
    %v4463 = vunpack.c.h.b16 %v4180
    %v4464 = vunpack.c.l.b16 %v4181
    %v4465 = vunpack.c.h.b16 %v4181
    %v4466 = vunpack.c.l.b16 %v4182
    %v4467 = vunpack.c.h.b16 %v4182
    %v4468 = vunpack.c.l.b16 %v4183
    %v4469 = vunpack.c.h.b16 %v4183
    %v4470 = vunpack.c.l.b16 %v4184
    %v4471 = vunpack.c.h.b16 %v4184
    %v4472 = vunpack.c.l.b16 %v4185
    %v4473 = vunpack.c.h.b16 %v4185
    %v4474 = vunpack.c.l.b16 %v4186
    %v4475 = vunpack.c.h.b16 %v4186
    %v4476 = vunpack.c.l.b16 %v4187
    %v4477 = vunpack.c.h.b16 %v4187
    %v4478 = vunpack.c.l.b16 %v4188
    %v4479 = vunpack.c.h.b16 %v4188
    %v4480 = vunpack.c.l.b16 %v4189
    %v4481 = vunpack.c.h.b16 %v4189
    %v4482 = vunpack.c.l.b16 %v4190
    %v4483 = vunpack.c.h.b16 %v4190
    %v4484 = vunpack.c.l.b16 %v4191
    %v4485 = vunpack.c.h.b16 %v4191
    %v4486 = vunpack.c.l.b16 %v4192
    %v4487 = vunpack.c.h.b16 %v4192
    %v4488 = vunpack.c.l.b16 %v4193
    %v4489 = vunpack.c.h.b16 %v4193
    %v4490 = vunpack.c.l.b16 %v4194
    %v4491 = vunpack.c.h.b16 %v4194
    %v4492 = vunpack.c.l.b16 %v4195
    %v4493 = vunpack.c.h.b16 %v4195
    %v4494 = vunpack.c.l.b16 %v4196
    %v4495 = vunpack.c.h.b16 %v4196
    %v4496 = vunpack.c.l.b16 %v4197
    %v4497 = vunpack.c.h.b16 %v4197
    %v4498 = vunpack.c.l.b16 %v4198
    %v4499 = vunpack.c.h.b16 %v4198
    %v4500 = vunpack.c.l.b16 %v4199
    %v4501 = vunpack.c.h.b16 %v4199
    %v4502 = vunpack.c.l.b16 %v4200
    %v4503 = vunpack.c.h.b16 %v4200
    %v4504 = vunpack.c.l.b16 %v4201
    %v4505 = vunpack.c.h.b16 %v4201
    %v4506 = vunpack.c.l.b16 %v4202
    %v4507 = vunpack.c.h.b16 %v4202
    %v4508 = vunpack.c.l.b16 %v4203
    %v4509 = vunpack.c.h.b16 %v4203
    %v4510 = vunpack.c.l.b16 %v4204
    %v4511 = vunpack.c.h.b16 %v4204
    %v4512 = vunpack.c.l.b16 %v4205
    %v4513 = vunpack.c.h.b16 %v4205
    %v4514 = vunpack.c.l.b16 %v4206
    %v4515 = vunpack.c.h.b16 %v4206
    %v4516 = vunpack.c.l.b16 %v4207
    %v4517 = vunpack.c.h.b16 %v4207
    %v4518 = vunpack.c.l.b16 %v4208
    %v4519 = vunpack.c.h.b16 %v4208
    %v4520 = vunpack.c.l.b16 %v4209
    %v4521 = vunpack.c.h.b16 %v4209
    %v4522 = vunpack.c.l.b16 %v4210
    %v4523 = vunpack.c.h.b16 %v4210
    %v4524 = vunpack.c.l.b16 %v4211
    %v4525 = vunpack.c.h.b16 %v4211
    %v4526 = vunpack.c.l.b16 %v4212
    %v4527 = vunpack.c.h.b16 %v4212
    %v4528 = vunpack.c.l.b16 %v4213
    %v4529 = vunpack.c.h.b16 %v4213
    %v4530 = vunpack.c.l.b16 %v4214
    %v4531 = vunpack.c.h.b16 %v4214
    %v4532 = vunpack.c.l.b16 %v4215
    %v4533 = vunpack.c.h.b16 %v4215
    %v4534 = vunpack.c.l.b16 %v4216
    %v4535 = vunpack.c.h.b16 %v4216
    %v4536 = vunpack.c.l.b16 %v4217
    %v4537 = vunpack.c.h.b16 %v4217
    %v4538 = vunpack.c.l.b16 %v4218
    %v4539 = vunpack.c.h.b16 %v4218
    %v4540 = vunpack.c.l.b16 %v4219
    %v4541 = vunpack.c.h.b16 %v4219
    %v4542 = vunpack.c.l.b16 %v4220
    %v4543 = vunpack.c.h.b16 %v4220
    %v4544 = vunpack.c.l.b16 %v4221
    %v4545 = vunpack.c.h.b16 %v4221
    %v4546 = vunpack.c.l.b16 %v4222
    %v4547 = vunpack.c.h.b16 %v4222
    %v4548 = vunpack.c.l.b16 %v4223
    %v4549 = vunpack.c.h.b16 %v4223
    %v4550 = vunpack.c.l.b16 %v4224
    %v4551 = vunpack.c.h.b16 %v4224
    %v4552 = vunpack.c.l.b16 %v4225
    %v4553 = vunpack.c.h.b16 %v4225
    %v4554 = vunpack.c.l.b16 %v4226
    %v4555 = vunpack.c.h.b16 %v4226
    %v4556 = vunpack.c.l.b16 %v4227
    %v4557 = vunpack.c.h.b16 %v4227
    %v4558 = vunpack.c.l.b16 %v4228
    %v4559 = vunpack.c.h.b16 %v4228
    %v4560 = vunpack.c.l.b16 %v4229
    %v4561 = vunpack.c.h.b16 %v4229
    %v4562 = vunpack.c.l.b16 %v4230
    %v4563 = vunpack.c.h.b16 %v4230
    %v4564 = vunpack.c.l.b16 %v4231
    %v4565 = vunpack.c.h.b16 %v4231
    %v4566 = vunpack.c.l.b16 %v4232
    %v4567 = vunpack.c.h.b16 %v4232
    %v4568 = vunpack.c.l.b16 %v4233
    %v4569 = vunpack.c.h.b16 %v4233
    %v4570 = vunpack.c.l.b16 %v4234
    %v4571 = vunpack.c.h.b16 %v4234
    %v4572 = vunpack.c.l.b16 %v4235
    %v4573 = vunpack.c.h.b16 %v4235
    %v4574 = vunpack.c.l.b16 %v4236
    %v4575 = vunpack.c.h.b16 %v4236
    %v4576 = vunpack.c.l.b16 %v4237
    %v4577 = vunpack.c.h.b16 %v4237
    %v4578 = vunpack.c.l.b16 %v4238
    %v4579 = vunpack.c.h.b16 %v4238
    %v4580 = vunpack.c.l.b16 %v4239
    %v4581 = vunpack.c.h.b16 %v4239
    %v4582 = vunpack.c.l.b16 %v4240
    %v4583 = vunpack.c.h.b16 %v4240
    %v4584 = vunpack.c.l.b16 %v4241
    %v4585 = vunpack.c.h.b16 %v4241
    %v4586 = vunpack.c.l.b16 %v4242
    %v4587 = vunpack.c.h.b16 %v4242
    %v4588 = vunpack.c.l.b16 %v4243
    %v4589 = vunpack.c.h.b16 %v4243
    %v4590 = vunpack.c.l.b16 %v4244
    %v4591 = vunpack.c.h.b16 %v4244
    %v4592 = vunpack.c.l.b16 %v4245
    %v4593 = vunpack.c.h.b16 %v4245
    %v4594 = vunpack.c.l.b16 %v4246
    %v4595 = vunpack.c.h.b16 %v4246
    %v4596 = vunpack.c.l.b16 %v4247
    %v4597 = vunpack.c.h.b16 %v4247
    %v4598 = vunpack.c.l.b16 %v4248
    %v4599 = vunpack.c.h.b16 %v4248
    %v4600 = vunpack.c.l.b16 %v4249
    %v4601 = vunpack.c.h.b16 %v4249
    %v4602 = vunpack.c.l.b16 %v4250
    %v4603 = vunpack.c.h.b16 %v4250
    %v4604 = vunpack.c.l.b16 %v4251
    %v4605 = vunpack.c.h.b16 %v4251
    %v4606 = vunpack.c.l.b16 %v4252
    %v4607 = vunpack.c.h.b16 %v4252
    %v4608 = vunpack.c.l.b16 %v4253
    %v4609 = vunpack.c.h.b16 %v4253
    %v4610 = vunpack.c.l.b16 %v4254
    %v4611 = vunpack.c.h.b16 %v4254
    %v4612 = vunpack.c.l.b16 %v4255
    %v4613 = vunpack.c.h.b16 %v4255
    %v4614 = vunpack.c.l.b16 %v4256
    %v4615 = vunpack.c.h.b16 %v4256
    %v4616 = vunpack.c.l.b16 %v4257
    %v4617 = vunpack.c.h.b16 %v4257
    %v4618 = vunpack.c.l.b16 %v4258
    %v4619 = vunpack.c.h.b16 %v4258
    %v4620 = vunpack.c.l.b16 %v4259
    %v4621 = vunpack.c.h.b16 %v4259
    %v4622 = vunpack.c.l.b16 %v4260
    %v4623 = vunpack.c.h.b16 %v4260
    %v4624 = vunpack.c.l.b16 %v4261
    %v4625 = vunpack.c.h.b16 %v4261
    %v4626 = vunpack.c.l.b16 %v4262
    %v4627 = vunpack.c.h.b16 %v4262
    %v4628 = vunpack.c.l.b16 %v4263
    %v4629 = vunpack.c.h.b16 %v4263
    %v4630 = vunpack.c.l.b16 %v4264
    %v4631 = vunpack.c.h.b16 %v4264
    %v4632 = vunpack.c.l.b16 %v4265
    %v4633 = vunpack.c.h.b16 %v4265
    %v4634 = vunpack.c.l.b16 %v4266
    %v4635 = vunpack.c.h.b16 %v4266
    %v4636 = vunpack.c.l.b16 %v4267
    %v4637 = vunpack.c.h.b16 %v4267
    %v4638 = vunpack.c.l.b16 %v4268
    %v4639 = vunpack.c.h.b16 %v4268
    %v4640 = vunpack.c.l.b16 %v4269
    %v4641 = vunpack.c.h.b16 %v4269
    %v4642 = vunpack.c.l.b16 %v4270
    %v4643 = vunpack.c.h.b16 %v4270
    %v4644 = vunpack.c.l.b16 %v4271
    %v4645 = vunpack.c.h.b16 %v4271
    %v4646 = vunpack.c.l.b16 %v4272
    %v4647 = vunpack.c.h.b16 %v4272
    %v4648 = vunpack.c.l.b16 %v4273
    %v4649 = vunpack.c.h.b16 %v4273
    %v4650 = vunpack.c.l.b16 %v4274
    %v4651 = vunpack.c.h.b16 %v4274
    %v4652 = vunpack.c.l.b16 %v4275
    %v4653 = vunpack.c.h.b16 %v4275
    %v4654 = vunpack.c.l.b16 %v4276
    %v4655 = vunpack.c.h.b16 %v4276
    %v4656 = vunpack.c.l.b16 %v4277
    %v4657 = vunpack.c.h.b16 %v4277
    %v4658 = vunpack.c.l.b16 %v4278
    %v4659 = vunpack.c.h.b16 %v4278
    %v4660 = vunpack.c.l.b16 %v4279
    %v4661 = vunpack.c.h.b16 %v4279
    %v4662 = vunpack.c.l.b16 %v4280
    %v4663 = vunpack.c.h.b16 %v4280
    %v4664 = vunpack.c.l.b16 %v4281
    %v4665 = vunpack.c.h.b16 %v4281
    %v4666 = vunpack.c.l.b16 %v4282
    %v4667 = vunpack.c.h.b16 %v4282
    %v4668 = vunpack.c.l.b16 %v4283
    %v4669 = vunpack.c.h.b16 %v4283
    %v4670 = vunpack.c.l.b16 %v4284
    %v4671 = vunpack.c.h.b16 %v4284
    %v4672 = vunpack.c.l.b16 %v4285
    %v4673 = vunpack.c.h.b16 %v4285
    %v4674 = vpack.c.b16 %v4426, %v4422
    %v4675 = vpack.c.b16 %v4427, %v4423
    %v4676 = vpack.c.b16 %v4428, %v4424
    %v4677 = vpack.c.b16 %v4429, %v4425
    %v4678 = vpack.c.b16 %v4434, %v4430
    %v4679 = vpack.c.b16 %v4435, %v4431
    %v4680 = vpack.c.b16 %v4436, %v4432
    %v4681 = vpack.c.b16 %v4437, %v4433
    %v4682 = vpack.c.b16 %v4442, %v4438
    %v4683 = vpack.c.b16 %v4443, %v4439
    %v4684 = vpack.c.b16 %v4444, %v4440
    %v4685 = vpack.c.b16 %v4445, %v4441
    %v4686 = vpack.c.b16 %v4450, %v4446
    %v4687 = vpack.c.b16 %v4451, %v4447
    %v4688 = vpack.c.b16 %v4452, %v4448
    %v4689 = vpack.c.b16 %v4453, %v4449
    %v4690 = vpack.c.b16 %v4458, %v4454
    %v4691 = vpack.c.b16 %v4459, %v4455
    %v4692 = vpack.c.b16 %v4460, %v4456
    %v4693 = vpack.c.b16 %v4461, %v4457
    %v4694 = vpack.c.b16 %v4466, %v4462
    %v4695 = vpack.c.b16 %v4467, %v4463
    %v4696 = vpack.c.b16 %v4468, %v4464
    %v4697 = vpack.c.b16 %v4469, %v4465
    %v4698 = vpack.c.b16 %v4474, %v4470
    %v4699 = vpack.c.b16 %v4475, %v4471
    %v4700 = vpack.c.b16 %v4476, %v4472
    %v4701 = vpack.c.b16 %v4477, %v4473
    %v4702 = vpack.c.b16 %v4482, %v4478
    %v4703 = vpack.c.b16 %v4483, %v4479
    %v4704 = vpack.c.b16 %v4484, %v4480
    %v4705 = vpack.c.b16 %v4485, %v4481
    %v4706 = vpack.c.b16 %v4490, %v4486
    %v4707 = vpack.c.b16 %v4491, %v4487
    %v4708 = vpack.c.b16 %v4492, %v4488
    %v4709 = vpack.c.b16 %v4493, %v4489
    %v4710 = vpack.c.b16 %v4498, %v4494
    %v4711 = vpack.c.b16 %v4499, %v4495
    %v4712 = vpack.c.b16 %v4500, %v4496
    %v4713 = vpack.c.b16 %v4501, %v4497
    %v4714 = vpack.c.b16 %v4506, %v4502
    %v4715 = vpack.c.b16 %v4507, %v4503
    %v4716 = vpack.c.b16 %v4508, %v4504
    %v4717 = vpack.c.b16 %v4509, %v4505
    %v4718 = vpack.c.b16 %v4514, %v4510
    %v4719 = vpack.c.b16 %v4515, %v4511
    %v4720 = vpack.c.b16 %v4516, %v4512
    %v4721 = vpack.c.b16 %v4517, %v4513
    %v4722 = vpack.c.b16 %v4522, %v4518
    %v4723 = vpack.c.b16 %v4523, %v4519
    %v4724 = vpack.c.b16 %v4524, %v4520
    %v4725 = vpack.c.b16 %v4525, %v4521
    %v4726 = vpack.c.b16 %v4530, %v4526
    %v4727 = vpack.c.b16 %v4531, %v4527
    %v4728 = vpack.c.b16 %v4532, %v4528
    %v4729 = vpack.c.b16 %v4533, %v4529
    %v4730 = vpack.c.b16 %v4538, %v4534
    %v4731 = vpack.c.b16 %v4539, %v4535
    %v4732 = vpack.c.b16 %v4540, %v4536
    %v4733 = vpack.c.b16 %v4541, %v4537
    %v4734 = vpack.c.b16 %v4546, %v4542
    %v4735 = vpack.c.b16 %v4547, %v4543
    %v4736 = vpack.c.b16 %v4548, %v4544
    %v4737 = vpack.c.b16 %v4549, %v4545
    %v4738 = vpack.c.b16 %v4554, %v4550
    %v4739 = vpack.c.b16 %v4555, %v4551
    %v4740 = vpack.c.b16 %v4556, %v4552
    %v4741 = vpack.c.b16 %v4557, %v4553
    %v4742 = vpack.c.b16 %v4562, %v4558
    %v4743 = vpack.c.b16 %v4563, %v4559
    %v4744 = vpack.c.b16 %v4564, %v4560
    %v4745 = vpack.c.b16 %v4565, %v4561
    %v4746 = vpack.c.b16 %v4570, %v4566
    %v4747 = vpack.c.b16 %v4571, %v4567
    %v4748 = vpack.c.b16 %v4572, %v4568
    %v4749 = vpack.c.b16 %v4573, %v4569
    %v4750 = vpack.c.b16 %v4578, %v4574
    %v4751 = vpack.c.b16 %v4579, %v4575
    %v4752 = vpack.c.b16 %v4580, %v4576
    %v4753 = vpack.c.b16 %v4581, %v4577
    %v4754 = vpack.c.b16 %v4586, %v4582
    %v4755 = vpack.c.b16 %v4587, %v4583
    %v4756 = vpack.c.b16 %v4588, %v4584
    %v4757 = vpack.c.b16 %v4589, %v4585
    %v4758 = vpack.c.b16 %v4594, %v4590
    %v4759 = vpack.c.b16 %v4595, %v4591
    %v4760 = vpack.c.b16 %v4596, %v4592
    %v4761 = vpack.c.b16 %v4597, %v4593
    %v4762 = vpack.c.b16 %v4602, %v4598
    %v4763 = vpack.c.b16 %v4603, %v4599
    %v4764 = vpack.c.b16 %v4604, %v4600
    %v4765 = vpack.c.b16 %v4605, %v4601
    %v4766 = vpack.c.b16 %v4610, %v4606
    %v4767 = vpack.c.b16 %v4611, %v4607
    %v4768 = vpack.c.b16 %v4612, %v4608
    %v4769 = vpack.c.b16 %v4613, %v4609
    %v4770 = vpack.c.b16 %v4618, %v4614
    %v4771 = vpack.c.b16 %v4619, %v4615
    %v4772 = vpack.c.b16 %v4620, %v4616
    %v4773 = vpack.c.b16 %v4621, %v4617
    %v4774 = vpack.c.b16 %v4626, %v4622
    %v4775 = vpack.c.b16 %v4627, %v4623
    %v4776 = vpack.c.b16 %v4628, %v4624
    %v4777 = vpack.c.b16 %v4629, %v4625
    %v4778 = vpack.c.b16 %v4634, %v4630
    %v4779 = vpack.c.b16 %v4635, %v4631
    %v4780 = vpack.c.b16 %v4636, %v4632
    %v4781 = vpack.c.b16 %v4637, %v4633
    %v4782 = vpack.c.b16 %v4642, %v4638
    %v4783 = vpack.c.b16 %v4643, %v4639
    %v4784 = vpack.c.b16 %v4644, %v4640
    %v4785 = vpack.c.b16 %v4645, %v4641
    %v4786 = vpack.c.b16 %v4650, %v4646
    %v4787 = vpack.c.b16 %v4651, %v4647
    %v4788 = vpack.c.b16 %v4652, %v4648
    %v4789 = vpack.c.b16 %v4653, %v4649
    %v4790 = vpack.c.b16 %v4658, %v4654
    %v4791 = vpack.c.b16 %v4659, %v4655
    %v4792 = vpack.c.b16 %v4660, %v4656
    %v4793 = vpack.c.b16 %v4661, %v4657
    %v4794 = vpack.c.b16 %v4666, %v4662
    %v4795 = vpack.c.b16 %v4667, %v4663
    %v4796 = vpack.c.b16 %v4668, %v4664
    %v4797 = vpack.c.b16 %v4669, %v4665
    %v4798 = vpack.c.b16 %v4670, %v4670
    %v4799 = vpack.c.b16 %v4671, %v4671
    %v4800 = vpack.c.b16 %v4672, %v4672
    %v4801 = vpack.c.b16 %v4673, %v4673
    %v4927 = vsel %vm1549, %v4159, 0
    %v4930 = vsel %vm606, %v4798, 0
    %v4933 = vsel %vm606, %v4799, 0
    %v4936 = vsel %vm606, %v4800, 0
    %v4939 = vsel %vm606, %v4801, 0
    %4941 = vmatpush.bf16.msra.mxu0 %v4702
    %4942 = vmatpush.bf16.msra.mxu0 %v4698
    %4943 = vmatpush.bf16.msra.mxu0 %v4694
    %4944 = vmatpush.bf16.msra.mxu0 %v4690
    %4945 = vmatpush.bf16.msra.mxu0 %v4686
    %4946 = vmatpush.bf16.msra.mxu0 %v4682
    %4947 = vmatpush.bf16.msra.mxu0 %v4678
    %4948 = vmatpush.bf16.msra.mxu0 %v4674
    %4949 = vmatmul.bf16.gmra.mxu0 %v4156
    %v4950 = vpop.f32.mrf.mxu0
    %v4951 = vadd.f32 %v4288, %v4950
    %v4952 = vpop.f32.mrf.mxu0
    %4953 = vdwg.mxu0
    %4954 = vmatpush.bf16.msra.mxu0 %v4734
    %4955 = vmatpush.bf16.msra.mxu0 %v4730
    %4956 = vmatpush.bf16.msra.mxu0 %v4726
    %4957 = vmatpush.bf16.msra.mxu0 %v4722
    %4958 = vmatpush.bf16.msra.mxu0 %v4718
    %4959 = vmatpush.bf16.msra.mxu0 %v4714
    %4960 = vmatpush.bf16.msra.mxu0 %v4710
    %4961 = vmatpush.bf16.msra.mxu0 %v4706
    %4962 = vmatmul.bf16.gmra.mxu0 %v4157
    %v4963 = vpop.f32.mrf.mxu0
    %v4964 = vadd.f32 %v4951, %v4963
    %v4965 = vpop.f32.mrf.mxu0
    %4966 = vdwg.mxu0
    %4967 = vmatpush.bf16.msra.mxu0 %v4766
    %4968 = vmatpush.bf16.msra.mxu0 %v4762
    %4969 = vmatpush.bf16.msra.mxu0 %v4758
    %4970 = vmatpush.bf16.msra.mxu0 %v4754
    %4971 = vmatpush.bf16.msra.mxu0 %v4750
    %4972 = vmatpush.bf16.msra.mxu0 %v4746
    %4973 = vmatpush.bf16.msra.mxu0 %v4742
    %4974 = vmatpush.bf16.msra.mxu0 %v4738
    %4975 = vmatmul.bf16.gmra.mxu0 %v4158
    %v4976 = vpop.f32.mrf.mxu0
    %v4977 = vadd.f32 %v4964, %v4976
    %v4978 = vpop.f32.mrf.mxu0
    %4979 = vdwg.mxu0
    %4980 = vmatpush.bf16.msra.mxu0 %v4930
    %4981 = vmatpush.bf16.msra.mxu0 %v4794
    %4982 = vmatpush.bf16.msra.mxu0 %v4790
    %4983 = vmatpush.bf16.msra.mxu0 %v4786
    %4984 = vmatpush.bf16.msra.mxu0 %v4782
    %4985 = vmatpush.bf16.msra.mxu0 %v4778
    %4986 = vmatpush.bf16.msra.mxu0 %v4774
    %4987 = vmatpush.bf16.msra.mxu0 %v4770
    %4988 = vmatmul.bf16.gmra.mxu0 %v4927
    %v4989 = vpop.f32.mrf.mxu0
    %v4990 = vadd.f32 %v4977, %v4989
    %v4991 = vpop.f32.mrf.mxu0
    %4992 = vdwg.mxu0
    %4993 = vmatpush.bf16.msra.mxu0 %v4703
    %4994 = vmatpush.bf16.msra.mxu0 %v4699
    %4995 = vmatpush.bf16.msra.mxu0 %v4695
    %4996 = vmatpush.bf16.msra.mxu0 %v4691
    %4997 = vmatpush.bf16.msra.mxu0 %v4687
    %4998 = vmatpush.bf16.msra.mxu0 %v4683
    %4999 = vmatpush.bf16.msra.mxu0 %v4679
    %5000 = vmatpush.bf16.msra.mxu0 %v4675
    %5001 = vmatmul.bf16.gmra.mxu0 %v4156
    %v5002 = vpop.f32.mrf.mxu0
    %v5003 = vadd.f32 %v4289, %v5002
    %v5004 = vpop.f32.mrf.mxu0
    %5005 = vdwg.mxu0
    %5006 = vmatpush.bf16.msra.mxu0 %v4735
    %5007 = vmatpush.bf16.msra.mxu0 %v4731
    %5008 = vmatpush.bf16.msra.mxu0 %v4727
    %5009 = vmatpush.bf16.msra.mxu0 %v4723
    %5010 = vmatpush.bf16.msra.mxu0 %v4719
    %5011 = vmatpush.bf16.msra.mxu0 %v4715
    %5012 = vmatpush.bf16.msra.mxu0 %v4711
    %5013 = vmatpush.bf16.msra.mxu0 %v4707
    %5014 = vmatmul.bf16.gmra.mxu0 %v4157
    %v5015 = vpop.f32.mrf.mxu0
    %v5016 = vadd.f32 %v5003, %v5015
    %v5017 = vpop.f32.mrf.mxu0
    %5018 = vdwg.mxu0
    %5019 = vmatpush.bf16.msra.mxu0 %v4767
    %5020 = vmatpush.bf16.msra.mxu0 %v4763
    %5021 = vmatpush.bf16.msra.mxu0 %v4759
    %5022 = vmatpush.bf16.msra.mxu0 %v4755
    %5023 = vmatpush.bf16.msra.mxu0 %v4751
    %5024 = vmatpush.bf16.msra.mxu0 %v4747
    %5025 = vmatpush.bf16.msra.mxu0 %v4743
    %5026 = vmatpush.bf16.msra.mxu0 %v4739
    %5027 = vmatmul.bf16.gmra.mxu0 %v4158
    %v5028 = vpop.f32.mrf.mxu0
    %v5029 = vadd.f32 %v5016, %v5028
    %v5030 = vpop.f32.mrf.mxu0
    %5031 = vdwg.mxu0
    %5032 = vmatpush.bf16.msra.mxu0 %v4933
    %5033 = vmatpush.bf16.msra.mxu0 %v4795
    %5034 = vmatpush.bf16.msra.mxu0 %v4791
    %5035 = vmatpush.bf16.msra.mxu0 %v4787
    %5036 = vmatpush.bf16.msra.mxu0 %v4783
    %5037 = vmatpush.bf16.msra.mxu0 %v4779
    %5038 = vmatpush.bf16.msra.mxu0 %v4775
    %5039 = vmatpush.bf16.msra.mxu0 %v4771
    %5040 = vmatmul.bf16.gmra.mxu0 %v4927
    %v5041 = vpop.f32.mrf.mxu0
    %v5042 = vadd.f32 %v5029, %v5041
    %v5043 = vpop.f32.mrf.mxu0
    %5044 = vdwg.mxu0
    %5045 = vmatpush.bf16.msra.mxu0 %v4704
    %5046 = vmatpush.bf16.msra.mxu0 %v4700
    %5047 = vmatpush.bf16.msra.mxu0 %v4696
    %5048 = vmatpush.bf16.msra.mxu0 %v4692
    %5049 = vmatpush.bf16.msra.mxu0 %v4688
    %5050 = vmatpush.bf16.msra.mxu0 %v4684
    %5051 = vmatpush.bf16.msra.mxu0 %v4680
    %5052 = vmatpush.bf16.msra.mxu0 %v4676
    %5053 = vmatmul.bf16.gmra.mxu0 %v4156
    %v5054 = vpop.f32.mrf.mxu0
    %v5055 = vadd.f32 %v4290, %v5054
    %v5056 = vpop.f32.mrf.mxu0
    %5057 = vdwg.mxu0
    %5058 = vmatpush.bf16.msra.mxu0 %v4736
    %5059 = vmatpush.bf16.msra.mxu0 %v4732
    %5060 = vmatpush.bf16.msra.mxu0 %v4728
    %5061 = vmatpush.bf16.msra.mxu0 %v4724
    %5062 = vmatpush.bf16.msra.mxu0 %v4720
    %5063 = vmatpush.bf16.msra.mxu0 %v4716
    %5064 = vmatpush.bf16.msra.mxu0 %v4712
    %5065 = vmatpush.bf16.msra.mxu0 %v4708
    %5066 = vmatmul.bf16.gmra.mxu0 %v4157
    %v5067 = vpop.f32.mrf.mxu0
    %v5068 = vadd.f32 %v5055, %v5067
    %v5069 = vpop.f32.mrf.mxu0
    %5070 = vdwg.mxu0
    %5071 = vmatpush.bf16.msra.mxu0 %v4768
    %5072 = vmatpush.bf16.msra.mxu0 %v4764
    %5073 = vmatpush.bf16.msra.mxu0 %v4760
    %5074 = vmatpush.bf16.msra.mxu0 %v4756
    %5075 = vmatpush.bf16.msra.mxu0 %v4752
    %5076 = vmatpush.bf16.msra.mxu0 %v4748
    %5077 = vmatpush.bf16.msra.mxu0 %v4744
    %5078 = vmatpush.bf16.msra.mxu0 %v4740
    %5079 = vmatmul.bf16.gmra.mxu0 %v4158
    %v5080 = vpop.f32.mrf.mxu0
    %v5081 = vadd.f32 %v5068, %v5080
    %v5082 = vpop.f32.mrf.mxu0
    %5083 = vdwg.mxu0
    %5084 = vmatpush.bf16.msra.mxu0 %v4936
    %5085 = vmatpush.bf16.msra.mxu0 %v4796
    %5086 = vmatpush.bf16.msra.mxu0 %v4792
    %5087 = vmatpush.bf16.msra.mxu0 %v4788
    %5088 = vmatpush.bf16.msra.mxu0 %v4784
    %5089 = vmatpush.bf16.msra.mxu0 %v4780
    %5090 = vmatpush.bf16.msra.mxu0 %v4776
    %5091 = vmatpush.bf16.msra.mxu0 %v4772
    %5092 = vmatmul.bf16.gmra.mxu0 %v4927
    %v5093 = vpop.f32.mrf.mxu0
    %v5094 = vadd.f32 %v5081, %v5093
    %v5095 = vpop.f32.mrf.mxu0
    %5096 = vdwg.mxu0
    %5097 = vmatpush.bf16.msra.mxu0 %v4705
    %5098 = vmatpush.bf16.msra.mxu0 %v4701
    %5099 = vmatpush.bf16.msra.mxu0 %v4697
    %5100 = vmatpush.bf16.msra.mxu0 %v4693
    %5101 = vmatpush.bf16.msra.mxu0 %v4689
    %5102 = vmatpush.bf16.msra.mxu0 %v4685
    %5103 = vmatpush.bf16.msra.mxu0 %v4681
    %5104 = vmatpush.bf16.msra.mxu0 %v4677
    %5105 = vmatmul.bf16.gmra.mxu0 %v4156
    %v5106 = vpop.f32.mrf.mxu0
    %v5107 = vadd.f32 %v4291, %v5106
    %v5108 = vpop.f32.mrf.mxu0
    %5109 = vdwg.mxu0
    %5110 = vmatpush.bf16.msra.mxu0 %v4737
    %5111 = vmatpush.bf16.msra.mxu0 %v4733
    %5112 = vmatpush.bf16.msra.mxu0 %v4729
    %5113 = vmatpush.bf16.msra.mxu0 %v4725
    %5114 = vmatpush.bf16.msra.mxu0 %v4721
    %5115 = vmatpush.bf16.msra.mxu0 %v4717
    %5116 = vmatpush.bf16.msra.mxu0 %v4713
    %5117 = vmatpush.bf16.msra.mxu0 %v4709
    %5118 = vmatmul.bf16.gmra.mxu0 %v4157
    %v5119 = vpop.f32.mrf.mxu0
    %v5120 = vadd.f32 %v5107, %v5119
    %v5121 = vpop.f32.mrf.mxu0
    %5122 = vdwg.mxu0
    %5123 = vmatpush.bf16.msra.mxu0 %v4769
    %5124 = vmatpush.bf16.msra.mxu0 %v4765
    %5125 = vmatpush.bf16.msra.mxu0 %v4761
    %5126 = vmatpush.bf16.msra.mxu0 %v4757
    %5127 = vmatpush.bf16.msra.mxu0 %v4753
    %5128 = vmatpush.bf16.msra.mxu0 %v4749
    %5129 = vmatpush.bf16.msra.mxu0 %v4745
    %5130 = vmatpush.bf16.msra.mxu0 %v4741
    %5131 = vmatmul.bf16.gmra.mxu0 %v4158
    %v5132 = vpop.f32.mrf.mxu0
    %v5133 = vadd.f32 %v5120, %v5132
    %v5134 = vpop.f32.mrf.mxu0
    %5135 = vdwg.mxu0
    %5136 = vmatpush.bf16.msra.mxu0 %v4939
    %5137 = vmatpush.bf16.msra.mxu0 %v4797
    %5138 = vmatpush.bf16.msra.mxu0 %v4793
    %5139 = vmatpush.bf16.msra.mxu0 %v4789
    %5140 = vmatpush.bf16.msra.mxu0 %v4785
    %5141 = vmatpush.bf16.msra.mxu0 %v4781
    %5142 = vmatpush.bf16.msra.mxu0 %v4777
    %5143 = vmatpush.bf16.msra.mxu0 %v4773
    %5144 = vmatmul.bf16.gmra.mxu0 %v4927
    %v5145 = vpop.f32.mrf.mxu0
    %v5146 = vadd.f32 %v5133, %v5145
    %v5147 = vpop.f32.mrf.mxu0
    %5148 = vdwg.mxu0
    %v5149 = vtanh.pop %v4990
    %v5150 = vtanh.pop %v5042
    %v5151 = vtanh.pop %v5094
    %v5152 = vtanh.pop %v5146
    %v5153 = vpack.c.bf16 %v5149, %v5149
    %v5154 = vpack.c.bf16 %v5150, %v5150
    %v5155 = vpack.c.bf16 %v5151, %v5151
    %v5156 = vpack.c.bf16 %v5152, %v5152
    %v5157 = vld [vmem:[%s15] sm:$0xf]
    %v5158 = vld [vmem:[%s15 + $0x4] sm:$0xf]
    %v5159 = vld [vmem:[%s15 + $0x8] sm:$0xf]
    %v5160 = vld [vmem:[%s15 + $0xc] sm:$0xf]
    %v5161 = vld [vmem:[%s15 + $0x10] sm:$0xf]
    %v5162 = vld [vmem:[%s15 + $0x14] sm:$0xf]
    %v5163 = vld [vmem:[%s15 + $0x18] sm:$0xf]
    %v5164 = vld [vmem:[%s15 + $0x1c] sm:$0xf]
    %v5165 = vld [vmem:[%s15 + $0x20] sm:$0xf]
    %v5166 = vld [vmem:[%s15 + $0x24] sm:$0xf]
    %v5167 = vld [vmem:[%s15 + $0x28] sm:$0xf]
    %v5168 = vld [vmem:[%s15 + $0x2c] sm:$0xf]
    %v5169 = vld [vmem:[%s15 + $0x30] sm:$0xf]
    %v5170 = vld [vmem:[%s15 + $0x34] sm:$0xf]
    %v5171 = vld [vmem:[%s15 + $0x38] sm:$0xf]
    %v5172 = vld [vmem:[%s15 + $0x3c] sm:$0xf]
    %v5173 = vld [vmem:[%s15 + $0x40] sm:$0xf]
    %v5174 = vld [vmem:[%s15 + $0x44] sm:$0xf]
    %v5175 = vld [vmem:[%s15 + $0x48] sm:$0xf]
    %v5176 = vld [vmem:[%s15 + $0x4c] sm:$0xf]
    %v5177 = vld [vmem:[%s15 + $0x50] sm:$0xf]
    %v5178 = vld [vmem:[%s15 + $0x54] sm:$0xf]
    %v5179 = vld [vmem:[%s15 + $0x58] sm:$0xf]
    %v5180 = vld [vmem:[%s15 + $0x5c] sm:$0xf]
    %v5181 = vld [vmem:[%s15 + $0x60] sm:$0xf]
    %v5182 = vld [vmem:[%s15 + $0x64] sm:$0xf]
    %v5183 = vld [vmem:[%s15 + $0x68] sm:$0xf]
    %v5184 = vld [vmem:[%s15 + $0x6c] sm:$0xf]
    %v5185 = vld [vmem:[%s15 + $0x70] sm:$0xf]
    %v5186 = vld [vmem:[%s15 + $0x74] sm:$0xf]
    %v5187 = vld [vmem:[%s15 + $0x78] sm:$0xf]
    %v5188 = vld [vmem:[%s15 + $0x7c] sm:$0xf]
    %v5189 = vld [vmem:[%s15 + $0x80] sm:$0xf]
    %v5190 = vld [vmem:[%s15 + $0x84] sm:$0xf]
    %v5191 = vld [vmem:[%s15 + $0x88] sm:$0xf]
    %v5192 = vld [vmem:[%s15 + $0x8c] sm:$0xf]
    %v5193 = vld [vmem:[%s15 + $0x90] sm:$0xf]
    %v5194 = vld [vmem:[%s15 + $0x94] sm:$0xf]
    %v5195 = vld [vmem:[%s15 + $0x98] sm:$0xf]
    %v5196 = vld [vmem:[%s15 + $0x9c] sm:$0xf]
    %v5197 = vld [vmem:[%s15 + $0xa0] sm:$0xf]
    %v5198 = vld [vmem:[%s15 + $0xa4] sm:$0xf]
    %v5199 = vld [vmem:[%s15 + $0xa8] sm:$0xf]
    %v5200 = vld [vmem:[%s15 + $0xac] sm:$0xf]
    %v5201 = vld [vmem:[%s15 + $0xb0] sm:$0xf]
    %v5202 = vld [vmem:[%s15 + $0xb4] sm:$0xf]
    %v5203 = vld [vmem:[%s15 + $0xb8] sm:$0xf]
    %v5204 = vld [vmem:[%s15 + $0xbc] sm:$0xf]
    %v5205 = vld [vmem:[%s15 + $0xc0] sm:$0xf]
    %v5206 = vld [vmem:[%s15 + $0xc4] sm:$0xf]
    %v5207 = vld [vmem:[%s15 + $0xc8] sm:$0xf]
    %v5208 = vld [vmem:[%s15 + $0xcc] sm:$0xf]
    %v5209 = vld [vmem:[%s15 + $0xd0] sm:$0xf]
    %v5210 = vld [vmem:[%s15 + $0xd4] sm:$0xf]
    %v5211 = vld [vmem:[%s15 + $0xd8] sm:$0xf]
    %v5212 = vld [vmem:[%s15 + $0xdc] sm:$0xf]
    %v5213 = vld [vmem:[%s15 + $0xe0] sm:$0xf]
    %v5214 = vld [vmem:[%s15 + $0xe4] sm:$0xf]
    %v5215 = vld [vmem:[%s15 + $0xe8] sm:$0xf]
    %v5216 = vld [vmem:[%s15 + $0xec] sm:$0xf]
    %v5217 = vld [vmem:[%s15 + $0xf0] sm:$0xf]
    %v5218 = vld [vmem:[%s15 + $0xf4] sm:$0xf]
    %v5219 = vld [vmem:[%s15 + $0xf8] sm:$0x3]
    %v5220 = vld [vmem:[%s16] sm:$0x1]
    %v5222 = vperm.slane %v5220, 0
    %v5287 = vunpack.c.l.b16 %v5157
    %v5288 = vunpack.c.l.b16 %v5158
    %v5289 = vunpack.c.l.b16 %v5159
    %v5290 = vunpack.c.l.b16 %v5160
    %v5291 = vunpack.c.l.b16 %v5161
    %v5292 = vunpack.c.l.b16 %v5162
    %v5293 = vunpack.c.l.b16 %v5163
    %v5294 = vunpack.c.l.b16 %v5164
    %v5295 = vunpack.c.l.b16 %v5165
    %v5296 = vunpack.c.l.b16 %v5166
    %v5297 = vunpack.c.l.b16 %v5167
    %v5298 = vunpack.c.l.b16 %v5168
    %v5299 = vunpack.c.l.b16 %v5169
    %v5300 = vunpack.c.l.b16 %v5170
    %v5301 = vunpack.c.l.b16 %v5171
    %v5302 = vunpack.c.l.b16 %v5172
    %v5303 = vunpack.c.l.b16 %v5173
    %v5304 = vunpack.c.l.b16 %v5174
    %v5305 = vunpack.c.l.b16 %v5175
    %v5306 = vunpack.c.l.b16 %v5176
    %v5307 = vunpack.c.l.b16 %v5177
    %v5308 = vunpack.c.l.b16 %v5178
    %v5309 = vunpack.c.l.b16 %v5179
    %v5310 = vunpack.c.l.b16 %v5180
    %v5311 = vunpack.c.l.b16 %v5181
    %v5312 = vunpack.c.l.b16 %v5182
    %v5313 = vunpack.c.l.b16 %v5183
    %v5314 = vunpack.c.l.b16 %v5184
    %v5315 = vunpack.c.l.b16 %v5185
    %v5316 = vunpack.c.l.b16 %v5186
    %v5317 = vunpack.c.l.b16 %v5187
    %v5318 = vunpack.c.l.b16 %v5188
    %v5319 = vunpack.c.l.b16 %v5189
    %v5320 = vunpack.c.l.b16 %v5190
    %v5321 = vunpack.c.l.b16 %v5191
    %v5322 = vunpack.c.l.b16 %v5192
    %v5323 = vunpack.c.l.b16 %v5193
    %v5324 = vunpack.c.l.b16 %v5194
    %v5325 = vunpack.c.l.b16 %v5195
    %v5326 = vunpack.c.l.b16 %v5196
    %v5327 = vunpack.c.l.b16 %v5197
    %v5328 = vunpack.c.l.b16 %v5198
    %v5329 = vunpack.c.l.b16 %v5199
    %v5330 = vunpack.c.l.b16 %v5200
    %v5331 = vunpack.c.l.b16 %v5201
    %v5332 = vunpack.c.l.b16 %v5202
    %v5333 = vunpack.c.l.b16 %v5203
    %v5334 = vunpack.c.l.b16 %v5204
    %v5335 = vunpack.c.l.b16 %v5205
    %v5336 = vunpack.c.l.b16 %v5206
    %v5337 = vunpack.c.l.b16 %v5207
    %v5338 = vunpack.c.l.b16 %v5208
    %v5339 = vunpack.c.l.b16 %v5209
    %v5340 = vunpack.c.l.b16 %v5210
    %v5341 = vunpack.c.l.b16 %v5211
    %v5342 = vunpack.c.l.b16 %v5212
    %v5343 = vunpack.c.l.b16 %v5213
    %v5344 = vunpack.c.l.b16 %v5214
    %v5345 = vunpack.c.l.b16 %v5215
    %v5346 = vunpack.c.l.b16 %v5216
    %v5347 = vunpack.c.l.b16 %v5217
    %v5348 = vunpack.c.l.b16 %v5218
    %v5349 = vunpack.c.l.b16 %v5219
    %v5350 = vpack.c.b16 %v5288, %v5287
    %v5351 = vpack.c.b16 %v5290, %v5289
    %v5352 = vpack.c.b16 %v5292, %v5291
    %v5353 = vpack.c.b16 %v5294, %v5293
    %v5354 = vpack.c.b16 %v5296, %v5295
    %v5355 = vpack.c.b16 %v5298, %v5297
    %v5356 = vpack.c.b16 %v5300, %v5299
    %v5357 = vpack.c.b16 %v5302, %v5301
    %v5358 = vpack.c.b16 %v5304, %v5303
    %v5359 = vpack.c.b16 %v5306, %v5305
    %v5360 = vpack.c.b16 %v5308, %v5307
    %v5361 = vpack.c.b16 %v5310, %v5309
    %v5362 = vpack.c.b16 %v5312, %v5311
    %v5363 = vpack.c.b16 %v5314, %v5313
    %v5364 = vpack.c.b16 %v5316, %v5315
    %v5365 = vpack.c.b16 %v5318, %v5317
    %v5366 = vpack.c.b16 %v5320, %v5319
    %v5367 = vpack.c.b16 %v5322, %v5321
    %v5368 = vpack.c.b16 %v5324, %v5323
    %v5369 = vpack.c.b16 %v5326, %v5325
    %v5370 = vpack.c.b16 %v5328, %v5327
    %v5371 = vpack.c.b16 %v5330, %v5329
    %v5372 = vpack.c.b16 %v5332, %v5331
    %v5373 = vpack.c.b16 %v5334, %v5333
    %v5374 = vpack.c.b16 %v5336, %v5335
    %v5375 = vpack.c.b16 %v5338, %v5337
    %v5376 = vpack.c.b16 %v5340, %v5339
    %v5377 = vpack.c.b16 %v5342, %v5341
    %v5378 = vpack.c.b16 %v5344, %v5343
    %v5379 = vpack.c.b16 %v5346, %v5345
    %v5380 = vpack.c.b16 %v5348, %v5347
    %v5381 = vpack.c.b16 %v5349, %v5349
    %v5414 = vsel %vm1549, %v5156, 0
    %v5417 = vsel %vm606, %v5381, 0
    %5419 = vmatpush.bf16.msra.mxu0 %v5357
    %5420 = vmatpush.bf16.msra.mxu0 %v5356
    %5421 = vmatpush.bf16.msra.mxu0 %v5355
    %5422 = vmatpush.bf16.msra.mxu0 %v5354
    %5423 = vmatpush.bf16.msra.mxu0 %v5353
    %5424 = vmatpush.bf16.msra.mxu0 %v5352
    %5425 = vmatpush.bf16.msra.mxu0 %v5351
    %5426 = vmatpush.bf16.msra.mxu0 %v5350
    %5427 = vmatmul.bf16.gmra.mxu0 %v5153
    %v5428 = vpop.f32.mrf.mxu0
    %v5429 = vadd.f32 %v5222, %v5428
    %v5430 = vpop.f32.mrf.mxu0
    %5431 = vdwg.mxu0
    %5432 = vmatpush.bf16.msra.mxu0 %v5365
    %5433 = vmatpush.bf16.msra.mxu0 %v5364
    %5434 = vmatpush.bf16.msra.mxu0 %v5363
    %5435 = vmatpush.bf16.msra.mxu0 %v5362
    %5436 = vmatpush.bf16.msra.mxu0 %v5361
    %5437 = vmatpush.bf16.msra.mxu0 %v5360
    %5438 = vmatpush.bf16.msra.mxu0 %v5359
    %5439 = vmatpush.bf16.msra.mxu0 %v5358
    %5440 = vmatmul.bf16.gmra.mxu0 %v5154
    %v5441 = vpop.f32.mrf.mxu0
    %v5442 = vadd.f32 %v5429, %v5441
    %v5443 = vpop.f32.mrf.mxu0
    %5444 = vdwg.mxu0
    %5445 = vmatpush.bf16.msra.mxu0 %v5373
    %5446 = vmatpush.bf16.msra.mxu0 %v5372
    %5447 = vmatpush.bf16.msra.mxu0 %v5371
    %5448 = vmatpush.bf16.msra.mxu0 %v5370
    %5449 = vmatpush.bf16.msra.mxu0 %v5369
    %5450 = vmatpush.bf16.msra.mxu0 %v5368
    %5451 = vmatpush.bf16.msra.mxu0 %v5367
    %5452 = vmatpush.bf16.msra.mxu0 %v5366
    %5453 = vmatmul.bf16.gmra.mxu0 %v5155
    %v5454 = vpop.f32.mrf.mxu0
    %v5455 = vadd.f32 %v5442, %v5454
    %v5456 = vpop.f32.mrf.mxu0
    %5457 = vdwg.mxu0
    %5458 = vmatpush.bf16.msra.mxu0 %v5417
    %5459 = vmatpush.bf16.msra.mxu0 %v5380
    %5460 = vmatpush.bf16.msra.mxu0 %v5379
    %5461 = vmatpush.bf16.msra.mxu0 %v5378
    %5462 = vmatpush.bf16.msra.mxu0 %v5377
    %5463 = vmatpush.bf16.msra.mxu0 %v5376
    %5464 = vmatpush.bf16.msra.mxu0 %v5375
    %5465 = vmatpush.bf16.msra.mxu0 %v5374
    %5466 = vmatmul.bf16.gmra.mxu0 %v5414
    %v5467 = vpop.f32.mrf.mxu0
    %v5468 = vadd.f32 %v5455, %v5467
    %v5469 = vpop.f32.mrf.mxu0
    %5470 = vdwg.mxu0
    %v5471 = vmul.f32 %v5468, 0.5
    %v5472 = vtanh.pop %v5471
    %v5473 = vadd.f32 %v5472, 1.0
    %v5474 = vmul.f32 %v5473, 0.5
    %v5475 = vpack.c.bf16 %v5474, %v5474
    %v5476 = vld [vmem:[#allocation11] sm:$0xff]
    %v5477 = vld [vmem:[#allocation11 + $0x8] sm:$0xff]
    %v5478 = vld [vmem:[#allocation11 + $0x10] sm:$0xff]
    %v5479 = vld [vmem:[#allocation11 + $0x18] sm:$0xff]
    %v5480 = vld [vmem:[#allocation11 + $0x20] sm:$0xff]
    %v5481 = vld [vmem:[#allocation11 + $0x28] sm:$0xff]
    %v5482 = vld [vmem:[#allocation11 + $0x30] sm:$0xff]
    %v5483 = vld [vmem:[#allocation11 + $0x38] sm:$0xff]
    %v5484 = vld [vmem:[#allocation11 + $0x40] sm:$0xff]
    %v5485 = vld [vmem:[#allocation11 + $0x48] sm:$0xff]
    %v5486 = vld [vmem:[#allocation11 + $0x50] sm:$0xff]
    %v5487 = vld [vmem:[#allocation11 + $0x58] sm:$0xff]
    %v5488 = vld [vmem:[#allocation11 + $0x60] sm:$0xff]
    %v5489 = vld [vmem:[#allocation11 + $0x68] sm:$0xff]
    %v5490 = vld [vmem:[#allocation11 + $0x70] sm:$0xff]
    %v5491 = vld [vmem:[#allocation11 + $0x78] sm:$0xff]
    %v5492 = vld [vmem:[#allocation11 + $0x80] sm:$0xff]
    %v5493 = vld [vmem:[#allocation11 + $0x88] sm:$0xff]
    %v5494 = vld [vmem:[#allocation11 + $0x90] sm:$0xff]
    %v5495 = vld [vmem:[#allocation11 + $0x98] sm:$0xff]
    %v5496 = vld [vmem:[#allocation11 + $0xa0] sm:$0xff]
    %v5497 = vld [vmem:[#allocation11 + $0xa8] sm:$0xff]
    %v5498 = vld [vmem:[#allocation11 + $0xb0] sm:$0xff]
    %v5499 = vld [vmem:[#allocation11 + $0xb8] sm:$0xff]
    %v5500 = vld [vmem:[#allocation11 + $0xc0] sm:$0xff]
    %v5501 = vld [vmem:[#allocation11 + $0xc8] sm:$0xff]
    %v5502 = vld [vmem:[#allocation11 + $0xd0] sm:$0xff]
    %v5503 = vld [vmem:[#allocation11 + $0xd8] sm:$0xff]
    %v5504 = vld [vmem:[#allocation11 + $0xe0] sm:$0xff]
    %v5505 = vld [vmem:[#allocation11 + $0xe8] sm:$0xff]
    %v5506 = vld [vmem:[#allocation11 + $0xf0] sm:$0xff]
    %v5507 = vld [vmem:[#allocation11 + $0xf8] sm:$0xff]
    %v5508 = vld [vmem:[#allocation11 + $0x100] sm:$0xff]
    %v5509 = vld [vmem:[#allocation11 + $0x108] sm:$0xff]
    %v5510 = vld [vmem:[#allocation11 + $0x110] sm:$0xff]
    %v5511 = vld [vmem:[#allocation11 + $0x118] sm:$0xff]
    %v5512 = vld [vmem:[#allocation11 + $0x120] sm:$0xff]
    %v5513 = vld [vmem:[#allocation11 + $0x128] sm:$0xff]
    %v5514 = vld [vmem:[#allocation11 + $0x130] sm:$0xff]
    %v5515 = vld [vmem:[#allocation11 + $0x138] sm:$0xff]
    %v5516 = vld [vmem:[#allocation11 + $0x140] sm:$0xff]
    %v5517 = vld [vmem:[#allocation11 + $0x148] sm:$0xff]
    %v5518 = vld [vmem:[#allocation11 + $0x150] sm:$0xff]
    %v5519 = vld [vmem:[#allocation11 + $0x158] sm:$0xff]
    %v5520 = vld [vmem:[#allocation11 + $0x160] sm:$0xff]
    %v5521 = vld [vmem:[#allocation11 + $0x168] sm:$0xff]
    %v5522 = vld [vmem:[#allocation11 + $0x170] sm:$0xff]
    %v5523 = vld [vmem:[#allocation11 + $0x178] sm:$0xff]
    %v5524 = vld [vmem:[#allocation11 + $0x180] sm:$0xff]
    %v5525 = vld [vmem:[#allocation11 + $0x188] sm:$0xff]
    %v5526 = vld [vmem:[#allocation11 + $0x190] sm:$0xff]
    %v5527 = vld [vmem:[#allocation11 + $0x198] sm:$0xff]
    %v5528 = vld [vmem:[#allocation11 + $0x1a0] sm:$0xff]
    %v5529 = vld [vmem:[#allocation11 + $0x1a8] sm:$0xff]
    %v5530 = vld [vmem:[#allocation11 + $0x1b0] sm:$0xff]
    %v5531 = vld [vmem:[#allocation11 + $0x1b8] sm:$0xff]
    %v5532 = vld [vmem:[#allocation11 + $0x1c0] sm:$0xff]
    %v5533 = vld [vmem:[#allocation11 + $0x1c8] sm:$0xff]
    %v5534 = vld [vmem:[#allocation11 + $0x1d0] sm:$0xff]
    %v5535 = vld [vmem:[#allocation11 + $0x1d8] sm:$0xff]
    %v5536 = vld [vmem:[#allocation11 + $0x1e0] sm:$0x11]
    %v5537 = vld [vmem:[#allocation11 + $0x1e8] sm:$0x11]
    %v5538 = vld [vmem:[#allocation11 + $0x1f0] sm:$0x11]
    %v5539 = vld [vmem:[#allocation11 + $0x1f8] sm:$0x11]
    %v5540 = vld [vmem:[#allocation11 + $0x200] sm:$0x11]
    %v5541 = vld [vmem:[#allocation11 + $0x208] sm:$0x11]
    %v5542 = vld [vmem:[#allocation11 + $0x210] sm:$0x11]
    %v5543 = vld [vmem:[#allocation11 + $0x218] sm:$0x11]
    %v5544 = vld [vmem:[#allocation11 + $0x220] sm:$0x11]
    %v5545 = vld [vmem:[#allocation11 + $0x228] sm:$0x11]
    %v5546 = vld [vmem:[%s18] sm:$0xff]
    %v5547 = vld [vmem:[%s18 + $0x8] sm:$0xff]
    %v5548 = vld [vmem:[%s18 + $0x10] sm:$0xf]
    %v5552 = vperm.slane %v5546, 0
    %v5553 = vperm.slane %v5546, 1
    %v5554 = vperm.slane %v5546, 2
    %v5555 = vperm.slane %v5546, 3
    %v5556 = vperm.slane %v5546, 4
    %v5557 = vperm.slane %v5546, 5
    %v5558 = vperm.slane %v5546, 6
    %v5559 = vperm.slane %v5546, 7
    %v5560 = vperm.slane %v5547, 0
    %v5561 = vperm.slane %v5547, 1
    %v5562 = vperm.slane %v5547, 2
    %v5563 = vperm.slane %v5547, 3
    %v5564 = vperm.slane %v5547, 4
    %v5565 = vperm.slane %v5547, 5
    %v5566 = vperm.slane %v5547, 6
    %v5567 = vperm.slane %v5547, 7
    %v5568 = vperm.slane %v5548, 0
    %v5569 = vperm.slane %v5548, 1
    %v5570 = vperm.slane %v5548, 2
    %v5571 = vperm.slane %v5548, 3
    %v5662 = vunpack.c.l.b16 %v5476
    %v5663 = vunpack.c.h.b16 %v5476
    %v5664 = vunpack.c.l.b16 %v5477
    %v5665 = vunpack.c.h.b16 %v5477
    %v5666 = vunpack.c.l.b16 %v5478
    %v5667 = vunpack.c.h.b16 %v5478
    %v5668 = vunpack.c.l.b16 %v5479
    %v5669 = vunpack.c.h.b16 %v5479
    %v5670 = vunpack.c.l.b16 %v5480
    %v5671 = vunpack.c.h.b16 %v5480
    %v5672 = vunpack.c.l.b16 %v5481
    %v5673 = vunpack.c.h.b16 %v5481
    %v5674 = vunpack.c.l.b16 %v5482
    %v5675 = vunpack.c.h.b16 %v5482
    %v5676 = vunpack.c.l.b16 %v5483
    %v5677 = vunpack.c.h.b16 %v5483
    %v5678 = vunpack.c.l.b16 %v5484
    %v5679 = vunpack.c.h.b16 %v5484
    %v5680 = vunpack.c.l.b16 %v5485
    %v5681 = vunpack.c.h.b16 %v5485
    %v5682 = vunpack.c.l.b16 %v5486
    %v5683 = vunpack.c.h.b16 %v5486
    %v5684 = vunpack.c.l.b16 %v5487
    %v5685 = vunpack.c.h.b16 %v5487
    %v5686 = vunpack.c.l.b16 %v5488
    %v5687 = vunpack.c.h.b16 %v5488
    %v5688 = vunpack.c.l.b16 %v5489
    %v5689 = vunpack.c.h.b16 %v5489
    %v5690 = vunpack.c.l.b16 %v5490
    %v5691 = vunpack.c.h.b16 %v5490
    %v5692 = vunpack.c.l.b16 %v5491
    %v5693 = vunpack.c.h.b16 %v5491
    %v5694 = vunpack.c.l.b16 %v5492
    %v5695 = vunpack.c.h.b16 %v5492
    %v5696 = vunpack.c.l.b16 %v5493
    %v5697 = vunpack.c.h.b16 %v5493
    %v5698 = vunpack.c.l.b16 %v5494
    %v5699 = vunpack.c.h.b16 %v5494
    %v5700 = vunpack.c.l.b16 %v5495
    %v5701 = vunpack.c.h.b16 %v5495
    %v5702 = vunpack.c.l.b16 %v5496
    %v5703 = vunpack.c.h.b16 %v5496
    %v5704 = vunpack.c.l.b16 %v5497
    %v5705 = vunpack.c.h.b16 %v5497
    %v5706 = vunpack.c.l.b16 %v5498
    %v5707 = vunpack.c.h.b16 %v5498
    %v5708 = vunpack.c.l.b16 %v5499
    %v5709 = vunpack.c.h.b16 %v5499
    %v5710 = vunpack.c.l.b16 %v5500
    %v5711 = vunpack.c.h.b16 %v5500
    %v5712 = vunpack.c.l.b16 %v5501
    %v5713 = vunpack.c.h.b16 %v5501
    %v5714 = vunpack.c.l.b16 %v5502
    %v5715 = vunpack.c.h.b16 %v5502
    %v5716 = vunpack.c.l.b16 %v5503
    %v5717 = vunpack.c.h.b16 %v5503
    %v5718 = vunpack.c.l.b16 %v5504
    %v5719 = vunpack.c.h.b16 %v5504
    %v5720 = vunpack.c.l.b16 %v5505
    %v5721 = vunpack.c.h.b16 %v5505
    %v5722 = vunpack.c.l.b16 %v5506
    %v5723 = vunpack.c.h.b16 %v5506
    %v5724 = vunpack.c.l.b16 %v5507
    %v5725 = vunpack.c.h.b16 %v5507
    %v5726 = vunpack.c.l.b16 %v5508
    %v5727 = vunpack.c.h.b16 %v5508
    %v5728 = vunpack.c.l.b16 %v5509
    %v5729 = vunpack.c.h.b16 %v5509
    %v5730 = vunpack.c.l.b16 %v5510
    %v5731 = vunpack.c.h.b16 %v5510
    %v5732 = vunpack.c.l.b16 %v5511
    %v5733 = vunpack.c.h.b16 %v5511
    %v5734 = vunpack.c.l.b16 %v5512
    %v5735 = vunpack.c.h.b16 %v5512
    %v5736 = vunpack.c.l.b16 %v5513
    %v5737 = vunpack.c.h.b16 %v5513
    %v5738 = vunpack.c.l.b16 %v5514
    %v5739 = vunpack.c.h.b16 %v5514
    %v5740 = vunpack.c.l.b16 %v5515
    %v5741 = vunpack.c.h.b16 %v5515
    %v5742 = vunpack.c.l.b16 %v5516
    %v5743 = vunpack.c.h.b16 %v5516
    %v5744 = vunpack.c.l.b16 %v5517
    %v5745 = vunpack.c.h.b16 %v5517
    %v5746 = vunpack.c.l.b16 %v5518
    %v5747 = vunpack.c.h.b16 %v5518
    %v5748 = vunpack.c.l.b16 %v5519
    %v5749 = vunpack.c.h.b16 %v5519
    %v5750 = vunpack.c.l.b16 %v5520
    %v5751 = vunpack.c.h.b16 %v5520
    %v5752 = vunpack.c.l.b16 %v5521
    %v5753 = vunpack.c.h.b16 %v5521
    %v5754 = vunpack.c.l.b16 %v5522
    %v5755 = vunpack.c.h.b16 %v5522
    %v5756 = vunpack.c.l.b16 %v5523
    %v5757 = vunpack.c.h.b16 %v5523
    %v5758 = vunpack.c.l.b16 %v5524
    %v5759 = vunpack.c.h.b16 %v5524
    %v5760 = vunpack.c.l.b16 %v5525
    %v5761 = vunpack.c.h.b16 %v5525
    %v5762 = vunpack.c.l.b16 %v5526
    %v5763 = vunpack.c.h.b16 %v5526
    %v5764 = vunpack.c.l.b16 %v5527
    %v5765 = vunpack.c.h.b16 %v5527
    %v5766 = vunpack.c.l.b16 %v5528
    %v5767 = vunpack.c.h.b16 %v5528
    %v5768 = vunpack.c.l.b16 %v5529
    %v5769 = vunpack.c.h.b16 %v5529
    %v5770 = vunpack.c.l.b16 %v5530
    %v5771 = vunpack.c.h.b16 %v5530
    %v5772 = vunpack.c.l.b16 %v5531
    %v5773 = vunpack.c.h.b16 %v5531
    %v5774 = vunpack.c.l.b16 %v5532
    %v5775 = vunpack.c.h.b16 %v5532
    %v5776 = vunpack.c.l.b16 %v5533
    %v5777 = vunpack.c.h.b16 %v5533
    %v5778 = vunpack.c.l.b16 %v5534
    %v5779 = vunpack.c.h.b16 %v5534
    %v5780 = vunpack.c.l.b16 %v5535
    %v5781 = vunpack.c.h.b16 %v5535
    %v5782 = vunpack.c.l.b16 %v5536
    %v5783 = vunpack.c.h.b16 %v5536
    %v5784 = vunpack.c.l.b16 %v5537
    %v5785 = vunpack.c.h.b16 %v5537
    %v5786 = vunpack.c.l.b16 %v5538
    %v5787 = vunpack.c.h.b16 %v5538
    %v5788 = vunpack.c.l.b16 %v5539
    %v5789 = vunpack.c.h.b16 %v5539
    %v5790 = vunpack.c.l.b16 %v5540
    %v5791 = vunpack.c.h.b16 %v5540
    %v5792 = vunpack.c.l.b16 %v5541
    %v5793 = vunpack.c.h.b16 %v5541
    %v5794 = vunpack.c.l.b16 %v5542
    %v5795 = vunpack.c.h.b16 %v5542
    %v5796 = vunpack.c.l.b16 %v5543
    %v5797 = vunpack.c.h.b16 %v5543
    %v5798 = vunpack.c.l.b16 %v5544
    %v5799 = vunpack.c.h.b16 %v5544
    %v5800 = vunpack.c.l.b16 %v5545
    %v5801 = vunpack.c.h.b16 %v5545
    %v5802 = vpack.c.b16 %v5682, %v5662
    %v5803 = vpack.c.b16 %v5683, %v5663
    %v5804 = vpack.c.b16 %v5684, %v5664
    %v5805 = vpack.c.b16 %v5685, %v5665
    %v5806 = vpack.c.b16 %v5686, %v5666
    %v5807 = vpack.c.b16 %v5687, %v5667
    %v5808 = vpack.c.b16 %v5688, %v5668
    %v5809 = vpack.c.b16 %v5689, %v5669
    %v5810 = vpack.c.b16 %v5690, %v5670
    %v5811 = vpack.c.b16 %v5691, %v5671
    %v5812 = vpack.c.b16 %v5692, %v5672
    %v5813 = vpack.c.b16 %v5693, %v5673
    %v5814 = vpack.c.b16 %v5694, %v5674
    %v5815 = vpack.c.b16 %v5695, %v5675
    %v5816 = vpack.c.b16 %v5696, %v5676
    %v5817 = vpack.c.b16 %v5697, %v5677
    %v5818 = vpack.c.b16 %v5698, %v5678
    %v5819 = vpack.c.b16 %v5699, %v5679
    %v5820 = vpack.c.b16 %v5700, %v5680
    %v5821 = vpack.c.b16 %v5701, %v5681
    %v5822 = vpack.c.b16 %v5722, %v5702
    %v5823 = vpack.c.b16 %v5723, %v5703
    %v5824 = vpack.c.b16 %v5724, %v5704
    %v5825 = vpack.c.b16 %v5725, %v5705
    %v5826 = vpack.c.b16 %v5726, %v5706
    %v5827 = vpack.c.b16 %v5727, %v5707
    %v5828 = vpack.c.b16 %v5728, %v5708
    %v5829 = vpack.c.b16 %v5729, %v5709
    %v5830 = vpack.c.b16 %v5730, %v5710
    %v5831 = vpack.c.b16 %v5731, %v5711
    %v5832 = vpack.c.b16 %v5732, %v5712
    %v5833 = vpack.c.b16 %v5733, %v5713
    %v5834 = vpack.c.b16 %v5734, %v5714
    %v5835 = vpack.c.b16 %v5735, %v5715
    %v5836 = vpack.c.b16 %v5736, %v5716
    %v5837 = vpack.c.b16 %v5737, %v5717
    %v5838 = vpack.c.b16 %v5738, %v5718
    %v5839 = vpack.c.b16 %v5739, %v5719
    %v5840 = vpack.c.b16 %v5740, %v5720
    %v5841 = vpack.c.b16 %v5741, %v5721
    %v5842 = vpack.c.b16 %v5762, %v5742
    %v5843 = vpack.c.b16 %v5763, %v5743
    %v5844 = vpack.c.b16 %v5764, %v5744
    %v5845 = vpack.c.b16 %v5765, %v5745
    %v5846 = vpack.c.b16 %v5766, %v5746
    %v5847 = vpack.c.b16 %v5767, %v5747
    %v5848 = vpack.c.b16 %v5768, %v5748
    %v5849 = vpack.c.b16 %v5769, %v5749
    %v5850 = vpack.c.b16 %v5770, %v5750
    %v5851 = vpack.c.b16 %v5771, %v5751
    %v5852 = vpack.c.b16 %v5772, %v5752
    %v5853 = vpack.c.b16 %v5773, %v5753
    %v5854 = vpack.c.b16 %v5774, %v5754
    %v5855 = vpack.c.b16 %v5775, %v5755
    %v5856 = vpack.c.b16 %v5776, %v5756
    %v5857 = vpack.c.b16 %v5777, %v5757
    %v5858 = vpack.c.b16 %v5778, %v5758
    %v5859 = vpack.c.b16 %v5779, %v5759
    %v5860 = vpack.c.b16 %v5780, %v5760
    %v5861 = vpack.c.b16 %v5781, %v5761
    %v5862 = vpack.c.b16 %v5782, %v5782
    %v5863 = vpack.c.b16 %v5783, %v5783
    %v5864 = vpack.c.b16 %v5784, %v5784
    %v5865 = vpack.c.b16 %v5785, %v5785
    %v5866 = vpack.c.b16 %v5786, %v5786
    %v5867 = vpack.c.b16 %v5787, %v5787
    %v5868 = vpack.c.b16 %v5788, %v5788
    %v5869 = vpack.c.b16 %v5789, %v5789
    %v5870 = vpack.c.b16 %v5790, %v5790
    %v5871 = vpack.c.b16 %v5791, %v5791
    %v5872 = vpack.c.b16 %v5792, %v5792
    %v5873 = vpack.c.b16 %v5793, %v5793
    %v5874 = vpack.c.b16 %v5794, %v5794
    %v5875 = vpack.c.b16 %v5795, %v5795
    %v5876 = vpack.c.b16 %v5796, %v5796
    %v5877 = vpack.c.b16 %v5797, %v5797
    %v5878 = vpack.c.b16 %v5798, %v5798
    %v5879 = vpack.c.b16 %v5799, %v5799
    %v5880 = vpack.c.b16 %v5800, %v5800
    %v5881 = vpack.c.b16 %v5801, %v5801
    %vm5942 = vcmask 408576
    %v5944 = vsel %vm5942, %v5475, 0
    %vm5946 = vcmask 1040384
    %v5948 = vsel %vm5946, %v5862, 0
    %v5951 = vsel %vm5946, %v5863, 0
    %v5954 = vsel %vm5946, %v5864, 0
    %v5957 = vsel %vm5946, %v5865, 0
    %v5960 = vsel %vm5946, %v5866, 0
    %v5963 = vsel %vm5946, %v5867, 0
    %v5966 = vsel %vm5946, %v5868, 0
    %v5969 = vsel %vm5946, %v5869, 0
    %v5972 = vsel %vm5946, %v5870, 0
    %v5975 = vsel %vm5946, %v5871, 0
    %v5978 = vsel %vm5946, %v5872, 0
    %v5981 = vsel %vm5946, %v5873, 0
    %v5984 = vsel %vm5946, %v5874, 0
    %v5987 = vsel %vm5946, %v5875, 0
    %v5990 = vsel %vm5946, %v5876, 0
    %v5993 = vsel %vm5946, %v5877, 0
    %v5996 = vsel %vm5946, %v5878, 0
    %v5999 = vsel %vm5946, %v5879, 0
    %v6002 = vsel %vm5946, %v5880, 0
    %v6005 = vsel %vm5946, %v5881, 0
    %6007 = vmatpush.bf16.msra.mxu0 0
    %6008 = vmatpush.bf16.msra.mxu0 0
    %6009 = vmatpush.bf16.msra.mxu0 0
    %6010 = vmatpush.bf16.msra.mxu0 0
    %6011 = vmatpush.bf16.msra.mxu0 %v5948
    %6012 = vmatpush.bf16.msra.mxu0 %v5842
    %6013 = vmatpush.bf16.msra.mxu0 %v5822
    %6014 = vmatpush.bf16.msra.mxu0 %v5802
    %6015 = vmatmul.bf16.gmra.mxu0 %v5944
    %v6016 = vpop.f32.mrf.mxu0
    %v6017 = vadd.f32 %v5552, %v6016
    %v6018 = vpop.f32.mrf.mxu0
    %6019 = vdwg.mxu0
    %6020 = vmatpush.bf16.msra.mxu0 0
    %6021 = vmatpush.bf16.msra.mxu0 0
    %6022 = vmatpush.bf16.msra.mxu0 0
    %6023 = vmatpush.bf16.msra.mxu0 0
    %6024 = vmatpush.bf16.msra.mxu0 %v5951
    %6025 = vmatpush.bf16.msra.mxu0 %v5843
    %6026 = vmatpush.bf16.msra.mxu0 %v5823
    %6027 = vmatpush.bf16.msra.mxu0 %v5803
    %6028 = vmatmul.bf16.gmra.mxu0 %v5944
    %v6029 = vpop.f32.mrf.mxu0
    %v6030 = vadd.f32 %v5553, %v6029
    %v6031 = vpop.f32.mrf.mxu0
    %6032 = vdwg.mxu0
    %6033 = vmatpush.bf16.msra.mxu0 0
    %6034 = vmatpush.bf16.msra.mxu0 0
    %6035 = vmatpush.bf16.msra.mxu0 0
    %6036 = vmatpush.bf16.msra.mxu0 0
    %6037 = vmatpush.bf16.msra.mxu0 %v5954
    %6038 = vmatpush.bf16.msra.mxu0 %v5844
    %6039 = vmatpush.bf16.msra.mxu0 %v5824
    %6040 = vmatpush.bf16.msra.mxu0 %v5804
    %6041 = vmatmul.bf16.gmra.mxu0 %v5944
    %v6042 = vpop.f32.mrf.mxu0
    %v6043 = vadd.f32 %v5554, %v6042
    %v6044 = vpop.f32.mrf.mxu0
    %6045 = vdwg.mxu0
    %6046 = vmatpush.bf16.msra.mxu0 0
    %6047 = vmatpush.bf16.msra.mxu0 0
    %6048 = vmatpush.bf16.msra.mxu0 0
    %6049 = vmatpush.bf16.msra.mxu0 0
    %6050 = vmatpush.bf16.msra.mxu0 %v5957
    %6051 = vmatpush.bf16.msra.mxu0 %v5845
    %6052 = vmatpush.bf16.msra.mxu0 %v5825
    %6053 = vmatpush.bf16.msra.mxu0 %v5805
    %6054 = vmatmul.bf16.gmra.mxu0 %v5944
    %v6055 = vpop.f32.mrf.mxu0
    %v6056 = vadd.f32 %v5555, %v6055
    %v6057 = vpop.f32.mrf.mxu0
    %6058 = vdwg.mxu0
    %6059 = vmatpush.bf16.msra.mxu0 0
    %6060 = vmatpush.bf16.msra.mxu0 0
    %6061 = vmatpush.bf16.msra.mxu0 0
    %6062 = vmatpush.bf16.msra.mxu0 0
    %6063 = vmatpush.bf16.msra.mxu0 %v5960
    %6064 = vmatpush.bf16.msra.mxu0 %v5846
    %6065 = vmatpush.bf16.msra.mxu0 %v5826
    %6066 = vmatpush.bf16.msra.mxu0 %v5806
    %6067 = vmatmul.bf16.gmra.mxu0 %v5944
    %v6068 = vpop.f32.mrf.mxu0
    %v6069 = vadd.f32 %v5556, %v6068
    %v6070 = vpop.f32.mrf.mxu0
    %6071 = vdwg.mxu0
    %6072 = vmatpush.bf16.msra.mxu0 0
    %6073 = vmatpush.bf16.msra.mxu0 0
    %6074 = vmatpush.bf16.msra.mxu0 0
    %6075 = vmatpush.bf16.msra.mxu0 0
    %6076 = vmatpush.bf16.msra.mxu0 %v5963
    %6077 = vmatpush.bf16.msra.mxu0 %v5847
    %6078 = vmatpush.bf16.msra.mxu0 %v5827
    %6079 = vmatpush.bf16.msra.mxu0 %v5807
    %6080 = vmatmul.bf16.gmra.mxu0 %v5944
    %v6081 = vpop.f32.mrf.mxu0
    %v6082 = vadd.f32 %v5557, %v6081
    %v6083 = vpop.f32.mrf.mxu0
    %6084 = vdwg.mxu0
    %6085 = vmatpush.bf16.msra.mxu0 0
    %6086 = vmatpush.bf16.msra.mxu0 0
    %6087 = vmatpush.bf16.msra.mxu0 0
    %6088 = vmatpush.bf16.msra.mxu0 0
    %6089 = vmatpush.bf16.msra.mxu0 %v5966
    %6090 = vmatpush.bf16.msra.mxu0 %v5848
    %6091 = vmatpush.bf16.msra.mxu0 %v5828
    %6092 = vmatpush.bf16.msra.mxu0 %v5808
    %6093 = vmatmul.bf16.gmra.mxu0 %v5944
    %v6094 = vpop.f32.mrf.mxu0
    %v6095 = vadd.f32 %v5558, %v6094
    %v6096 = vpop.f32.mrf.mxu0
    %6097 = vdwg.mxu0
    %6098 = vmatpush.bf16.msra.mxu0 0
    %6099 = vmatpush.bf16.msra.mxu0 0
    %6100 = vmatpush.bf16.msra.mxu0 0
    %6101 = vmatpush.bf16.msra.mxu0 0
    %6102 = vmatpush.bf16.msra.mxu0 %v5969
    %6103 = vmatpush.bf16.msra.mxu0 %v5849
    %6104 = vmatpush.bf16.msra.mxu0 %v5829
    %6105 = vmatpush.bf16.msra.mxu0 %v5809
    %6106 = vmatmul.bf16.gmra.mxu0 %v5944
    %v6107 = vpop.f32.mrf.mxu0
    %v6108 = vadd.f32 %v5559, %v6107
    %v6109 = vpop.f32.mrf.mxu0
    %6110 = vdwg.mxu0
    %6111 = vmatpush.bf16.msra.mxu0 0
    %6112 = vmatpush.bf16.msra.mxu0 0
    %6113 = vmatpush.bf16.msra.mxu0 0
    %6114 = vmatpush.bf16.msra.mxu0 0
    %6115 = vmatpush.bf16.msra.mxu0 %v5972
    %6116 = vmatpush.bf16.msra.mxu0 %v5850
    %6117 = vmatpush.bf16.msra.mxu0 %v5830
    %6118 = vmatpush.bf16.msra.mxu0 %v5810
    %6119 = vmatmul.bf16.gmra.mxu0 %v5944
    %v6120 = vpop.f32.mrf.mxu0
    %v6121 = vadd.f32 %v5560, %v6120
    %v6122 = vpop.f32.mrf.mxu0
    %6123 = vdwg.mxu0
    %6124 = vmatpush.bf16.msra.mxu0 0
    %6125 = vmatpush.bf16.msra.mxu0 0
    %6126 = vmatpush.bf16.msra.mxu0 0
    %6127 = vmatpush.bf16.msra.mxu0 0
    %6128 = vmatpush.bf16.msra.mxu0 %v5975
    %6129 = vmatpush.bf16.msra.mxu0 %v5851
    %6130 = vmatpush.bf16.msra.mxu0 %v5831
    %6131 = vmatpush.bf16.msra.mxu0 %v5811
    %6132 = vmatmul.bf16.gmra.mxu0 %v5944
    %v6133 = vpop.f32.mrf.mxu0
    %v6134 = vadd.f32 %v5561, %v6133
    %v6135 = vpop.f32.mrf.mxu0
    %6136 = vdwg.mxu0
    %6137 = vmatpush.bf16.msra.mxu0 0
    %6138 = vmatpush.bf16.msra.mxu0 0
    %6139 = vmatpush.bf16.msra.mxu0 0
    %6140 = vmatpush.bf16.msra.mxu0 0
    %6141 = vmatpush.bf16.msra.mxu0 %v5978
    %6142 = vmatpush.bf16.msra.mxu0 %v5852
    %6143 = vmatpush.bf16.msra.mxu0 %v5832
    %6144 = vmatpush.bf16.msra.mxu0 %v5812
    %6145 = vmatmul.bf16.gmra.mxu0 %v5944
    %v6146 = vpop.f32.mrf.mxu0
    %v6147 = vadd.f32 %v5562, %v6146
    %v6148 = vpop.f32.mrf.mxu0
    %6149 = vdwg.mxu0
    %6150 = vmatpush.bf16.msra.mxu0 0
    %6151 = vmatpush.bf16.msra.mxu0 0
    %6152 = vmatpush.bf16.msra.mxu0 0
    %6153 = vmatpush.bf16.msra.mxu0 0
    %6154 = vmatpush.bf16.msra.mxu0 %v5981
    %6155 = vmatpush.bf16.msra.mxu0 %v5853
    %6156 = vmatpush.bf16.msra.mxu0 %v5833
    %6157 = vmatpush.bf16.msra.mxu0 %v5813
    %6158 = vmatmul.bf16.gmra.mxu0 %v5944
    %v6159 = vpop.f32.mrf.mxu0
    %v6160 = vadd.f32 %v5563, %v6159
    %v6161 = vpop.f32.mrf.mxu0
    %6162 = vdwg.mxu0
    %6163 = vmatpush.bf16.msra.mxu0 0
    %6164 = vmatpush.bf16.msra.mxu0 0
    %6165 = vmatpush.bf16.msra.mxu0 0
    %6166 = vmatpush.bf16.msra.mxu0 0
    %6167 = vmatpush.bf16.msra.mxu0 %v5984
    %6168 = vmatpush.bf16.msra.mxu0 %v5854
    %6169 = vmatpush.bf16.msra.mxu0 %v5834
    %6170 = vmatpush.bf16.msra.mxu0 %v5814
    %6171 = vmatmul.bf16.gmra.mxu0 %v5944
    %v6172 = vpop.f32.mrf.mxu0
    %v6173 = vadd.f32 %v5564, %v6172
    %v6174 = vpop.f32.mrf.mxu0
    %6175 = vdwg.mxu0
    %6176 = vmatpush.bf16.msra.mxu0 0
    %6177 = vmatpush.bf16.msra.mxu0 0
    %6178 = vmatpush.bf16.msra.mxu0 0
    %6179 = vmatpush.bf16.msra.mxu0 0
    %6180 = vmatpush.bf16.msra.mxu0 %v5987
    %6181 = vmatpush.bf16.msra.mxu0 %v5855
    %6182 = vmatpush.bf16.msra.mxu0 %v5835
    %6183 = vmatpush.bf16.msra.mxu0 %v5815
    %6184 = vmatmul.bf16.gmra.mxu0 %v5944
    %v6185 = vpop.f32.mrf.mxu0
    %v6186 = vadd.f32 %v5565, %v6185
    %v6187 = vpop.f32.mrf.mxu0
    %6188 = vdwg.mxu0
    %6189 = vmatpush.bf16.msra.mxu0 0
    %6190 = vmatpush.bf16.msra.mxu0 0
    %6191 = vmatpush.bf16.msra.mxu0 0
    %6192 = vmatpush.bf16.msra.mxu0 0
    %6193 = vmatpush.bf16.msra.mxu0 %v5990
    %6194 = vmatpush.bf16.msra.mxu0 %v5856
    %6195 = vmatpush.bf16.msra.mxu0 %v5836
    %6196 = vmatpush.bf16.msra.mxu0 %v5816
    %6197 = vmatmul.bf16.gmra.mxu0 %v5944
    %v6198 = vpop.f32.mrf.mxu0
    %v6199 = vadd.f32 %v5566, %v6198
    %v6200 = vpop.f32.mrf.mxu0
    %6201 = vdwg.mxu0
    %6202 = vmatpush.bf16.msra.mxu0 0
    %6203 = vmatpush.bf16.msra.mxu0 0
    %6204 = vmatpush.bf16.msra.mxu0 0
    %6205 = vmatpush.bf16.msra.mxu0 0
    %6206 = vmatpush.bf16.msra.mxu0 %v5993
    %6207 = vmatpush.bf16.msra.mxu0 %v5857
    %6208 = vmatpush.bf16.msra.mxu0 %v5837
    %6209 = vmatpush.bf16.msra.mxu0 %v5817
    %6210 = vmatmul.bf16.gmra.mxu0 %v5944
    %v6211 = vpop.f32.mrf.mxu0
    %v6212 = vadd.f32 %v5567, %v6211
    %v6213 = vpop.f32.mrf.mxu0
    %6214 = vdwg.mxu0
    %6215 = vmatpush.bf16.msra.mxu0 0
    %6216 = vmatpush.bf16.msra.mxu0 0
    %6217 = vmatpush.bf16.msra.mxu0 0
    %6218 = vmatpush.bf16.msra.mxu0 0
    %6219 = vmatpush.bf16.msra.mxu0 %v5996
    %6220 = vmatpush.bf16.msra.mxu0 %v5858
    %6221 = vmatpush.bf16.msra.mxu0 %v5838
    %6222 = vmatpush.bf16.msra.mxu0 %v5818
    %6223 = vmatmul.bf16.gmra.mxu0 %v5944
    %v6224 = vpop.f32.mrf.mxu0
    %v6225 = vadd.f32 %v5568, %v6224
    %v6226 = vpop.f32.mrf.mxu0
    %6227 = vdwg.mxu0
    %6228 = vmatpush.bf16.msra.mxu0 0
    %6229 = vmatpush.bf16.msra.mxu0 0
    %6230 = vmatpush.bf16.msra.mxu0 0
    %6231 = vmatpush.bf16.msra.mxu0 0
    %6232 = vmatpush.bf16.msra.mxu0 %v5999
    %6233 = vmatpush.bf16.msra.mxu0 %v5859
    %6234 = vmatpush.bf16.msra.mxu0 %v5839
    %6235 = vmatpush.bf16.msra.mxu0 %v5819
    %6236 = vmatmul.bf16.gmra.mxu0 %v5944
    %v6237 = vpop.f32.mrf.mxu0
    %v6238 = vadd.f32 %v5569, %v6237
    %v6239 = vpop.f32.mrf.mxu0
    %6240 = vdwg.mxu0
    %6241 = vmatpush.bf16.msra.mxu0 0
    %6242 = vmatpush.bf16.msra.mxu0 0
    %6243 = vmatpush.bf16.msra.mxu0 0
    %6244 = vmatpush.bf16.msra.mxu0 0
    %6245 = vmatpush.bf16.msra.mxu0 %v6002
    %6246 = vmatpush.bf16.msra.mxu0 %v5860
    %6247 = vmatpush.bf16.msra.mxu0 %v5840
    %6248 = vmatpush.bf16.msra.mxu0 %v5820
    %6249 = vmatmul.bf16.gmra.mxu0 %v5944
    %v6250 = vpop.f32.mrf.mxu0
    %v6251 = vadd.f32 %v5570, %v6250
    %v6252 = vpop.f32.mrf.mxu0
    %6253 = vdwg.mxu0
    %6254 = vmatpush.bf16.msra.mxu0 0
    %6255 = vmatpush.bf16.msra.mxu0 0
    %6256 = vmatpush.bf16.msra.mxu0 0
    %6257 = vmatpush.bf16.msra.mxu0 0
    %6258 = vmatpush.bf16.msra.mxu0 %v6005
    %6259 = vmatpush.bf16.msra.mxu0 %v5861
    %6260 = vmatpush.bf16.msra.mxu0 %v5841
    %6261 = vmatpush.bf16.msra.mxu0 %v5821
    %6262 = vmatmul.bf16.gmra.mxu0 %v5944
    %v6263 = vpop.f32.mrf.mxu0
    %v6264 = vadd.f32 %v5571, %v6263
    %v6265 = vpop.f32.mrf.mxu0
    %6266 = vdwg.mxu0
    %6270 = vrot.lane.b32.xlu0 %v6043, 108
    %v6271 = vpop.permute.xlu0 %6270
    %6272 = vrot.lane.b32.xlu0 %v6056, 108
    %v6273 = vpop.permute.xlu0 %6272
    %6274 = vrot.lane.b32.xlu0 %v6069, 108
    %v6275 = vpop.permute.xlu0 %6274
    %vm6276 = vcmask 883712
    %v6277 = vsel %vm6276, %v6271, %v6273
    %v6278 = vsel %vm6276, %v6273, %v6275
    %v6282 = vmax.f32 %v6017, %v6277
    %v6283 = vmax.f32 %v6030, %v6278
    %v6284 = vmax.f32 %v6043, %v6275
    %6287 = vrot.lane.b32.xlu0 %v6069, 88
    %v6288 = vpop.permute.xlu0 %6287
    %6289 = vrot.lane.b32.xlu0 %v6082, 88
    %v6290 = vpop.permute.xlu0 %6289
    %6291 = vrot.lane.b32.xlu0 %v6095, 88
    %v6292 = vpop.permute.xlu0 %6291
    %vm6293 = vcmask 719872
    %v6294 = vsel %vm6293, %v6288, %v6290
    %v6295 = vsel %vm6293, %v6290, %v6292
    %v6299 = vmax.f32 %v6282, %v6294
    %v6300 = vmax.f32 %v6283, %v6295
    %v6301 = vmax.f32 %v6284, %v6292
    %v6302 = vsub.f32 %v6017, %v6299
    %v6303 = vsub.f32 %v6030, %v6300
    %v6304 = vsub.f32 %v6043, %v6301
    %v6305 = vmul.f32 %v6302, 1.442695
    %v6306 = vpow.pop %v6305
    %v6307 = vmul.f32 %v6303, 1.442695
    %v6308 = vpow.pop %v6307
    %v6309 = vmul.f32 %v6304, 1.442695
    %v6310 = vpow.pop %v6309
    %6314 = vrot.lane.b32.xlu0 %v6299, 20
    %v6315 = vpop.permute.xlu0 %6314
    %6316 = vrot.lane.b32.xlu0 %v6300, 20
    %v6317 = vpop.permute.xlu0 %6316
    %6318 = vrot.lane.b32.xlu0 %v6301, 20
    %v6319 = vpop.permute.xlu0 %6318
    %v6320 = vsel %vm602, %v6315, %v6317
    %v6321 = vsel %vm602, %v6317, %v6319
    %v6325 = vsub.f32 %v6043, %v6315
    %v6326 = vsub.f32 %v6056, %v6320
    %v6327 = vsub.f32 %v6069, %v6321
    %v6328 = vmul.f32 %v6325, 1.442695
    %v6329 = vpow.pop %v6328
    %v6330 = vmul.f32 %v6326, 1.442695
    %v6331 = vpow.pop %v6330
    %v6332 = vmul.f32 %v6327, 1.442695
    %v6333 = vpow.pop %v6332
    %6334 = vrot.lane.b32.xlu0 %v6299, 40
    %v6335 = vpop.permute.xlu0 %6334
    %6336 = vrot.lane.b32.xlu0 %v6300, 40
    %v6337 = vpop.permute.xlu0 %6336
    %6338 = vrot.lane.b32.xlu0 %v6301, 40
    %v6339 = vpop.permute.xlu0 %6338
    %vm6340 = vcmask 326656
    %v6341 = vsel %vm6340, %v6335, %v6337
    %v6342 = vsel %vm6340, %v6337, %v6339
    %v6346 = vsub.f32 %v6069, %v6335
    %v6347 = vsub.f32 %v6082, %v6341
    %v6348 = vsub.f32 %v6095, %v6342
    %v6349 = vmul.f32 %v6346, 1.442695
    %v6350 = vpow.pop %v6349
    %v6351 = vmul.f32 %v6347, 1.442695
    %v6352 = vpow.pop %v6351
    %v6353 = vmul.f32 %v6348, 1.442695
    %v6354 = vpow.pop %v6353
    %6358 = vrot.lane.b32.xlu0 %v6329, 108
    %v6359 = vpop.permute.xlu0 %6358
    %6360 = vrot.lane.b32.xlu0 %v6331, 108
    %v6361 = vpop.permute.xlu0 %6360
    %6362 = vrot.lane.b32.xlu0 %v6333, 108
    %v6363 = vpop.permute.xlu0 %6362
    %v6364 = vsel %vm6276, %v6359, %v6361
    %v6365 = vsel %vm6276, %v6361, %v6363
    %v6369 = vadd.f32 %v6306, %v6364
    %v6370 = vadd.f32 %v6308, %v6365
    %v6371 = vadd.f32 %v6310, %v6363
    %6375 = vrot.lane.b32.xlu0 %v6350, 88
    %v6376 = vpop.permute.xlu0 %6375
    %6377 = vrot.lane.b32.xlu0 %v6352, 88
    %v6378 = vpop.permute.xlu0 %6377
    %6379 = vrot.lane.b32.xlu0 %v6354, 88
    %v6380 = vpop.permute.xlu0 %6379
    %v6381 = vsel %vm6293, %v6376, %v6378
    %v6382 = vsel %vm6293, %v6378, %v6380
    %v6386 = vadd.f32 %v6369, %v6381
    %v6387 = vadd.f32 %v6370, %v6382
    %v6388 = vadd.f32 %v6371, %v6380
    %v6389 = vrcp.pop %v6386
    %v6390 = vrcp.pop %v6387
    %v6391 = vrcp.pop %v6388
    %v6392 = vmul.f32 %v6306, %v6389
    %v6393 = vmul.f32 %v6308, %v6390
    %v6394 = vmul.f32 %v6310, %v6391
    %v6395 = vpack.c.bf16 %v6393, %v6392
    %v6396 = vpack.c.bf16 %v6394, %v6394
    %6397 = vst [vmem:[#allocation13] sm:$0xff] %v6395
    %vm6398 = vcmask 158720
    %6399 = vst.msk [vmem:[#allocation13 + $0x8] sm:$0xf] %vm6398, %v6396
    %6403 = vrot.lane.b32.xlu0 %v6389, 20
    %v6404 = vpop.permute.xlu0 %6403
    %6405 = vrot.lane.b32.xlu0 %v6390, 20
    %v6406 = vpop.permute.xlu0 %6405
    %6407 = vrot.lane.b32.xlu0 %v6391, 20
    %v6408 = vpop.permute.xlu0 %6407
    %v6409 = vsel %vm602, %v6404, %v6406
    %v6410 = vsel %vm602, %v6406, %v6408
    %v6414 = vmul.f32 %v6329, %v6404
    %v6415 = vmul.f32 %v6331, %v6409
    %v6416 = vmul.f32 %v6333, %v6410
    %v6417 = vpack.c.bf16 %v6415, %v6414
    %v6418 = vpack.c.bf16 %v6416, %v6416
    %vm6419 = vcmask 1043616
    %vm6420 = vcmask 1047556
    %vm6421 = vmor %vm6420, %vm6419
    %6422 = vst.msk [vmem:[#allocation13 + $0x8] sm:$0xff] %vm6421, %v6417
    %vm6423 = vcmask 322560
    %6424 = vst.msk [vmem:[#allocation13 + $0x10] sm:$0xf] %vm6423, %v6418
    %6425 = vrot.lane.b32.xlu0 %v6389, 40
    %v6426 = vpop.permute.xlu0 %6425
    %6427 = vrot.lane.b32.xlu0 %v6390, 40
    %v6428 = vpop.permute.xlu0 %6427
    %6429 = vrot.lane.b32.xlu0 %v6391, 40
    %v6430 = vpop.permute.xlu0 %6429
    %v6431 = vsel %vm6340, %v6426, %v6428
    %v6432 = vsel %vm6340, %v6428, %v6430
    %v6436 = vmul.f32 %v6350, %v6426
    %v6437 = vmul.f32 %v6352, %v6431
    %v6438 = vmul.f32 %v6354, %v6432
    %v6439 = vpack.c.bf16 %v6437, %v6436
    %v6440 = vpack.c.bf16 %v6438, %v6438
    %vm6441 = vcmask 1043776
    %vm6442 = vmor %vm6420, %vm6441
    %6443 = vst.msk [vmem:[#allocation13 + $0x10] sm:$0xff] %vm6442, %v6439
    %vm6444 = vcmask 486400
    %6445 = vst.msk [vmem:[#allocation13 + $0x18] sm:$0xf] %vm6444, %v6440
    %v6446 = vpack.c.bf16 %v6108, %v6095
    %v6447 = vpack.c.bf16 %v6134, %v6121
    %v6448 = vpack.c.bf16 %v6147, %v6147
    %vm6449 = vcmask 1043936
    %vm6450 = vmor %vm6420, %vm6449
    %6451 = vst.msk [vmem:[#allocation13 + $0x18] sm:$0xff] %vm6450, %v6446
    %6452 = vst [vmem:[#allocation13 + $0x20] sm:$0xff] %v6447
    %vm6453 = vcmask 814080
    %6454 = vst.msk [vmem:[#allocation13 + $0x28] sm:$0xf] %vm6453, %v6448
    %v6455 = vmul.f32 %v6147, 0.5
    %v6456 = vmul.f32 %v6160, 0.5
    %v6457 = vmul.f32 %v6173, 0.5
    %v6458 = vmul.f32 %v6186, 0.5
    %v6459 = vmul.f32 %v6199, 0.5
    %v6460 = vmul.f32 %v6212, 0.5
    %v6461 = vtanh.pop %v6455
    %v6462 = vtanh.pop %v6456
    %v6463 = vtanh.pop %v6457
    %v6464 = vtanh.pop %v6458
    %v6465 = vtanh.pop %v6459
    %v6466 = vtanh.pop %v6460
    %v6467 = vadd.f32 %v6461, 1.0
    %v6468 = vadd.f32 %v6462, 1.0
    %v6469 = vadd.f32 %v6463, 1.0
    %v6470 = vadd.f32 %v6464, 1.0
    %v6471 = vadd.f32 %v6465, 1.0
    %v6472 = vadd.f32 %v6466, 1.0
    %v6473 = vmul.f32 %v6467, 0.5
    %v6474 = vmul.f32 %v6468, 0.5
    %v6475 = vmul.f32 %v6469, 0.5
    %v6476 = vmul.f32 %v6470, 0.5
    %v6477 = vmul.f32 %v6471, 0.5
    %v6478 = vmul.f32 %v6472, 0.5
    %v6479 = vmul.f32 %v6473, 0.8
    %v6480 = vmul.f32 %v6474, 0.8
    %v6481 = vmul.f32 %v6475, 0.8
    %v6482 = vmul.f32 %v6476, 0.8
    %v6483 = vmul.f32 %v6477, 0.8
    %v6484 = vmul.f32 %v6478, 0.8
    %v6485 = vpack.c.bf16 %v6480, %v6479
    %v6486 = vpack.c.bf16 %v6482, %v6481
    %v6487 = vpack.c.bf16 %v6484, %v6483
    %vm6488 = vcmask 1044256
    %vm6489 = vmor %vm6420, %vm6488
    %6490 = vst.msk [vmem:[#allocation13 + $0x28] sm:$0xff] %vm6489, %v6485
    %6491 = vst [vmem:[#allocation13 + $0x30] sm:$0xff] %v6486
    %vm6492 = vcmask 1043456
    %vm6493 = vcmask 97284
    %vm6494 = vmor %vm6493, %vm6492
    %6495 = vst.msk [vmem:[#allocation13 + $0x38] sm:$0xff] %vm6494, %v6487
    %v6496 = vpack.c.bf16 %v6225, %v6212
    %v6497 = vpack.c.bf16 %v6238, %v6238
    %vm6498 = vcmask 1043552
    %vm6499 = vmor %vm6420, %vm6498
    %6500 = vst.msk [vmem:[#allocation13 + $0x3c] sm:$0xff] %vm6499, %v6496
    %vm6501 = vcmask 257024
    %6502 = vst.msk [vmem:[#allocation13 + $0x44] sm:$0xf] %vm6501, %v6497
    %v6503 = vmax.f32 %v6238, 0.0
    %v6504 = vmax.f32 %v6251, 0.0
    %v6505 = vmax.f32 %v6264, 0.0
    %v6506 = vand.u32 2147483647, %v6238
    %v6507 = vand.u32 2147483647, %v6251
    %v6508 = vand.u32 2147483647, %v6264
    %v6509 = vsub.f32 0.0, %v6506
    %v6510 = vsub.f32 0.0, %v6507
    %v6511 = vsub.f32 0.0, %v6508
    %v6512 = vmul.f32 %v6509, 1.442695
    %v6513 = vpow.pop %v6512
    %v6514 = vmul.f32 %v6510, 1.442695
    %v6515 = vpow.pop %v6514
    %v6516 = vmul.f32 %v6511, 1.442695
    %v6517 = vpow.pop %v6516
    %v6518 = vadd.f32 %v6513, 1.0
    %v6519 = vadd.f32 %v6515, 1.0
    %v6520 = vadd.f32 %v6517, 1.0
    %v6521 = vlog2.pop %v6518
    %v6522 = vmul.f32 %v6521, 0.6931472
    %v6523 = vlog2.pop %v6519
    %v6524 = vmul.f32 %v6523, 0.6931472
    %v6525 = vlog2.pop %v6520
    %v6526 = vmul.f32 %v6525, 0.6931472
    %v6527 = vadd.f32 %v6503, %v6522
    %v6528 = vadd.f32 %v6504, %v6524
    %v6529 = vadd.f32 %v6505, %v6526
    %v6530 = vpack.c.bf16 %v6528, %v6527
    %v6531 = vpack.c.bf16 %v6529, %v6529
    %vm6532 = vcmask 1043712
    %vm6533 = vmor %vm6420, %vm6532
    %6534 = vst.msk [vmem:[#allocation13 + $0x44] sm:$0xff] %vm6533, %v6530
    %vm6535 = vcmask 420864
    %6536 = vst.msk [vmem:[#allocation13 + $0x4c] sm:$0xf] %vm6535, %v6531
    // Predicated region
    $region102: #{tpu_custom_call.1} parent=1 // pred_check
      _
    $region103: #{tpu_custom_call.1} parent=1 // pred_check_branch
      %6538 = sbr.rel (0) target = $region105
    $region104: #{tpu_custom_call.1} parent=1 // pred_region
      _
    $region105: #{tpu_custom_call.1} parent=1 // pred_fallthru
      _
    // Predicated region
    $region106: #{tpu_custom_call.1} parent=1 // pred_check
      _
    $region107: #{tpu_custom_call.1} parent=1 // pred_check_branch
      %6540 = sbr.rel (0) target = $region109
    $region108: #{tpu_custom_call.1} parent=1 // pred_region
      %6542 = vsyncadd [#allocation4], 0
      %s6544 = sshll.u32 [#allocation13], 4
      %s6545 = int_to_ptr.vmem [resolvable:$true] %s6544
      %s6546 = sshll.u32 %s20, 4
      %s6547 = int_to_ptr.hbm [resolvable:$true] %s6546
      %6549 = dma.vmem_to_hbm [thread:$0]  %s6545, 1280, %s6547, [#allocation4]
    $region109: #{tpu_custom_call.1} parent=1 // pred_fallthru
      _
    // Predicated region
    $region110: #{tpu_custom_call.1} parent=1 // pred_check
      _
    $region111: #{tpu_custom_call.1} parent=1 // pred_check_branch
      %6551 = sbr.rel (0) target = $region113
    $region112: #{tpu_custom_call.1} parent=1 // pred_region
      _
    $region113: #{tpu_custom_call.1} parent=1 // pred_fallthru
      _
    // Predicated region
    $region114: #{tpu_custom_call.1} parent=1 // pred_check
      _
    $region115: #{tpu_custom_call.1} parent=1 // pred_check_branch
      %6553 = sbr.rel (0) target = $region117
    $region116: #{tpu_custom_call.1} parent=1 // pred_region
      %6555 = dma.done [#allocation4], 1280
    $region117: #{tpu_custom_call.1} parent=1 // pred_fallthru
      _
    %6556 = vsyncpa [#allocation3], 1
    %6557 = vsyncpa [#allocation6], 1
    %6558 = vsyncpa [#allocation9], 1
    %6559 = vsyncpa [#allocation12], 1
    %6560 = vsyncpa [#allocation4], 1

</llo_original>
